<compile_context>
chip_gen: v7x
topology: tpu7x:2x2x1
jax: 0.10.0
libtpu: 0.0.40
codegen_flags: <defaults>
</compile_context>

<pallas_src>
import functools

import jax
import jax.numpy as jnp
from jax.experimental import pallas as pl
from jax.experimental.pallas import tpu as pltpu


def _round_up(x, m):
    return ((x + m - 1) // m) * m


def _folded_mlp_kernel(idx_ref, tbl_ref, b1_ref, w2_ref, b2_ref, out_ref,
                       *, seg_layout):
    """One-hot MXU gather against the folded table, then tanh + Linear.

    idx_ref : [TILE_B, 3*W] int32  token ids, column k = s*W + w
    tbl_ref : [R, H_pad]           folded (embedding x W1) table, VMEM resident
    b1_ref  : [1, H_pad] f32       hidden bias (zero in padded columns)
    w2_ref  : [H_pad, L]           output weight, transposed (zero padded rows)
    b2_ref  : [1, L] f32           output bias
    out_ref : [TILE_B, L] f32      logits
    seg_layout : static tuple of (index column, row offset, padded width)
    """
    idx = idx_ref[...]                                    # [TILE_B, 3*W] int32
    tile_b = idx.shape[0]
    h_pad = tbl_ref.shape[1]

    acc = jnp.zeros((tile_b, h_pad), jnp.float32)
    for col, off, width in seg_layout:                    # static unrolled
        ids = idx[:, col:col + 1]                         # [TILE_B, 1]
        lanes = jax.lax.broadcasted_iota(jnp.int32, (tile_b, width), 1)
        onehot = (lanes == ids).astype(tbl_ref.dtype)     # VPU compare
        acc = acc + jnp.dot(onehot, tbl_ref[off:off + width, :],
                            preferred_element_type=jnp.float32)   # MXU gather

    h = jnp.tanh(acc + b1_ref[...])                       # EUP; pads stay 0
    y = jnp.dot(h.astype(w2_ref.dtype), w2_ref[...],
                preferred_element_type=jnp.float32)       # MXU
    out_ref[...] = (y + b2_ref[...]).astype(out_ref.dtype)


def _pick_tile_b(batch):
    # Large tiles amortize the ~0.35 us per-grid-step overhead; >= 2 grid
    # steps (when batch allows) so v7x's "parallel" axis uses both TCs;
    # multiple of 16 keeps bf16 intermediates sublane-aligned.
    if batch <= 16:
        return 16
    if batch <= 512:
        return _round_up(pl.cdiv(batch, 2), 16)
    return min(4096, _round_up(pl.cdiv(batch, 2), 256))


def window_model_with_subwords_forward(x, params, *, tile_b=None,
                                        matmul_dtype=jnp.bfloat16):
    """x: int [B, 3, W]; params: dict of f32 weights. Returns f32 [B, L]."""
    word_tbl = params["embedding"]            # [tokens_dim, E]
    pre_tbl = params["prefix_embedding"]      # [prefix_dim, E]
    suf_tbl = params["suffix_embedding"]      # [suffix_dim, E]
    w1 = params["hidden_w"]                   # [H, W*E]  (torch Linear layout)
    b1 = params["hidden_b"]                   # [H]
    w2 = params["output_w"]                   # [L, H]
    b2 = params["output_b"]                   # [L]

    B, three, W = x.shape
    assert three == 3
    E = word_tbl.shape[1]
    H = w1.shape[0]
    L = w2.shape[0]
    assert w1.shape[1] == W * E
    h_pad = _round_up(H, 128)

    # ---- Fold the embedding tables into W1 (weight prep; in a real serving
    # path this is computed once, offline).  Segment k = s*W + w holds
    # Table_s @ W1[:, w*E:(w+1)*E].T, lane-padded to a multiple of 128 rows so
    # the in-kernel one-hot is only ~vocab_s wide and MXU K stays aligned.
    tables = (word_tbl, pre_tbl, suf_tbl)
    seg_layout = []                 # (index column, row offset, padded width)
    blocks = []
    row_off = 0
    for s, tbl in enumerate(tables):
        v = tbl.shape[0]
        v_pad = _round_up(v, 128)
        for w in range(W):
            fold = tbl @ w1[:, w * E:(w + 1) * E].T             # [V_s, H]
            blk = jnp.zeros((v_pad, h_pad), jnp.float32).at[:v, :H].set(fold)
            blocks.append(blk)
            seg_layout.append((s * W + w, row_off, v_pad))
            row_off += v_pad
    folded = jnp.concatenate(blocks, axis=0).astype(matmul_dtype)  # [R, H_pad]
    R = row_off

    b1_p = jnp.zeros((1, h_pad), jnp.float32).at[:, :H].set(b1)
    w2_p = jnp.zeros((h_pad, L), jnp.float32).at[:H, :].set(w2.T)
    w2_p = w2_p.astype(matmul_dtype)
    b2_p = b2.reshape(1, L).astype(jnp.float32)

    # ---- Stream only int32 indices.  [B,3,W] -> [B,3*W] is a free row-major
    # reshape (column k = s*W + w), so no extra XLA op / HBM round trip.
    n_lookups = 3 * W
    idx = x.reshape(B, n_lookups).astype(jnp.int32)

    if tile_b is None:
        tile_b = _pick_tile_b(B)
    assert tile_b % 16 == 0, "tile_b must be sublane-aligned for bf16 packing"
    n_tiles = pl.cdiv(B, tile_b)
    b_pad = n_tiles * tile_b
    if b_pad != B:
        idx = jnp.pad(idx, ((0, b_pad - B), (0, 0)))    # pad rows gather row 0

    itemsize = jnp.dtype(matmul_dtype).itemsize
    cost = pl.CostEstimate(
        flops=2 * b_pad * (R * h_pad + h_pad * L) + b_pad * n_lookups * 128,
        transcendentals=b_pad * h_pad,
        bytes_accessed=(b_pad * n_lookups * 4            # index stream
                        + b_pad * L * 4                  # logits
                        + R * h_pad * itemsize           # folded table
                        + h_pad * L * itemsize
                        + (h_pad + L) * 4),              # biases
    )

    kernel = functools.partial(_folded_mlp_kernel,
                               seg_layout=tuple(seg_layout))

    out = pl.pallas_call(
        kernel,
        out_shape=jax.ShapeDtypeStruct((b_pad, L), jnp.float32),
        grid=(n_tiles,),
        in_specs=[
            pl.BlockSpec((tile_b, n_lookups), lambda i: (i, 0)),  # streamed ids
            # Resident operands (constant index_map).
            # TODO(synk): mark these pipeline_mode=pl.Buffered(1) once the
            # folded table is large enough that the redundant second VMEM
            # buffer matters on v7x's 64 MiB VMEM.
            pl.BlockSpec((R, h_pad), lambda i: (0, 0)),           # folded table
            pl.BlockSpec((1, h_pad), lambda i: (0, 0)),           # b1
            pl.BlockSpec((h_pad, L), lambda i: (0, 0)),           # W2^T
            pl.BlockSpec((1, L), lambda i: (0, 0)),               # b2
        ],
        out_specs=pl.BlockSpec((tile_b, L), lambda i: (i, 0)),
        compiler_params=pltpu.CompilerParams(
            dimension_semantics=("parallel",)),
        cost_estimate=cost,
    )(idx, folded, b1_p, w2_p, b2_p)

    return out[:B] if b_pad != B else out


def _reference_forward(x, params):
    """Pure-JAX reference matching the PyTorch module."""
    we = params["embedding"][x[:, 0, :]]
    pe = params["prefix_embedding"][x[:, 1, :]]
    se = params["suffix_embedding"][x[:, 2, :]]
    emb = (we + pe + se).reshape(x.shape[0], -1)
    h = jnp.tanh(emb @ params["hidden_w"].T + params["hidden_b"])
    return h @ params["output_w"].T + params["output_b"]


if __name__ == "__main__":
    # Small, deterministic config consistent with the module.
    batch = 500                      # non-multiple of tile -> exercises padding
    window_size = 2
    W = 2 * window_size + 1          # 5
    embedding_dim = 32
    hidden_dim = 32
    labels_dim = 8
    tokens_dim = 100
    prefix_dim = 50
    suffix_dim = 50
    input_dim = W * embedding_dim    # 160

    key = jax.random.PRNGKey(0)
    keys = jax.random.split(key, 8)
    params = {
        "embedding": jax.random.normal(keys[0], (tokens_dim, embedding_dim), jnp.float32) * 0.1,
        "prefix_embedding": jax.random.normal(keys[1], (prefix_dim, embedding_dim), jnp.float32) * 0.1,
        "suffix_embedding": jax.random.normal(keys[2], (suffix_dim, embedding_dim), jnp.float32) * 0.1,
        "hidden_w": jax.random.normal(keys[3], (hidden_dim, input_dim), jnp.float32) * 0.05,
        "hidden_b": jax.random.normal(keys[4], (hidden_dim,), jnp.float32) * 0.05,
        "output_w": jax.random.normal(keys[5], (labels_dim, hidden_dim), jnp.float32) * 0.05,
        "output_b": jax.random.normal(keys[6], (labels_dim,), jnp.float32) * 0.05,
    }

    # Input token indices: [B, 3, W] int32.
    x = jnp.stack(
        [
            jax.random.randint(keys[7], (batch, W), 0, tokens_dim),
            jax.random.randint(jax.random.fold_in(keys[7], 1), (batch, W), 0, prefix_dim),
            jax.random.randint(jax.random.fold_in(keys[7], 2), (batch, W), 0, suffix_dim),
        ],
        axis=1,
    ).astype(jnp.int32)

    fwd_f32 = jax.jit(functools.partial(
        window_model_with_subwords_forward, matmul_dtype=jnp.float32))
    fwd_bf16 = jax.jit(functools.partial(
        window_model_with_subwords_forward, matmul_dtype=jnp.bfloat16))

    y_ref = _reference_forward(x, params)

    # f32 path: strict accuracy (folding only reorders f32 sums).
    y32 = jax.block_until_ready(fwd_f32(x, params))
    assert y32.shape == (batch, labels_dim)
    assert jnp.allclose(y32, y_ref, atol=1e-5, rtol=1e-5)

    # bf16 MXU-operand path (default; all TPU gens): relaxed tolerance.
    ybf = jax.block_until_ready(fwd_bf16(x, params))
    assert ybf.shape == (batch, labels_dim)
    assert jnp.allclose(ybf, y_ref, atol=1e-2, rtol=1e-2)

    print("KERNEL_OK")
</pallas_src>

<mosaic_0001>
module attributes {stable_mosaic.version = 11 : i64} {
  func.func @_folded_mlp_kernel(%arg0: i32, %arg1: memref<256x15xi32, #tpu.memory_space<vmem>>, %arg2: memref<1920x128xf32, #tpu.memory_space<vmem>>, %arg3: memref<1x128xf32, #tpu.memory_space<vmem>>, %arg4: memref<128x8xf32, #tpu.memory_space<vmem>>, %arg5: memref<1x8xf32, #tpu.memory_space<vmem>>, %arg6: memref<256x8xf32, #tpu.memory_space<vmem>>) attributes {dimension_semantics = [#tpu.dimension_semantics<parallel>], iteration_bounds = array<i64: 2>, scalar_prefetch = 0 : i64, scratch_operands = 0 : i64, tpu.core_type = #tpu.core_type<tc>, window_params = [{transform_indices = @transform_0, window_bounds = array<i64: 256, 15>}, {pipeline_mode = #tpu.pipeline_mode<synchronous>, transform_indices = @transform_1, window_bounds = array<i64: 1920, 128>}, {pipeline_mode = #tpu.pipeline_mode<synchronous>, transform_indices = @transform_2, window_bounds = array<i64: 1, 128>}, {pipeline_mode = #tpu.pipeline_mode<synchronous>, transform_indices = @transform_3, window_bounds = array<i64: 128, 8>}, {pipeline_mode = #tpu.pipeline_mode<synchronous>, transform_indices = @transform_4, window_bounds = array<i64: 1, 8>}, {transform_indices = @transform_5, window_bounds = array<i64: 256, 8>}]} {
    %c0 = arith.constant 0 : index
    %c0_0 = arith.constant 0 : index
    %0 = vector.load %arg1[%c0, %c0_0] : memref<256x15xi32, #tpu.memory_space<vmem>>, vector<256x15xi32>
    %cst = arith.constant 0.000000e+00 : f32
    %1 = vector.broadcast %cst : f32 to vector<256x128xf32>
    %2 = vector.extract_strided_slice %0 {offsets = [0, 0], sizes = [256, 1], strides = [1, 1]} : vector<256x15xi32> to vector<256x1xi32>
    %3 = tpu.iota {dimensions = array<i32: 1>} : vector<256x128xi32>
    %4 = vector.broadcast %2 : vector<256x1xi32> to vector<256x128xi32>
    %5 = arith.cmpi eq, %3, %4 : vector<256x128xi32>
    %6 = arith.extui %5 : vector<256x128xi1> to vector<256x128xi32>
    %7 = arith.sitofp %6 : vector<256x128xi32> to vector<256x128xf32>
    %c0_1 = arith.constant 0 : index
    %c0_2 = arith.constant 0 : index
    %8 = vector.load %arg2[%c0_1, %c0_2] : memref<1920x128xf32, #tpu.memory_space<vmem>>, vector<128x128xf32>
    %cst_3 = arith.constant dense<0.000000e+00> : vector<256x128xf32>
    %9 = tpu.matmul %7, %8, %cst_3 {dimension_numbers = #tpu.dot_dimension_numbers<[1], [0], [0], [1], [0, 0, 1, 1], [], []>} : vector<256x128xf32>, vector<128x128xf32>, vector<256x128xf32> -> vector<256x128xf32>
    %10 = arith.addf %1, %9 : vector<256x128xf32>
    %11 = vector.extract_strided_slice %0 {offsets = [0, 1], sizes = [256, 1], strides = [1, 1]} : vector<256x15xi32> to vector<256x1xi32>
    %12 = tpu.iota {dimensions = array<i32: 1>} : vector<256x128xi32>
    %13 = vector.broadcast %11 : vector<256x1xi32> to vector<256x128xi32>
    %14 = arith.cmpi eq, %12, %13 : vector<256x128xi32>
    %15 = arith.extui %14 : vector<256x128xi1> to vector<256x128xi32>
    %16 = arith.sitofp %15 : vector<256x128xi32> to vector<256x128xf32>
    %c128 = arith.constant 128 : index
    %c0_4 = arith.constant 0 : index
    %17 = vector.load %arg2[%c128, %c0_4] : memref<1920x128xf32, #tpu.memory_space<vmem>>, vector<128x128xf32>
    %cst_5 = arith.constant dense<0.000000e+00> : vector<256x128xf32>
    %18 = tpu.matmul %16, %17, %cst_5 {dimension_numbers = #tpu.dot_dimension_numbers<[1], [0], [0], [1], [0, 0, 1, 1], [], []>} : vector<256x128xf32>, vector<128x128xf32>, vector<256x128xf32> -> vector<256x128xf32>
    %19 = arith.addf %10, %18 : vector<256x128xf32>
    %20 = vector.extract_strided_slice %0 {offsets = [0, 2], sizes = [256, 1], strides = [1, 1]} : vector<256x15xi32> to vector<256x1xi32>
    %21 = tpu.iota {dimensions = array<i32: 1>} : vector<256x128xi32>
    %22 = vector.broadcast %20 : vector<256x1xi32> to vector<256x128xi32>
    %23 = arith.cmpi eq, %21, %22 : vector<256x128xi32>
    %24 = arith.extui %23 : vector<256x128xi1> to vector<256x128xi32>
    %25 = arith.sitofp %24 : vector<256x128xi32> to vector<256x128xf32>
    %c256 = arith.constant 256 : index
    %c0_6 = arith.constant 0 : index
    %26 = vector.load %arg2[%c256, %c0_6] : memref<1920x128xf32, #tpu.memory_space<vmem>>, vector<128x128xf32>
    %cst_7 = arith.constant dense<0.000000e+00> : vector<256x128xf32>
    %27 = tpu.matmul %25, %26, %cst_7 {dimension_numbers = #tpu.dot_dimension_numbers<[1], [0], [0], [1], [0, 0, 1, 1], [], []>} : vector<256x128xf32>, vector<128x128xf32>, vector<256x128xf32> -> vector<256x128xf32>
    %28 = arith.addf %19, %27 : vector<256x128xf32>
    %29 = vector.extract_strided_slice %0 {offsets = [0, 3], sizes = [256, 1], strides = [1, 1]} : vector<256x15xi32> to vector<256x1xi32>
    %30 = tpu.iota {dimensions = array<i32: 1>} : vector<256x128xi32>
    %31 = vector.broadcast %29 : vector<256x1xi32> to vector<256x128xi32>
    %32 = arith.cmpi eq, %30, %31 : vector<256x128xi32>
    %33 = arith.extui %32 : vector<256x128xi1> to vector<256x128xi32>
    %34 = arith.sitofp %33 : vector<256x128xi32> to vector<256x128xf32>
    %c384 = arith.constant 384 : index
    %c0_8 = arith.constant 0 : index
    %35 = vector.load %arg2[%c384, %c0_8] : memref<1920x128xf32, #tpu.memory_space<vmem>>, vector<128x128xf32>
    %cst_9 = arith.constant dense<0.000000e+00> : vector<256x128xf32>
    %36 = tpu.matmul %34, %35, %cst_9 {dimension_numbers = #tpu.dot_dimension_numbers<[1], [0], [0], [1], [0, 0, 1, 1], [], []>} : vector<256x128xf32>, vector<128x128xf32>, vector<256x128xf32> -> vector<256x128xf32>
    %37 = arith.addf %28, %36 : vector<256x128xf32>
    %38 = vector.extract_strided_slice %0 {offsets = [0, 4], sizes = [256, 1], strides = [1, 1]} : vector<256x15xi32> to vector<256x1xi32>
    %39 = tpu.iota {dimensions = array<i32: 1>} : vector<256x128xi32>
    %40 = vector.broadcast %38 : vector<256x1xi32> to vector<256x128xi32>
    %41 = arith.cmpi eq, %39, %40 : vector<256x128xi32>
    %42 = arith.extui %41 : vector<256x128xi1> to vector<256x128xi32>
    %43 = arith.sitofp %42 : vector<256x128xi32> to vector<256x128xf32>
    %c512 = arith.constant 512 : index
    %c0_10 = arith.constant 0 : index
    %44 = vector.load %arg2[%c512, %c0_10] : memref<1920x128xf32, #tpu.memory_space<vmem>>, vector<128x128xf32>
    %cst_11 = arith.constant dense<0.000000e+00> : vector<256x128xf32>
    %45 = tpu.matmul %43, %44, %cst_11 {dimension_numbers = #tpu.dot_dimension_numbers<[1], [0], [0], [1], [0, 0, 1, 1], [], []>} : vector<256x128xf32>, vector<128x128xf32>, vector<256x128xf32> -> vector<256x128xf32>
    %46 = arith.addf %37, %45 : vector<256x128xf32>
    %47 = vector.extract_strided_slice %0 {offsets = [0, 5], sizes = [256, 1], strides = [1, 1]} : vector<256x15xi32> to vector<256x1xi32>
    %48 = tpu.iota {dimensions = array<i32: 1>} : vector<256x128xi32>
    %49 = vector.broadcast %47 : vector<256x1xi32> to vector<256x128xi32>
    %50 = arith.cmpi eq, %48, %49 : vector<256x128xi32>
    %51 = arith.extui %50 : vector<256x128xi1> to vector<256x128xi32>
    %52 = arith.sitofp %51 : vector<256x128xi32> to vector<256x128xf32>
    %c640 = arith.constant 640 : index
    %c0_12 = arith.constant 0 : index
    %53 = vector.load %arg2[%c640, %c0_12] : memref<1920x128xf32, #tpu.memory_space<vmem>>, vector<128x128xf32>
    %cst_13 = arith.constant dense<0.000000e+00> : vector<256x128xf32>
    %54 = tpu.matmul %52, %53, %cst_13 {dimension_numbers = #tpu.dot_dimension_numbers<[1], [0], [0], [1], [0, 0, 1, 1], [], []>} : vector<256x128xf32>, vector<128x128xf32>, vector<256x128xf32> -> vector<256x128xf32>
    %55 = arith.addf %46, %54 : vector<256x128xf32>
    %56 = vector.extract_strided_slice %0 {offsets = [0, 6], sizes = [256, 1], strides = [1, 1]} : vector<256x15xi32> to vector<256x1xi32>
    %57 = tpu.iota {dimensions = array<i32: 1>} : vector<256x128xi32>
    %58 = vector.broadcast %56 : vector<256x1xi32> to vector<256x128xi32>
    %59 = arith.cmpi eq, %57, %58 : vector<256x128xi32>
    %60 = arith.extui %59 : vector<256x128xi1> to vector<256x128xi32>
    %61 = arith.sitofp %60 : vector<256x128xi32> to vector<256x128xf32>
    %c768 = arith.constant 768 : index
    %c0_14 = arith.constant 0 : index
    %62 = vector.load %arg2[%c768, %c0_14] : memref<1920x128xf32, #tpu.memory_space<vmem>>, vector<128x128xf32>
    %cst_15 = arith.constant dense<0.000000e+00> : vector<256x128xf32>
    %63 = tpu.matmul %61, %62, %cst_15 {dimension_numbers = #tpu.dot_dimension_numbers<[1], [0], [0], [1], [0, 0, 1, 1], [], []>} : vector<256x128xf32>, vector<128x128xf32>, vector<256x128xf32> -> vector<256x128xf32>
    %64 = arith.addf %55, %63 : vector<256x128xf32>
    %65 = vector.extract_strided_slice %0 {offsets = [0, 7], sizes = [256, 1], strides = [1, 1]} : vector<256x15xi32> to vector<256x1xi32>
    %66 = tpu.iota {dimensions = array<i32: 1>} : vector<256x128xi32>
    %67 = vector.broadcast %65 : vector<256x1xi32> to vector<256x128xi32>
    %68 = arith.cmpi eq, %66, %67 : vector<256x128xi32>
    %69 = arith.extui %68 : vector<256x128xi1> to vector<256x128xi32>
    %70 = arith.sitofp %69 : vector<256x128xi32> to vector<256x128xf32>
    %c896 = arith.constant 896 : index
    %c0_16 = arith.constant 0 : index
    %71 = vector.load %arg2[%c896, %c0_16] : memref<1920x128xf32, #tpu.memory_space<vmem>>, vector<128x128xf32>
    %cst_17 = arith.constant dense<0.000000e+00> : vector<256x128xf32>
    %72 = tpu.matmul %70, %71, %cst_17 {dimension_numbers = #tpu.dot_dimension_numbers<[1], [0], [0], [1], [0, 0, 1, 1], [], []>} : vector<256x128xf32>, vector<128x128xf32>, vector<256x128xf32> -> vector<256x128xf32>
    %73 = arith.addf %64, %72 : vector<256x128xf32>
    %74 = vector.extract_strided_slice %0 {offsets = [0, 8], sizes = [256, 1], strides = [1, 1]} : vector<256x15xi32> to vector<256x1xi32>
    %75 = tpu.iota {dimensions = array<i32: 1>} : vector<256x128xi32>
    %76 = vector.broadcast %74 : vector<256x1xi32> to vector<256x128xi32>
    %77 = arith.cmpi eq, %75, %76 : vector<256x128xi32>
    %78 = arith.extui %77 : vector<256x128xi1> to vector<256x128xi32>
    %79 = arith.sitofp %78 : vector<256x128xi32> to vector<256x128xf32>
    %c1024 = arith.constant 1024 : index
    %c0_18 = arith.constant 0 : index
    %80 = vector.load %arg2[%c1024, %c0_18] : memref<1920x128xf32, #tpu.memory_space<vmem>>, vector<128x128xf32>
    %cst_19 = arith.constant dense<0.000000e+00> : vector<256x128xf32>
    %81 = tpu.matmul %79, %80, %cst_19 {dimension_numbers = #tpu.dot_dimension_numbers<[1], [0], [0], [1], [0, 0, 1, 1], [], []>} : vector<256x128xf32>, vector<128x128xf32>, vector<256x128xf32> -> vector<256x128xf32>
    %82 = arith.addf %73, %81 : vector<256x128xf32>
    %83 = vector.extract_strided_slice %0 {offsets = [0, 9], sizes = [256, 1], strides = [1, 1]} : vector<256x15xi32> to vector<256x1xi32>
    %84 = tpu.iota {dimensions = array<i32: 1>} : vector<256x128xi32>
    %85 = vector.broadcast %83 : vector<256x1xi32> to vector<256x128xi32>
    %86 = arith.cmpi eq, %84, %85 : vector<256x128xi32>
    %87 = arith.extui %86 : vector<256x128xi1> to vector<256x128xi32>
    %88 = arith.sitofp %87 : vector<256x128xi32> to vector<256x128xf32>
    %c1152 = arith.constant 1152 : index
    %c0_20 = arith.constant 0 : index
    %89 = vector.load %arg2[%c1152, %c0_20] : memref<1920x128xf32, #tpu.memory_space<vmem>>, vector<128x128xf32>
    %cst_21 = arith.constant dense<0.000000e+00> : vector<256x128xf32>
    %90 = tpu.matmul %88, %89, %cst_21 {dimension_numbers = #tpu.dot_dimension_numbers<[1], [0], [0], [1], [0, 0, 1, 1], [], []>} : vector<256x128xf32>, vector<128x128xf32>, vector<256x128xf32> -> vector<256x128xf32>
    %91 = arith.addf %82, %90 : vector<256x128xf32>
    %92 = vector.extract_strided_slice %0 {offsets = [0, 10], sizes = [256, 1], strides = [1, 1]} : vector<256x15xi32> to vector<256x1xi32>
    %93 = tpu.iota {dimensions = array<i32: 1>} : vector<256x128xi32>
    %94 = vector.broadcast %92 : vector<256x1xi32> to vector<256x128xi32>
    %95 = arith.cmpi eq, %93, %94 : vector<256x128xi32>
    %96 = arith.extui %95 : vector<256x128xi1> to vector<256x128xi32>
    %97 = arith.sitofp %96 : vector<256x128xi32> to vector<256x128xf32>
    %c1280 = arith.constant 1280 : index
    %c0_22 = arith.constant 0 : index
    %98 = vector.load %arg2[%c1280, %c0_22] : memref<1920x128xf32, #tpu.memory_space<vmem>>, vector<128x128xf32>
    %cst_23 = arith.constant dense<0.000000e+00> : vector<256x128xf32>
    %99 = tpu.matmul %97, %98, %cst_23 {dimension_numbers = #tpu.dot_dimension_numbers<[1], [0], [0], [1], [0, 0, 1, 1], [], []>} : vector<256x128xf32>, vector<128x128xf32>, vector<256x128xf32> -> vector<256x128xf32>
    %100 = arith.addf %91, %99 : vector<256x128xf32>
    %101 = vector.extract_strided_slice %0 {offsets = [0, 11], sizes = [256, 1], strides = [1, 1]} : vector<256x15xi32> to vector<256x1xi32>
    %102 = tpu.iota {dimensions = array<i32: 1>} : vector<256x128xi32>
    %103 = vector.broadcast %101 : vector<256x1xi32> to vector<256x128xi32>
    %104 = arith.cmpi eq, %102, %103 : vector<256x128xi32>
    %105 = arith.extui %104 : vector<256x128xi1> to vector<256x128xi32>
    %106 = arith.sitofp %105 : vector<256x128xi32> to vector<256x128xf32>
    %c1408 = arith.constant 1408 : index
    %c0_24 = arith.constant 0 : index
    %107 = vector.load %arg2[%c1408, %c0_24] : memref<1920x128xf32, #tpu.memory_space<vmem>>, vector<128x128xf32>
    %cst_25 = arith.constant dense<0.000000e+00> : vector<256x128xf32>
    %108 = tpu.matmul %106, %107, %cst_25 {dimension_numbers = #tpu.dot_dimension_numbers<[1], [0], [0], [1], [0, 0, 1, 1], [], []>} : vector<256x128xf32>, vector<128x128xf32>, vector<256x128xf32> -> vector<256x128xf32>
    %109 = arith.addf %100, %108 : vector<256x128xf32>
    %110 = vector.extract_strided_slice %0 {offsets = [0, 12], sizes = [256, 1], strides = [1, 1]} : vector<256x15xi32> to vector<256x1xi32>
    %111 = tpu.iota {dimensions = array<i32: 1>} : vector<256x128xi32>
    %112 = vector.broadcast %110 : vector<256x1xi32> to vector<256x128xi32>
    %113 = arith.cmpi eq, %111, %112 : vector<256x128xi32>
    %114 = arith.extui %113 : vector<256x128xi1> to vector<256x128xi32>
    %115 = arith.sitofp %114 : vector<256x128xi32> to vector<256x128xf32>
    %c1536 = arith.constant 1536 : index
    %c0_26 = arith.constant 0 : index
    %116 = vector.load %arg2[%c1536, %c0_26] : memref<1920x128xf32, #tpu.memory_space<vmem>>, vector<128x128xf32>
    %cst_27 = arith.constant dense<0.000000e+00> : vector<256x128xf32>
    %117 = tpu.matmul %115, %116, %cst_27 {dimension_numbers = #tpu.dot_dimension_numbers<[1], [0], [0], [1], [0, 0, 1, 1], [], []>} : vector<256x128xf32>, vector<128x128xf32>, vector<256x128xf32> -> vector<256x128xf32>
    %118 = arith.addf %109, %117 : vector<256x128xf32>
    %119 = vector.extract_strided_slice %0 {offsets = [0, 13], sizes = [256, 1], strides = [1, 1]} : vector<256x15xi32> to vector<256x1xi32>
    %120 = tpu.iota {dimensions = array<i32: 1>} : vector<256x128xi32>
    %121 = vector.broadcast %119 : vector<256x1xi32> to vector<256x128xi32>
    %122 = arith.cmpi eq, %120, %121 : vector<256x128xi32>
    %123 = arith.extui %122 : vector<256x128xi1> to vector<256x128xi32>
    %124 = arith.sitofp %123 : vector<256x128xi32> to vector<256x128xf32>
    %c1664 = arith.constant 1664 : index
    %c0_28 = arith.constant 0 : index
    %125 = vector.load %arg2[%c1664, %c0_28] : memref<1920x128xf32, #tpu.memory_space<vmem>>, vector<128x128xf32>
    %cst_29 = arith.constant dense<0.000000e+00> : vector<256x128xf32>
    %126 = tpu.matmul %124, %125, %cst_29 {dimension_numbers = #tpu.dot_dimension_numbers<[1], [0], [0], [1], [0, 0, 1, 1], [], []>} : vector<256x128xf32>, vector<128x128xf32>, vector<256x128xf32> -> vector<256x128xf32>
    %127 = arith.addf %118, %126 : vector<256x128xf32>
    %128 = vector.extract_strided_slice %0 {offsets = [0, 14], sizes = [256, 1], strides = [1, 1]} : vector<256x15xi32> to vector<256x1xi32>
    %129 = tpu.iota {dimensions = array<i32: 1>} : vector<256x128xi32>
    %130 = vector.broadcast %128 : vector<256x1xi32> to vector<256x128xi32>
    %131 = arith.cmpi eq, %129, %130 : vector<256x128xi32>
    %132 = arith.extui %131 : vector<256x128xi1> to vector<256x128xi32>
    %133 = arith.sitofp %132 : vector<256x128xi32> to vector<256x128xf32>
    %c1792 = arith.constant 1792 : index
    %c0_30 = arith.constant 0 : index
    %134 = vector.load %arg2[%c1792, %c0_30] : memref<1920x128xf32, #tpu.memory_space<vmem>>, vector<128x128xf32>
    %cst_31 = arith.constant dense<0.000000e+00> : vector<256x128xf32>
    %135 = tpu.matmul %133, %134, %cst_31 {dimension_numbers = #tpu.dot_dimension_numbers<[1], [0], [0], [1], [0, 0, 1, 1], [], []>} : vector<256x128xf32>, vector<128x128xf32>, vector<256x128xf32> -> vector<256x128xf32>
    %136 = arith.addf %127, %135 : vector<256x128xf32>
    %c0_32 = arith.constant 0 : index
    %c0_33 = arith.constant 0 : index
    %137 = vector.load %arg3[%c0_32, %c0_33] : memref<1x128xf32, #tpu.memory_space<vmem>>, vector<1x128xf32>
    %138 = vector.broadcast %137 : vector<1x128xf32> to vector<256x128xf32>
    %139 = arith.addf %136, %138 : vector<256x128xf32>
    %140 = math.tanh %139 : vector<256x128xf32>
    %c0_34 = arith.constant 0 : index
    %c0_35 = arith.constant 0 : index
    %141 = vector.load %arg4[%c0_34, %c0_35] : memref<128x8xf32, #tpu.memory_space<vmem>>, vector<128x8xf32>
    %cst_36 = arith.constant dense<0.000000e+00> : vector<256x8xf32>
    %142 = tpu.matmul %140, %141, %cst_36 {dimension_numbers = #tpu.dot_dimension_numbers<[1], [0], [0], [1], [0, 0, 1, 1], [], []>} : vector<256x128xf32>, vector<128x8xf32>, vector<256x8xf32> -> vector<256x8xf32>
    %c0_37 = arith.constant 0 : index
    %c0_38 = arith.constant 0 : index
    %143 = vector.load %arg5[%c0_37, %c0_38] : memref<1x8xf32, #tpu.memory_space<vmem>>, vector<1x8xf32>
    %144 = vector.broadcast %143 : vector<1x8xf32> to vector<256x8xf32>
    %145 = arith.addf %142, %144 : vector<256x8xf32>
    %c0_39 = arith.constant 0 : index
    %c0_40 = arith.constant 0 : index
    %146 = vector.load %arg6[%c0_39, %c0_40] : memref<256x8xf32, #tpu.memory_space<vmem>>, vector<256x8xf32>
    tpu.vector_store %arg6[%c0_39, %c0_40], %145 {strides = array<i32>} : memref<256x8xf32, #tpu.memory_space<vmem>>, vector<256x8xf32>,
    return
  }
  func.func @transform_0(%arg0: i32) -> (i32, i32) {
    %c0_i32 = arith.constant 0 : i32
    %c0_i32_0 = arith.constant 0 : i32
    return %arg0, %c0_i32 : i32, i32
  }
  func.func @transform_1(%arg0: i32) -> (i32, i32) {
    %c0_i32 = arith.constant 0 : i32
    %c0_i32_0 = arith.constant 0 : i32
    %c0_i32_1 = arith.constant 0 : i32
    return %c0_i32, %c0_i32_0 : i32, i32
  }
  func.func @transform_2(%arg0: i32) -> (i32, i32) {
    %c0_i32 = arith.constant 0 : i32
    %c0_i32_0 = arith.constant 0 : i32
    %c0_i32_1 = arith.constant 0 : i32
    return %c0_i32, %c0_i32_0 : i32, i32
  }
  func.func @transform_3(%arg0: i32) -> (i32, i32) {
    %c0_i32 = arith.constant 0 : i32
    %c0_i32_0 = arith.constant 0 : i32
    %c0_i32_1 = arith.constant 0 : i32
    return %c0_i32, %c0_i32_0 : i32, i32
  }
  func.func @transform_4(%arg0: i32) -> (i32, i32) {
    %c0_i32 = arith.constant 0 : i32
    %c0_i32_0 = arith.constant 0 : i32
    %c0_i32_1 = arith.constant 0 : i32
    return %c0_i32, %c0_i32_0 : i32, i32
  }
  func.func @transform_5(%arg0: i32) -> (i32, i32) {
    %c0_i32 = arith.constant 0 : i32
    %c0_i32_0 = arith.constant 0 : i32
    return %arg0, %c0_i32 : i32, i32
  }
}

</mosaic_0001>

<llo_original>
// kernel: window_model_with_subwords_forward.1
$region0: #{window_model_with_subwords_forward.1}
  #allocation0 [shape = 'u32[]', space=smem, size = 0x4, offset = 0x4, fixed_abs, tag = 'smem constant byte address 0x4 - core index']
  #allocation1 [shape = 'u32[144,128]{1,0:T(1,128)}', space=vmem, size = 0x12000, scoped, tag = 'internal scratch']
  %s0 = inlined_call_operand.vmem [shape: s32[512,15], index: 0, kind: input, shape index: {}]
  %s1 = inlined_call_operand.vmem [shape: f32[1920,128], index: 1, kind: input, shape index: {}]
  %s2 = inlined_call_operand.vmem [shape: f32[1,128], index: 2, kind: input, shape index: {}]
  %s3 = inlined_call_operand.vmem [shape: f32[128,8], index: 3, kind: input, shape index: {}]
  %s4 = inlined_call_operand.vmem [shape: f32[1,8], index: 4, kind: input, shape index: {}]
  %s5 = inlined_call_operand.vmem [shape: f32[512,8], index: 5, kind: output, shape index: {}]
  %s6 = sld [smem:[#allocation0]]
  $region53: #{window_model_with_subwords_forward.1} parent=0
    _
  %s8 = ssub.s32 1, %s6
  %s9 = scalar_select 0, %s8, %s6
  loop: start=0, step=1, limit=4
  $region2: #{window_model_with_subwords_forward.1} parent=0 // loop_pre_header
    _
  $region3: #{window_model_with_subwords_forward.1} parent=0 // loop_header
    %s11 = sphi 0, %s15
    %p12 = scmp.ge.s32.totalorder %s11, 4
    %s21 = sphi 0, %s23
    %s24 = sphi 0, %s21
    %s25 = sphi 0, %s24
    %s41 = sphi 0, %s25
    %s45 = sphi 0, %s45
    %s47 = sphi 0, %s45
    %s48 = sphi 0, %s47
    %s62 = sphi 0, %s48
    %s66 = sphi 0, %s66
    %s68 = sphi 0, %s66
    %s69 = sphi 0, %s68
    %s83 = sphi 0, %s69
    %s87 = sphi 0, %s87
    %s89 = sphi 0, %s87
    %s90 = sphi 0, %s89
    %s104 = sphi 0, %s90
    %s108 = sphi 0, %s108
    %s110 = sphi 0, %s108
    %s111 = sphi 0, %s110
    %s125 = sphi 0, %s111
    %s131 = sphi 0, %s133
    %s134 = sphi 0, %s131
    %s135 = sphi 0, %s134
    %s151 = sphi 0, %s135
  $region4: #{window_model_with_subwords_forward.1} parent=0 // loop_header_branch
    %14 = sbr.rel (%p12) target = $region8
  $region5: #{window_model_with_subwords_forward.1} parent=0 // loop_body
    %s16 = ssub.s32 %s11, 1
    %s17 = ssub.s32 %s11, 2
    %s18 = sadd.s32 %s11, 1
    %s19 = ssub.s32 %s11, %s18
    %p20 = scmp.eq.s32.totalorder %s19, 0
    %s22 = sadd.s32 %s21, 1
    %s23 = scalar_select %p20, %s21, %s22
    %p26 = pneg %p20
    %p27 = scmp.eq.s32.totalorder %s11, 1
    %p28 = por %p26, %p27
    %p29 = scmp.ne.s32.totalorder %s21, %s24
    %p30 = scmp.eq.s32.totalorder %s11, 0
    %p31 = por %p29, %p30
    %p32 = scmp.ne.s32.totalorder %s21, %s24
    %p33 = scmp.eq.s32.totalorder %s16, 1
    %p34 = por %p32, %p33
    %p35 = scmp.ne.s32.totalorder %s24, %s25
    %p36 = scmp.eq.s32.totalorder %s16, 0
    %p37 = por %p35, %p36
    %p38 = scmp.ne.s32.totalorder %s24, %s25
    %p39 = scmp.eq.s32.totalorder %s17, 1
    %p40 = por %p38, %p39
    %p42 = scmp.ne.s32.totalorder %s25, %s41
    %p43 = scmp.eq.s32.totalorder %s17, 0
    %p44 = por %p42, %p43
    %s46 = sadd.s32 %s45, 1
    %p49 = scmp.eq.s32.totalorder %s11, 1
    %p50 = scmp.ne.s32.totalorder %s45, %s47
    %p51 = scmp.eq.s32.totalorder %s11, 0
    %p52 = por %p50, %p51
    %p53 = scmp.ne.s32.totalorder %s45, %s47
    %p54 = scmp.eq.s32.totalorder %s16, 1
    %p55 = por %p53, %p54
    %p56 = scmp.ne.s32.totalorder %s47, %s48
    %p57 = scmp.eq.s32.totalorder %s16, 0
    %p58 = por %p56, %p57
    %p59 = scmp.ne.s32.totalorder %s47, %s48
    %p60 = scmp.eq.s32.totalorder %s17, 1
    %p61 = por %p59, %p60
    %p63 = scmp.ne.s32.totalorder %s48, %s62
    %p64 = scmp.eq.s32.totalorder %s17, 0
    %p65 = por %p63, %p64
    %s67 = sadd.s32 %s66, 1
    %p70 = scmp.eq.s32.totalorder %s11, 1
    %p71 = scmp.ne.s32.totalorder %s66, %s68
    %p72 = scmp.eq.s32.totalorder %s11, 0
    %p73 = por %p71, %p72
    %p74 = scmp.ne.s32.totalorder %s66, %s68
    %p75 = scmp.eq.s32.totalorder %s16, 1
    %p76 = por %p74, %p75
    %p77 = scmp.ne.s32.totalorder %s68, %s69
    %p78 = scmp.eq.s32.totalorder %s16, 0
    %p79 = por %p77, %p78
    %p80 = scmp.ne.s32.totalorder %s68, %s69
    %p81 = scmp.eq.s32.totalorder %s17, 1
    %p82 = por %p80, %p81
    %p84 = scmp.ne.s32.totalorder %s69, %s83
    %p85 = scmp.eq.s32.totalorder %s17, 0
    %p86 = por %p84, %p85
    %s88 = sadd.s32 %s87, 1
    %p91 = scmp.eq.s32.totalorder %s11, 1
    %p92 = scmp.ne.s32.totalorder %s87, %s89
    %p93 = scmp.eq.s32.totalorder %s11, 0
    %p94 = por %p92, %p93
    %p95 = scmp.ne.s32.totalorder %s87, %s89
    %p96 = scmp.eq.s32.totalorder %s16, 1
    %p97 = por %p95, %p96
    %p98 = scmp.ne.s32.totalorder %s89, %s90
    %p99 = scmp.eq.s32.totalorder %s16, 0
    %p100 = por %p98, %p99
    %p101 = scmp.ne.s32.totalorder %s89, %s90
    %p102 = scmp.eq.s32.totalorder %s17, 1
    %p103 = por %p101, %p102
    %p105 = scmp.ne.s32.totalorder %s90, %s104
    %p106 = scmp.eq.s32.totalorder %s17, 0
    %p107 = por %p105, %p106
    %s109 = sadd.s32 %s108, 1
    %p112 = scmp.eq.s32.totalorder %s11, 1
    %p113 = scmp.ne.s32.totalorder %s108, %s110
    %p114 = scmp.eq.s32.totalorder %s11, 0
    %p115 = por %p113, %p114
    %p116 = scmp.ne.s32.totalorder %s108, %s110
    %p117 = scmp.eq.s32.totalorder %s16, 1
    %p118 = por %p116, %p117
    %p119 = scmp.ne.s32.totalorder %s110, %s111
    %p120 = scmp.eq.s32.totalorder %s16, 0
    %p121 = por %p119, %p120
    %p122 = scmp.ne.s32.totalorder %s110, %s111
    %p123 = scmp.eq.s32.totalorder %s17, 1
    %p124 = por %p122, %p123
    %p126 = scmp.ne.s32.totalorder %s111, %s125
    %p127 = scmp.eq.s32.totalorder %s17, 0
    %p128 = por %p126, %p127
    %s129 = ssub.s32 %s11, %s18
    %p130 = scmp.eq.s32.totalorder %s129, 0
    %s132 = sadd.s32 %s131, 1
    %s133 = scalar_select %p130, %s131, %s132
    %p136 = pneg %p130
    %p137 = scmp.eq.s32.totalorder %s11, 1
    %p138 = por %p136, %p137
    %p139 = scmp.ne.s32.totalorder %s131, %s134
    %p140 = scmp.eq.s32.totalorder %s11, 0
    %p141 = por %p139, %p140
    %p142 = scmp.ne.s32.totalorder %s131, %s134
    %p143 = scmp.eq.s32.totalorder %s16, 1
    %p144 = por %p142, %p143
    %p145 = scmp.ne.s32.totalorder %s134, %s135
    %p146 = scmp.eq.s32.totalorder %s16, 0
    %p147 = por %p145, %p146
    %p148 = scmp.ne.s32.totalorder %s134, %s135
    %p149 = scmp.eq.s32.totalorder %s17, 1
    %p150 = por %p148, %p149
    %p152 = scmp.ne.s32.totalorder %s135, %s151
    %p153 = scmp.eq.s32.totalorder %s17, 0
    %p154 = por %p152, %p153
    %p155 = scmp.le.s32.totalorder 1, %s11
    %p156 = scmp.lt.s32.totalorder %s11, 3
    %p157 = pnand %p155, %p156
    %p158 = pneg %p157
    // Predicated region
    $region9: #{window_model_with_subwords_forward.1} parent=5 // pred_check
      _
    $region10: #{window_model_with_subwords_forward.1} parent=5 // pred_check_branch
      %160 = sbr.rel (%p157) target = $region12
    $region11: #{window_model_with_subwords_forward.1} parent=5 // pred_region
      %s161 = ssub.s32 %s11, 1
      // Predicated region
      $region13: #{window_model_with_subwords_forward.1} parent=11 // pred_check
        %p162 = pneg %p58
      $region14: #{window_model_with_subwords_forward.1} parent=11 // pred_check_branch
        %164 = sbr.rel (%p162) target = $region16
      $region15: #{window_model_with_subwords_forward.1} parent=11 // pred_region
        _
      $region16: #{window_model_with_subwords_forward.1} parent=11 // pred_fallthru
        _
      // Predicated region
      $region17: #{window_model_with_subwords_forward.1} parent=11 // pred_check
        %p165 = pneg %p79
      $region18: #{window_model_with_subwords_forward.1} parent=11 // pred_check_branch
        %167 = sbr.rel (%p165) target = $region20
      $region19: #{window_model_with_subwords_forward.1} parent=11 // pred_region
        _
      $region20: #{window_model_with_subwords_forward.1} parent=11 // pred_fallthru
        _
      // Predicated region
      $region21: #{window_model_with_subwords_forward.1} parent=11 // pred_check
        %p168 = pneg %p100
      $region22: #{window_model_with_subwords_forward.1} parent=11 // pred_check_branch
        %170 = sbr.rel (%p168) target = $region24
      $region23: #{window_model_with_subwords_forward.1} parent=11 // pred_region
        _
      $region24: #{window_model_with_subwords_forward.1} parent=11 // pred_fallthru
        _
      // Predicated region
      $region25: #{window_model_with_subwords_forward.1} parent=11 // pred_check
        %p171 = pneg %p121
      $region26: #{window_model_with_subwords_forward.1} parent=11 // pred_check_branch
        %173 = sbr.rel (%p171) target = $region28
      $region27: #{window_model_with_subwords_forward.1} parent=11 // pred_region
        _
      $region28: #{window_model_with_subwords_forward.1} parent=11 // pred_fallthru
        _
    $region12: #{window_model_with_subwords_forward.1} parent=5 // pred_fallthru
      _
    %p174 = scmp.lt.s32.totalorder %s11, 2
    // Predicated region
    $region29: #{window_model_with_subwords_forward.1} parent=5 // pred_check
      %p175 = pneg %p174
    $region30: #{window_model_with_subwords_forward.1} parent=5 // pred_check_branch
      %177 = sbr.rel (%p175) target = $region32
    $region31: #{window_model_with_subwords_forward.1} parent=5 // pred_region
      // Predicated region
      $region33: #{window_model_with_subwords_forward.1} parent=31 // pred_check
        %p178 = pneg %p31
      $region34: #{window_model_with_subwords_forward.1} parent=31 // pred_check_branch
        %180 = sbr.rel (%p178) target = $region36
      $region35: #{window_model_with_subwords_forward.1} parent=31 // pred_region
        %s181 = smul.u32 32, %s11
        %p182 = scmp.lt.s32.totalorder %s181, 63
        %s183 = scalar_select %p182, %s181, 63
        %s184 = smul.addr %s183, 8
        %s185 = scalar_lea.vmem %s0, %s184
        %s186 = smul.u32 32, %s11
      $region36: #{window_model_with_subwords_forward.1} parent=31 // pred_fallthru
        _
    $region32: #{window_model_with_subwords_forward.1} parent=5 // pred_fallthru
      _
    %p187 = scmp.le.s32.totalorder 1, %s11
    %p188 = scmp.lt.s32.totalorder %s11, 3
    %p189 = pnand %p187, %p188
    %p190 = pneg %p189
    // Predicated region
    $region37: #{window_model_with_subwords_forward.1} parent=5 // pred_check
      _
    $region38: #{window_model_with_subwords_forward.1} parent=5 // pred_check_branch
      %192 = sbr.rel (%p189) target = $region40
    $region39: #{window_model_with_subwords_forward.1} parent=5 // pred_region
      %s193 = ssub.s32 %s11, 1
      %s194 = smul.u32 32, %s16
      %p195 = scmp.lt.s32.totalorder %s194, 63
      %s196 = scalar_select %p195, %s194, 63
      %s197 = smul.addr %s196, 8
      %s198 = scalar_lea.vmem %s0, %s197
      %p199 = pneg %p37
      %p200 = pneg %p34
      %p201 = pneg %p58
      %p202 = pneg %p55
      %p203 = pneg %p79
      %p204 = pneg %p76
      %p205 = pneg %p100
      %p206 = pneg %p97
      %p207 = pneg %p121
      %p208 = pneg %p118
      %p209 = pneg %p147
      %p210 = pneg %p144
      %s211 = smul.u32 32, %s16
      %p212 = scmp.lt.s32.totalorder %s211, 63
      %s213 = scalar_select %p212, %s211, 63
      %s214 = smul.addr %s213, 8
      %s215 = scalar_lea.vmem %s5, %s214
      %s216 = smul.u32 32, %s16
      %p217 = scmp.lt.s32.totalorder %s216, 63
      %s218 = scalar_select %p217, %s216, 63
      %s219 = smul.addr %s218, 8
      %s220 = scalar_lea.vmem %s0, %s219
      %s221 = smul.u32 32, %s16
      %s222 = smul.u32 32, %s16
      %p223 = scmp.lt.s32.totalorder %s222, 63
      %s224 = scalar_select %p223, %s222, 63
      %s225 = smul.addr %s224, 8
      %s226 = scalar_lea.vmem %s5, %s225
      %s227 = smul.u32 32, %s16
      %v228 = vld [vmem:[%s220] sm:$0xff]
      %v229 = vld [vmem:[%s220 + $0x8] sm:$0xff]
      %v230 = vld [vmem:[%s220 + $0x10] sm:$0xff]
      %v231 = vld [vmem:[%s220 + $0x18] sm:$0xff]
      %v232 = vld [vmem:[%s220 + $0x20] sm:$0xff]
      %v233 = vld [vmem:[%s220 + $0x28] sm:$0xff]
      %v234 = vld [vmem:[%s220 + $0x30] sm:$0xff]
      %v235 = vld [vmem:[%s220 + $0x38] sm:$0xff]
      %v236 = vld [vmem:[%s220 + $0x40] sm:$0xff]
      %v237 = vld [vmem:[%s220 + $0x48] sm:$0xff]
      %v238 = vld [vmem:[%s220 + $0x50] sm:$0xff]
      %v239 = vld [vmem:[%s220 + $0x58] sm:$0xff]
      %v240 = vld [vmem:[%s220 + $0x60] sm:$0xff]
      %v241 = vld [vmem:[%s220 + $0x68] sm:$0xff]
      %v242 = vld [vmem:[%s220 + $0x70] sm:$0xff]
      %v243 = vld [vmem:[%s220 + $0x78] sm:$0xff]
      %v244 = vld [vmem:[%s220 + $0x80] sm:$0xff]
      %v245 = vld [vmem:[%s220 + $0x88] sm:$0xff]
      %v246 = vld [vmem:[%s220 + $0x90] sm:$0xff]
      %v247 = vld [vmem:[%s220 + $0x98] sm:$0xff]
      %v248 = vld [vmem:[%s220 + $0xa0] sm:$0xff]
      %v249 = vld [vmem:[%s220 + $0xa8] sm:$0xff]
      %v250 = vld [vmem:[%s220 + $0xb0] sm:$0xff]
      %v251 = vld [vmem:[%s220 + $0xb8] sm:$0xff]
      %v252 = vld [vmem:[%s220 + $0xc0] sm:$0xff]
      %v253 = vld [vmem:[%s220 + $0xc8] sm:$0xff]
      %v254 = vld [vmem:[%s220 + $0xd0] sm:$0xff]
      %v255 = vld [vmem:[%s220 + $0xd8] sm:$0xff]
      %v256 = vld [vmem:[%s220 + $0xe0] sm:$0xff]
      %v257 = vld [vmem:[%s220 + $0xe8] sm:$0xff]
      %v258 = vld [vmem:[%s220 + $0xf0] sm:$0xff]
      %v259 = vld [vmem:[%s220 + $0xf8] sm:$0xff]
      %v260 = vlaneseq
      %v261 = vand.u32 %v260, 127
      %262 = vset.pattern.permute.xlu0 0
      %263 = vperm.xlu0 %262, %v228
      %v264 = vpop.permute.xlu0 %263
      %265 = vset.pattern.permute.xlu0 0
      %266 = vperm.xlu0 %265, %v229
      %v267 = vpop.permute.xlu0 %266
      %268 = vset.pattern.permute.xlu0 0
      %269 = vperm.xlu0 %268, %v230
      %v270 = vpop.permute.xlu0 %269
      %271 = vset.pattern.permute.xlu0 0
      %272 = vperm.xlu0 %271, %v231
      %v273 = vpop.permute.xlu0 %272
      %274 = vset.pattern.permute.xlu0 0
      %275 = vperm.xlu0 %274, %v232
      %v276 = vpop.permute.xlu0 %275
      %277 = vset.pattern.permute.xlu0 0
      %278 = vperm.xlu0 %277, %v233
      %v279 = vpop.permute.xlu0 %278
      %280 = vset.pattern.permute.xlu0 0
      %281 = vperm.xlu0 %280, %v234
      %v282 = vpop.permute.xlu0 %281
      %283 = vset.pattern.permute.xlu0 0
      %284 = vperm.xlu0 %283, %v235
      %v285 = vpop.permute.xlu0 %284
      %286 = vset.pattern.permute.xlu0 0
      %287 = vperm.xlu0 %286, %v236
      %v288 = vpop.permute.xlu0 %287
      %289 = vset.pattern.permute.xlu0 0
      %290 = vperm.xlu0 %289, %v237
      %v291 = vpop.permute.xlu0 %290
      %292 = vset.pattern.permute.xlu0 0
      %293 = vperm.xlu0 %292, %v238
      %v294 = vpop.permute.xlu0 %293
      %295 = vset.pattern.permute.xlu0 0
      %296 = vperm.xlu0 %295, %v239
      %v297 = vpop.permute.xlu0 %296
      %298 = vset.pattern.permute.xlu0 0
      %299 = vperm.xlu0 %298, %v240
      %v300 = vpop.permute.xlu0 %299
      %301 = vset.pattern.permute.xlu0 0
      %302 = vperm.xlu0 %301, %v241
      %v303 = vpop.permute.xlu0 %302
      %304 = vset.pattern.permute.xlu0 0
      %305 = vperm.xlu0 %304, %v242
      %v306 = vpop.permute.xlu0 %305
      %307 = vset.pattern.permute.xlu0 0
      %308 = vperm.xlu0 %307, %v243
      %v309 = vpop.permute.xlu0 %308
      %310 = vset.pattern.permute.xlu0 0
      %311 = vperm.xlu0 %310, %v244
      %v312 = vpop.permute.xlu0 %311
      %313 = vset.pattern.permute.xlu0 0
      %314 = vperm.xlu0 %313, %v245
      %v315 = vpop.permute.xlu0 %314
      %316 = vset.pattern.permute.xlu0 0
      %317 = vperm.xlu0 %316, %v246
      %v318 = vpop.permute.xlu0 %317
      %319 = vset.pattern.permute.xlu0 0
      %320 = vperm.xlu0 %319, %v247
      %v321 = vpop.permute.xlu0 %320
      %322 = vset.pattern.permute.xlu0 0
      %323 = vperm.xlu0 %322, %v248
      %v324 = vpop.permute.xlu0 %323
      %325 = vset.pattern.permute.xlu0 0
      %326 = vperm.xlu0 %325, %v249
      %v327 = vpop.permute.xlu0 %326
      %328 = vset.pattern.permute.xlu0 0
      %329 = vperm.xlu0 %328, %v250
      %v330 = vpop.permute.xlu0 %329
      %331 = vset.pattern.permute.xlu0 0
      %332 = vperm.xlu0 %331, %v251
      %v333 = vpop.permute.xlu0 %332
      %334 = vset.pattern.permute.xlu0 0
      %335 = vperm.xlu0 %334, %v252
      %v336 = vpop.permute.xlu0 %335
      %337 = vset.pattern.permute.xlu0 0
      %338 = vperm.xlu0 %337, %v253
      %v339 = vpop.permute.xlu0 %338
      %340 = vset.pattern.permute.xlu0 0
      %341 = vperm.xlu0 %340, %v254
      %v342 = vpop.permute.xlu0 %341
      %343 = vset.pattern.permute.xlu0 0
      %344 = vperm.xlu0 %343, %v255
      %v345 = vpop.permute.xlu0 %344
      %346 = vset.pattern.permute.xlu0 0
      %347 = vperm.xlu0 %346, %v256
      %v348 = vpop.permute.xlu0 %347
      %349 = vset.pattern.permute.xlu0 0
      %350 = vperm.xlu0 %349, %v257
      %v351 = vpop.permute.xlu0 %350
      %352 = vset.pattern.permute.xlu0 0
      %353 = vperm.xlu0 %352, %v258
      %v354 = vpop.permute.xlu0 %353
      %355 = vset.pattern.permute.xlu0 0
      %356 = vperm.xlu0 %355, %v259
      %v357 = vpop.permute.xlu0 %356
      %vm358 = vcmp.eq.s32.totalorder %v261, %v264
      %vm359 = vcmp.eq.s32.totalorder %v261, %v267
      %vm360 = vcmp.eq.s32.totalorder %v261, %v270
      %vm361 = vcmp.eq.s32.totalorder %v261, %v273
      %vm362 = vcmp.eq.s32.totalorder %v261, %v276
      %vm363 = vcmp.eq.s32.totalorder %v261, %v279
      %vm364 = vcmp.eq.s32.totalorder %v261, %v282
      %vm365 = vcmp.eq.s32.totalorder %v261, %v285
      %vm366 = vcmp.eq.s32.totalorder %v261, %v288
      %vm367 = vcmp.eq.s32.totalorder %v261, %v291
      %vm368 = vcmp.eq.s32.totalorder %v261, %v294
      %vm369 = vcmp.eq.s32.totalorder %v261, %v297
      %vm370 = vcmp.eq.s32.totalorder %v261, %v300
      %vm371 = vcmp.eq.s32.totalorder %v261, %v303
      %vm372 = vcmp.eq.s32.totalorder %v261, %v306
      %vm373 = vcmp.eq.s32.totalorder %v261, %v309
      %vm374 = vcmp.eq.s32.totalorder %v261, %v312
      %vm375 = vcmp.eq.s32.totalorder %v261, %v315
      %vm376 = vcmp.eq.s32.totalorder %v261, %v318
      %vm377 = vcmp.eq.s32.totalorder %v261, %v321
      %vm378 = vcmp.eq.s32.totalorder %v261, %v324
      %vm379 = vcmp.eq.s32.totalorder %v261, %v327
      %vm380 = vcmp.eq.s32.totalorder %v261, %v330
      %vm381 = vcmp.eq.s32.totalorder %v261, %v333
      %vm382 = vcmp.eq.s32.totalorder %v261, %v336
      %vm383 = vcmp.eq.s32.totalorder %v261, %v339
      %vm384 = vcmp.eq.s32.totalorder %v261, %v342
      %vm385 = vcmp.eq.s32.totalorder %v261, %v345
      %vm386 = vcmp.eq.s32.totalorder %v261, %v348
      %vm387 = vcmp.eq.s32.totalorder %v261, %v351
      %vm388 = vcmp.eq.s32.totalorder %v261, %v354
      %vm389 = vcmp.eq.s32.totalorder %v261, %v357
      %v390 = vsel %vm358, 1, 0
      %v391 = vsel %vm359, 1, 0
      %v392 = vsel %vm360, 1, 0
      %v393 = vsel %vm361, 1, 0
      %v394 = vsel %vm362, 1, 0
      %v395 = vsel %vm363, 1, 0
      %v396 = vsel %vm364, 1, 0
      %v397 = vsel %vm365, 1, 0
      %v398 = vsel %vm366, 1, 0
      %v399 = vsel %vm367, 1, 0
      %v400 = vsel %vm368, 1, 0
      %v401 = vsel %vm369, 1, 0
      %v402 = vsel %vm370, 1, 0
      %v403 = vsel %vm371, 1, 0
      %v404 = vsel %vm372, 1, 0
      %v405 = vsel %vm373, 1, 0
      %v406 = vsel %vm374, 1, 0
      %v407 = vsel %vm375, 1, 0
      %v408 = vsel %vm376, 1, 0
      %v409 = vsel %vm377, 1, 0
      %v410 = vsel %vm378, 1, 0
      %v411 = vsel %vm379, 1, 0
      %v412 = vsel %vm380, 1, 0
      %v413 = vsel %vm381, 1, 0
      %v414 = vsel %vm382, 1, 0
      %v415 = vsel %vm383, 1, 0
      %v416 = vsel %vm384, 1, 0
      %v417 = vsel %vm385, 1, 0
      %v418 = vsel %vm386, 1, 0
      %v419 = vsel %vm387, 1, 0
      %v420 = vsel %vm388, 1, 0
      %v421 = vsel %vm389, 1, 0
      %v422 = vcvt.s32.f32 %v390
      %v423 = vcvt.s32.f32 %v391
      %v424 = vcvt.s32.f32 %v392
      %v425 = vcvt.s32.f32 %v393
      %v426 = vcvt.s32.f32 %v394
      %v427 = vcvt.s32.f32 %v395
      %v428 = vcvt.s32.f32 %v396
      %v429 = vcvt.s32.f32 %v397
      %v430 = vcvt.s32.f32 %v398
      %v431 = vcvt.s32.f32 %v399
      %v432 = vcvt.s32.f32 %v400
      %v433 = vcvt.s32.f32 %v401
      %v434 = vcvt.s32.f32 %v402
      %v435 = vcvt.s32.f32 %v403
      %v436 = vcvt.s32.f32 %v404
      %v437 = vcvt.s32.f32 %v405
      %v438 = vcvt.s32.f32 %v406
      %v439 = vcvt.s32.f32 %v407
      %v440 = vcvt.s32.f32 %v408
      %v441 = vcvt.s32.f32 %v409
      %v442 = vcvt.s32.f32 %v410
      %v443 = vcvt.s32.f32 %v411
      %v444 = vcvt.s32.f32 %v412
      %v445 = vcvt.s32.f32 %v413
      %v446 = vcvt.s32.f32 %v414
      %v447 = vcvt.s32.f32 %v415
      %v448 = vcvt.s32.f32 %v416
      %v449 = vcvt.s32.f32 %v417
      %v450 = vcvt.s32.f32 %v418
      %v451 = vcvt.s32.f32 %v419
      %v452 = vcvt.s32.f32 %v420
      %v453 = vcvt.s32.f32 %v421
      %v454 = vld [vmem:[%s1] sm:$0xff]
      %v455 = vld [vmem:[%s1 + $0x8] sm:$0xff]
      %v456 = vld [vmem:[%s1 + $0x10] sm:$0xff]
      %v457 = vld [vmem:[%s1 + $0x18] sm:$0xff]
      %v458 = vld [vmem:[%s1 + $0x20] sm:$0xff]
      %v459 = vld [vmem:[%s1 + $0x28] sm:$0xff]
      %v460 = vld [vmem:[%s1 + $0x30] sm:$0xff]
      %v461 = vld [vmem:[%s1 + $0x38] sm:$0xff]
      %v462 = vld [vmem:[%s1 + $0x40] sm:$0xff]
      %v463 = vld [vmem:[%s1 + $0x48] sm:$0xff]
      %v464 = vld [vmem:[%s1 + $0x50] sm:$0xff]
      %v465 = vld [vmem:[%s1 + $0x58] sm:$0xff]
      %v466 = vld [vmem:[%s1 + $0x60] sm:$0xff]
      %v467 = vld [vmem:[%s1 + $0x68] sm:$0xff]
      %v468 = vld [vmem:[%s1 + $0x70] sm:$0xff]
      %v469 = vld [vmem:[%s1 + $0x78] sm:$0xff]
      %470 = vset.pattern.permute.xlu0 1
      %471 = vperm.xlu0 %470, %v228
      %v472 = vpop.permute.xlu0 %471
      %473 = vset.pattern.permute.xlu0 1
      %474 = vperm.xlu0 %473, %v229
      %v475 = vpop.permute.xlu0 %474
      %476 = vset.pattern.permute.xlu0 1
      %477 = vperm.xlu0 %476, %v230
      %v478 = vpop.permute.xlu0 %477
      %479 = vset.pattern.permute.xlu0 1
      %480 = vperm.xlu0 %479, %v231
      %v481 = vpop.permute.xlu0 %480
      %482 = vset.pattern.permute.xlu0 1
      %483 = vperm.xlu0 %482, %v232
      %v484 = vpop.permute.xlu0 %483
      %485 = vset.pattern.permute.xlu0 1
      %486 = vperm.xlu0 %485, %v233
      %v487 = vpop.permute.xlu0 %486
      %488 = vset.pattern.permute.xlu0 1
      %489 = vperm.xlu0 %488, %v234
      %v490 = vpop.permute.xlu0 %489
      %491 = vset.pattern.permute.xlu0 1
      %492 = vperm.xlu0 %491, %v235
      %v493 = vpop.permute.xlu0 %492
      %494 = vset.pattern.permute.xlu0 1
      %495 = vperm.xlu0 %494, %v236
      %v496 = vpop.permute.xlu0 %495
      %497 = vset.pattern.permute.xlu0 1
      %498 = vperm.xlu0 %497, %v237
      %v499 = vpop.permute.xlu0 %498
      %500 = vset.pattern.permute.xlu0 1
      %501 = vperm.xlu0 %500, %v238
      %v502 = vpop.permute.xlu0 %501
      %503 = vset.pattern.permute.xlu0 1
      %504 = vperm.xlu0 %503, %v239
      %v505 = vpop.permute.xlu0 %504
      %506 = vset.pattern.permute.xlu0 1
      %507 = vperm.xlu0 %506, %v240
      %v508 = vpop.permute.xlu0 %507
      %509 = vset.pattern.permute.xlu0 1
      %510 = vperm.xlu0 %509, %v241
      %v511 = vpop.permute.xlu0 %510
      %512 = vset.pattern.permute.xlu0 1
      %513 = vperm.xlu0 %512, %v242
      %v514 = vpop.permute.xlu0 %513
      %515 = vset.pattern.permute.xlu0 1
      %516 = vperm.xlu0 %515, %v243
      %v517 = vpop.permute.xlu0 %516
      %518 = vset.pattern.permute.xlu0 1
      %519 = vperm.xlu0 %518, %v244
      %v520 = vpop.permute.xlu0 %519
      %521 = vset.pattern.permute.xlu0 1
      %522 = vperm.xlu0 %521, %v245
      %v523 = vpop.permute.xlu0 %522
      %524 = vset.pattern.permute.xlu0 1
      %525 = vperm.xlu0 %524, %v246
      %v526 = vpop.permute.xlu0 %525
      %527 = vset.pattern.permute.xlu0 1
      %528 = vperm.xlu0 %527, %v247
      %v529 = vpop.permute.xlu0 %528
      %530 = vset.pattern.permute.xlu0 1
      %531 = vperm.xlu0 %530, %v248
      %v532 = vpop.permute.xlu0 %531
      %533 = vset.pattern.permute.xlu0 1
      %534 = vperm.xlu0 %533, %v249
      %v535 = vpop.permute.xlu0 %534
      %536 = vset.pattern.permute.xlu0 1
      %537 = vperm.xlu0 %536, %v250
      %v538 = vpop.permute.xlu0 %537
      %539 = vset.pattern.permute.xlu0 1
      %540 = vperm.xlu0 %539, %v251
      %v541 = vpop.permute.xlu0 %540
      %542 = vset.pattern.permute.xlu0 1
      %543 = vperm.xlu0 %542, %v252
      %v544 = vpop.permute.xlu0 %543
      %545 = vset.pattern.permute.xlu0 1
      %546 = vperm.xlu0 %545, %v253
      %v547 = vpop.permute.xlu0 %546
      %548 = vset.pattern.permute.xlu0 1
      %549 = vperm.xlu0 %548, %v254
      %v550 = vpop.permute.xlu0 %549
      %551 = vset.pattern.permute.xlu0 1
      %552 = vperm.xlu0 %551, %v255
      %v553 = vpop.permute.xlu0 %552
      %554 = vset.pattern.permute.xlu0 1
      %555 = vperm.xlu0 %554, %v256
      %v556 = vpop.permute.xlu0 %555
      %557 = vset.pattern.permute.xlu0 1
      %558 = vperm.xlu0 %557, %v257
      %v559 = vpop.permute.xlu0 %558
      %560 = vset.pattern.permute.xlu0 1
      %561 = vperm.xlu0 %560, %v258
      %v562 = vpop.permute.xlu0 %561
      %563 = vset.pattern.permute.xlu0 1
      %564 = vperm.xlu0 %563, %v259
      %v565 = vpop.permute.xlu0 %564
      %vm566 = vcmp.eq.s32.totalorder %v261, %v472
      %vm567 = vcmp.eq.s32.totalorder %v261, %v475
      %vm568 = vcmp.eq.s32.totalorder %v261, %v478
      %vm569 = vcmp.eq.s32.totalorder %v261, %v481
      %vm570 = vcmp.eq.s32.totalorder %v261, %v484
      %vm571 = vcmp.eq.s32.totalorder %v261, %v487
      %vm572 = vcmp.eq.s32.totalorder %v261, %v490
      %vm573 = vcmp.eq.s32.totalorder %v261, %v493
      %vm574 = vcmp.eq.s32.totalorder %v261, %v496
      %vm575 = vcmp.eq.s32.totalorder %v261, %v499
      %vm576 = vcmp.eq.s32.totalorder %v261, %v502
      %vm577 = vcmp.eq.s32.totalorder %v261, %v505
      %vm578 = vcmp.eq.s32.totalorder %v261, %v508
      %vm579 = vcmp.eq.s32.totalorder %v261, %v511
      %vm580 = vcmp.eq.s32.totalorder %v261, %v514
      %vm581 = vcmp.eq.s32.totalorder %v261, %v517
      %vm582 = vcmp.eq.s32.totalorder %v261, %v520
      %vm583 = vcmp.eq.s32.totalorder %v261, %v523
      %vm584 = vcmp.eq.s32.totalorder %v261, %v526
      %vm585 = vcmp.eq.s32.totalorder %v261, %v529
      %vm586 = vcmp.eq.s32.totalorder %v261, %v532
      %vm587 = vcmp.eq.s32.totalorder %v261, %v535
      %vm588 = vcmp.eq.s32.totalorder %v261, %v538
      %vm589 = vcmp.eq.s32.totalorder %v261, %v541
      %vm590 = vcmp.eq.s32.totalorder %v261, %v544
      %vm591 = vcmp.eq.s32.totalorder %v261, %v547
      %vm592 = vcmp.eq.s32.totalorder %v261, %v550
      %vm593 = vcmp.eq.s32.totalorder %v261, %v553
      %vm594 = vcmp.eq.s32.totalorder %v261, %v556
      %vm595 = vcmp.eq.s32.totalorder %v261, %v559
      %vm596 = vcmp.eq.s32.totalorder %v261, %v562
      %vm597 = vcmp.eq.s32.totalorder %v261, %v565
      %v598 = vsel %vm566, 1, 0
      %v599 = vsel %vm567, 1, 0
      %v600 = vsel %vm568, 1, 0
      %v601 = vsel %vm569, 1, 0
      %v602 = vsel %vm570, 1, 0
      %v603 = vsel %vm571, 1, 0
      %v604 = vsel %vm572, 1, 0
      %v605 = vsel %vm573, 1, 0
      %v606 = vsel %vm574, 1, 0
      %v607 = vsel %vm575, 1, 0
      %v608 = vsel %vm576, 1, 0
      %v609 = vsel %vm577, 1, 0
      %v610 = vsel %vm578, 1, 0
      %v611 = vsel %vm579, 1, 0
      %v612 = vsel %vm580, 1, 0
      %v613 = vsel %vm581, 1, 0
      %v614 = vsel %vm582, 1, 0
      %v615 = vsel %vm583, 1, 0
      %v616 = vsel %vm584, 1, 0
      %v617 = vsel %vm585, 1, 0
      %v618 = vsel %vm586, 1, 0
      %v619 = vsel %vm587, 1, 0
      %v620 = vsel %vm588, 1, 0
      %v621 = vsel %vm589, 1, 0
      %v622 = vsel %vm590, 1, 0
      %v623 = vsel %vm591, 1, 0
      %v624 = vsel %vm592, 1, 0
      %v625 = vsel %vm593, 1, 0
      %v626 = vsel %vm594, 1, 0
      %v627 = vsel %vm595, 1, 0
      %v628 = vsel %vm596, 1, 0
      %v629 = vsel %vm597, 1, 0
      %v630 = vcvt.s32.f32 %v598
      %v631 = vcvt.s32.f32 %v599
      %v632 = vcvt.s32.f32 %v600
      %v633 = vcvt.s32.f32 %v601
      %v634 = vcvt.s32.f32 %v602
      %v635 = vcvt.s32.f32 %v603
      %v636 = vcvt.s32.f32 %v604
      %v637 = vcvt.s32.f32 %v605
      %v638 = vcvt.s32.f32 %v606
      %v639 = vcvt.s32.f32 %v607
      %v640 = vcvt.s32.f32 %v608
      %v641 = vcvt.s32.f32 %v609
      %v642 = vcvt.s32.f32 %v610
      %v643 = vcvt.s32.f32 %v611
      %v644 = vcvt.s32.f32 %v612
      %v645 = vcvt.s32.f32 %v613
      %v646 = vcvt.s32.f32 %v614
      %v647 = vcvt.s32.f32 %v615
      %v648 = vcvt.s32.f32 %v616
      %v649 = vcvt.s32.f32 %v617
      %v650 = vcvt.s32.f32 %v618
      %v651 = vcvt.s32.f32 %v619
      %v652 = vcvt.s32.f32 %v620
      %v653 = vcvt.s32.f32 %v621
      %v654 = vcvt.s32.f32 %v622
      %v655 = vcvt.s32.f32 %v623
      %v656 = vcvt.s32.f32 %v624
      %v657 = vcvt.s32.f32 %v625
      %v658 = vcvt.s32.f32 %v626
      %v659 = vcvt.s32.f32 %v627
      %v660 = vcvt.s32.f32 %v628
      %v661 = vcvt.s32.f32 %v629
      %v662 = vld [vmem:[%s1 + $0x80] sm:$0xff]
      %v663 = vld [vmem:[%s1 + $0x88] sm:$0xff]
      %v664 = vld [vmem:[%s1 + $0x90] sm:$0xff]
      %v665 = vld [vmem:[%s1 + $0x98] sm:$0xff]
      %v666 = vld [vmem:[%s1 + $0xa0] sm:$0xff]
      %v667 = vld [vmem:[%s1 + $0xa8] sm:$0xff]
      %v668 = vld [vmem:[%s1 + $0xb0] sm:$0xff]
      %v669 = vld [vmem:[%s1 + $0xb8] sm:$0xff]
      %v670 = vld [vmem:[%s1 + $0xc0] sm:$0xff]
      %v671 = vld [vmem:[%s1 + $0xc8] sm:$0xff]
      %v672 = vld [vmem:[%s1 + $0xd0] sm:$0xff]
      %v673 = vld [vmem:[%s1 + $0xd8] sm:$0xff]
      %v674 = vld [vmem:[%s1 + $0xe0] sm:$0xff]
      %v675 = vld [vmem:[%s1 + $0xe8] sm:$0xff]
      %v676 = vld [vmem:[%s1 + $0xf0] sm:$0xff]
      %v677 = vld [vmem:[%s1 + $0xf8] sm:$0xff]
      %678 = vmatprep.subr.mxu0 0.0
      %679 = vmatpush1.msra.mxu0 %v662
      %680 = vmatprep.subr.mxu0 0.0
      %681 = vmatpush1.msra.mxu0 %v663
      %682 = vmatprep.subr.mxu0 0.0
      %683 = vmatpush1.msra.mxu0 %v664
      %684 = vmatprep.subr.mxu0 0.0
      %685 = vmatpush1.msra.mxu0 %v665
      %686 = vmatprep.subr.mxu0 0.0
      %687 = vmatpush1.msra.mxu0 %v666
      %688 = vmatprep.subr.mxu0 0.0
      %689 = vmatpush1.msra.mxu0 %v667
      %690 = vmatprep.subr.mxu0 0.0
      %691 = vmatpush1.msra.mxu0 %v668
      %692 = vmatprep.subr.mxu0 0.0
      %693 = vmatpush1.msra.mxu0 %v669
      %694 = vmatprep.subr.mxu0 0.0
      %695 = vmatpush1.msra.mxu0 %v670
      %696 = vmatprep.subr.mxu0 0.0
      %697 = vmatpush1.msra.mxu0 %v671
      %698 = vmatprep.subr.mxu0 0.0
      %699 = vmatpush1.msra.mxu0 %v672
      %700 = vmatprep.subr.mxu0 0.0
      %701 = vmatpush1.msra.mxu0 %v673
      %702 = vmatprep.subr.mxu0 0.0
      %703 = vmatpush1.msra.mxu0 %v674
      %704 = vmatprep.subr.mxu0 0.0
      %705 = vmatpush1.msra.mxu0 %v675
      %706 = vmatprep.subr.mxu0 0.0
      %707 = vmatpush1.msra.mxu0 %v676
      %708 = vmatprep.subr.mxu0 0.0
      %709 = vmatpush1.msra.mxu0 %v677
      %710 = vmatprep.subr.mxu0 0.0
      %711 = vmatpush1.msra.mxu0 0.0
      %712 = vmatprep.subr.mxu0 0.0
      %713 = vmatpush1.msra.mxu0 0.0
      %714 = vmatprep.subr.mxu0 0.0
      %715 = vmatpush1.msra.mxu0 0.0
      %716 = vmatprep.subr.mxu0 0.0
      %717 = vmatpush1.msra.mxu0 0.0
      %718 = vmatprep.subr.mxu0 0.0
      %719 = vmatpush1.msra.mxu0 0.0
      %720 = vmatprep.subr.mxu0 0.0
      %721 = vmatpush1.msra.mxu0 0.0
      %722 = vmatprep.subr.mxu0 0.0
      %723 = vmatpush1.msra.mxu0 0.0
      %724 = vmatprep.subr.mxu0 0.0
      %725 = vmatpush1.msra.mxu0 0.0
      %726 = vmatprep.subr.mxu0 0.0
      %727 = vmatpush1.msra.mxu0 0.0
      %728 = vmatprep.subr.mxu0 0.0
      %729 = vmatpush1.msra.mxu0 0.0
      %730 = vmatprep.subr.mxu0 0.0
      %731 = vmatpush1.msra.mxu0 0.0
      %732 = vmatprep.subr.mxu0 0.0
      %733 = vmatpush1.msra.mxu0 0.0
      %734 = vmatprep.subr.mxu0 0.0
      %735 = vmatpush1.msra.mxu0 0.0
      %736 = vmatprep.subr.mxu0 0.0
      %737 = vmatpush1.msra.mxu0 0.0
      %738 = vmatprep.subr.mxu0 0.0
      %739 = vmatpush1.msra.mxu0 0.0
      %740 = vmatprep.subr.mxu0 0.0
      %741 = vmatpush1.msra.mxu0 0.0
      %742 = vmatprep.mubr.f32.mxu0 0.0
      %743 = vmatmul.mubr.f32.gmra.mrb[0].mxu0 %v630
      %v744 = vpop.f32.mrb[0].mxu0
      %v745 = vadd.f32 0.0, %v744
      %v746 = vpop.f32.mrb[0].mxu0
      %747 = vmatprep.mubr.f32.mxu0 0.0
      %748 = vmatmul.mubr.f32.gmra.mrb[0].mxu0 %v631
      %v749 = vpop.f32.mrb[0].mxu0
      %v750 = vadd.f32 0.0, %v749
      %v751 = vpop.f32.mrb[0].mxu0
      %752 = vmatprep.mubr.f32.mxu0 0.0
      %753 = vmatmul.mubr.f32.gmra.mrb[0].mxu0 %v632
      %v754 = vpop.f32.mrb[0].mxu0
      %v755 = vadd.f32 0.0, %v754
      %v756 = vpop.f32.mrb[0].mxu0
      %757 = vmatprep.mubr.f32.mxu0 0.0
      %758 = vmatmul.mubr.f32.gmra.mrb[0].mxu0 %v633
      %v759 = vpop.f32.mrb[0].mxu0
      %v760 = vadd.f32 0.0, %v759
      %v761 = vpop.f32.mrb[0].mxu0
      %762 = vmatprep.mubr.f32.mxu0 0.0
      %763 = vmatmul.mubr.f32.gmra.mrb[0].mxu0 %v634
      %v764 = vpop.f32.mrb[0].mxu0
      %v765 = vadd.f32 0.0, %v764
      %v766 = vpop.f32.mrb[0].mxu0
      %767 = vmatprep.mubr.f32.mxu0 0.0
      %768 = vmatmul.mubr.f32.gmra.mrb[0].mxu0 %v635
      %v769 = vpop.f32.mrb[0].mxu0
      %v770 = vadd.f32 0.0, %v769
      %v771 = vpop.f32.mrb[0].mxu0
      %772 = vmatprep.mubr.f32.mxu0 0.0
      %773 = vmatmul.mubr.f32.gmra.mrb[0].mxu0 %v636
      %v774 = vpop.f32.mrb[0].mxu0
      %v775 = vadd.f32 0.0, %v774
      %v776 = vpop.f32.mrb[0].mxu0
      %777 = vmatprep.mubr.f32.mxu0 0.0
      %778 = vmatmul.mubr.f32.gmra.mrb[0].mxu0 %v637
      %v779 = vpop.f32.mrb[0].mxu0
      %v780 = vadd.f32 0.0, %v779
      %v781 = vpop.f32.mrb[0].mxu0
      %782 = vmatprep.mubr.f32.mxu0 0.0
      %783 = vmatmul.mubr.f32.gmra.mrb[0].mxu0 %v638
      %v784 = vpop.f32.mrb[0].mxu0
      %v785 = vadd.f32 0.0, %v784
      %v786 = vpop.f32.mrb[0].mxu0
      %787 = vmatprep.mubr.f32.mxu0 0.0
      %788 = vmatmul.mubr.f32.gmra.mrb[0].mxu0 %v639
      %v789 = vpop.f32.mrb[0].mxu0
      %v790 = vadd.f32 0.0, %v789
      %v791 = vpop.f32.mrb[0].mxu0
      %792 = vmatprep.mubr.f32.mxu0 0.0
      %793 = vmatmul.mubr.f32.gmra.mrb[0].mxu0 %v640
      %v794 = vpop.f32.mrb[0].mxu0
      %v795 = vadd.f32 0.0, %v794
      %v796 = vpop.f32.mrb[0].mxu0
      %797 = vmatprep.mubr.f32.mxu0 0.0
      %798 = vmatmul.mubr.f32.gmra.mrb[0].mxu0 %v641
      %v799 = vpop.f32.mrb[0].mxu0
      %v800 = vadd.f32 0.0, %v799
      %v801 = vpop.f32.mrb[0].mxu0
      %802 = vmatprep.mubr.f32.mxu0 0.0
      %803 = vmatmul.mubr.f32.gmra.mrb[0].mxu0 %v642
      %v804 = vpop.f32.mrb[0].mxu0
      %v805 = vadd.f32 0.0, %v804
      %v806 = vpop.f32.mrb[0].mxu0
      %807 = vmatprep.mubr.f32.mxu0 0.0
      %808 = vmatmul.mubr.f32.gmra.mrb[0].mxu0 %v643
      %v809 = vpop.f32.mrb[0].mxu0
      %v810 = vadd.f32 0.0, %v809
      %v811 = vpop.f32.mrb[0].mxu0
      %812 = vmatprep.mubr.f32.mxu0 0.0
      %813 = vmatmul.mubr.f32.gmra.mrb[0].mxu0 %v644
      %v814 = vpop.f32.mrb[0].mxu0
      %v815 = vadd.f32 0.0, %v814
      %v816 = vpop.f32.mrb[0].mxu0
      %817 = vmatprep.mubr.f32.mxu0 0.0
      %818 = vmatmul.mubr.f32.gmra.mrb[0].mxu0 %v645
      %v819 = vpop.f32.mrb[0].mxu0
      %v820 = vadd.f32 0.0, %v819
      %v821 = vpop.f32.mrb[0].mxu0
      %822 = vmatprep.mubr.f32.mxu0 0.0
      %823 = vmatmul.mubr.f32.gmra.mrb[0].mxu0 %v646
      %v824 = vpop.f32.mrb[0].mxu0
      %v825 = vadd.f32 0.0, %v824
      %v826 = vpop.f32.mrb[0].mxu0
      %827 = vmatprep.mubr.f32.mxu0 0.0
      %828 = vmatmul.mubr.f32.gmra.mrb[0].mxu0 %v647
      %v829 = vpop.f32.mrb[0].mxu0
      %v830 = vadd.f32 0.0, %v829
      %v831 = vpop.f32.mrb[0].mxu0
      %832 = vmatprep.mubr.f32.mxu0 0.0
      %833 = vmatmul.mubr.f32.gmra.mrb[0].mxu0 %v648
      %v834 = vpop.f32.mrb[0].mxu0
      %v835 = vadd.f32 0.0, %v834
      %v836 = vpop.f32.mrb[0].mxu0
      %837 = vmatprep.mubr.f32.mxu0 0.0
      %838 = vmatmul.mubr.f32.gmra.mrb[0].mxu0 %v649
      %v839 = vpop.f32.mrb[0].mxu0
      %v840 = vadd.f32 0.0, %v839
      %v841 = vpop.f32.mrb[0].mxu0
      %842 = vmatprep.mubr.f32.mxu0 0.0
      %843 = vmatmul.mubr.f32.gmra.mrb[0].mxu0 %v650
      %v844 = vpop.f32.mrb[0].mxu0
      %v845 = vadd.f32 0.0, %v844
      %v846 = vpop.f32.mrb[0].mxu0
      %847 = vmatprep.mubr.f32.mxu0 0.0
      %848 = vmatmul.mubr.f32.gmra.mrb[0].mxu0 %v651
      %v849 = vpop.f32.mrb[0].mxu0
      %v850 = vadd.f32 0.0, %v849
      %v851 = vpop.f32.mrb[0].mxu0
      %852 = vmatprep.mubr.f32.mxu0 0.0
      %853 = vmatmul.mubr.f32.gmra.mrb[0].mxu0 %v652
      %v854 = vpop.f32.mrb[0].mxu0
      %v855 = vadd.f32 0.0, %v854
      %v856 = vpop.f32.mrb[0].mxu0
      %857 = vmatprep.mubr.f32.mxu0 0.0
      %858 = vmatmul.mubr.f32.gmra.mrb[0].mxu0 %v653
      %v859 = vpop.f32.mrb[0].mxu0
      %v860 = vadd.f32 0.0, %v859
      %v861 = vpop.f32.mrb[0].mxu0
      %862 = vmatprep.mubr.f32.mxu0 0.0
      %863 = vmatmul.mubr.f32.gmra.mrb[0].mxu0 %v654
      %v864 = vpop.f32.mrb[0].mxu0
      %v865 = vadd.f32 0.0, %v864
      %v866 = vpop.f32.mrb[0].mxu0
      %867 = vmatprep.mubr.f32.mxu0 0.0
      %868 = vmatmul.mubr.f32.gmra.mrb[0].mxu0 %v655
      %v869 = vpop.f32.mrb[0].mxu0
      %v870 = vadd.f32 0.0, %v869
      %v871 = vpop.f32.mrb[0].mxu0
      %872 = vmatprep.mubr.f32.mxu0 0.0
      %873 = vmatmul.mubr.f32.gmra.mrb[0].mxu0 %v656
      %v874 = vpop.f32.mrb[0].mxu0
      %v875 = vadd.f32 0.0, %v874
      %v876 = vpop.f32.mrb[0].mxu0
      %877 = vmatprep.mubr.f32.mxu0 0.0
      %878 = vmatmul.mubr.f32.gmra.mrb[0].mxu0 %v657
      %v879 = vpop.f32.mrb[0].mxu0
      %v880 = vadd.f32 0.0, %v879
      %v881 = vpop.f32.mrb[0].mxu0
      %882 = vmatprep.mubr.f32.mxu0 0.0
      %883 = vmatmul.mubr.f32.gmra.mrb[0].mxu0 %v658
      %v884 = vpop.f32.mrb[0].mxu0
      %v885 = vadd.f32 0.0, %v884
      %v886 = vpop.f32.mrb[0].mxu0
      %887 = vmatprep.mubr.f32.mxu0 0.0
      %888 = vmatmul.mubr.f32.gmra.mrb[0].mxu0 %v659
      %v889 = vpop.f32.mrb[0].mxu0
      %v890 = vadd.f32 0.0, %v889
      %v891 = vpop.f32.mrb[0].mxu0
      %892 = vmatprep.mubr.f32.mxu0 0.0
      %893 = vmatmul.mubr.f32.gmra.mrb[0].mxu0 %v660
      %v894 = vpop.f32.mrb[0].mxu0
      %v895 = vadd.f32 0.0, %v894
      %v896 = vpop.f32.mrb[0].mxu0
      %897 = vmatprep.mubr.f32.mxu0 0.0
      %898 = vmatmul.mubr.f32.gmra.mrb[0].mxu0 %v661
      %v899 = vpop.f32.mrb[0].mxu0
      %v900 = vadd.f32 0.0, %v899
      %v901 = vpop.f32.mrb[0].mxu0
      %902 = vdwg.mxu0
      %903 = vmatprep.subr.mxu0 0.0
      %904 = vmatpush1.msra.mxu0 %v454
      %905 = vmatprep.subr.mxu0 0.0
      %906 = vmatpush1.msra.mxu0 %v455
      %907 = vmatprep.subr.mxu0 0.0
      %908 = vmatpush1.msra.mxu0 %v456
      %909 = vmatprep.subr.mxu0 0.0
      %910 = vmatpush1.msra.mxu0 %v457
      %911 = vmatprep.subr.mxu0 0.0
      %912 = vmatpush1.msra.mxu0 %v458
      %913 = vmatprep.subr.mxu0 0.0
      %914 = vmatpush1.msra.mxu0 %v459
      %915 = vmatprep.subr.mxu0 0.0
      %916 = vmatpush1.msra.mxu0 %v460
      %917 = vmatprep.subr.mxu0 0.0
      %918 = vmatpush1.msra.mxu0 %v461
      %919 = vmatprep.subr.mxu0 0.0
      %920 = vmatpush1.msra.mxu0 %v462
      %921 = vmatprep.subr.mxu0 0.0
      %922 = vmatpush1.msra.mxu0 %v463
      %923 = vmatprep.subr.mxu0 0.0
      %924 = vmatpush1.msra.mxu0 %v464
      %925 = vmatprep.subr.mxu0 0.0
      %926 = vmatpush1.msra.mxu0 %v465
      %927 = vmatprep.subr.mxu0 0.0
      %928 = vmatpush1.msra.mxu0 %v466
      %929 = vmatprep.subr.mxu0 0.0
      %930 = vmatpush1.msra.mxu0 %v467
      %931 = vmatprep.subr.mxu0 0.0
      %932 = vmatpush1.msra.mxu0 %v468
      %933 = vmatprep.subr.mxu0 0.0
      %934 = vmatpush1.msra.mxu0 %v469
      %935 = vmatprep.subr.mxu0 0.0
      %936 = vmatpush1.msra.mxu0 0.0
      %937 = vmatprep.subr.mxu0 0.0
      %938 = vmatpush1.msra.mxu0 0.0
      %939 = vmatprep.subr.mxu0 0.0
      %940 = vmatpush1.msra.mxu0 0.0
      %941 = vmatprep.subr.mxu0 0.0
      %942 = vmatpush1.msra.mxu0 0.0
      %943 = vmatprep.subr.mxu0 0.0
      %944 = vmatpush1.msra.mxu0 0.0
      %945 = vmatprep.subr.mxu0 0.0
      %946 = vmatpush1.msra.mxu0 0.0
      %947 = vmatprep.subr.mxu0 0.0
      %948 = vmatpush1.msra.mxu0 0.0
      %949 = vmatprep.subr.mxu0 0.0
      %950 = vmatpush1.msra.mxu0 0.0
      %951 = vmatprep.subr.mxu0 0.0
      %952 = vmatpush1.msra.mxu0 0.0
      %953 = vmatprep.subr.mxu0 0.0
      %954 = vmatpush1.msra.mxu0 0.0
      %955 = vmatprep.subr.mxu0 0.0
      %956 = vmatpush1.msra.mxu0 0.0
      %957 = vmatprep.subr.mxu0 0.0
      %958 = vmatpush1.msra.mxu0 0.0
      %959 = vmatprep.subr.mxu0 0.0
      %960 = vmatpush1.msra.mxu0 0.0
      %961 = vmatprep.subr.mxu0 0.0
      %962 = vmatpush1.msra.mxu0 0.0
      %963 = vmatprep.subr.mxu0 0.0
      %964 = vmatpush1.msra.mxu0 0.0
      %965 = vmatprep.subr.mxu0 0.0
      %966 = vmatpush1.msra.mxu0 0.0
      %967 = vmatprep.mubr.f32.mxu0 0.0
      %968 = vmatmul.mubr.f32.gmra.mrb[0].mxu0 %v422
      %v969 = vpop.f32.mrb[0].mxu0
      %v970 = vadd.f32 %v745, %v969
      %v971 = vpop.f32.mrb[0].mxu0
      %972 = vmatprep.mubr.f32.mxu0 0.0
      %973 = vmatmul.mubr.f32.gmra.mrb[0].mxu0 %v423
      %v974 = vpop.f32.mrb[0].mxu0
      %v975 = vadd.f32 %v750, %v974
      %v976 = vpop.f32.mrb[0].mxu0
      %977 = vmatprep.mubr.f32.mxu0 0.0
      %978 = vmatmul.mubr.f32.gmra.mrb[0].mxu0 %v424
      %v979 = vpop.f32.mrb[0].mxu0
      %v980 = vadd.f32 %v755, %v979
      %v981 = vpop.f32.mrb[0].mxu0
      %982 = vmatprep.mubr.f32.mxu0 0.0
      %983 = vmatmul.mubr.f32.gmra.mrb[0].mxu0 %v425
      %v984 = vpop.f32.mrb[0].mxu0
      %v985 = vadd.f32 %v760, %v984
      %v986 = vpop.f32.mrb[0].mxu0
      %987 = vmatprep.mubr.f32.mxu0 0.0
      %988 = vmatmul.mubr.f32.gmra.mrb[0].mxu0 %v426
      %v989 = vpop.f32.mrb[0].mxu0
      %v990 = vadd.f32 %v765, %v989
      %v991 = vpop.f32.mrb[0].mxu0
      %992 = vmatprep.mubr.f32.mxu0 0.0
      %993 = vmatmul.mubr.f32.gmra.mrb[0].mxu0 %v427
      %v994 = vpop.f32.mrb[0].mxu0
      %v995 = vadd.f32 %v770, %v994
      %v996 = vpop.f32.mrb[0].mxu0
      %997 = vmatprep.mubr.f32.mxu0 0.0
      %998 = vmatmul.mubr.f32.gmra.mrb[0].mxu0 %v428
      %v999 = vpop.f32.mrb[0].mxu0
      %v1000 = vadd.f32 %v775, %v999
      %v1001 = vpop.f32.mrb[0].mxu0
      %1002 = vmatprep.mubr.f32.mxu0 0.0
      %1003 = vmatmul.mubr.f32.gmra.mrb[0].mxu0 %v429
      %v1004 = vpop.f32.mrb[0].mxu0
      %v1005 = vadd.f32 %v780, %v1004
      %v1006 = vpop.f32.mrb[0].mxu0
      %1007 = vmatprep.mubr.f32.mxu0 0.0
      %1008 = vmatmul.mubr.f32.gmra.mrb[0].mxu0 %v430
      %v1009 = vpop.f32.mrb[0].mxu0
      %v1010 = vadd.f32 %v785, %v1009
      %v1011 = vpop.f32.mrb[0].mxu0
      %1012 = vmatprep.mubr.f32.mxu0 0.0
      %1013 = vmatmul.mubr.f32.gmra.mrb[0].mxu0 %v431
      %v1014 = vpop.f32.mrb[0].mxu0
      %v1015 = vadd.f32 %v790, %v1014
      %v1016 = vpop.f32.mrb[0].mxu0
      %1017 = vmatprep.mubr.f32.mxu0 0.0
      %1018 = vmatmul.mubr.f32.gmra.mrb[0].mxu0 %v432
      %v1019 = vpop.f32.mrb[0].mxu0
      %v1020 = vadd.f32 %v795, %v1019
      %v1021 = vpop.f32.mrb[0].mxu0
      %1022 = vmatprep.mubr.f32.mxu0 0.0
      %1023 = vmatmul.mubr.f32.gmra.mrb[0].mxu0 %v433
      %v1024 = vpop.f32.mrb[0].mxu0
      %v1025 = vadd.f32 %v800, %v1024
      %v1026 = vpop.f32.mrb[0].mxu0
      %1027 = vmatprep.mubr.f32.mxu0 0.0
      %1028 = vmatmul.mubr.f32.gmra.mrb[0].mxu0 %v434
      %v1029 = vpop.f32.mrb[0].mxu0
      %v1030 = vadd.f32 %v805, %v1029
      %v1031 = vpop.f32.mrb[0].mxu0
      %1032 = vmatprep.mubr.f32.mxu0 0.0
      %1033 = vmatmul.mubr.f32.gmra.mrb[0].mxu0 %v435
      %v1034 = vpop.f32.mrb[0].mxu0
      %v1035 = vadd.f32 %v810, %v1034
      %v1036 = vpop.f32.mrb[0].mxu0
      %1037 = vmatprep.mubr.f32.mxu0 0.0
      %1038 = vmatmul.mubr.f32.gmra.mrb[0].mxu0 %v436
      %v1039 = vpop.f32.mrb[0].mxu0
      %v1040 = vadd.f32 %v815, %v1039
      %v1041 = vpop.f32.mrb[0].mxu0
      %1042 = vmatprep.mubr.f32.mxu0 0.0
      %1043 = vmatmul.mubr.f32.gmra.mrb[0].mxu0 %v437
      %v1044 = vpop.f32.mrb[0].mxu0
      %v1045 = vadd.f32 %v820, %v1044
      %v1046 = vpop.f32.mrb[0].mxu0
      %1047 = vmatprep.mubr.f32.mxu0 0.0
      %1048 = vmatmul.mubr.f32.gmra.mrb[0].mxu0 %v438
      %v1049 = vpop.f32.mrb[0].mxu0
      %v1050 = vadd.f32 %v825, %v1049
      %v1051 = vpop.f32.mrb[0].mxu0
      %1052 = vmatprep.mubr.f32.mxu0 0.0
      %1053 = vmatmul.mubr.f32.gmra.mrb[0].mxu0 %v439
      %v1054 = vpop.f32.mrb[0].mxu0
      %v1055 = vadd.f32 %v830, %v1054
      %v1056 = vpop.f32.mrb[0].mxu0
      %1057 = vmatprep.mubr.f32.mxu0 0.0
      %1058 = vmatmul.mubr.f32.gmra.mrb[0].mxu0 %v440
      %v1059 = vpop.f32.mrb[0].mxu0
      %v1060 = vadd.f32 %v835, %v1059
      %v1061 = vpop.f32.mrb[0].mxu0
      %1062 = vmatprep.mubr.f32.mxu0 0.0
      %1063 = vmatmul.mubr.f32.gmra.mrb[0].mxu0 %v441
      %v1064 = vpop.f32.mrb[0].mxu0
      %v1065 = vadd.f32 %v840, %v1064
      %v1066 = vpop.f32.mrb[0].mxu0
      %1067 = vmatprep.mubr.f32.mxu0 0.0
      %1068 = vmatmul.mubr.f32.gmra.mrb[0].mxu0 %v442
      %v1069 = vpop.f32.mrb[0].mxu0
      %v1070 = vadd.f32 %v845, %v1069
      %v1071 = vpop.f32.mrb[0].mxu0
      %1072 = vmatprep.mubr.f32.mxu0 0.0
      %1073 = vmatmul.mubr.f32.gmra.mrb[0].mxu0 %v443
      %v1074 = vpop.f32.mrb[0].mxu0
      %v1075 = vadd.f32 %v850, %v1074
      %v1076 = vpop.f32.mrb[0].mxu0
      %1077 = vmatprep.mubr.f32.mxu0 0.0
      %1078 = vmatmul.mubr.f32.gmra.mrb[0].mxu0 %v444
      %v1079 = vpop.f32.mrb[0].mxu0
      %v1080 = vadd.f32 %v855, %v1079
      %v1081 = vpop.f32.mrb[0].mxu0
      %1082 = vmatprep.mubr.f32.mxu0 0.0
      %1083 = vmatmul.mubr.f32.gmra.mrb[0].mxu0 %v445
      %v1084 = vpop.f32.mrb[0].mxu0
      %v1085 = vadd.f32 %v860, %v1084
      %v1086 = vpop.f32.mrb[0].mxu0
      %1087 = vmatprep.mubr.f32.mxu0 0.0
      %1088 = vmatmul.mubr.f32.gmra.mrb[0].mxu0 %v446
      %v1089 = vpop.f32.mrb[0].mxu0
      %v1090 = vadd.f32 %v865, %v1089
      %v1091 = vpop.f32.mrb[0].mxu0
      %1092 = vmatprep.mubr.f32.mxu0 0.0
      %1093 = vmatmul.mubr.f32.gmra.mrb[0].mxu0 %v447
      %v1094 = vpop.f32.mrb[0].mxu0
      %v1095 = vadd.f32 %v870, %v1094
      %v1096 = vpop.f32.mrb[0].mxu0
      %1097 = vmatprep.mubr.f32.mxu0 0.0
      %1098 = vmatmul.mubr.f32.gmra.mrb[0].mxu0 %v448
      %v1099 = vpop.f32.mrb[0].mxu0
      %v1100 = vadd.f32 %v875, %v1099
      %v1101 = vpop.f32.mrb[0].mxu0
      %1102 = vmatprep.mubr.f32.mxu0 0.0
      %1103 = vmatmul.mubr.f32.gmra.mrb[0].mxu0 %v449
      %v1104 = vpop.f32.mrb[0].mxu0
      %v1105 = vadd.f32 %v880, %v1104
      %v1106 = vpop.f32.mrb[0].mxu0
      %1107 = vmatprep.mubr.f32.mxu0 0.0
      %1108 = vmatmul.mubr.f32.gmra.mrb[0].mxu0 %v450
      %v1109 = vpop.f32.mrb[0].mxu0
      %v1110 = vadd.f32 %v885, %v1109
      %v1111 = vpop.f32.mrb[0].mxu0
      %1112 = vmatprep.mubr.f32.mxu0 0.0
      %1113 = vmatmul.mubr.f32.gmra.mrb[0].mxu0 %v451
      %v1114 = vpop.f32.mrb[0].mxu0
      %v1115 = vadd.f32 %v890, %v1114
      %v1116 = vpop.f32.mrb[0].mxu0
      %1117 = vmatprep.mubr.f32.mxu0 0.0
      %1118 = vmatmul.mubr.f32.gmra.mrb[0].mxu0 %v452
      %v1119 = vpop.f32.mrb[0].mxu0
      %v1120 = vadd.f32 %v895, %v1119
      %v1121 = vpop.f32.mrb[0].mxu0
      %1122 = vmatprep.mubr.f32.mxu0 0.0
      %1123 = vmatmul.mubr.f32.gmra.mrb[0].mxu0 %v453
      %v1124 = vpop.f32.mrb[0].mxu0
      %v1125 = vadd.f32 %v900, %v1124
      %v1126 = vpop.f32.mrb[0].mxu0
      %1127 = vdwg.mxu0
      %1128 = vset.pattern.permute.xlu0 2
      %1129 = vperm.xlu0 %1128, %v228
      %v1130 = vpop.permute.xlu0 %1129
      %1131 = vset.pattern.permute.xlu0 2
      %1132 = vperm.xlu0 %1131, %v229
      %v1133 = vpop.permute.xlu0 %1132
      %1134 = vset.pattern.permute.xlu0 2
      %1135 = vperm.xlu0 %1134, %v230
      %v1136 = vpop.permute.xlu0 %1135
      %1137 = vset.pattern.permute.xlu0 2
      %1138 = vperm.xlu0 %1137, %v231
      %v1139 = vpop.permute.xlu0 %1138
      %1140 = vset.pattern.permute.xlu0 2
      %1141 = vperm.xlu0 %1140, %v232
      %v1142 = vpop.permute.xlu0 %1141
      %1143 = vset.pattern.permute.xlu0 2
      %1144 = vperm.xlu0 %1143, %v233
      %v1145 = vpop.permute.xlu0 %1144
      %1146 = vset.pattern.permute.xlu0 2
      %1147 = vperm.xlu0 %1146, %v234
      %v1148 = vpop.permute.xlu0 %1147
      %1149 = vset.pattern.permute.xlu0 2
      %1150 = vperm.xlu0 %1149, %v235
      %v1151 = vpop.permute.xlu0 %1150
      %1152 = vset.pattern.permute.xlu0 2
      %1153 = vperm.xlu0 %1152, %v236
      %v1154 = vpop.permute.xlu0 %1153
      %1155 = vset.pattern.permute.xlu0 2
      %1156 = vperm.xlu0 %1155, %v237
      %v1157 = vpop.permute.xlu0 %1156
      %1158 = vset.pattern.permute.xlu0 2
      %1159 = vperm.xlu0 %1158, %v238
      %v1160 = vpop.permute.xlu0 %1159
      %1161 = vset.pattern.permute.xlu0 2
      %1162 = vperm.xlu0 %1161, %v239
      %v1163 = vpop.permute.xlu0 %1162
      %1164 = vset.pattern.permute.xlu0 2
      %1165 = vperm.xlu0 %1164, %v240
      %v1166 = vpop.permute.xlu0 %1165
      %1167 = vset.pattern.permute.xlu0 2
      %1168 = vperm.xlu0 %1167, %v241
      %v1169 = vpop.permute.xlu0 %1168
      %1170 = vset.pattern.permute.xlu0 2
      %1171 = vperm.xlu0 %1170, %v242
      %v1172 = vpop.permute.xlu0 %1171
      %1173 = vset.pattern.permute.xlu0 2
      %1174 = vperm.xlu0 %1173, %v243
      %v1175 = vpop.permute.xlu0 %1174
      %1176 = vset.pattern.permute.xlu0 2
      %1177 = vperm.xlu0 %1176, %v244
      %v1178 = vpop.permute.xlu0 %1177
      %1179 = vset.pattern.permute.xlu0 2
      %1180 = vperm.xlu0 %1179, %v245
      %v1181 = vpop.permute.xlu0 %1180
      %1182 = vset.pattern.permute.xlu0 2
      %1183 = vperm.xlu0 %1182, %v246
      %v1184 = vpop.permute.xlu0 %1183
      %1185 = vset.pattern.permute.xlu0 2
      %1186 = vperm.xlu0 %1185, %v247
      %v1187 = vpop.permute.xlu0 %1186
      %1188 = vset.pattern.permute.xlu0 2
      %1189 = vperm.xlu0 %1188, %v248
      %v1190 = vpop.permute.xlu0 %1189
      %1191 = vset.pattern.permute.xlu0 2
      %1192 = vperm.xlu0 %1191, %v249
      %v1193 = vpop.permute.xlu0 %1192
      %1194 = vset.pattern.permute.xlu0 2
      %1195 = vperm.xlu0 %1194, %v250
      %v1196 = vpop.permute.xlu0 %1195
      %1197 = vset.pattern.permute.xlu0 2
      %1198 = vperm.xlu0 %1197, %v251
      %v1199 = vpop.permute.xlu0 %1198
      %1200 = vset.pattern.permute.xlu0 2
      %1201 = vperm.xlu0 %1200, %v252
      %v1202 = vpop.permute.xlu0 %1201
      %1203 = vset.pattern.permute.xlu0 2
      %1204 = vperm.xlu0 %1203, %v253
      %v1205 = vpop.permute.xlu0 %1204
      %1206 = vset.pattern.permute.xlu0 2
      %1207 = vperm.xlu0 %1206, %v254
      %v1208 = vpop.permute.xlu0 %1207
      %1209 = vset.pattern.permute.xlu0 2
      %1210 = vperm.xlu0 %1209, %v255
      %v1211 = vpop.permute.xlu0 %1210
      %1212 = vset.pattern.permute.xlu0 2
      %1213 = vperm.xlu0 %1212, %v256
      %v1214 = vpop.permute.xlu0 %1213
      %1215 = vset.pattern.permute.xlu0 2
      %1216 = vperm.xlu0 %1215, %v257
      %v1217 = vpop.permute.xlu0 %1216
      %1218 = vset.pattern.permute.xlu0 2
      %1219 = vperm.xlu0 %1218, %v258
      %v1220 = vpop.permute.xlu0 %1219
      %1221 = vset.pattern.permute.xlu0 2
      %1222 = vperm.xlu0 %1221, %v259
      %v1223 = vpop.permute.xlu0 %1222
      %vm1224 = vcmp.eq.s32.totalorder %v261, %v1130
      %vm1225 = vcmp.eq.s32.totalorder %v261, %v1133
      %vm1226 = vcmp.eq.s32.totalorder %v261, %v1136
      %vm1227 = vcmp.eq.s32.totalorder %v261, %v1139
      %vm1228 = vcmp.eq.s32.totalorder %v261, %v1142
      %vm1229 = vcmp.eq.s32.totalorder %v261, %v1145
      %vm1230 = vcmp.eq.s32.totalorder %v261, %v1148
      %vm1231 = vcmp.eq.s32.totalorder %v261, %v1151
      %vm1232 = vcmp.eq.s32.totalorder %v261, %v1154
      %vm1233 = vcmp.eq.s32.totalorder %v261, %v1157
      %vm1234 = vcmp.eq.s32.totalorder %v261, %v1160
      %vm1235 = vcmp.eq.s32.totalorder %v261, %v1163
      %vm1236 = vcmp.eq.s32.totalorder %v261, %v1166
      %vm1237 = vcmp.eq.s32.totalorder %v261, %v1169
      %vm1238 = vcmp.eq.s32.totalorder %v261, %v1172
      %vm1239 = vcmp.eq.s32.totalorder %v261, %v1175
      %vm1240 = vcmp.eq.s32.totalorder %v261, %v1178
      %vm1241 = vcmp.eq.s32.totalorder %v261, %v1181
      %vm1242 = vcmp.eq.s32.totalorder %v261, %v1184
      %vm1243 = vcmp.eq.s32.totalorder %v261, %v1187
      %vm1244 = vcmp.eq.s32.totalorder %v261, %v1190
      %vm1245 = vcmp.eq.s32.totalorder %v261, %v1193
      %vm1246 = vcmp.eq.s32.totalorder %v261, %v1196
      %vm1247 = vcmp.eq.s32.totalorder %v261, %v1199
      %vm1248 = vcmp.eq.s32.totalorder %v261, %v1202
      %vm1249 = vcmp.eq.s32.totalorder %v261, %v1205
      %vm1250 = vcmp.eq.s32.totalorder %v261, %v1208
      %vm1251 = vcmp.eq.s32.totalorder %v261, %v1211
      %vm1252 = vcmp.eq.s32.totalorder %v261, %v1214
      %vm1253 = vcmp.eq.s32.totalorder %v261, %v1217
      %vm1254 = vcmp.eq.s32.totalorder %v261, %v1220
      %vm1255 = vcmp.eq.s32.totalorder %v261, %v1223
      %v1256 = vsel %vm1224, 1, 0
      %v1257 = vsel %vm1225, 1, 0
      %v1258 = vsel %vm1226, 1, 0
      %v1259 = vsel %vm1227, 1, 0
      %v1260 = vsel %vm1228, 1, 0
      %v1261 = vsel %vm1229, 1, 0
      %v1262 = vsel %vm1230, 1, 0
      %v1263 = vsel %vm1231, 1, 0
      %v1264 = vsel %vm1232, 1, 0
      %v1265 = vsel %vm1233, 1, 0
      %v1266 = vsel %vm1234, 1, 0
      %v1267 = vsel %vm1235, 1, 0
      %v1268 = vsel %vm1236, 1, 0
      %v1269 = vsel %vm1237, 1, 0
      %v1270 = vsel %vm1238, 1, 0
      %v1271 = vsel %vm1239, 1, 0
      %v1272 = vsel %vm1240, 1, 0
      %v1273 = vsel %vm1241, 1, 0
      %v1274 = vsel %vm1242, 1, 0
      %v1275 = vsel %vm1243, 1, 0
      %v1276 = vsel %vm1244, 1, 0
      %v1277 = vsel %vm1245, 1, 0
      %v1278 = vsel %vm1246, 1, 0
      %v1279 = vsel %vm1247, 1, 0
      %v1280 = vsel %vm1248, 1, 0
      %v1281 = vsel %vm1249, 1, 0
      %v1282 = vsel %vm1250, 1, 0
      %v1283 = vsel %vm1251, 1, 0
      %v1284 = vsel %vm1252, 1, 0
      %v1285 = vsel %vm1253, 1, 0
      %v1286 = vsel %vm1254, 1, 0
      %v1287 = vsel %vm1255, 1, 0
      %v1288 = vcvt.s32.f32 %v1256
      %v1289 = vcvt.s32.f32 %v1257
      %v1290 = vcvt.s32.f32 %v1258
      %v1291 = vcvt.s32.f32 %v1259
      %v1292 = vcvt.s32.f32 %v1260
      %v1293 = vcvt.s32.f32 %v1261
      %v1294 = vcvt.s32.f32 %v1262
      %v1295 = vcvt.s32.f32 %v1263
      %v1296 = vcvt.s32.f32 %v1264
      %v1297 = vcvt.s32.f32 %v1265
      %v1298 = vcvt.s32.f32 %v1266
      %v1299 = vcvt.s32.f32 %v1267
      %v1300 = vcvt.s32.f32 %v1268
      %v1301 = vcvt.s32.f32 %v1269
      %v1302 = vcvt.s32.f32 %v1270
      %v1303 = vcvt.s32.f32 %v1271
      %v1304 = vcvt.s32.f32 %v1272
      %v1305 = vcvt.s32.f32 %v1273
      %v1306 = vcvt.s32.f32 %v1274
      %v1307 = vcvt.s32.f32 %v1275
      %v1308 = vcvt.s32.f32 %v1276
      %v1309 = vcvt.s32.f32 %v1277
      %v1310 = vcvt.s32.f32 %v1278
      %v1311 = vcvt.s32.f32 %v1279
      %v1312 = vcvt.s32.f32 %v1280
      %v1313 = vcvt.s32.f32 %v1281
      %v1314 = vcvt.s32.f32 %v1282
      %v1315 = vcvt.s32.f32 %v1283
      %v1316 = vcvt.s32.f32 %v1284
      %v1317 = vcvt.s32.f32 %v1285
      %v1318 = vcvt.s32.f32 %v1286
      %v1319 = vcvt.s32.f32 %v1287
      %v1320 = vld [vmem:[%s1 + $0x100] sm:$0xff]
      %v1321 = vld [vmem:[%s1 + $0x108] sm:$0xff]
      %v1322 = vld [vmem:[%s1 + $0x110] sm:$0xff]
      %v1323 = vld [vmem:[%s1 + $0x118] sm:$0xff]
      %v1324 = vld [vmem:[%s1 + $0x120] sm:$0xff]
      %v1325 = vld [vmem:[%s1 + $0x128] sm:$0xff]
      %v1326 = vld [vmem:[%s1 + $0x130] sm:$0xff]
      %v1327 = vld [vmem:[%s1 + $0x138] sm:$0xff]
      %v1328 = vld [vmem:[%s1 + $0x140] sm:$0xff]
      %v1329 = vld [vmem:[%s1 + $0x148] sm:$0xff]
      %v1330 = vld [vmem:[%s1 + $0x150] sm:$0xff]
      %v1331 = vld [vmem:[%s1 + $0x158] sm:$0xff]
      %v1332 = vld [vmem:[%s1 + $0x160] sm:$0xff]
      %v1333 = vld [vmem:[%s1 + $0x168] sm:$0xff]
      %v1334 = vld [vmem:[%s1 + $0x170] sm:$0xff]
      %v1335 = vld [vmem:[%s1 + $0x178] sm:$0xff]
      %1336 = vmatprep.subr.mxu0 0.0
      %1337 = vmatpush1.msra.mxu0 %v1320
      %1338 = vmatprep.subr.mxu0 0.0
      %1339 = vmatpush1.msra.mxu0 %v1321
      %1340 = vmatprep.subr.mxu0 0.0
      %1341 = vmatpush1.msra.mxu0 %v1322
      %1342 = vmatprep.subr.mxu0 0.0
      %1343 = vmatpush1.msra.mxu0 %v1323
      %1344 = vmatprep.subr.mxu0 0.0
      %1345 = vmatpush1.msra.mxu0 %v1324
      %1346 = vmatprep.subr.mxu0 0.0
      %1347 = vmatpush1.msra.mxu0 %v1325
      %1348 = vmatprep.subr.mxu0 0.0
      %1349 = vmatpush1.msra.mxu0 %v1326
      %1350 = vmatprep.subr.mxu0 0.0
      %1351 = vmatpush1.msra.mxu0 %v1327
      %1352 = vmatprep.subr.mxu0 0.0
      %1353 = vmatpush1.msra.mxu0 %v1328
      %1354 = vmatprep.subr.mxu0 0.0
      %1355 = vmatpush1.msra.mxu0 %v1329
      %1356 = vmatprep.subr.mxu0 0.0
      %1357 = vmatpush1.msra.mxu0 %v1330
      %1358 = vmatprep.subr.mxu0 0.0
      %1359 = vmatpush1.msra.mxu0 %v1331
      %1360 = vmatprep.subr.mxu0 0.0
      %1361 = vmatpush1.msra.mxu0 %v1332
      %1362 = vmatprep.subr.mxu0 0.0
      %1363 = vmatpush1.msra.mxu0 %v1333
      %1364 = vmatprep.subr.mxu0 0.0
      %1365 = vmatpush1.msra.mxu0 %v1334
      %1366 = vmatprep.subr.mxu0 0.0
      %1367 = vmatpush1.msra.mxu0 %v1335
      %1368 = vmatprep.subr.mxu0 0.0
      %1369 = vmatpush1.msra.mxu0 0.0
      %1370 = vmatprep.subr.mxu0 0.0
      %1371 = vmatpush1.msra.mxu0 0.0
      %1372 = vmatprep.subr.mxu0 0.0
      %1373 = vmatpush1.msra.mxu0 0.0
      %1374 = vmatprep.subr.mxu0 0.0
      %1375 = vmatpush1.msra.mxu0 0.0
      %1376 = vmatprep.subr.mxu0 0.0
      %1377 = vmatpush1.msra.mxu0 0.0
      %1378 = vmatprep.subr.mxu0 0.0
      %1379 = vmatpush1.msra.mxu0 0.0
      %1380 = vmatprep.subr.mxu0 0.0
      %1381 = vmatpush1.msra.mxu0 0.0
      %1382 = vmatprep.subr.mxu0 0.0
      %1383 = vmatpush1.msra.mxu0 0.0
      %1384 = vmatprep.subr.mxu0 0.0
      %1385 = vmatpush1.msra.mxu0 0.0
      %1386 = vmatprep.subr.mxu0 0.0
      %1387 = vmatpush1.msra.mxu0 0.0
      %1388 = vmatprep.subr.mxu0 0.0
      %1389 = vmatpush1.msra.mxu0 0.0
      %1390 = vmatprep.subr.mxu0 0.0
      %1391 = vmatpush1.msra.mxu0 0.0
      %1392 = vmatprep.subr.mxu0 0.0
      %1393 = vmatpush1.msra.mxu0 0.0
      %1394 = vmatprep.subr.mxu0 0.0
      %1395 = vmatpush1.msra.mxu0 0.0
      %1396 = vmatprep.subr.mxu0 0.0
      %1397 = vmatpush1.msra.mxu0 0.0
      %1398 = vmatprep.subr.mxu0 0.0
      %1399 = vmatpush1.msra.mxu0 0.0
      %1400 = vmatprep.mubr.f32.mxu0 0.0
      %1401 = vmatmul.mubr.f32.gmra.mrb[0].mxu0 %v1288
      %v1402 = vpop.f32.mrb[0].mxu0
      %v1403 = vadd.f32 0.0, %v1402
      %v1404 = vpop.f32.mrb[0].mxu0
      %1405 = vmatprep.mubr.f32.mxu0 0.0
      %1406 = vmatmul.mubr.f32.gmra.mrb[0].mxu0 %v1289
      %v1407 = vpop.f32.mrb[0].mxu0
      %v1408 = vadd.f32 0.0, %v1407
      %v1409 = vpop.f32.mrb[0].mxu0
      %1410 = vmatprep.mubr.f32.mxu0 0.0
      %1411 = vmatmul.mubr.f32.gmra.mrb[0].mxu0 %v1290
      %v1412 = vpop.f32.mrb[0].mxu0
      %v1413 = vadd.f32 0.0, %v1412
      %v1414 = vpop.f32.mrb[0].mxu0
      %1415 = vmatprep.mubr.f32.mxu0 0.0
      %1416 = vmatmul.mubr.f32.gmra.mrb[0].mxu0 %v1291
      %v1417 = vpop.f32.mrb[0].mxu0
      %v1418 = vadd.f32 0.0, %v1417
      %v1419 = vpop.f32.mrb[0].mxu0
      %1420 = vmatprep.mubr.f32.mxu0 0.0
      %1421 = vmatmul.mubr.f32.gmra.mrb[0].mxu0 %v1292
      %v1422 = vpop.f32.mrb[0].mxu0
      %v1423 = vadd.f32 0.0, %v1422
      %v1424 = vpop.f32.mrb[0].mxu0
      %1425 = vmatprep.mubr.f32.mxu0 0.0
      %1426 = vmatmul.mubr.f32.gmra.mrb[0].mxu0 %v1293
      %v1427 = vpop.f32.mrb[0].mxu0
      %v1428 = vadd.f32 0.0, %v1427
      %v1429 = vpop.f32.mrb[0].mxu0
      %1430 = vmatprep.mubr.f32.mxu0 0.0
      %1431 = vmatmul.mubr.f32.gmra.mrb[0].mxu0 %v1294
      %v1432 = vpop.f32.mrb[0].mxu0
      %v1433 = vadd.f32 0.0, %v1432
      %v1434 = vpop.f32.mrb[0].mxu0
      %1435 = vmatprep.mubr.f32.mxu0 0.0
      %1436 = vmatmul.mubr.f32.gmra.mrb[0].mxu0 %v1295
      %v1437 = vpop.f32.mrb[0].mxu0
      %v1438 = vadd.f32 0.0, %v1437
      %v1439 = vpop.f32.mrb[0].mxu0
      %1440 = vmatprep.mubr.f32.mxu0 0.0
      %1441 = vmatmul.mubr.f32.gmra.mrb[0].mxu0 %v1296
      %v1442 = vpop.f32.mrb[0].mxu0
      %v1443 = vadd.f32 0.0, %v1442
      %v1444 = vpop.f32.mrb[0].mxu0
      %1445 = vmatprep.mubr.f32.mxu0 0.0
      %1446 = vmatmul.mubr.f32.gmra.mrb[0].mxu0 %v1297
      %v1447 = vpop.f32.mrb[0].mxu0
      %v1448 = vadd.f32 0.0, %v1447
      %v1449 = vpop.f32.mrb[0].mxu0
      %1450 = vmatprep.mubr.f32.mxu0 0.0
      %1451 = vmatmul.mubr.f32.gmra.mrb[0].mxu0 %v1298
      %v1452 = vpop.f32.mrb[0].mxu0
      %v1453 = vadd.f32 0.0, %v1452
      %v1454 = vpop.f32.mrb[0].mxu0
      %1455 = vmatprep.mubr.f32.mxu0 0.0
      %1456 = vmatmul.mubr.f32.gmra.mrb[0].mxu0 %v1299
      %v1457 = vpop.f32.mrb[0].mxu0
      %v1458 = vadd.f32 0.0, %v1457
      %v1459 = vpop.f32.mrb[0].mxu0
      %1460 = vmatprep.mubr.f32.mxu0 0.0
      %1461 = vmatmul.mubr.f32.gmra.mrb[0].mxu0 %v1300
      %v1462 = vpop.f32.mrb[0].mxu0
      %v1463 = vadd.f32 0.0, %v1462
      %v1464 = vpop.f32.mrb[0].mxu0
      %1465 = vmatprep.mubr.f32.mxu0 0.0
      %1466 = vmatmul.mubr.f32.gmra.mrb[0].mxu0 %v1301
      %v1467 = vpop.f32.mrb[0].mxu0
      %v1468 = vadd.f32 0.0, %v1467
      %v1469 = vpop.f32.mrb[0].mxu0
      %1470 = vmatprep.mubr.f32.mxu0 0.0
      %1471 = vmatmul.mubr.f32.gmra.mrb[0].mxu0 %v1302
      %v1472 = vpop.f32.mrb[0].mxu0
      %v1473 = vadd.f32 0.0, %v1472
      %v1474 = vpop.f32.mrb[0].mxu0
      %1475 = vmatprep.mubr.f32.mxu0 0.0
      %1476 = vmatmul.mubr.f32.gmra.mrb[0].mxu0 %v1303
      %v1477 = vpop.f32.mrb[0].mxu0
      %v1478 = vadd.f32 0.0, %v1477
      %v1479 = vpop.f32.mrb[0].mxu0
      %1480 = vmatprep.mubr.f32.mxu0 0.0
      %1481 = vmatmul.mubr.f32.gmra.mrb[0].mxu0 %v1304
      %v1482 = vpop.f32.mrb[0].mxu0
      %v1483 = vadd.f32 0.0, %v1482
      %v1484 = vpop.f32.mrb[0].mxu0
      %1485 = vmatprep.mubr.f32.mxu0 0.0
      %1486 = vmatmul.mubr.f32.gmra.mrb[0].mxu0 %v1305
      %v1487 = vpop.f32.mrb[0].mxu0
      %v1488 = vadd.f32 0.0, %v1487
      %v1489 = vpop.f32.mrb[0].mxu0
      %1490 = vmatprep.mubr.f32.mxu0 0.0
      %1491 = vmatmul.mubr.f32.gmra.mrb[0].mxu0 %v1306
      %v1492 = vpop.f32.mrb[0].mxu0
      %v1493 = vadd.f32 0.0, %v1492
      %v1494 = vpop.f32.mrb[0].mxu0
      %1495 = vmatprep.mubr.f32.mxu0 0.0
      %1496 = vmatmul.mubr.f32.gmra.mrb[0].mxu0 %v1307
      %v1497 = vpop.f32.mrb[0].mxu0
      %v1498 = vadd.f32 0.0, %v1497
      %v1499 = vpop.f32.mrb[0].mxu0
      %1500 = vmatprep.mubr.f32.mxu0 0.0
      %1501 = vmatmul.mubr.f32.gmra.mrb[0].mxu0 %v1308
      %v1502 = vpop.f32.mrb[0].mxu0
      %v1503 = vadd.f32 0.0, %v1502
      %v1504 = vpop.f32.mrb[0].mxu0
      %1505 = vmatprep.mubr.f32.mxu0 0.0
      %1506 = vmatmul.mubr.f32.gmra.mrb[0].mxu0 %v1309
      %v1507 = vpop.f32.mrb[0].mxu0
      %v1508 = vadd.f32 0.0, %v1507
      %v1509 = vpop.f32.mrb[0].mxu0
      %1510 = vmatprep.mubr.f32.mxu0 0.0
      %1511 = vmatmul.mubr.f32.gmra.mrb[0].mxu0 %v1310
      %v1512 = vpop.f32.mrb[0].mxu0
      %v1513 = vadd.f32 0.0, %v1512
      %v1514 = vpop.f32.mrb[0].mxu0
      %1515 = vmatprep.mubr.f32.mxu0 0.0
      %1516 = vmatmul.mubr.f32.gmra.mrb[0].mxu0 %v1311
      %v1517 = vpop.f32.mrb[0].mxu0
      %v1518 = vadd.f32 0.0, %v1517
      %v1519 = vpop.f32.mrb[0].mxu0
      %1520 = vmatprep.mubr.f32.mxu0 0.0
      %1521 = vmatmul.mubr.f32.gmra.mrb[0].mxu0 %v1312
      %v1522 = vpop.f32.mrb[0].mxu0
      %v1523 = vadd.f32 0.0, %v1522
      %v1524 = vpop.f32.mrb[0].mxu0
      %1525 = vmatprep.mubr.f32.mxu0 0.0
      %1526 = vmatmul.mubr.f32.gmra.mrb[0].mxu0 %v1313
      %v1527 = vpop.f32.mrb[0].mxu0
      %v1528 = vadd.f32 0.0, %v1527
      %v1529 = vpop.f32.mrb[0].mxu0
      %1530 = vmatprep.mubr.f32.mxu0 0.0
      %1531 = vmatmul.mubr.f32.gmra.mrb[0].mxu0 %v1314
      %v1532 = vpop.f32.mrb[0].mxu0
      %v1533 = vadd.f32 0.0, %v1532
      %v1534 = vpop.f32.mrb[0].mxu0
      %1535 = vmatprep.mubr.f32.mxu0 0.0
      %1536 = vmatmul.mubr.f32.gmra.mrb[0].mxu0 %v1315
      %v1537 = vpop.f32.mrb[0].mxu0
      %v1538 = vadd.f32 0.0, %v1537
      %v1539 = vpop.f32.mrb[0].mxu0
      %1540 = vmatprep.mubr.f32.mxu0 0.0
      %1541 = vmatmul.mubr.f32.gmra.mrb[0].mxu0 %v1316
      %v1542 = vpop.f32.mrb[0].mxu0
      %v1543 = vadd.f32 0.0, %v1542
      %v1544 = vpop.f32.mrb[0].mxu0
      %1545 = vmatprep.mubr.f32.mxu0 0.0
      %1546 = vmatmul.mubr.f32.gmra.mrb[0].mxu0 %v1317
      %v1547 = vpop.f32.mrb[0].mxu0
      %v1548 = vadd.f32 0.0, %v1547
      %v1549 = vpop.f32.mrb[0].mxu0
      %1550 = vmatprep.mubr.f32.mxu0 0.0
      %1551 = vmatmul.mubr.f32.gmra.mrb[0].mxu0 %v1318
      %v1552 = vpop.f32.mrb[0].mxu0
      %v1553 = vadd.f32 0.0, %v1552
      %v1554 = vpop.f32.mrb[0].mxu0
      %1555 = vmatprep.mubr.f32.mxu0 0.0
      %1556 = vmatmul.mubr.f32.gmra.mrb[0].mxu0 %v1319
      %v1557 = vpop.f32.mrb[0].mxu0
      %v1558 = vadd.f32 0.0, %v1557
      %v1559 = vpop.f32.mrb[0].mxu0
      %1560 = vdwg.mxu0
      %v1561 = vadd.f32 %v970, %v1403
      %v1562 = vadd.f32 %v975, %v1408
      %v1563 = vadd.f32 %v980, %v1413
      %v1564 = vadd.f32 %v985, %v1418
      %v1565 = vadd.f32 %v990, %v1423
      %v1566 = vadd.f32 %v995, %v1428
      %v1567 = vadd.f32 %v1000, %v1433
      %v1568 = vadd.f32 %v1005, %v1438
      %v1569 = vadd.f32 %v1010, %v1443
      %v1570 = vadd.f32 %v1015, %v1448
      %v1571 = vadd.f32 %v1020, %v1453
      %v1572 = vadd.f32 %v1025, %v1458
      %v1573 = vadd.f32 %v1030, %v1463
      %v1574 = vadd.f32 %v1035, %v1468
      %v1575 = vadd.f32 %v1040, %v1473
      %v1576 = vadd.f32 %v1045, %v1478
      %v1577 = vadd.f32 %v1050, %v1483
      %v1578 = vadd.f32 %v1055, %v1488
      %v1579 = vadd.f32 %v1060, %v1493
      %v1580 = vadd.f32 %v1065, %v1498
      %v1581 = vadd.f32 %v1070, %v1503
      %v1582 = vadd.f32 %v1075, %v1508
      %v1583 = vadd.f32 %v1080, %v1513
      %v1584 = vadd.f32 %v1085, %v1518
      %v1585 = vadd.f32 %v1090, %v1523
      %v1586 = vadd.f32 %v1095, %v1528
      %v1587 = vadd.f32 %v1100, %v1533
      %v1588 = vadd.f32 %v1105, %v1538
      %v1589 = vadd.f32 %v1110, %v1543
      %v1590 = vadd.f32 %v1115, %v1548
      %v1591 = vadd.f32 %v1120, %v1553
      %v1592 = vadd.f32 %v1125, %v1558
      %1593 = vset.pattern.permute.xlu0 3
      %1594 = vperm.xlu0 %1593, %v228
      %v1595 = vpop.permute.xlu0 %1594
      %1596 = vset.pattern.permute.xlu0 3
      %1597 = vperm.xlu0 %1596, %v229
      %v1598 = vpop.permute.xlu0 %1597
      %1599 = vset.pattern.permute.xlu0 3
      %1600 = vperm.xlu0 %1599, %v230
      %v1601 = vpop.permute.xlu0 %1600
      %1602 = vset.pattern.permute.xlu0 3
      %1603 = vperm.xlu0 %1602, %v231
      %v1604 = vpop.permute.xlu0 %1603
      %1605 = vset.pattern.permute.xlu0 3
      %1606 = vperm.xlu0 %1605, %v232
      %v1607 = vpop.permute.xlu0 %1606
      %1608 = vset.pattern.permute.xlu0 3
      %1609 = vperm.xlu0 %1608, %v233
      %v1610 = vpop.permute.xlu0 %1609
      %1611 = vset.pattern.permute.xlu0 3
      %1612 = vperm.xlu0 %1611, %v234
      %v1613 = vpop.permute.xlu0 %1612
      %1614 = vset.pattern.permute.xlu0 3
      %1615 = vperm.xlu0 %1614, %v235
      %v1616 = vpop.permute.xlu0 %1615
      %1617 = vset.pattern.permute.xlu0 3
      %1618 = vperm.xlu0 %1617, %v236
      %v1619 = vpop.permute.xlu0 %1618
      %1620 = vset.pattern.permute.xlu0 3
      %1621 = vperm.xlu0 %1620, %v237
      %v1622 = vpop.permute.xlu0 %1621
      %1623 = vset.pattern.permute.xlu0 3
      %1624 = vperm.xlu0 %1623, %v238
      %v1625 = vpop.permute.xlu0 %1624
      %1626 = vset.pattern.permute.xlu0 3
      %1627 = vperm.xlu0 %1626, %v239
      %v1628 = vpop.permute.xlu0 %1627
      %1629 = vset.pattern.permute.xlu0 3
      %1630 = vperm.xlu0 %1629, %v240
      %v1631 = vpop.permute.xlu0 %1630
      %1632 = vset.pattern.permute.xlu0 3
      %1633 = vperm.xlu0 %1632, %v241
      %v1634 = vpop.permute.xlu0 %1633
      %1635 = vset.pattern.permute.xlu0 3
      %1636 = vperm.xlu0 %1635, %v242
      %v1637 = vpop.permute.xlu0 %1636
      %1638 = vset.pattern.permute.xlu0 3
      %1639 = vperm.xlu0 %1638, %v243
      %v1640 = vpop.permute.xlu0 %1639
      %1641 = vset.pattern.permute.xlu0 3
      %1642 = vperm.xlu0 %1641, %v244
      %v1643 = vpop.permute.xlu0 %1642
      %1644 = vset.pattern.permute.xlu0 3
      %1645 = vperm.xlu0 %1644, %v245
      %v1646 = vpop.permute.xlu0 %1645
      %1647 = vset.pattern.permute.xlu0 3
      %1648 = vperm.xlu0 %1647, %v246
      %v1649 = vpop.permute.xlu0 %1648
      %1650 = vset.pattern.permute.xlu0 3
      %1651 = vperm.xlu0 %1650, %v247
      %v1652 = vpop.permute.xlu0 %1651
      %1653 = vset.pattern.permute.xlu0 3
      %1654 = vperm.xlu0 %1653, %v248
      %v1655 = vpop.permute.xlu0 %1654
      %1656 = vset.pattern.permute.xlu0 3
      %1657 = vperm.xlu0 %1656, %v249
      %v1658 = vpop.permute.xlu0 %1657
      %1659 = vset.pattern.permute.xlu0 3
      %1660 = vperm.xlu0 %1659, %v250
      %v1661 = vpop.permute.xlu0 %1660
      %1662 = vset.pattern.permute.xlu0 3
      %1663 = vperm.xlu0 %1662, %v251
      %v1664 = vpop.permute.xlu0 %1663
      %1665 = vset.pattern.permute.xlu0 3
      %1666 = vperm.xlu0 %1665, %v252
      %v1667 = vpop.permute.xlu0 %1666
      %1668 = vset.pattern.permute.xlu0 3
      %1669 = vperm.xlu0 %1668, %v253
      %v1670 = vpop.permute.xlu0 %1669
      %1671 = vset.pattern.permute.xlu0 3
      %1672 = vperm.xlu0 %1671, %v254
      %v1673 = vpop.permute.xlu0 %1672
      %1674 = vset.pattern.permute.xlu0 3
      %1675 = vperm.xlu0 %1674, %v255
      %v1676 = vpop.permute.xlu0 %1675
      %1677 = vset.pattern.permute.xlu0 3
      %1678 = vperm.xlu0 %1677, %v256
      %v1679 = vpop.permute.xlu0 %1678
      %1680 = vset.pattern.permute.xlu0 3
      %1681 = vperm.xlu0 %1680, %v257
      %v1682 = vpop.permute.xlu0 %1681
      %1683 = vset.pattern.permute.xlu0 3
      %1684 = vperm.xlu0 %1683, %v258
      %v1685 = vpop.permute.xlu0 %1684
      %1686 = vset.pattern.permute.xlu0 3
      %1687 = vperm.xlu0 %1686, %v259
      %v1688 = vpop.permute.xlu0 %1687
      %vm1689 = vcmp.eq.s32.totalorder %v261, %v1595
      %vm1690 = vcmp.eq.s32.totalorder %v261, %v1598
      %vm1691 = vcmp.eq.s32.totalorder %v261, %v1601
      %vm1692 = vcmp.eq.s32.totalorder %v261, %v1604
      %vm1693 = vcmp.eq.s32.totalorder %v261, %v1607
      %vm1694 = vcmp.eq.s32.totalorder %v261, %v1610
      %vm1695 = vcmp.eq.s32.totalorder %v261, %v1613
      %vm1696 = vcmp.eq.s32.totalorder %v261, %v1616
      %vm1697 = vcmp.eq.s32.totalorder %v261, %v1619
      %vm1698 = vcmp.eq.s32.totalorder %v261, %v1622
      %vm1699 = vcmp.eq.s32.totalorder %v261, %v1625
      %vm1700 = vcmp.eq.s32.totalorder %v261, %v1628
      %vm1701 = vcmp.eq.s32.totalorder %v261, %v1631
      %vm1702 = vcmp.eq.s32.totalorder %v261, %v1634
      %vm1703 = vcmp.eq.s32.totalorder %v261, %v1637
      %vm1704 = vcmp.eq.s32.totalorder %v261, %v1640
      %vm1705 = vcmp.eq.s32.totalorder %v261, %v1643
      %vm1706 = vcmp.eq.s32.totalorder %v261, %v1646
      %vm1707 = vcmp.eq.s32.totalorder %v261, %v1649
      %vm1708 = vcmp.eq.s32.totalorder %v261, %v1652
      %vm1709 = vcmp.eq.s32.totalorder %v261, %v1655
      %vm1710 = vcmp.eq.s32.totalorder %v261, %v1658
      %vm1711 = vcmp.eq.s32.totalorder %v261, %v1661
      %vm1712 = vcmp.eq.s32.totalorder %v261, %v1664
      %vm1713 = vcmp.eq.s32.totalorder %v261, %v1667
      %vm1714 = vcmp.eq.s32.totalorder %v261, %v1670
      %vm1715 = vcmp.eq.s32.totalorder %v261, %v1673
      %vm1716 = vcmp.eq.s32.totalorder %v261, %v1676
      %vm1717 = vcmp.eq.s32.totalorder %v261, %v1679
      %vm1718 = vcmp.eq.s32.totalorder %v261, %v1682
      %vm1719 = vcmp.eq.s32.totalorder %v261, %v1685
      %vm1720 = vcmp.eq.s32.totalorder %v261, %v1688
      %v1721 = vsel %vm1689, 1, 0
      %v1722 = vsel %vm1690, 1, 0
      %v1723 = vsel %vm1691, 1, 0
      %v1724 = vsel %vm1692, 1, 0
      %v1725 = vsel %vm1693, 1, 0
      %v1726 = vsel %vm1694, 1, 0
      %v1727 = vsel %vm1695, 1, 0
      %v1728 = vsel %vm1696, 1, 0
      %v1729 = vsel %vm1697, 1, 0
      %v1730 = vsel %vm1698, 1, 0
      %v1731 = vsel %vm1699, 1, 0
      %v1732 = vsel %vm1700, 1, 0
      %v1733 = vsel %vm1701, 1, 0
      %v1734 = vsel %vm1702, 1, 0
      %v1735 = vsel %vm1703, 1, 0
      %v1736 = vsel %vm1704, 1, 0
      %v1737 = vsel %vm1705, 1, 0
      %v1738 = vsel %vm1706, 1, 0
      %v1739 = vsel %vm1707, 1, 0
      %v1740 = vsel %vm1708, 1, 0
      %v1741 = vsel %vm1709, 1, 0
      %v1742 = vsel %vm1710, 1, 0
      %v1743 = vsel %vm1711, 1, 0
      %v1744 = vsel %vm1712, 1, 0
      %v1745 = vsel %vm1713, 1, 0
      %v1746 = vsel %vm1714, 1, 0
      %v1747 = vsel %vm1715, 1, 0
      %v1748 = vsel %vm1716, 1, 0
      %v1749 = vsel %vm1717, 1, 0
      %v1750 = vsel %vm1718, 1, 0
      %v1751 = vsel %vm1719, 1, 0
      %v1752 = vsel %vm1720, 1, 0
      %v1753 = vcvt.s32.f32 %v1721
      %v1754 = vcvt.s32.f32 %v1722
      %v1755 = vcvt.s32.f32 %v1723
      %v1756 = vcvt.s32.f32 %v1724
      %v1757 = vcvt.s32.f32 %v1725
      %v1758 = vcvt.s32.f32 %v1726
      %v1759 = vcvt.s32.f32 %v1727
      %v1760 = vcvt.s32.f32 %v1728
      %v1761 = vcvt.s32.f32 %v1729
      %v1762 = vcvt.s32.f32 %v1730
      %v1763 = vcvt.s32.f32 %v1731
      %v1764 = vcvt.s32.f32 %v1732
      %v1765 = vcvt.s32.f32 %v1733
      %v1766 = vcvt.s32.f32 %v1734
      %v1767 = vcvt.s32.f32 %v1735
      %v1768 = vcvt.s32.f32 %v1736
      %v1769 = vcvt.s32.f32 %v1737
      %v1770 = vcvt.s32.f32 %v1738
      %v1771 = vcvt.s32.f32 %v1739
      %v1772 = vcvt.s32.f32 %v1740
      %v1773 = vcvt.s32.f32 %v1741
      %v1774 = vcvt.s32.f32 %v1742
      %v1775 = vcvt.s32.f32 %v1743
      %v1776 = vcvt.s32.f32 %v1744
      %v1777 = vcvt.s32.f32 %v1745
      %v1778 = vcvt.s32.f32 %v1746
      %v1779 = vcvt.s32.f32 %v1747
      %v1780 = vcvt.s32.f32 %v1748
      %v1781 = vcvt.s32.f32 %v1749
      %v1782 = vcvt.s32.f32 %v1750
      %v1783 = vcvt.s32.f32 %v1751
      %v1784 = vcvt.s32.f32 %v1752
      %v1785 = vld [vmem:[%s1 + $0x180] sm:$0xff]
      %v1786 = vld [vmem:[%s1 + $0x188] sm:$0xff]
      %v1787 = vld [vmem:[%s1 + $0x190] sm:$0xff]
      %v1788 = vld [vmem:[%s1 + $0x198] sm:$0xff]
      %v1789 = vld [vmem:[%s1 + $0x1a0] sm:$0xff]
      %v1790 = vld [vmem:[%s1 + $0x1a8] sm:$0xff]
      %v1791 = vld [vmem:[%s1 + $0x1b0] sm:$0xff]
      %v1792 = vld [vmem:[%s1 + $0x1b8] sm:$0xff]
      %v1793 = vld [vmem:[%s1 + $0x1c0] sm:$0xff]
      %v1794 = vld [vmem:[%s1 + $0x1c8] sm:$0xff]
      %v1795 = vld [vmem:[%s1 + $0x1d0] sm:$0xff]
      %v1796 = vld [vmem:[%s1 + $0x1d8] sm:$0xff]
      %v1797 = vld [vmem:[%s1 + $0x1e0] sm:$0xff]
      %v1798 = vld [vmem:[%s1 + $0x1e8] sm:$0xff]
      %v1799 = vld [vmem:[%s1 + $0x1f0] sm:$0xff]
      %v1800 = vld [vmem:[%s1 + $0x1f8] sm:$0xff]
      %1801 = vmatprep.subr.mxu0 0.0
      %1802 = vmatpush1.msra.mxu0 %v1785
      %1803 = vmatprep.subr.mxu0 0.0
      %1804 = vmatpush1.msra.mxu0 %v1786
      %1805 = vmatprep.subr.mxu0 0.0
      %1806 = vmatpush1.msra.mxu0 %v1787
      %1807 = vmatprep.subr.mxu0 0.0
      %1808 = vmatpush1.msra.mxu0 %v1788
      %1809 = vmatprep.subr.mxu0 0.0
      %1810 = vmatpush1.msra.mxu0 %v1789
      %1811 = vmatprep.subr.mxu0 0.0
      %1812 = vmatpush1.msra.mxu0 %v1790
      %1813 = vmatprep.subr.mxu0 0.0
      %1814 = vmatpush1.msra.mxu0 %v1791
      %1815 = vmatprep.subr.mxu0 0.0
      %1816 = vmatpush1.msra.mxu0 %v1792
      %1817 = vmatprep.subr.mxu0 0.0
      %1818 = vmatpush1.msra.mxu0 %v1793
      %1819 = vmatprep.subr.mxu0 0.0
      %1820 = vmatpush1.msra.mxu0 %v1794
      %1821 = vmatprep.subr.mxu0 0.0
      %1822 = vmatpush1.msra.mxu0 %v1795
      %1823 = vmatprep.subr.mxu0 0.0
      %1824 = vmatpush1.msra.mxu0 %v1796
      %1825 = vmatprep.subr.mxu0 0.0
      %1826 = vmatpush1.msra.mxu0 %v1797
      %1827 = vmatprep.subr.mxu0 0.0
      %1828 = vmatpush1.msra.mxu0 %v1798
      %1829 = vmatprep.subr.mxu0 0.0
      %1830 = vmatpush1.msra.mxu0 %v1799
      %1831 = vmatprep.subr.mxu0 0.0
      %1832 = vmatpush1.msra.mxu0 %v1800
      %1833 = vmatprep.subr.mxu0 0.0
      %1834 = vmatpush1.msra.mxu0 0.0
      %1835 = vmatprep.subr.mxu0 0.0
      %1836 = vmatpush1.msra.mxu0 0.0
      %1837 = vmatprep.subr.mxu0 0.0
      %1838 = vmatpush1.msra.mxu0 0.0
      %1839 = vmatprep.subr.mxu0 0.0
      %1840 = vmatpush1.msra.mxu0 0.0
      %1841 = vmatprep.subr.mxu0 0.0
      %1842 = vmatpush1.msra.mxu0 0.0
      %1843 = vmatprep.subr.mxu0 0.0
      %1844 = vmatpush1.msra.mxu0 0.0
      %1845 = vmatprep.subr.mxu0 0.0
      %1846 = vmatpush1.msra.mxu0 0.0
      %1847 = vmatprep.subr.mxu0 0.0
      %1848 = vmatpush1.msra.mxu0 0.0
      %1849 = vmatprep.subr.mxu0 0.0
      %1850 = vmatpush1.msra.mxu0 0.0
      %1851 = vmatprep.subr.mxu0 0.0
      %1852 = vmatpush1.msra.mxu0 0.0
      %1853 = vmatprep.subr.mxu0 0.0
      %1854 = vmatpush1.msra.mxu0 0.0
      %1855 = vmatprep.subr.mxu0 0.0
      %1856 = vmatpush1.msra.mxu0 0.0
      %1857 = vmatprep.subr.mxu0 0.0
      %1858 = vmatpush1.msra.mxu0 0.0
      %1859 = vmatprep.subr.mxu0 0.0
      %1860 = vmatpush1.msra.mxu0 0.0
      %1861 = vmatprep.subr.mxu0 0.0
      %1862 = vmatpush1.msra.mxu0 0.0
      %1863 = vmatprep.subr.mxu0 0.0
      %1864 = vmatpush1.msra.mxu0 0.0
      %1865 = vmatprep.mubr.f32.mxu0 0.0
      %1866 = vmatmul.mubr.f32.gmra.mrb[0].mxu0 %v1753
      %v1867 = vpop.f32.mrb[0].mxu0
      %v1868 = vadd.f32 0.0, %v1867
      %v1869 = vpop.f32.mrb[0].mxu0
      %1870 = vmatprep.mubr.f32.mxu0 0.0
      %1871 = vmatmul.mubr.f32.gmra.mrb[0].mxu0 %v1754
      %v1872 = vpop.f32.mrb[0].mxu0
      %v1873 = vadd.f32 0.0, %v1872
      %v1874 = vpop.f32.mrb[0].mxu0
      %1875 = vmatprep.mubr.f32.mxu0 0.0
      %1876 = vmatmul.mubr.f32.gmra.mrb[0].mxu0 %v1755
      %v1877 = vpop.f32.mrb[0].mxu0
      %v1878 = vadd.f32 0.0, %v1877
      %v1879 = vpop.f32.mrb[0].mxu0
      %1880 = vmatprep.mubr.f32.mxu0 0.0
      %1881 = vmatmul.mubr.f32.gmra.mrb[0].mxu0 %v1756
      %v1882 = vpop.f32.mrb[0].mxu0
      %v1883 = vadd.f32 0.0, %v1882
      %v1884 = vpop.f32.mrb[0].mxu0
      %1885 = vmatprep.mubr.f32.mxu0 0.0
      %1886 = vmatmul.mubr.f32.gmra.mrb[0].mxu0 %v1757
      %v1887 = vpop.f32.mrb[0].mxu0
      %v1888 = vadd.f32 0.0, %v1887
      %v1889 = vpop.f32.mrb[0].mxu0
      %1890 = vmatprep.mubr.f32.mxu0 0.0
      %1891 = vmatmul.mubr.f32.gmra.mrb[0].mxu0 %v1758
      %v1892 = vpop.f32.mrb[0].mxu0
      %v1893 = vadd.f32 0.0, %v1892
      %v1894 = vpop.f32.mrb[0].mxu0
      %1895 = vmatprep.mubr.f32.mxu0 0.0
      %1896 = vmatmul.mubr.f32.gmra.mrb[0].mxu0 %v1759
      %v1897 = vpop.f32.mrb[0].mxu0
      %v1898 = vadd.f32 0.0, %v1897
      %v1899 = vpop.f32.mrb[0].mxu0
      %1900 = vmatprep.mubr.f32.mxu0 0.0
      %1901 = vmatmul.mubr.f32.gmra.mrb[0].mxu0 %v1760
      %v1902 = vpop.f32.mrb[0].mxu0
      %v1903 = vadd.f32 0.0, %v1902
      %v1904 = vpop.f32.mrb[0].mxu0
      %1905 = vmatprep.mubr.f32.mxu0 0.0
      %1906 = vmatmul.mubr.f32.gmra.mrb[0].mxu0 %v1761
      %v1907 = vpop.f32.mrb[0].mxu0
      %v1908 = vadd.f32 0.0, %v1907
      %v1909 = vpop.f32.mrb[0].mxu0
      %1910 = vmatprep.mubr.f32.mxu0 0.0
      %1911 = vmatmul.mubr.f32.gmra.mrb[0].mxu0 %v1762
      %v1912 = vpop.f32.mrb[0].mxu0
      %v1913 = vadd.f32 0.0, %v1912
      %v1914 = vpop.f32.mrb[0].mxu0
      %1915 = vmatprep.mubr.f32.mxu0 0.0
      %1916 = vmatmul.mubr.f32.gmra.mrb[0].mxu0 %v1763
      %v1917 = vpop.f32.mrb[0].mxu0
      %v1918 = vadd.f32 0.0, %v1917
      %v1919 = vpop.f32.mrb[0].mxu0
      %1920 = vmatprep.mubr.f32.mxu0 0.0
      %1921 = vmatmul.mubr.f32.gmra.mrb[0].mxu0 %v1764
      %v1922 = vpop.f32.mrb[0].mxu0
      %v1923 = vadd.f32 0.0, %v1922
      %v1924 = vpop.f32.mrb[0].mxu0
      %1925 = vmatprep.mubr.f32.mxu0 0.0
      %1926 = vmatmul.mubr.f32.gmra.mrb[0].mxu0 %v1765
      %v1927 = vpop.f32.mrb[0].mxu0
      %v1928 = vadd.f32 0.0, %v1927
      %v1929 = vpop.f32.mrb[0].mxu0
      %1930 = vmatprep.mubr.f32.mxu0 0.0
      %1931 = vmatmul.mubr.f32.gmra.mrb[0].mxu0 %v1766
      %v1932 = vpop.f32.mrb[0].mxu0
      %v1933 = vadd.f32 0.0, %v1932
      %v1934 = vpop.f32.mrb[0].mxu0
      %1935 = vmatprep.mubr.f32.mxu0 0.0
      %1936 = vmatmul.mubr.f32.gmra.mrb[0].mxu0 %v1767
      %v1937 = vpop.f32.mrb[0].mxu0
      %v1938 = vadd.f32 0.0, %v1937
      %v1939 = vpop.f32.mrb[0].mxu0
      %1940 = vmatprep.mubr.f32.mxu0 0.0
      %1941 = vmatmul.mubr.f32.gmra.mrb[0].mxu0 %v1768
      %v1942 = vpop.f32.mrb[0].mxu0
      %v1943 = vadd.f32 0.0, %v1942
      %v1944 = vpop.f32.mrb[0].mxu0
      %1945 = vmatprep.mubr.f32.mxu0 0.0
      %1946 = vmatmul.mubr.f32.gmra.mrb[0].mxu0 %v1769
      %v1947 = vpop.f32.mrb[0].mxu0
      %v1948 = vadd.f32 0.0, %v1947
      %v1949 = vpop.f32.mrb[0].mxu0
      %1950 = vmatprep.mubr.f32.mxu0 0.0
      %1951 = vmatmul.mubr.f32.gmra.mrb[0].mxu0 %v1770
      %v1952 = vpop.f32.mrb[0].mxu0
      %v1953 = vadd.f32 0.0, %v1952
      %v1954 = vpop.f32.mrb[0].mxu0
      %1955 = vmatprep.mubr.f32.mxu0 0.0
      %1956 = vmatmul.mubr.f32.gmra.mrb[0].mxu0 %v1771
      %v1957 = vpop.f32.mrb[0].mxu0
      %v1958 = vadd.f32 0.0, %v1957
      %v1959 = vpop.f32.mrb[0].mxu0
      %1960 = vmatprep.mubr.f32.mxu0 0.0
      %1961 = vmatmul.mubr.f32.gmra.mrb[0].mxu0 %v1772
      %v1962 = vpop.f32.mrb[0].mxu0
      %v1963 = vadd.f32 0.0, %v1962
      %v1964 = vpop.f32.mrb[0].mxu0
      %1965 = vmatprep.mubr.f32.mxu0 0.0
      %1966 = vmatmul.mubr.f32.gmra.mrb[0].mxu0 %v1773
      %v1967 = vpop.f32.mrb[0].mxu0
      %v1968 = vadd.f32 0.0, %v1967
      %v1969 = vpop.f32.mrb[0].mxu0
      %1970 = vmatprep.mubr.f32.mxu0 0.0
      %1971 = vmatmul.mubr.f32.gmra.mrb[0].mxu0 %v1774
      %v1972 = vpop.f32.mrb[0].mxu0
      %v1973 = vadd.f32 0.0, %v1972
      %v1974 = vpop.f32.mrb[0].mxu0
      %1975 = vmatprep.mubr.f32.mxu0 0.0
      %1976 = vmatmul.mubr.f32.gmra.mrb[0].mxu0 %v1775
      %v1977 = vpop.f32.mrb[0].mxu0
      %v1978 = vadd.f32 0.0, %v1977
      %v1979 = vpop.f32.mrb[0].mxu0
      %1980 = vmatprep.mubr.f32.mxu0 0.0
      %1981 = vmatmul.mubr.f32.gmra.mrb[0].mxu0 %v1776
      %v1982 = vpop.f32.mrb[0].mxu0
      %v1983 = vadd.f32 0.0, %v1982
      %v1984 = vpop.f32.mrb[0].mxu0
      %1985 = vmatprep.mubr.f32.mxu0 0.0
      %1986 = vmatmul.mubr.f32.gmra.mrb[0].mxu0 %v1777
      %v1987 = vpop.f32.mrb[0].mxu0
      %v1988 = vadd.f32 0.0, %v1987
      %v1989 = vpop.f32.mrb[0].mxu0
      %1990 = vmatprep.mubr.f32.mxu0 0.0
      %1991 = vmatmul.mubr.f32.gmra.mrb[0].mxu0 %v1778
      %v1992 = vpop.f32.mrb[0].mxu0
      %v1993 = vadd.f32 0.0, %v1992
      %v1994 = vpop.f32.mrb[0].mxu0
      %1995 = vmatprep.mubr.f32.mxu0 0.0
      %1996 = vmatmul.mubr.f32.gmra.mrb[0].mxu0 %v1779
      %v1997 = vpop.f32.mrb[0].mxu0
      %v1998 = vadd.f32 0.0, %v1997
      %v1999 = vpop.f32.mrb[0].mxu0
      %2000 = vmatprep.mubr.f32.mxu0 0.0
      %2001 = vmatmul.mubr.f32.gmra.mrb[0].mxu0 %v1780
      %v2002 = vpop.f32.mrb[0].mxu0
      %v2003 = vadd.f32 0.0, %v2002
      %v2004 = vpop.f32.mrb[0].mxu0
      %2005 = vmatprep.mubr.f32.mxu0 0.0
      %2006 = vmatmul.mubr.f32.gmra.mrb[0].mxu0 %v1781
      %v2007 = vpop.f32.mrb[0].mxu0
      %v2008 = vadd.f32 0.0, %v2007
      %v2009 = vpop.f32.mrb[0].mxu0
      %2010 = vmatprep.mubr.f32.mxu0 0.0
      %2011 = vmatmul.mubr.f32.gmra.mrb[0].mxu0 %v1782
      %v2012 = vpop.f32.mrb[0].mxu0
      %v2013 = vadd.f32 0.0, %v2012
      %v2014 = vpop.f32.mrb[0].mxu0
      %2015 = vmatprep.mubr.f32.mxu0 0.0
      %2016 = vmatmul.mubr.f32.gmra.mrb[0].mxu0 %v1783
      %v2017 = vpop.f32.mrb[0].mxu0
      %v2018 = vadd.f32 0.0, %v2017
      %v2019 = vpop.f32.mrb[0].mxu0
      %2020 = vmatprep.mubr.f32.mxu0 0.0
      %2021 = vmatmul.mubr.f32.gmra.mrb[0].mxu0 %v1784
      %v2022 = vpop.f32.mrb[0].mxu0
      %v2023 = vadd.f32 0.0, %v2022
      %v2024 = vpop.f32.mrb[0].mxu0
      %2025 = vdwg.mxu0
      %v2026 = vadd.f32 %v1561, %v1868
      %v2027 = vadd.f32 %v1562, %v1873
      %v2028 = vadd.f32 %v1563, %v1878
      %v2029 = vadd.f32 %v1564, %v1883
      %v2030 = vadd.f32 %v1565, %v1888
      %v2031 = vadd.f32 %v1566, %v1893
      %v2032 = vadd.f32 %v1567, %v1898
      %v2033 = vadd.f32 %v1568, %v1903
      %v2034 = vadd.f32 %v1569, %v1908
      %v2035 = vadd.f32 %v1570, %v1913
      %v2036 = vadd.f32 %v1571, %v1918
      %v2037 = vadd.f32 %v1572, %v1923
      %v2038 = vadd.f32 %v1573, %v1928
      %v2039 = vadd.f32 %v1574, %v1933
      %v2040 = vadd.f32 %v1575, %v1938
      %v2041 = vadd.f32 %v1576, %v1943
      %v2042 = vadd.f32 %v1577, %v1948
      %v2043 = vadd.f32 %v1578, %v1953
      %v2044 = vadd.f32 %v1579, %v1958
      %v2045 = vadd.f32 %v1580, %v1963
      %v2046 = vadd.f32 %v1581, %v1968
      %v2047 = vadd.f32 %v1582, %v1973
      %v2048 = vadd.f32 %v1583, %v1978
      %v2049 = vadd.f32 %v1584, %v1983
      %v2050 = vadd.f32 %v1585, %v1988
      %v2051 = vadd.f32 %v1586, %v1993
      %v2052 = vadd.f32 %v1587, %v1998
      %v2053 = vadd.f32 %v1588, %v2003
      %v2054 = vadd.f32 %v1589, %v2008
      %v2055 = vadd.f32 %v1590, %v2013
      %v2056 = vadd.f32 %v1591, %v2018
      %v2057 = vadd.f32 %v1592, %v2023
      %2058 = vset.pattern.permute.xlu0 4
      %2059 = vperm.xlu0 %2058, %v228
      %v2060 = vpop.permute.xlu0 %2059
      %2061 = vset.pattern.permute.xlu0 4
      %2062 = vperm.xlu0 %2061, %v229
      %v2063 = vpop.permute.xlu0 %2062
      %2064 = vset.pattern.permute.xlu0 4
      %2065 = vperm.xlu0 %2064, %v230
      %v2066 = vpop.permute.xlu0 %2065
      %2067 = vset.pattern.permute.xlu0 4
      %2068 = vperm.xlu0 %2067, %v231
      %v2069 = vpop.permute.xlu0 %2068
      %2070 = vset.pattern.permute.xlu0 4
      %2071 = vperm.xlu0 %2070, %v232
      %v2072 = vpop.permute.xlu0 %2071
      %2073 = vset.pattern.permute.xlu0 4
      %2074 = vperm.xlu0 %2073, %v233
      %v2075 = vpop.permute.xlu0 %2074
      %2076 = vset.pattern.permute.xlu0 4
      %2077 = vperm.xlu0 %2076, %v234
      %v2078 = vpop.permute.xlu0 %2077
      %2079 = vset.pattern.permute.xlu0 4
      %2080 = vperm.xlu0 %2079, %v235
      %v2081 = vpop.permute.xlu0 %2080
      %2082 = vset.pattern.permute.xlu0 4
      %2083 = vperm.xlu0 %2082, %v236
      %v2084 = vpop.permute.xlu0 %2083
      %2085 = vset.pattern.permute.xlu0 4
      %2086 = vperm.xlu0 %2085, %v237
      %v2087 = vpop.permute.xlu0 %2086
      %2088 = vset.pattern.permute.xlu0 4
      %2089 = vperm.xlu0 %2088, %v238
      %v2090 = vpop.permute.xlu0 %2089
      %2091 = vset.pattern.permute.xlu0 4
      %2092 = vperm.xlu0 %2091, %v239
      %v2093 = vpop.permute.xlu0 %2092
      %2094 = vset.pattern.permute.xlu0 4
      %2095 = vperm.xlu0 %2094, %v240
      %v2096 = vpop.permute.xlu0 %2095
      %2097 = vset.pattern.permute.xlu0 4
      %2098 = vperm.xlu0 %2097, %v241
      %v2099 = vpop.permute.xlu0 %2098
      %2100 = vset.pattern.permute.xlu0 4
      %2101 = vperm.xlu0 %2100, %v242
      %v2102 = vpop.permute.xlu0 %2101
      %2103 = vset.pattern.permute.xlu0 4
      %2104 = vperm.xlu0 %2103, %v243
      %v2105 = vpop.permute.xlu0 %2104
      %2106 = vset.pattern.permute.xlu0 4
      %2107 = vperm.xlu0 %2106, %v244
      %v2108 = vpop.permute.xlu0 %2107
      %2109 = vset.pattern.permute.xlu0 4
      %2110 = vperm.xlu0 %2109, %v245
      %v2111 = vpop.permute.xlu0 %2110
      %2112 = vset.pattern.permute.xlu0 4
      %2113 = vperm.xlu0 %2112, %v246
      %v2114 = vpop.permute.xlu0 %2113
      %2115 = vset.pattern.permute.xlu0 4
      %2116 = vperm.xlu0 %2115, %v247
      %v2117 = vpop.permute.xlu0 %2116
      %2118 = vset.pattern.permute.xlu0 4
      %2119 = vperm.xlu0 %2118, %v248
      %v2120 = vpop.permute.xlu0 %2119
      %2121 = vset.pattern.permute.xlu0 4
      %2122 = vperm.xlu0 %2121, %v249
      %v2123 = vpop.permute.xlu0 %2122
      %2124 = vset.pattern.permute.xlu0 4
      %2125 = vperm.xlu0 %2124, %v250
      %v2126 = vpop.permute.xlu0 %2125
      %2127 = vset.pattern.permute.xlu0 4
      %2128 = vperm.xlu0 %2127, %v251
      %v2129 = vpop.permute.xlu0 %2128
      %2130 = vset.pattern.permute.xlu0 4
      %2131 = vperm.xlu0 %2130, %v252
      %v2132 = vpop.permute.xlu0 %2131
      %2133 = vset.pattern.permute.xlu0 4
      %2134 = vperm.xlu0 %2133, %v253
      %v2135 = vpop.permute.xlu0 %2134
      %2136 = vset.pattern.permute.xlu0 4
      %2137 = vperm.xlu0 %2136, %v254
      %v2138 = vpop.permute.xlu0 %2137
      %2139 = vset.pattern.permute.xlu0 4
      %2140 = vperm.xlu0 %2139, %v255
      %v2141 = vpop.permute.xlu0 %2140
      %2142 = vset.pattern.permute.xlu0 4
      %2143 = vperm.xlu0 %2142, %v256
      %v2144 = vpop.permute.xlu0 %2143
      %2145 = vset.pattern.permute.xlu0 4
      %2146 = vperm.xlu0 %2145, %v257
      %v2147 = vpop.permute.xlu0 %2146
      %2148 = vset.pattern.permute.xlu0 4
      %2149 = vperm.xlu0 %2148, %v258
      %v2150 = vpop.permute.xlu0 %2149
      %2151 = vset.pattern.permute.xlu0 4
      %2152 = vperm.xlu0 %2151, %v259
      %v2153 = vpop.permute.xlu0 %2152
      %vm2154 = vcmp.eq.s32.totalorder %v261, %v2060
      %vm2155 = vcmp.eq.s32.totalorder %v261, %v2063
      %vm2156 = vcmp.eq.s32.totalorder %v261, %v2066
      %vm2157 = vcmp.eq.s32.totalorder %v261, %v2069
      %vm2158 = vcmp.eq.s32.totalorder %v261, %v2072
      %vm2159 = vcmp.eq.s32.totalorder %v261, %v2075
      %vm2160 = vcmp.eq.s32.totalorder %v261, %v2078
      %vm2161 = vcmp.eq.s32.totalorder %v261, %v2081
      %vm2162 = vcmp.eq.s32.totalorder %v261, %v2084
      %vm2163 = vcmp.eq.s32.totalorder %v261, %v2087
      %vm2164 = vcmp.eq.s32.totalorder %v261, %v2090
      %vm2165 = vcmp.eq.s32.totalorder %v261, %v2093
      %vm2166 = vcmp.eq.s32.totalorder %v261, %v2096
      %vm2167 = vcmp.eq.s32.totalorder %v261, %v2099
      %vm2168 = vcmp.eq.s32.totalorder %v261, %v2102
      %vm2169 = vcmp.eq.s32.totalorder %v261, %v2105
      %vm2170 = vcmp.eq.s32.totalorder %v261, %v2108
      %vm2171 = vcmp.eq.s32.totalorder %v261, %v2111
      %vm2172 = vcmp.eq.s32.totalorder %v261, %v2114
      %vm2173 = vcmp.eq.s32.totalorder %v261, %v2117
      %vm2174 = vcmp.eq.s32.totalorder %v261, %v2120
      %vm2175 = vcmp.eq.s32.totalorder %v261, %v2123
      %vm2176 = vcmp.eq.s32.totalorder %v261, %v2126
      %vm2177 = vcmp.eq.s32.totalorder %v261, %v2129
      %vm2178 = vcmp.eq.s32.totalorder %v261, %v2132
      %vm2179 = vcmp.eq.s32.totalorder %v261, %v2135
      %vm2180 = vcmp.eq.s32.totalorder %v261, %v2138
      %vm2181 = vcmp.eq.s32.totalorder %v261, %v2141
      %vm2182 = vcmp.eq.s32.totalorder %v261, %v2144
      %vm2183 = vcmp.eq.s32.totalorder %v261, %v2147
      %vm2184 = vcmp.eq.s32.totalorder %v261, %v2150
      %vm2185 = vcmp.eq.s32.totalorder %v261, %v2153
      %v2186 = vsel %vm2154, 1, 0
      %v2187 = vsel %vm2155, 1, 0
      %v2188 = vsel %vm2156, 1, 0
      %v2189 = vsel %vm2157, 1, 0
      %v2190 = vsel %vm2158, 1, 0
      %v2191 = vsel %vm2159, 1, 0
      %v2192 = vsel %vm2160, 1, 0
      %v2193 = vsel %vm2161, 1, 0
      %v2194 = vsel %vm2162, 1, 0
      %v2195 = vsel %vm2163, 1, 0
      %v2196 = vsel %vm2164, 1, 0
      %v2197 = vsel %vm2165, 1, 0
      %v2198 = vsel %vm2166, 1, 0
      %v2199 = vsel %vm2167, 1, 0
      %v2200 = vsel %vm2168, 1, 0
      %v2201 = vsel %vm2169, 1, 0
      %v2202 = vsel %vm2170, 1, 0
      %v2203 = vsel %vm2171, 1, 0
      %v2204 = vsel %vm2172, 1, 0
      %v2205 = vsel %vm2173, 1, 0
      %v2206 = vsel %vm2174, 1, 0
      %v2207 = vsel %vm2175, 1, 0
      %v2208 = vsel %vm2176, 1, 0
      %v2209 = vsel %vm2177, 1, 0
      %v2210 = vsel %vm2178, 1, 0
      %v2211 = vsel %vm2179, 1, 0
      %v2212 = vsel %vm2180, 1, 0
      %v2213 = vsel %vm2181, 1, 0
      %v2214 = vsel %vm2182, 1, 0
      %v2215 = vsel %vm2183, 1, 0
      %v2216 = vsel %vm2184, 1, 0
      %v2217 = vsel %vm2185, 1, 0
      %v2218 = vcvt.s32.f32 %v2186
      %v2219 = vcvt.s32.f32 %v2187
      %v2220 = vcvt.s32.f32 %v2188
      %v2221 = vcvt.s32.f32 %v2189
      %v2222 = vcvt.s32.f32 %v2190
      %v2223 = vcvt.s32.f32 %v2191
      %v2224 = vcvt.s32.f32 %v2192
      %v2225 = vcvt.s32.f32 %v2193
      %v2226 = vcvt.s32.f32 %v2194
      %v2227 = vcvt.s32.f32 %v2195
      %v2228 = vcvt.s32.f32 %v2196
      %v2229 = vcvt.s32.f32 %v2197
      %v2230 = vcvt.s32.f32 %v2198
      %v2231 = vcvt.s32.f32 %v2199
      %v2232 = vcvt.s32.f32 %v2200
      %v2233 = vcvt.s32.f32 %v2201
      %v2234 = vcvt.s32.f32 %v2202
      %v2235 = vcvt.s32.f32 %v2203
      %v2236 = vcvt.s32.f32 %v2204
      %v2237 = vcvt.s32.f32 %v2205
      %v2238 = vcvt.s32.f32 %v2206
      %v2239 = vcvt.s32.f32 %v2207
      %v2240 = vcvt.s32.f32 %v2208
      %v2241 = vcvt.s32.f32 %v2209
      %v2242 = vcvt.s32.f32 %v2210
      %v2243 = vcvt.s32.f32 %v2211
      %v2244 = vcvt.s32.f32 %v2212
      %v2245 = vcvt.s32.f32 %v2213
      %v2246 = vcvt.s32.f32 %v2214
      %v2247 = vcvt.s32.f32 %v2215
      %v2248 = vcvt.s32.f32 %v2216
      %v2249 = vcvt.s32.f32 %v2217
      %v2250 = vld [vmem:[%s1 + $0x200] sm:$0xff]
      %v2251 = vld [vmem:[%s1 + $0x208] sm:$0xff]
      %v2252 = vld [vmem:[%s1 + $0x210] sm:$0xff]
      %v2253 = vld [vmem:[%s1 + $0x218] sm:$0xff]
      %v2254 = vld [vmem:[%s1 + $0x220] sm:$0xff]
      %v2255 = vld [vmem:[%s1 + $0x228] sm:$0xff]
      %v2256 = vld [vmem:[%s1 + $0x230] sm:$0xff]
      %v2257 = vld [vmem:[%s1 + $0x238] sm:$0xff]
      %v2258 = vld [vmem:[%s1 + $0x240] sm:$0xff]
      %v2259 = vld [vmem:[%s1 + $0x248] sm:$0xff]
      %v2260 = vld [vmem:[%s1 + $0x250] sm:$0xff]
      %v2261 = vld [vmem:[%s1 + $0x258] sm:$0xff]
      %v2262 = vld [vmem:[%s1 + $0x260] sm:$0xff]
      %v2263 = vld [vmem:[%s1 + $0x268] sm:$0xff]
      %v2264 = vld [vmem:[%s1 + $0x270] sm:$0xff]
      %v2265 = vld [vmem:[%s1 + $0x278] sm:$0xff]
      %2266 = vmatprep.subr.mxu0 0.0
      %2267 = vmatpush1.msra.mxu0 %v2250
      %2268 = vmatprep.subr.mxu0 0.0
      %2269 = vmatpush1.msra.mxu0 %v2251
      %2270 = vmatprep.subr.mxu0 0.0
      %2271 = vmatpush1.msra.mxu0 %v2252
      %2272 = vmatprep.subr.mxu0 0.0
      %2273 = vmatpush1.msra.mxu0 %v2253
      %2274 = vmatprep.subr.mxu0 0.0
      %2275 = vmatpush1.msra.mxu0 %v2254
      %2276 = vmatprep.subr.mxu0 0.0
      %2277 = vmatpush1.msra.mxu0 %v2255
      %2278 = vmatprep.subr.mxu0 0.0
      %2279 = vmatpush1.msra.mxu0 %v2256
      %2280 = vmatprep.subr.mxu0 0.0
      %2281 = vmatpush1.msra.mxu0 %v2257
      %2282 = vmatprep.subr.mxu0 0.0
      %2283 = vmatpush1.msra.mxu0 %v2258
      %2284 = vmatprep.subr.mxu0 0.0
      %2285 = vmatpush1.msra.mxu0 %v2259
      %2286 = vmatprep.subr.mxu0 0.0
      %2287 = vmatpush1.msra.mxu0 %v2260
      %2288 = vmatprep.subr.mxu0 0.0
      %2289 = vmatpush1.msra.mxu0 %v2261
      %2290 = vmatprep.subr.mxu0 0.0
      %2291 = vmatpush1.msra.mxu0 %v2262
      %2292 = vmatprep.subr.mxu0 0.0
      %2293 = vmatpush1.msra.mxu0 %v2263
      %2294 = vmatprep.subr.mxu0 0.0
      %2295 = vmatpush1.msra.mxu0 %v2264
      %2296 = vmatprep.subr.mxu0 0.0
      %2297 = vmatpush1.msra.mxu0 %v2265
      %2298 = vmatprep.subr.mxu0 0.0
      %2299 = vmatpush1.msra.mxu0 0.0
      %2300 = vmatprep.subr.mxu0 0.0
      %2301 = vmatpush1.msra.mxu0 0.0
      %2302 = vmatprep.subr.mxu0 0.0
      %2303 = vmatpush1.msra.mxu0 0.0
      %2304 = vmatprep.subr.mxu0 0.0
      %2305 = vmatpush1.msra.mxu0 0.0
      %2306 = vmatprep.subr.mxu0 0.0
      %2307 = vmatpush1.msra.mxu0 0.0
      %2308 = vmatprep.subr.mxu0 0.0
      %2309 = vmatpush1.msra.mxu0 0.0
      %2310 = vmatprep.subr.mxu0 0.0
      %2311 = vmatpush1.msra.mxu0 0.0
      %2312 = vmatprep.subr.mxu0 0.0
      %2313 = vmatpush1.msra.mxu0 0.0
      %2314 = vmatprep.subr.mxu0 0.0
      %2315 = vmatpush1.msra.mxu0 0.0
      %2316 = vmatprep.subr.mxu0 0.0
      %2317 = vmatpush1.msra.mxu0 0.0
      %2318 = vmatprep.subr.mxu0 0.0
      %2319 = vmatpush1.msra.mxu0 0.0
      %2320 = vmatprep.subr.mxu0 0.0
      %2321 = vmatpush1.msra.mxu0 0.0
      %2322 = vmatprep.subr.mxu0 0.0
      %2323 = vmatpush1.msra.mxu0 0.0
      %2324 = vmatprep.subr.mxu0 0.0
      %2325 = vmatpush1.msra.mxu0 0.0
      %2326 = vmatprep.subr.mxu0 0.0
      %2327 = vmatpush1.msra.mxu0 0.0
      %2328 = vmatprep.subr.mxu0 0.0
      %2329 = vmatpush1.msra.mxu0 0.0
      %2330 = vmatprep.mubr.f32.mxu0 0.0
      %2331 = vmatmul.mubr.f32.gmra.mrb[0].mxu0 %v2218
      %v2332 = vpop.f32.mrb[0].mxu0
      %v2333 = vadd.f32 0.0, %v2332
      %v2334 = vpop.f32.mrb[0].mxu0
      %2335 = vmatprep.mubr.f32.mxu0 0.0
      %2336 = vmatmul.mubr.f32.gmra.mrb[0].mxu0 %v2219
      %v2337 = vpop.f32.mrb[0].mxu0
      %v2338 = vadd.f32 0.0, %v2337
      %v2339 = vpop.f32.mrb[0].mxu0
      %2340 = vmatprep.mubr.f32.mxu0 0.0
      %2341 = vmatmul.mubr.f32.gmra.mrb[0].mxu0 %v2220
      %v2342 = vpop.f32.mrb[0].mxu0
      %v2343 = vadd.f32 0.0, %v2342
      %v2344 = vpop.f32.mrb[0].mxu0
      %2345 = vmatprep.mubr.f32.mxu0 0.0
      %2346 = vmatmul.mubr.f32.gmra.mrb[0].mxu0 %v2221
      %v2347 = vpop.f32.mrb[0].mxu0
      %v2348 = vadd.f32 0.0, %v2347
      %v2349 = vpop.f32.mrb[0].mxu0
      %2350 = vmatprep.mubr.f32.mxu0 0.0
      %2351 = vmatmul.mubr.f32.gmra.mrb[0].mxu0 %v2222
      %v2352 = vpop.f32.mrb[0].mxu0
      %v2353 = vadd.f32 0.0, %v2352
      %v2354 = vpop.f32.mrb[0].mxu0
      %2355 = vmatprep.mubr.f32.mxu0 0.0
      %2356 = vmatmul.mubr.f32.gmra.mrb[0].mxu0 %v2223
      %v2357 = vpop.f32.mrb[0].mxu0
      %v2358 = vadd.f32 0.0, %v2357
      %v2359 = vpop.f32.mrb[0].mxu0
      %2360 = vmatprep.mubr.f32.mxu0 0.0
      %2361 = vmatmul.mubr.f32.gmra.mrb[0].mxu0 %v2224
      %v2362 = vpop.f32.mrb[0].mxu0
      %v2363 = vadd.f32 0.0, %v2362
      %v2364 = vpop.f32.mrb[0].mxu0
      %2365 = vmatprep.mubr.f32.mxu0 0.0
      %2366 = vmatmul.mubr.f32.gmra.mrb[0].mxu0 %v2225
      %v2367 = vpop.f32.mrb[0].mxu0
      %v2368 = vadd.f32 0.0, %v2367
      %v2369 = vpop.f32.mrb[0].mxu0
      %2370 = vmatprep.mubr.f32.mxu0 0.0
      %2371 = vmatmul.mubr.f32.gmra.mrb[0].mxu0 %v2226
      %v2372 = vpop.f32.mrb[0].mxu0
      %v2373 = vadd.f32 0.0, %v2372
      %v2374 = vpop.f32.mrb[0].mxu0
      %2375 = vmatprep.mubr.f32.mxu0 0.0
      %2376 = vmatmul.mubr.f32.gmra.mrb[0].mxu0 %v2227
      %v2377 = vpop.f32.mrb[0].mxu0
      %v2378 = vadd.f32 0.0, %v2377
      %v2379 = vpop.f32.mrb[0].mxu0
      %2380 = vmatprep.mubr.f32.mxu0 0.0
      %2381 = vmatmul.mubr.f32.gmra.mrb[0].mxu0 %v2228
      %v2382 = vpop.f32.mrb[0].mxu0
      %v2383 = vadd.f32 0.0, %v2382
      %v2384 = vpop.f32.mrb[0].mxu0
      %2385 = vmatprep.mubr.f32.mxu0 0.0
      %2386 = vmatmul.mubr.f32.gmra.mrb[0].mxu0 %v2229
      %v2387 = vpop.f32.mrb[0].mxu0
      %v2388 = vadd.f32 0.0, %v2387
      %v2389 = vpop.f32.mrb[0].mxu0
      %2390 = vmatprep.mubr.f32.mxu0 0.0
      %2391 = vmatmul.mubr.f32.gmra.mrb[0].mxu0 %v2230
      %v2392 = vpop.f32.mrb[0].mxu0
      %v2393 = vadd.f32 0.0, %v2392
      %v2394 = vpop.f32.mrb[0].mxu0
      %2395 = vmatprep.mubr.f32.mxu0 0.0
      %2396 = vmatmul.mubr.f32.gmra.mrb[0].mxu0 %v2231
      %v2397 = vpop.f32.mrb[0].mxu0
      %v2398 = vadd.f32 0.0, %v2397
      %v2399 = vpop.f32.mrb[0].mxu0
      %2400 = vmatprep.mubr.f32.mxu0 0.0
      %2401 = vmatmul.mubr.f32.gmra.mrb[0].mxu0 %v2232
      %v2402 = vpop.f32.mrb[0].mxu0
      %v2403 = vadd.f32 0.0, %v2402
      %v2404 = vpop.f32.mrb[0].mxu0
      %2405 = vmatprep.mubr.f32.mxu0 0.0
      %2406 = vmatmul.mubr.f32.gmra.mrb[0].mxu0 %v2233
      %v2407 = vpop.f32.mrb[0].mxu0
      %v2408 = vadd.f32 0.0, %v2407
      %v2409 = vpop.f32.mrb[0].mxu0
      %2410 = vmatprep.mubr.f32.mxu0 0.0
      %2411 = vmatmul.mubr.f32.gmra.mrb[0].mxu0 %v2234
      %v2412 = vpop.f32.mrb[0].mxu0
      %v2413 = vadd.f32 0.0, %v2412
      %v2414 = vpop.f32.mrb[0].mxu0
      %2415 = vmatprep.mubr.f32.mxu0 0.0
      %2416 = vmatmul.mubr.f32.gmra.mrb[0].mxu0 %v2235
      %v2417 = vpop.f32.mrb[0].mxu0
      %v2418 = vadd.f32 0.0, %v2417
      %v2419 = vpop.f32.mrb[0].mxu0
      %2420 = vmatprep.mubr.f32.mxu0 0.0
      %2421 = vmatmul.mubr.f32.gmra.mrb[0].mxu0 %v2236
      %v2422 = vpop.f32.mrb[0].mxu0
      %v2423 = vadd.f32 0.0, %v2422
      %v2424 = vpop.f32.mrb[0].mxu0
      %2425 = vmatprep.mubr.f32.mxu0 0.0
      %2426 = vmatmul.mubr.f32.gmra.mrb[0].mxu0 %v2237
      %v2427 = vpop.f32.mrb[0].mxu0
      %v2428 = vadd.f32 0.0, %v2427
      %v2429 = vpop.f32.mrb[0].mxu0
      %2430 = vmatprep.mubr.f32.mxu0 0.0
      %2431 = vmatmul.mubr.f32.gmra.mrb[0].mxu0 %v2238
      %v2432 = vpop.f32.mrb[0].mxu0
      %v2433 = vadd.f32 0.0, %v2432
      %v2434 = vpop.f32.mrb[0].mxu0
      %2435 = vmatprep.mubr.f32.mxu0 0.0
      %2436 = vmatmul.mubr.f32.gmra.mrb[0].mxu0 %v2239
      %v2437 = vpop.f32.mrb[0].mxu0
      %v2438 = vadd.f32 0.0, %v2437
      %v2439 = vpop.f32.mrb[0].mxu0
      %2440 = vmatprep.mubr.f32.mxu0 0.0
      %2441 = vmatmul.mubr.f32.gmra.mrb[0].mxu0 %v2240
      %v2442 = vpop.f32.mrb[0].mxu0
      %v2443 = vadd.f32 0.0, %v2442
      %v2444 = vpop.f32.mrb[0].mxu0
      %2445 = vmatprep.mubr.f32.mxu0 0.0
      %2446 = vmatmul.mubr.f32.gmra.mrb[0].mxu0 %v2241
      %v2447 = vpop.f32.mrb[0].mxu0
      %v2448 = vadd.f32 0.0, %v2447
      %v2449 = vpop.f32.mrb[0].mxu0
      %2450 = vmatprep.mubr.f32.mxu0 0.0
      %2451 = vmatmul.mubr.f32.gmra.mrb[0].mxu0 %v2242
      %v2452 = vpop.f32.mrb[0].mxu0
      %v2453 = vadd.f32 0.0, %v2452
      %v2454 = vpop.f32.mrb[0].mxu0
      %2455 = vmatprep.mubr.f32.mxu0 0.0
      %2456 = vmatmul.mubr.f32.gmra.mrb[0].mxu0 %v2243
      %v2457 = vpop.f32.mrb[0].mxu0
      %v2458 = vadd.f32 0.0, %v2457
      %v2459 = vpop.f32.mrb[0].mxu0
      %2460 = vmatprep.mubr.f32.mxu0 0.0
      %2461 = vmatmul.mubr.f32.gmra.mrb[0].mxu0 %v2244
      %v2462 = vpop.f32.mrb[0].mxu0
      %v2463 = vadd.f32 0.0, %v2462
      %v2464 = vpop.f32.mrb[0].mxu0
      %2465 = vmatprep.mubr.f32.mxu0 0.0
      %2466 = vmatmul.mubr.f32.gmra.mrb[0].mxu0 %v2245
      %v2467 = vpop.f32.mrb[0].mxu0
      %v2468 = vadd.f32 0.0, %v2467
      %v2469 = vpop.f32.mrb[0].mxu0
      %2470 = vmatprep.mubr.f32.mxu0 0.0
      %2471 = vmatmul.mubr.f32.gmra.mrb[0].mxu0 %v2246
      %v2472 = vpop.f32.mrb[0].mxu0
      %v2473 = vadd.f32 0.0, %v2472
      %v2474 = vpop.f32.mrb[0].mxu0
      %2475 = vmatprep.mubr.f32.mxu0 0.0
      %2476 = vmatmul.mubr.f32.gmra.mrb[0].mxu0 %v2247
      %v2477 = vpop.f32.mrb[0].mxu0
      %v2478 = vadd.f32 0.0, %v2477
      %v2479 = vpop.f32.mrb[0].mxu0
      %2480 = vmatprep.mubr.f32.mxu0 0.0
      %2481 = vmatmul.mubr.f32.gmra.mrb[0].mxu0 %v2248
      %v2482 = vpop.f32.mrb[0].mxu0
      %v2483 = vadd.f32 0.0, %v2482
      %v2484 = vpop.f32.mrb[0].mxu0
      %2485 = vmatprep.mubr.f32.mxu0 0.0
      %2486 = vmatmul.mubr.f32.gmra.mrb[0].mxu0 %v2249
      %v2487 = vpop.f32.mrb[0].mxu0
      %v2488 = vadd.f32 0.0, %v2487
      %v2489 = vpop.f32.mrb[0].mxu0
      %2490 = vdwg.mxu0
      %v2491 = vadd.f32 %v2026, %v2333
      %v2492 = vadd.f32 %v2027, %v2338
      %v2493 = vadd.f32 %v2028, %v2343
      %v2494 = vadd.f32 %v2029, %v2348
      %v2495 = vadd.f32 %v2030, %v2353
      %v2496 = vadd.f32 %v2031, %v2358
      %v2497 = vadd.f32 %v2032, %v2363
      %v2498 = vadd.f32 %v2033, %v2368
      %v2499 = vadd.f32 %v2034, %v2373
      %v2500 = vadd.f32 %v2035, %v2378
      %v2501 = vadd.f32 %v2036, %v2383
      %v2502 = vadd.f32 %v2037, %v2388
      %v2503 = vadd.f32 %v2038, %v2393
      %v2504 = vadd.f32 %v2039, %v2398
      %v2505 = vadd.f32 %v2040, %v2403
      %v2506 = vadd.f32 %v2041, %v2408
      %v2507 = vadd.f32 %v2042, %v2413
      %v2508 = vadd.f32 %v2043, %v2418
      %v2509 = vadd.f32 %v2044, %v2423
      %v2510 = vadd.f32 %v2045, %v2428
      %v2511 = vadd.f32 %v2046, %v2433
      %v2512 = vadd.f32 %v2047, %v2438
      %v2513 = vadd.f32 %v2048, %v2443
      %v2514 = vadd.f32 %v2049, %v2448
      %v2515 = vadd.f32 %v2050, %v2453
      %v2516 = vadd.f32 %v2051, %v2458
      %v2517 = vadd.f32 %v2052, %v2463
      %v2518 = vadd.f32 %v2053, %v2468
      %v2519 = vadd.f32 %v2054, %v2473
      %v2520 = vadd.f32 %v2055, %v2478
      %v2521 = vadd.f32 %v2056, %v2483
      %v2522 = vadd.f32 %v2057, %v2488
      %2523 = vset.pattern.permute.xlu0 5
      %2524 = vperm.xlu0 %2523, %v228
      %v2525 = vpop.permute.xlu0 %2524
      %2526 = vset.pattern.permute.xlu0 5
      %2527 = vperm.xlu0 %2526, %v229
      %v2528 = vpop.permute.xlu0 %2527
      %2529 = vset.pattern.permute.xlu0 5
      %2530 = vperm.xlu0 %2529, %v230
      %v2531 = vpop.permute.xlu0 %2530
      %2532 = vset.pattern.permute.xlu0 5
      %2533 = vperm.xlu0 %2532, %v231
      %v2534 = vpop.permute.xlu0 %2533
      %2535 = vset.pattern.permute.xlu0 5
      %2536 = vperm.xlu0 %2535, %v232
      %v2537 = vpop.permute.xlu0 %2536
      %2538 = vset.pattern.permute.xlu0 5
      %2539 = vperm.xlu0 %2538, %v233
      %v2540 = vpop.permute.xlu0 %2539
      %2541 = vset.pattern.permute.xlu0 5
      %2542 = vperm.xlu0 %2541, %v234
      %v2543 = vpop.permute.xlu0 %2542
      %2544 = vset.pattern.permute.xlu0 5
      %2545 = vperm.xlu0 %2544, %v235
      %v2546 = vpop.permute.xlu0 %2545
      %2547 = vset.pattern.permute.xlu0 5
      %2548 = vperm.xlu0 %2547, %v236
      %v2549 = vpop.permute.xlu0 %2548
      %2550 = vset.pattern.permute.xlu0 5
      %2551 = vperm.xlu0 %2550, %v237
      %v2552 = vpop.permute.xlu0 %2551
      %2553 = vset.pattern.permute.xlu0 5
      %2554 = vperm.xlu0 %2553, %v238
      %v2555 = vpop.permute.xlu0 %2554
      %2556 = vset.pattern.permute.xlu0 5
      %2557 = vperm.xlu0 %2556, %v239
      %v2558 = vpop.permute.xlu0 %2557
      %2559 = vset.pattern.permute.xlu0 5
      %2560 = vperm.xlu0 %2559, %v240
      %v2561 = vpop.permute.xlu0 %2560
      %2562 = vset.pattern.permute.xlu0 5
      %2563 = vperm.xlu0 %2562, %v241
      %v2564 = vpop.permute.xlu0 %2563
      %2565 = vset.pattern.permute.xlu0 5
      %2566 = vperm.xlu0 %2565, %v242
      %v2567 = vpop.permute.xlu0 %2566
      %2568 = vset.pattern.permute.xlu0 5
      %2569 = vperm.xlu0 %2568, %v243
      %v2570 = vpop.permute.xlu0 %2569
      %2571 = vset.pattern.permute.xlu0 5
      %2572 = vperm.xlu0 %2571, %v244
      %v2573 = vpop.permute.xlu0 %2572
      %2574 = vset.pattern.permute.xlu0 5
      %2575 = vperm.xlu0 %2574, %v245
      %v2576 = vpop.permute.xlu0 %2575
      %2577 = vset.pattern.permute.xlu0 5
      %2578 = vperm.xlu0 %2577, %v246
      %v2579 = vpop.permute.xlu0 %2578
      %2580 = vset.pattern.permute.xlu0 5
      %2581 = vperm.xlu0 %2580, %v247
      %v2582 = vpop.permute.xlu0 %2581
      %2583 = vset.pattern.permute.xlu0 5
      %2584 = vperm.xlu0 %2583, %v248
      %v2585 = vpop.permute.xlu0 %2584
      %2586 = vset.pattern.permute.xlu0 5
      %2587 = vperm.xlu0 %2586, %v249
      %v2588 = vpop.permute.xlu0 %2587
      %2589 = vset.pattern.permute.xlu0 5
      %2590 = vperm.xlu0 %2589, %v250
      %v2591 = vpop.permute.xlu0 %2590
      %2592 = vset.pattern.permute.xlu0 5
      %2593 = vperm.xlu0 %2592, %v251
      %v2594 = vpop.permute.xlu0 %2593
      %2595 = vset.pattern.permute.xlu0 5
      %2596 = vperm.xlu0 %2595, %v252
      %v2597 = vpop.permute.xlu0 %2596
      %2598 = vset.pattern.permute.xlu0 5
      %2599 = vperm.xlu0 %2598, %v253
      %v2600 = vpop.permute.xlu0 %2599
      %2601 = vset.pattern.permute.xlu0 5
      %2602 = vperm.xlu0 %2601, %v254
      %v2603 = vpop.permute.xlu0 %2602
      %2604 = vset.pattern.permute.xlu0 5
      %2605 = vperm.xlu0 %2604, %v255
      %v2606 = vpop.permute.xlu0 %2605
      %2607 = vset.pattern.permute.xlu0 5
      %2608 = vperm.xlu0 %2607, %v256
      %v2609 = vpop.permute.xlu0 %2608
      %2610 = vset.pattern.permute.xlu0 5
      %2611 = vperm.xlu0 %2610, %v257
      %v2612 = vpop.permute.xlu0 %2611
      %2613 = vset.pattern.permute.xlu0 5
      %2614 = vperm.xlu0 %2613, %v258
      %v2615 = vpop.permute.xlu0 %2614
      %2616 = vset.pattern.permute.xlu0 5
      %2617 = vperm.xlu0 %2616, %v259
      %v2618 = vpop.permute.xlu0 %2617
      %vm2619 = vcmp.eq.s32.totalorder %v261, %v2525
      %vm2620 = vcmp.eq.s32.totalorder %v261, %v2528
      %vm2621 = vcmp.eq.s32.totalorder %v261, %v2531
      %vm2622 = vcmp.eq.s32.totalorder %v261, %v2534
      %vm2623 = vcmp.eq.s32.totalorder %v261, %v2537
      %vm2624 = vcmp.eq.s32.totalorder %v261, %v2540
      %vm2625 = vcmp.eq.s32.totalorder %v261, %v2543
      %vm2626 = vcmp.eq.s32.totalorder %v261, %v2546
      %vm2627 = vcmp.eq.s32.totalorder %v261, %v2549
      %vm2628 = vcmp.eq.s32.totalorder %v261, %v2552
      %vm2629 = vcmp.eq.s32.totalorder %v261, %v2555
      %vm2630 = vcmp.eq.s32.totalorder %v261, %v2558
      %vm2631 = vcmp.eq.s32.totalorder %v261, %v2561
      %vm2632 = vcmp.eq.s32.totalorder %v261, %v2564
      %vm2633 = vcmp.eq.s32.totalorder %v261, %v2567
      %vm2634 = vcmp.eq.s32.totalorder %v261, %v2570
      %vm2635 = vcmp.eq.s32.totalorder %v261, %v2573
      %vm2636 = vcmp.eq.s32.totalorder %v261, %v2576
      %vm2637 = vcmp.eq.s32.totalorder %v261, %v2579
      %vm2638 = vcmp.eq.s32.totalorder %v261, %v2582
      %vm2639 = vcmp.eq.s32.totalorder %v261, %v2585
      %vm2640 = vcmp.eq.s32.totalorder %v261, %v2588
      %vm2641 = vcmp.eq.s32.totalorder %v261, %v2591
      %vm2642 = vcmp.eq.s32.totalorder %v261, %v2594
      %vm2643 = vcmp.eq.s32.totalorder %v261, %v2597
      %vm2644 = vcmp.eq.s32.totalorder %v261, %v2600
      %vm2645 = vcmp.eq.s32.totalorder %v261, %v2603
      %vm2646 = vcmp.eq.s32.totalorder %v261, %v2606
      %vm2647 = vcmp.eq.s32.totalorder %v261, %v2609
      %vm2648 = vcmp.eq.s32.totalorder %v261, %v2612
      %vm2649 = vcmp.eq.s32.totalorder %v261, %v2615
      %vm2650 = vcmp.eq.s32.totalorder %v261, %v2618
      %v2651 = vsel %vm2619, 1, 0
      %v2652 = vsel %vm2620, 1, 0
      %v2653 = vsel %vm2621, 1, 0
      %v2654 = vsel %vm2622, 1, 0
      %v2655 = vsel %vm2623, 1, 0
      %v2656 = vsel %vm2624, 1, 0
      %v2657 = vsel %vm2625, 1, 0
      %v2658 = vsel %vm2626, 1, 0
      %v2659 = vsel %vm2627, 1, 0
      %v2660 = vsel %vm2628, 1, 0
      %v2661 = vsel %vm2629, 1, 0
      %v2662 = vsel %vm2630, 1, 0
      %v2663 = vsel %vm2631, 1, 0
      %v2664 = vsel %vm2632, 1, 0
      %v2665 = vsel %vm2633, 1, 0
      %v2666 = vsel %vm2634, 1, 0
      %v2667 = vsel %vm2635, 1, 0
      %v2668 = vsel %vm2636, 1, 0
      %v2669 = vsel %vm2637, 1, 0
      %v2670 = vsel %vm2638, 1, 0
      %v2671 = vsel %vm2639, 1, 0
      %v2672 = vsel %vm2640, 1, 0
      %v2673 = vsel %vm2641, 1, 0
      %v2674 = vsel %vm2642, 1, 0
      %v2675 = vsel %vm2643, 1, 0
      %v2676 = vsel %vm2644, 1, 0
      %v2677 = vsel %vm2645, 1, 0
      %v2678 = vsel %vm2646, 1, 0
      %v2679 = vsel %vm2647, 1, 0
      %v2680 = vsel %vm2648, 1, 0
      %v2681 = vsel %vm2649, 1, 0
      %v2682 = vsel %vm2650, 1, 0
      %v2683 = vcvt.s32.f32 %v2651
      %v2684 = vcvt.s32.f32 %v2652
      %v2685 = vcvt.s32.f32 %v2653
      %v2686 = vcvt.s32.f32 %v2654
      %v2687 = vcvt.s32.f32 %v2655
      %v2688 = vcvt.s32.f32 %v2656
      %v2689 = vcvt.s32.f32 %v2657
      %v2690 = vcvt.s32.f32 %v2658
      %v2691 = vcvt.s32.f32 %v2659
      %v2692 = vcvt.s32.f32 %v2660
      %v2693 = vcvt.s32.f32 %v2661
      %v2694 = vcvt.s32.f32 %v2662
      %v2695 = vcvt.s32.f32 %v2663
      %v2696 = vcvt.s32.f32 %v2664
      %v2697 = vcvt.s32.f32 %v2665
      %v2698 = vcvt.s32.f32 %v2666
      %v2699 = vcvt.s32.f32 %v2667
      %v2700 = vcvt.s32.f32 %v2668
      %v2701 = vcvt.s32.f32 %v2669
      %v2702 = vcvt.s32.f32 %v2670
      %v2703 = vcvt.s32.f32 %v2671
      %v2704 = vcvt.s32.f32 %v2672
      %v2705 = vcvt.s32.f32 %v2673
      %v2706 = vcvt.s32.f32 %v2674
      %v2707 = vcvt.s32.f32 %v2675
      %v2708 = vcvt.s32.f32 %v2676
      %v2709 = vcvt.s32.f32 %v2677
      %v2710 = vcvt.s32.f32 %v2678
      %v2711 = vcvt.s32.f32 %v2679
      %v2712 = vcvt.s32.f32 %v2680
      %v2713 = vcvt.s32.f32 %v2681
      %v2714 = vcvt.s32.f32 %v2682
      %v2715 = vld [vmem:[%s1 + $0x280] sm:$0xff]
      %v2716 = vld [vmem:[%s1 + $0x288] sm:$0xff]
      %v2717 = vld [vmem:[%s1 + $0x290] sm:$0xff]
      %v2718 = vld [vmem:[%s1 + $0x298] sm:$0xff]
      %v2719 = vld [vmem:[%s1 + $0x2a0] sm:$0xff]
      %v2720 = vld [vmem:[%s1 + $0x2a8] sm:$0xff]
      %v2721 = vld [vmem:[%s1 + $0x2b0] sm:$0xff]
      %v2722 = vld [vmem:[%s1 + $0x2b8] sm:$0xff]
      %v2723 = vld [vmem:[%s1 + $0x2c0] sm:$0xff]
      %v2724 = vld [vmem:[%s1 + $0x2c8] sm:$0xff]
      %v2725 = vld [vmem:[%s1 + $0x2d0] sm:$0xff]
      %v2726 = vld [vmem:[%s1 + $0x2d8] sm:$0xff]
      %v2727 = vld [vmem:[%s1 + $0x2e0] sm:$0xff]
      %v2728 = vld [vmem:[%s1 + $0x2e8] sm:$0xff]
      %v2729 = vld [vmem:[%s1 + $0x2f0] sm:$0xff]
      %v2730 = vld [vmem:[%s1 + $0x2f8] sm:$0xff]
      %2731 = vmatprep.subr.mxu0 0.0
      %2732 = vmatpush1.msra.mxu0 %v2715
      %2733 = vmatprep.subr.mxu0 0.0
      %2734 = vmatpush1.msra.mxu0 %v2716
      %2735 = vmatprep.subr.mxu0 0.0
      %2736 = vmatpush1.msra.mxu0 %v2717
      %2737 = vmatprep.subr.mxu0 0.0
      %2738 = vmatpush1.msra.mxu0 %v2718
      %2739 = vmatprep.subr.mxu0 0.0
      %2740 = vmatpush1.msra.mxu0 %v2719
      %2741 = vmatprep.subr.mxu0 0.0
      %2742 = vmatpush1.msra.mxu0 %v2720
      %2743 = vmatprep.subr.mxu0 0.0
      %2744 = vmatpush1.msra.mxu0 %v2721
      %2745 = vmatprep.subr.mxu0 0.0
      %2746 = vmatpush1.msra.mxu0 %v2722
      %2747 = vmatprep.subr.mxu0 0.0
      %2748 = vmatpush1.msra.mxu0 %v2723
      %2749 = vmatprep.subr.mxu0 0.0
      %2750 = vmatpush1.msra.mxu0 %v2724
      %2751 = vmatprep.subr.mxu0 0.0
      %2752 = vmatpush1.msra.mxu0 %v2725
      %2753 = vmatprep.subr.mxu0 0.0
      %2754 = vmatpush1.msra.mxu0 %v2726
      %2755 = vmatprep.subr.mxu0 0.0
      %2756 = vmatpush1.msra.mxu0 %v2727
      %2757 = vmatprep.subr.mxu0 0.0
      %2758 = vmatpush1.msra.mxu0 %v2728
      %2759 = vmatprep.subr.mxu0 0.0
      %2760 = vmatpush1.msra.mxu0 %v2729
      %2761 = vmatprep.subr.mxu0 0.0
      %2762 = vmatpush1.msra.mxu0 %v2730
      %2763 = vmatprep.subr.mxu0 0.0
      %2764 = vmatpush1.msra.mxu0 0.0
      %2765 = vmatprep.subr.mxu0 0.0
      %2766 = vmatpush1.msra.mxu0 0.0
      %2767 = vmatprep.subr.mxu0 0.0
      %2768 = vmatpush1.msra.mxu0 0.0
      %2769 = vmatprep.subr.mxu0 0.0
      %2770 = vmatpush1.msra.mxu0 0.0
      %2771 = vmatprep.subr.mxu0 0.0
      %2772 = vmatpush1.msra.mxu0 0.0
      %2773 = vmatprep.subr.mxu0 0.0
      %2774 = vmatpush1.msra.mxu0 0.0
      %2775 = vmatprep.subr.mxu0 0.0
      %2776 = vmatpush1.msra.mxu0 0.0
      %2777 = vmatprep.subr.mxu0 0.0
      %2778 = vmatpush1.msra.mxu0 0.0
      %2779 = vmatprep.subr.mxu0 0.0
      %2780 = vmatpush1.msra.mxu0 0.0
      %2781 = vmatprep.subr.mxu0 0.0
      %2782 = vmatpush1.msra.mxu0 0.0
      %2783 = vmatprep.subr.mxu0 0.0
      %2784 = vmatpush1.msra.mxu0 0.0
      %2785 = vmatprep.subr.mxu0 0.0
      %2786 = vmatpush1.msra.mxu0 0.0
      %2787 = vmatprep.subr.mxu0 0.0
      %2788 = vmatpush1.msra.mxu0 0.0
      %2789 = vmatprep.subr.mxu0 0.0
      %2790 = vmatpush1.msra.mxu0 0.0
      %2791 = vmatprep.subr.mxu0 0.0
      %2792 = vmatpush1.msra.mxu0 0.0
      %2793 = vmatprep.subr.mxu0 0.0
      %2794 = vmatpush1.msra.mxu0 0.0
      %2795 = vmatprep.mubr.f32.mxu0 0.0
      %2796 = vmatmul.mubr.f32.gmra.mrb[0].mxu0 %v2683
      %v2797 = vpop.f32.mrb[0].mxu0
      %v2798 = vadd.f32 0.0, %v2797
      %v2799 = vpop.f32.mrb[0].mxu0
      %2800 = vmatprep.mubr.f32.mxu0 0.0
      %2801 = vmatmul.mubr.f32.gmra.mrb[0].mxu0 %v2684
      %v2802 = vpop.f32.mrb[0].mxu0
      %v2803 = vadd.f32 0.0, %v2802
      %v2804 = vpop.f32.mrb[0].mxu0
      %2805 = vmatprep.mubr.f32.mxu0 0.0
      %2806 = vmatmul.mubr.f32.gmra.mrb[0].mxu0 %v2685
      %v2807 = vpop.f32.mrb[0].mxu0
      %v2808 = vadd.f32 0.0, %v2807
      %v2809 = vpop.f32.mrb[0].mxu0
      %2810 = vmatprep.mubr.f32.mxu0 0.0
      %2811 = vmatmul.mubr.f32.gmra.mrb[0].mxu0 %v2686
      %v2812 = vpop.f32.mrb[0].mxu0
      %v2813 = vadd.f32 0.0, %v2812
      %v2814 = vpop.f32.mrb[0].mxu0
      %2815 = vmatprep.mubr.f32.mxu0 0.0
      %2816 = vmatmul.mubr.f32.gmra.mrb[0].mxu0 %v2687
      %v2817 = vpop.f32.mrb[0].mxu0
      %v2818 = vadd.f32 0.0, %v2817
      %v2819 = vpop.f32.mrb[0].mxu0
      %2820 = vmatprep.mubr.f32.mxu0 0.0
      %2821 = vmatmul.mubr.f32.gmra.mrb[0].mxu0 %v2688
      %v2822 = vpop.f32.mrb[0].mxu0
      %v2823 = vadd.f32 0.0, %v2822
      %v2824 = vpop.f32.mrb[0].mxu0
      %2825 = vmatprep.mubr.f32.mxu0 0.0
      %2826 = vmatmul.mubr.f32.gmra.mrb[0].mxu0 %v2689
      %v2827 = vpop.f32.mrb[0].mxu0
      %v2828 = vadd.f32 0.0, %v2827
      %v2829 = vpop.f32.mrb[0].mxu0
      %2830 = vmatprep.mubr.f32.mxu0 0.0
      %2831 = vmatmul.mubr.f32.gmra.mrb[0].mxu0 %v2690
      %v2832 = vpop.f32.mrb[0].mxu0
      %v2833 = vadd.f32 0.0, %v2832
      %v2834 = vpop.f32.mrb[0].mxu0
      %2835 = vmatprep.mubr.f32.mxu0 0.0
      %2836 = vmatmul.mubr.f32.gmra.mrb[0].mxu0 %v2691
      %v2837 = vpop.f32.mrb[0].mxu0
      %v2838 = vadd.f32 0.0, %v2837
      %v2839 = vpop.f32.mrb[0].mxu0
      %2840 = vmatprep.mubr.f32.mxu0 0.0
      %2841 = vmatmul.mubr.f32.gmra.mrb[0].mxu0 %v2692
      %v2842 = vpop.f32.mrb[0].mxu0
      %v2843 = vadd.f32 0.0, %v2842
      %v2844 = vpop.f32.mrb[0].mxu0
      %2845 = vmatprep.mubr.f32.mxu0 0.0
      %2846 = vmatmul.mubr.f32.gmra.mrb[0].mxu0 %v2693
      %v2847 = vpop.f32.mrb[0].mxu0
      %v2848 = vadd.f32 0.0, %v2847
      %v2849 = vpop.f32.mrb[0].mxu0
      %2850 = vmatprep.mubr.f32.mxu0 0.0
      %2851 = vmatmul.mubr.f32.gmra.mrb[0].mxu0 %v2694
      %v2852 = vpop.f32.mrb[0].mxu0
      %v2853 = vadd.f32 0.0, %v2852
      %v2854 = vpop.f32.mrb[0].mxu0
      %2855 = vmatprep.mubr.f32.mxu0 0.0
      %2856 = vmatmul.mubr.f32.gmra.mrb[0].mxu0 %v2695
      %v2857 = vpop.f32.mrb[0].mxu0
      %v2858 = vadd.f32 0.0, %v2857
      %v2859 = vpop.f32.mrb[0].mxu0
      %2860 = vmatprep.mubr.f32.mxu0 0.0
      %2861 = vmatmul.mubr.f32.gmra.mrb[0].mxu0 %v2696
      %v2862 = vpop.f32.mrb[0].mxu0
      %v2863 = vadd.f32 0.0, %v2862
      %v2864 = vpop.f32.mrb[0].mxu0
      %2865 = vmatprep.mubr.f32.mxu0 0.0
      %2866 = vmatmul.mubr.f32.gmra.mrb[0].mxu0 %v2697
      %v2867 = vpop.f32.mrb[0].mxu0
      %v2868 = vadd.f32 0.0, %v2867
      %v2869 = vpop.f32.mrb[0].mxu0
      %2870 = vmatprep.mubr.f32.mxu0 0.0
      %2871 = vmatmul.mubr.f32.gmra.mrb[0].mxu0 %v2698
      %v2872 = vpop.f32.mrb[0].mxu0
      %v2873 = vadd.f32 0.0, %v2872
      %v2874 = vpop.f32.mrb[0].mxu0
      %2875 = vmatprep.mubr.f32.mxu0 0.0
      %2876 = vmatmul.mubr.f32.gmra.mrb[0].mxu0 %v2699
      %v2877 = vpop.f32.mrb[0].mxu0
      %v2878 = vadd.f32 0.0, %v2877
      %v2879 = vpop.f32.mrb[0].mxu0
      %2880 = vmatprep.mubr.f32.mxu0 0.0
      %2881 = vmatmul.mubr.f32.gmra.mrb[0].mxu0 %v2700
      %v2882 = vpop.f32.mrb[0].mxu0
      %v2883 = vadd.f32 0.0, %v2882
      %v2884 = vpop.f32.mrb[0].mxu0
      %2885 = vmatprep.mubr.f32.mxu0 0.0
      %2886 = vmatmul.mubr.f32.gmra.mrb[0].mxu0 %v2701
      %v2887 = vpop.f32.mrb[0].mxu0
      %v2888 = vadd.f32 0.0, %v2887
      %v2889 = vpop.f32.mrb[0].mxu0
      %2890 = vmatprep.mubr.f32.mxu0 0.0
      %2891 = vmatmul.mubr.f32.gmra.mrb[0].mxu0 %v2702
      %v2892 = vpop.f32.mrb[0].mxu0
      %v2893 = vadd.f32 0.0, %v2892
      %v2894 = vpop.f32.mrb[0].mxu0
      %2895 = vmatprep.mubr.f32.mxu0 0.0
      %2896 = vmatmul.mubr.f32.gmra.mrb[0].mxu0 %v2703
      %v2897 = vpop.f32.mrb[0].mxu0
      %v2898 = vadd.f32 0.0, %v2897
      %v2899 = vpop.f32.mrb[0].mxu0
      %2900 = vmatprep.mubr.f32.mxu0 0.0
      %2901 = vmatmul.mubr.f32.gmra.mrb[0].mxu0 %v2704
      %v2902 = vpop.f32.mrb[0].mxu0
      %v2903 = vadd.f32 0.0, %v2902
      %v2904 = vpop.f32.mrb[0].mxu0
      %2905 = vmatprep.mubr.f32.mxu0 0.0
      %2906 = vmatmul.mubr.f32.gmra.mrb[0].mxu0 %v2705
      %v2907 = vpop.f32.mrb[0].mxu0
      %v2908 = vadd.f32 0.0, %v2907
      %v2909 = vpop.f32.mrb[0].mxu0
      %2910 = vmatprep.mubr.f32.mxu0 0.0
      %2911 = vmatmul.mubr.f32.gmra.mrb[0].mxu0 %v2706
      %v2912 = vpop.f32.mrb[0].mxu0
      %v2913 = vadd.f32 0.0, %v2912
      %v2914 = vpop.f32.mrb[0].mxu0
      %2915 = vmatprep.mubr.f32.mxu0 0.0
      %2916 = vmatmul.mubr.f32.gmra.mrb[0].mxu0 %v2707
      %v2917 = vpop.f32.mrb[0].mxu0
      %v2918 = vadd.f32 0.0, %v2917
      %v2919 = vpop.f32.mrb[0].mxu0
      %2920 = vmatprep.mubr.f32.mxu0 0.0
      %2921 = vmatmul.mubr.f32.gmra.mrb[0].mxu0 %v2708
      %v2922 = vpop.f32.mrb[0].mxu0
      %v2923 = vadd.f32 0.0, %v2922
      %v2924 = vpop.f32.mrb[0].mxu0
      %2925 = vmatprep.mubr.f32.mxu0 0.0
      %2926 = vmatmul.mubr.f32.gmra.mrb[0].mxu0 %v2709
      %v2927 = vpop.f32.mrb[0].mxu0
      %v2928 = vadd.f32 0.0, %v2927
      %v2929 = vpop.f32.mrb[0].mxu0
      %2930 = vmatprep.mubr.f32.mxu0 0.0
      %2931 = vmatmul.mubr.f32.gmra.mrb[0].mxu0 %v2710
      %v2932 = vpop.f32.mrb[0].mxu0
      %v2933 = vadd.f32 0.0, %v2932
      %v2934 = vpop.f32.mrb[0].mxu0
      %2935 = vmatprep.mubr.f32.mxu0 0.0
      %2936 = vmatmul.mubr.f32.gmra.mrb[0].mxu0 %v2711
      %v2937 = vpop.f32.mrb[0].mxu0
      %v2938 = vadd.f32 0.0, %v2937
      %v2939 = vpop.f32.mrb[0].mxu0
      %2940 = vmatprep.mubr.f32.mxu0 0.0
      %2941 = vmatmul.mubr.f32.gmra.mrb[0].mxu0 %v2712
      %v2942 = vpop.f32.mrb[0].mxu0
      %v2943 = vadd.f32 0.0, %v2942
      %v2944 = vpop.f32.mrb[0].mxu0
      %2945 = vmatprep.mubr.f32.mxu0 0.0
      %2946 = vmatmul.mubr.f32.gmra.mrb[0].mxu0 %v2713
      %v2947 = vpop.f32.mrb[0].mxu0
      %v2948 = vadd.f32 0.0, %v2947
      %v2949 = vpop.f32.mrb[0].mxu0
      %2950 = vmatprep.mubr.f32.mxu0 0.0
      %2951 = vmatmul.mubr.f32.gmra.mrb[0].mxu0 %v2714
      %v2952 = vpop.f32.mrb[0].mxu0
      %v2953 = vadd.f32 0.0, %v2952
      %v2954 = vpop.f32.mrb[0].mxu0
      %2955 = vdwg.mxu0
      %v2956 = vadd.f32 %v2491, %v2798
      %v2957 = vadd.f32 %v2492, %v2803
      %v2958 = vadd.f32 %v2493, %v2808
      %v2959 = vadd.f32 %v2494, %v2813
      %v2960 = vadd.f32 %v2495, %v2818
      %v2961 = vadd.f32 %v2496, %v2823
      %v2962 = vadd.f32 %v2497, %v2828
      %v2963 = vadd.f32 %v2498, %v2833
      %v2964 = vadd.f32 %v2499, %v2838
      %v2965 = vadd.f32 %v2500, %v2843
      %v2966 = vadd.f32 %v2501, %v2848
      %v2967 = vadd.f32 %v2502, %v2853
      %v2968 = vadd.f32 %v2503, %v2858
      %v2969 = vadd.f32 %v2504, %v2863
      %v2970 = vadd.f32 %v2505, %v2868
      %v2971 = vadd.f32 %v2506, %v2873
      %v2972 = vadd.f32 %v2507, %v2878
      %v2973 = vadd.f32 %v2508, %v2883
      %v2974 = vadd.f32 %v2509, %v2888
      %v2975 = vadd.f32 %v2510, %v2893
      %v2976 = vadd.f32 %v2511, %v2898
      %v2977 = vadd.f32 %v2512, %v2903
      %v2978 = vadd.f32 %v2513, %v2908
      %v2979 = vadd.f32 %v2514, %v2913
      %v2980 = vadd.f32 %v2515, %v2918
      %v2981 = vadd.f32 %v2516, %v2923
      %v2982 = vadd.f32 %v2517, %v2928
      %v2983 = vadd.f32 %v2518, %v2933
      %v2984 = vadd.f32 %v2519, %v2938
      %v2985 = vadd.f32 %v2520, %v2943
      %v2986 = vadd.f32 %v2521, %v2948
      %v2987 = vadd.f32 %v2522, %v2953
      %2988 = vset.pattern.permute.xlu0 6
      %2989 = vperm.xlu0 %2988, %v228
      %v2990 = vpop.permute.xlu0 %2989
      %2991 = vset.pattern.permute.xlu0 6
      %2992 = vperm.xlu0 %2991, %v229
      %v2993 = vpop.permute.xlu0 %2992
      %2994 = vset.pattern.permute.xlu0 6
      %2995 = vperm.xlu0 %2994, %v230
      %v2996 = vpop.permute.xlu0 %2995
      %2997 = vset.pattern.permute.xlu0 6
      %2998 = vperm.xlu0 %2997, %v231
      %v2999 = vpop.permute.xlu0 %2998
      %3000 = vset.pattern.permute.xlu0 6
      %3001 = vperm.xlu0 %3000, %v232
      %v3002 = vpop.permute.xlu0 %3001
      %3003 = vset.pattern.permute.xlu0 6
      %3004 = vperm.xlu0 %3003, %v233
      %v3005 = vpop.permute.xlu0 %3004
      %3006 = vset.pattern.permute.xlu0 6
      %3007 = vperm.xlu0 %3006, %v234
      %v3008 = vpop.permute.xlu0 %3007
      %3009 = vset.pattern.permute.xlu0 6
      %3010 = vperm.xlu0 %3009, %v235
      %v3011 = vpop.permute.xlu0 %3010
      %3012 = vset.pattern.permute.xlu0 6
      %3013 = vperm.xlu0 %3012, %v236
      %v3014 = vpop.permute.xlu0 %3013
      %3015 = vset.pattern.permute.xlu0 6
      %3016 = vperm.xlu0 %3015, %v237
      %v3017 = vpop.permute.xlu0 %3016
      %3018 = vset.pattern.permute.xlu0 6
      %3019 = vperm.xlu0 %3018, %v238
      %v3020 = vpop.permute.xlu0 %3019
      %3021 = vset.pattern.permute.xlu0 6
      %3022 = vperm.xlu0 %3021, %v239
      %v3023 = vpop.permute.xlu0 %3022
      %3024 = vset.pattern.permute.xlu0 6
      %3025 = vperm.xlu0 %3024, %v240
      %v3026 = vpop.permute.xlu0 %3025
      %3027 = vset.pattern.permute.xlu0 6
      %3028 = vperm.xlu0 %3027, %v241
      %v3029 = vpop.permute.xlu0 %3028
      %3030 = vset.pattern.permute.xlu0 6
      %3031 = vperm.xlu0 %3030, %v242
      %v3032 = vpop.permute.xlu0 %3031
      %3033 = vset.pattern.permute.xlu0 6
      %3034 = vperm.xlu0 %3033, %v243
      %v3035 = vpop.permute.xlu0 %3034
      %3036 = vset.pattern.permute.xlu0 6
      %3037 = vperm.xlu0 %3036, %v244
      %v3038 = vpop.permute.xlu0 %3037
      %3039 = vset.pattern.permute.xlu0 6
      %3040 = vperm.xlu0 %3039, %v245
      %v3041 = vpop.permute.xlu0 %3040
      %3042 = vset.pattern.permute.xlu0 6
      %3043 = vperm.xlu0 %3042, %v246
      %v3044 = vpop.permute.xlu0 %3043
      %3045 = vset.pattern.permute.xlu0 6
      %3046 = vperm.xlu0 %3045, %v247
      %v3047 = vpop.permute.xlu0 %3046
      %3048 = vset.pattern.permute.xlu0 6
      %3049 = vperm.xlu0 %3048, %v248
      %v3050 = vpop.permute.xlu0 %3049
      %3051 = vset.pattern.permute.xlu0 6
      %3052 = vperm.xlu0 %3051, %v249
      %v3053 = vpop.permute.xlu0 %3052
      %3054 = vset.pattern.permute.xlu0 6
      %3055 = vperm.xlu0 %3054, %v250
      %v3056 = vpop.permute.xlu0 %3055
      %3057 = vset.pattern.permute.xlu0 6
      %3058 = vperm.xlu0 %3057, %v251
      %v3059 = vpop.permute.xlu0 %3058
      %3060 = vset.pattern.permute.xlu0 6
      %3061 = vperm.xlu0 %3060, %v252
      %v3062 = vpop.permute.xlu0 %3061
      %3063 = vset.pattern.permute.xlu0 6
      %3064 = vperm.xlu0 %3063, %v253
      %v3065 = vpop.permute.xlu0 %3064
      %3066 = vset.pattern.permute.xlu0 6
      %3067 = vperm.xlu0 %3066, %v254
      %v3068 = vpop.permute.xlu0 %3067
      %3069 = vset.pattern.permute.xlu0 6
      %3070 = vperm.xlu0 %3069, %v255
      %v3071 = vpop.permute.xlu0 %3070
      %3072 = vset.pattern.permute.xlu0 6
      %3073 = vperm.xlu0 %3072, %v256
      %v3074 = vpop.permute.xlu0 %3073
      %3075 = vset.pattern.permute.xlu0 6
      %3076 = vperm.xlu0 %3075, %v257
      %v3077 = vpop.permute.xlu0 %3076
      %3078 = vset.pattern.permute.xlu0 6
      %3079 = vperm.xlu0 %3078, %v258
      %v3080 = vpop.permute.xlu0 %3079
      %3081 = vset.pattern.permute.xlu0 6
      %3082 = vperm.xlu0 %3081, %v259
      %v3083 = vpop.permute.xlu0 %3082
      %vm3084 = vcmp.eq.s32.totalorder %v261, %v2990
      %vm3085 = vcmp.eq.s32.totalorder %v261, %v2993
      %vm3086 = vcmp.eq.s32.totalorder %v261, %v2996
      %vm3087 = vcmp.eq.s32.totalorder %v261, %v2999
      %vm3088 = vcmp.eq.s32.totalorder %v261, %v3002
      %vm3089 = vcmp.eq.s32.totalorder %v261, %v3005
      %vm3090 = vcmp.eq.s32.totalorder %v261, %v3008
      %vm3091 = vcmp.eq.s32.totalorder %v261, %v3011
      %vm3092 = vcmp.eq.s32.totalorder %v261, %v3014
      %vm3093 = vcmp.eq.s32.totalorder %v261, %v3017
      %vm3094 = vcmp.eq.s32.totalorder %v261, %v3020
      %vm3095 = vcmp.eq.s32.totalorder %v261, %v3023
      %vm3096 = vcmp.eq.s32.totalorder %v261, %v3026
      %vm3097 = vcmp.eq.s32.totalorder %v261, %v3029
      %vm3098 = vcmp.eq.s32.totalorder %v261, %v3032
      %vm3099 = vcmp.eq.s32.totalorder %v261, %v3035
      %vm3100 = vcmp.eq.s32.totalorder %v261, %v3038
      %vm3101 = vcmp.eq.s32.totalorder %v261, %v3041
      %vm3102 = vcmp.eq.s32.totalorder %v261, %v3044
      %vm3103 = vcmp.eq.s32.totalorder %v261, %v3047
      %vm3104 = vcmp.eq.s32.totalorder %v261, %v3050
      %vm3105 = vcmp.eq.s32.totalorder %v261, %v3053
      %vm3106 = vcmp.eq.s32.totalorder %v261, %v3056
      %vm3107 = vcmp.eq.s32.totalorder %v261, %v3059
      %vm3108 = vcmp.eq.s32.totalorder %v261, %v3062
      %vm3109 = vcmp.eq.s32.totalorder %v261, %v3065
      %vm3110 = vcmp.eq.s32.totalorder %v261, %v3068
      %vm3111 = vcmp.eq.s32.totalorder %v261, %v3071
      %vm3112 = vcmp.eq.s32.totalorder %v261, %v3074
      %vm3113 = vcmp.eq.s32.totalorder %v261, %v3077
      %vm3114 = vcmp.eq.s32.totalorder %v261, %v3080
      %vm3115 = vcmp.eq.s32.totalorder %v261, %v3083
      %v3116 = vsel %vm3084, 1, 0
      %v3117 = vsel %vm3085, 1, 0
      %v3118 = vsel %vm3086, 1, 0
      %v3119 = vsel %vm3087, 1, 0
      %v3120 = vsel %vm3088, 1, 0
      %v3121 = vsel %vm3089, 1, 0
      %v3122 = vsel %vm3090, 1, 0
      %v3123 = vsel %vm3091, 1, 0
      %v3124 = vsel %vm3092, 1, 0
      %v3125 = vsel %vm3093, 1, 0
      %v3126 = vsel %vm3094, 1, 0
      %v3127 = vsel %vm3095, 1, 0
      %v3128 = vsel %vm3096, 1, 0
      %v3129 = vsel %vm3097, 1, 0
      %v3130 = vsel %vm3098, 1, 0
      %v3131 = vsel %vm3099, 1, 0
      %v3132 = vsel %vm3100, 1, 0
      %v3133 = vsel %vm3101, 1, 0
      %v3134 = vsel %vm3102, 1, 0
      %v3135 = vsel %vm3103, 1, 0
      %v3136 = vsel %vm3104, 1, 0
      %v3137 = vsel %vm3105, 1, 0
      %v3138 = vsel %vm3106, 1, 0
      %v3139 = vsel %vm3107, 1, 0
      %v3140 = vsel %vm3108, 1, 0
      %v3141 = vsel %vm3109, 1, 0
      %v3142 = vsel %vm3110, 1, 0
      %v3143 = vsel %vm3111, 1, 0
      %v3144 = vsel %vm3112, 1, 0
      %v3145 = vsel %vm3113, 1, 0
      %v3146 = vsel %vm3114, 1, 0
      %v3147 = vsel %vm3115, 1, 0
      %v3148 = vcvt.s32.f32 %v3116
      %v3149 = vcvt.s32.f32 %v3117
      %v3150 = vcvt.s32.f32 %v3118
      %v3151 = vcvt.s32.f32 %v3119
      %v3152 = vcvt.s32.f32 %v3120
      %v3153 = vcvt.s32.f32 %v3121
      %v3154 = vcvt.s32.f32 %v3122
      %v3155 = vcvt.s32.f32 %v3123
      %v3156 = vcvt.s32.f32 %v3124
      %v3157 = vcvt.s32.f32 %v3125
      %v3158 = vcvt.s32.f32 %v3126
      %v3159 = vcvt.s32.f32 %v3127
      %v3160 = vcvt.s32.f32 %v3128
      %v3161 = vcvt.s32.f32 %v3129
      %v3162 = vcvt.s32.f32 %v3130
      %v3163 = vcvt.s32.f32 %v3131
      %v3164 = vcvt.s32.f32 %v3132
      %v3165 = vcvt.s32.f32 %v3133
      %v3166 = vcvt.s32.f32 %v3134
      %v3167 = vcvt.s32.f32 %v3135
      %v3168 = vcvt.s32.f32 %v3136
      %v3169 = vcvt.s32.f32 %v3137
      %v3170 = vcvt.s32.f32 %v3138
      %v3171 = vcvt.s32.f32 %v3139
      %v3172 = vcvt.s32.f32 %v3140
      %v3173 = vcvt.s32.f32 %v3141
      %v3174 = vcvt.s32.f32 %v3142
      %v3175 = vcvt.s32.f32 %v3143
      %v3176 = vcvt.s32.f32 %v3144
      %v3177 = vcvt.s32.f32 %v3145
      %v3178 = vcvt.s32.f32 %v3146
      %v3179 = vcvt.s32.f32 %v3147
      %v3180 = vld [vmem:[%s1 + $0x300] sm:$0xff]
      %v3181 = vld [vmem:[%s1 + $0x308] sm:$0xff]
      %v3182 = vld [vmem:[%s1 + $0x310] sm:$0xff]
      %v3183 = vld [vmem:[%s1 + $0x318] sm:$0xff]
      %v3184 = vld [vmem:[%s1 + $0x320] sm:$0xff]
      %v3185 = vld [vmem:[%s1 + $0x328] sm:$0xff]
      %v3186 = vld [vmem:[%s1 + $0x330] sm:$0xff]
      %v3187 = vld [vmem:[%s1 + $0x338] sm:$0xff]
      %v3188 = vld [vmem:[%s1 + $0x340] sm:$0xff]
      %v3189 = vld [vmem:[%s1 + $0x348] sm:$0xff]
      %v3190 = vld [vmem:[%s1 + $0x350] sm:$0xff]
      %v3191 = vld [vmem:[%s1 + $0x358] sm:$0xff]
      %v3192 = vld [vmem:[%s1 + $0x360] sm:$0xff]
      %v3193 = vld [vmem:[%s1 + $0x368] sm:$0xff]
      %v3194 = vld [vmem:[%s1 + $0x370] sm:$0xff]
      %v3195 = vld [vmem:[%s1 + $0x378] sm:$0xff]
      %3196 = vmatprep.subr.mxu0 0.0
      %3197 = vmatpush1.msra.mxu0 %v3180
      %3198 = vmatprep.subr.mxu0 0.0
      %3199 = vmatpush1.msra.mxu0 %v3181
      %3200 = vmatprep.subr.mxu0 0.0
      %3201 = vmatpush1.msra.mxu0 %v3182
      %3202 = vmatprep.subr.mxu0 0.0
      %3203 = vmatpush1.msra.mxu0 %v3183
      %3204 = vmatprep.subr.mxu0 0.0
      %3205 = vmatpush1.msra.mxu0 %v3184
      %3206 = vmatprep.subr.mxu0 0.0
      %3207 = vmatpush1.msra.mxu0 %v3185
      %3208 = vmatprep.subr.mxu0 0.0
      %3209 = vmatpush1.msra.mxu0 %v3186
      %3210 = vmatprep.subr.mxu0 0.0
      %3211 = vmatpush1.msra.mxu0 %v3187
      %3212 = vmatprep.subr.mxu0 0.0
      %3213 = vmatpush1.msra.mxu0 %v3188
      %3214 = vmatprep.subr.mxu0 0.0
      %3215 = vmatpush1.msra.mxu0 %v3189
      %3216 = vmatprep.subr.mxu0 0.0
      %3217 = vmatpush1.msra.mxu0 %v3190
      %3218 = vmatprep.subr.mxu0 0.0
      %3219 = vmatpush1.msra.mxu0 %v3191
      %3220 = vmatprep.subr.mxu0 0.0
      %3221 = vmatpush1.msra.mxu0 %v3192
      %3222 = vmatprep.subr.mxu0 0.0
      %3223 = vmatpush1.msra.mxu0 %v3193
      %3224 = vmatprep.subr.mxu0 0.0
      %3225 = vmatpush1.msra.mxu0 %v3194
      %3226 = vmatprep.subr.mxu0 0.0
      %3227 = vmatpush1.msra.mxu0 %v3195
      %3228 = vmatprep.subr.mxu0 0.0
      %3229 = vmatpush1.msra.mxu0 0.0
      %3230 = vmatprep.subr.mxu0 0.0
      %3231 = vmatpush1.msra.mxu0 0.0
      %3232 = vmatprep.subr.mxu0 0.0
      %3233 = vmatpush1.msra.mxu0 0.0
      %3234 = vmatprep.subr.mxu0 0.0
      %3235 = vmatpush1.msra.mxu0 0.0
      %3236 = vmatprep.subr.mxu0 0.0
      %3237 = vmatpush1.msra.mxu0 0.0
      %3238 = vmatprep.subr.mxu0 0.0
      %3239 = vmatpush1.msra.mxu0 0.0
      %3240 = vmatprep.subr.mxu0 0.0
      %3241 = vmatpush1.msra.mxu0 0.0
      %3242 = vmatprep.subr.mxu0 0.0
      %3243 = vmatpush1.msra.mxu0 0.0
      %3244 = vmatprep.subr.mxu0 0.0
      %3245 = vmatpush1.msra.mxu0 0.0
      %3246 = vmatprep.subr.mxu0 0.0
      %3247 = vmatpush1.msra.mxu0 0.0
      %3248 = vmatprep.subr.mxu0 0.0
      %3249 = vmatpush1.msra.mxu0 0.0
      %3250 = vmatprep.subr.mxu0 0.0
      %3251 = vmatpush1.msra.mxu0 0.0
      %3252 = vmatprep.subr.mxu0 0.0
      %3253 = vmatpush1.msra.mxu0 0.0
      %3254 = vmatprep.subr.mxu0 0.0
      %3255 = vmatpush1.msra.mxu0 0.0
      %3256 = vmatprep.subr.mxu0 0.0
      %3257 = vmatpush1.msra.mxu0 0.0
      %3258 = vmatprep.subr.mxu0 0.0
      %3259 = vmatpush1.msra.mxu0 0.0
      %3260 = vmatprep.mubr.f32.mxu0 0.0
      %3261 = vmatmul.mubr.f32.gmra.mrb[0].mxu0 %v3148
      %v3262 = vpop.f32.mrb[0].mxu0
      %v3263 = vadd.f32 0.0, %v3262
      %v3264 = vpop.f32.mrb[0].mxu0
      %3265 = vmatprep.mubr.f32.mxu0 0.0
      %3266 = vmatmul.mubr.f32.gmra.mrb[0].mxu0 %v3149
      %v3267 = vpop.f32.mrb[0].mxu0
      %v3268 = vadd.f32 0.0, %v3267
      %v3269 = vpop.f32.mrb[0].mxu0
      %3270 = vmatprep.mubr.f32.mxu0 0.0
      %3271 = vmatmul.mubr.f32.gmra.mrb[0].mxu0 %v3150
      %v3272 = vpop.f32.mrb[0].mxu0
      %v3273 = vadd.f32 0.0, %v3272
      %v3274 = vpop.f32.mrb[0].mxu0
      %3275 = vmatprep.mubr.f32.mxu0 0.0
      %3276 = vmatmul.mubr.f32.gmra.mrb[0].mxu0 %v3151
      %v3277 = vpop.f32.mrb[0].mxu0
      %v3278 = vadd.f32 0.0, %v3277
      %v3279 = vpop.f32.mrb[0].mxu0
      %3280 = vmatprep.mubr.f32.mxu0 0.0
      %3281 = vmatmul.mubr.f32.gmra.mrb[0].mxu0 %v3152
      %v3282 = vpop.f32.mrb[0].mxu0
      %v3283 = vadd.f32 0.0, %v3282
      %v3284 = vpop.f32.mrb[0].mxu0
      %3285 = vmatprep.mubr.f32.mxu0 0.0
      %3286 = vmatmul.mubr.f32.gmra.mrb[0].mxu0 %v3153
      %v3287 = vpop.f32.mrb[0].mxu0
      %v3288 = vadd.f32 0.0, %v3287
      %v3289 = vpop.f32.mrb[0].mxu0
      %3290 = vmatprep.mubr.f32.mxu0 0.0
      %3291 = vmatmul.mubr.f32.gmra.mrb[0].mxu0 %v3154
      %v3292 = vpop.f32.mrb[0].mxu0
      %v3293 = vadd.f32 0.0, %v3292
      %v3294 = vpop.f32.mrb[0].mxu0
      %3295 = vmatprep.mubr.f32.mxu0 0.0
      %3296 = vmatmul.mubr.f32.gmra.mrb[0].mxu0 %v3155
      %v3297 = vpop.f32.mrb[0].mxu0
      %v3298 = vadd.f32 0.0, %v3297
      %v3299 = vpop.f32.mrb[0].mxu0
      %3300 = vmatprep.mubr.f32.mxu0 0.0
      %3301 = vmatmul.mubr.f32.gmra.mrb[0].mxu0 %v3156
      %v3302 = vpop.f32.mrb[0].mxu0
      %v3303 = vadd.f32 0.0, %v3302
      %v3304 = vpop.f32.mrb[0].mxu0
      %3305 = vmatprep.mubr.f32.mxu0 0.0
      %3306 = vmatmul.mubr.f32.gmra.mrb[0].mxu0 %v3157
      %v3307 = vpop.f32.mrb[0].mxu0
      %v3308 = vadd.f32 0.0, %v3307
      %v3309 = vpop.f32.mrb[0].mxu0
      %3310 = vmatprep.mubr.f32.mxu0 0.0
      %3311 = vmatmul.mubr.f32.gmra.mrb[0].mxu0 %v3158
      %v3312 = vpop.f32.mrb[0].mxu0
      %v3313 = vadd.f32 0.0, %v3312
      %v3314 = vpop.f32.mrb[0].mxu0
      %3315 = vmatprep.mubr.f32.mxu0 0.0
      %3316 = vmatmul.mubr.f32.gmra.mrb[0].mxu0 %v3159
      %v3317 = vpop.f32.mrb[0].mxu0
      %v3318 = vadd.f32 0.0, %v3317
      %v3319 = vpop.f32.mrb[0].mxu0
      %3320 = vmatprep.mubr.f32.mxu0 0.0
      %3321 = vmatmul.mubr.f32.gmra.mrb[0].mxu0 %v3160
      %v3322 = vpop.f32.mrb[0].mxu0
      %v3323 = vadd.f32 0.0, %v3322
      %v3324 = vpop.f32.mrb[0].mxu0
      %3325 = vmatprep.mubr.f32.mxu0 0.0
      %3326 = vmatmul.mubr.f32.gmra.mrb[0].mxu0 %v3161
      %v3327 = vpop.f32.mrb[0].mxu0
      %v3328 = vadd.f32 0.0, %v3327
      %v3329 = vpop.f32.mrb[0].mxu0
      %3330 = vmatprep.mubr.f32.mxu0 0.0
      %3331 = vmatmul.mubr.f32.gmra.mrb[0].mxu0 %v3162
      %v3332 = vpop.f32.mrb[0].mxu0
      %v3333 = vadd.f32 0.0, %v3332
      %v3334 = vpop.f32.mrb[0].mxu0
      %3335 = vmatprep.mubr.f32.mxu0 0.0
      %3336 = vmatmul.mubr.f32.gmra.mrb[0].mxu0 %v3163
      %v3337 = vpop.f32.mrb[0].mxu0
      %v3338 = vadd.f32 0.0, %v3337
      %v3339 = vpop.f32.mrb[0].mxu0
      %3340 = vmatprep.mubr.f32.mxu0 0.0
      %3341 = vmatmul.mubr.f32.gmra.mrb[0].mxu0 %v3164
      %v3342 = vpop.f32.mrb[0].mxu0
      %v3343 = vadd.f32 0.0, %v3342
      %v3344 = vpop.f32.mrb[0].mxu0
      %3345 = vmatprep.mubr.f32.mxu0 0.0
      %3346 = vmatmul.mubr.f32.gmra.mrb[0].mxu0 %v3165
      %v3347 = vpop.f32.mrb[0].mxu0
      %v3348 = vadd.f32 0.0, %v3347
      %v3349 = vpop.f32.mrb[0].mxu0
      %3350 = vmatprep.mubr.f32.mxu0 0.0
      %3351 = vmatmul.mubr.f32.gmra.mrb[0].mxu0 %v3166
      %v3352 = vpop.f32.mrb[0].mxu0
      %v3353 = vadd.f32 0.0, %v3352
      %v3354 = vpop.f32.mrb[0].mxu0
      %3355 = vmatprep.mubr.f32.mxu0 0.0
      %3356 = vmatmul.mubr.f32.gmra.mrb[0].mxu0 %v3167
      %v3357 = vpop.f32.mrb[0].mxu0
      %v3358 = vadd.f32 0.0, %v3357
      %v3359 = vpop.f32.mrb[0].mxu0
      %3360 = vmatprep.mubr.f32.mxu0 0.0
      %3361 = vmatmul.mubr.f32.gmra.mrb[0].mxu0 %v3168
      %v3362 = vpop.f32.mrb[0].mxu0
      %v3363 = vadd.f32 0.0, %v3362
      %v3364 = vpop.f32.mrb[0].mxu0
      %3365 = vmatprep.mubr.f32.mxu0 0.0
      %3366 = vmatmul.mubr.f32.gmra.mrb[0].mxu0 %v3169
      %v3367 = vpop.f32.mrb[0].mxu0
      %v3368 = vadd.f32 0.0, %v3367
      %v3369 = vpop.f32.mrb[0].mxu0
      %3370 = vmatprep.mubr.f32.mxu0 0.0
      %3371 = vmatmul.mubr.f32.gmra.mrb[0].mxu0 %v3170
      %v3372 = vpop.f32.mrb[0].mxu0
      %v3373 = vadd.f32 0.0, %v3372
      %v3374 = vpop.f32.mrb[0].mxu0
      %3375 = vmatprep.mubr.f32.mxu0 0.0
      %3376 = vmatmul.mubr.f32.gmra.mrb[0].mxu0 %v3171
      %v3377 = vpop.f32.mrb[0].mxu0
      %v3378 = vadd.f32 0.0, %v3377
      %v3379 = vpop.f32.mrb[0].mxu0
      %3380 = vmatprep.mubr.f32.mxu0 0.0
      %3381 = vmatmul.mubr.f32.gmra.mrb[0].mxu0 %v3172
      %v3382 = vpop.f32.mrb[0].mxu0
      %v3383 = vadd.f32 0.0, %v3382
      %v3384 = vpop.f32.mrb[0].mxu0
      %3385 = vmatprep.mubr.f32.mxu0 0.0
      %3386 = vmatmul.mubr.f32.gmra.mrb[0].mxu0 %v3173
      %v3387 = vpop.f32.mrb[0].mxu0
      %v3388 = vadd.f32 0.0, %v3387
      %v3389 = vpop.f32.mrb[0].mxu0
      %3390 = vmatprep.mubr.f32.mxu0 0.0
      %3391 = vmatmul.mubr.f32.gmra.mrb[0].mxu0 %v3174
      %v3392 = vpop.f32.mrb[0].mxu0
      %v3393 = vadd.f32 0.0, %v3392
      %v3394 = vpop.f32.mrb[0].mxu0
      %3395 = vmatprep.mubr.f32.mxu0 0.0
      %3396 = vmatmul.mubr.f32.gmra.mrb[0].mxu0 %v3175
      %v3397 = vpop.f32.mrb[0].mxu0
      %v3398 = vadd.f32 0.0, %v3397
      %v3399 = vpop.f32.mrb[0].mxu0
      %3400 = vmatprep.mubr.f32.mxu0 0.0
      %3401 = vmatmul.mubr.f32.gmra.mrb[0].mxu0 %v3176
      %v3402 = vpop.f32.mrb[0].mxu0
      %v3403 = vadd.f32 0.0, %v3402
      %v3404 = vpop.f32.mrb[0].mxu0
      %3405 = vmatprep.mubr.f32.mxu0 0.0
      %3406 = vmatmul.mubr.f32.gmra.mrb[0].mxu0 %v3177
      %v3407 = vpop.f32.mrb[0].mxu0
      %v3408 = vadd.f32 0.0, %v3407
      %v3409 = vpop.f32.mrb[0].mxu0
      %3410 = vmatprep.mubr.f32.mxu0 0.0
      %3411 = vmatmul.mubr.f32.gmra.mrb[0].mxu0 %v3178
      %v3412 = vpop.f32.mrb[0].mxu0
      %v3413 = vadd.f32 0.0, %v3412
      %v3414 = vpop.f32.mrb[0].mxu0
      %3415 = vmatprep.mubr.f32.mxu0 0.0
      %3416 = vmatmul.mubr.f32.gmra.mrb[0].mxu0 %v3179
      %v3417 = vpop.f32.mrb[0].mxu0
      %v3418 = vadd.f32 0.0, %v3417
      %v3419 = vpop.f32.mrb[0].mxu0
      %3420 = vdwg.mxu0
      %v3421 = vadd.f32 %v2956, %v3263
      %v3422 = vadd.f32 %v2957, %v3268
      %v3423 = vadd.f32 %v2958, %v3273
      %v3424 = vadd.f32 %v2959, %v3278
      %v3425 = vadd.f32 %v2960, %v3283
      %v3426 = vadd.f32 %v2961, %v3288
      %v3427 = vadd.f32 %v2962, %v3293
      %v3428 = vadd.f32 %v2963, %v3298
      %v3429 = vadd.f32 %v2964, %v3303
      %v3430 = vadd.f32 %v2965, %v3308
      %v3431 = vadd.f32 %v2966, %v3313
      %v3432 = vadd.f32 %v2967, %v3318
      %v3433 = vadd.f32 %v2968, %v3323
      %v3434 = vadd.f32 %v2969, %v3328
      %v3435 = vadd.f32 %v2970, %v3333
      %v3436 = vadd.f32 %v2971, %v3338
      %v3437 = vadd.f32 %v2972, %v3343
      %v3438 = vadd.f32 %v2973, %v3348
      %v3439 = vadd.f32 %v2974, %v3353
      %v3440 = vadd.f32 %v2975, %v3358
      %v3441 = vadd.f32 %v2976, %v3363
      %v3442 = vadd.f32 %v2977, %v3368
      %v3443 = vadd.f32 %v2978, %v3373
      %v3444 = vadd.f32 %v2979, %v3378
      %v3445 = vadd.f32 %v2980, %v3383
      %v3446 = vadd.f32 %v2981, %v3388
      %v3447 = vadd.f32 %v2982, %v3393
      %v3448 = vadd.f32 %v2983, %v3398
      %v3449 = vadd.f32 %v2984, %v3403
      %v3450 = vadd.f32 %v2985, %v3408
      %v3451 = vadd.f32 %v2986, %v3413
      %v3452 = vadd.f32 %v2987, %v3418
      %3453 = vset.pattern.permute.xlu0 7
      %3454 = vperm.xlu0 %3453, %v228
      %v3455 = vpop.permute.xlu0 %3454
      %3456 = vset.pattern.permute.xlu0 7
      %3457 = vperm.xlu0 %3456, %v229
      %v3458 = vpop.permute.xlu0 %3457
      %3459 = vset.pattern.permute.xlu0 7
      %3460 = vperm.xlu0 %3459, %v230
      %v3461 = vpop.permute.xlu0 %3460
      %3462 = vset.pattern.permute.xlu0 7
      %3463 = vperm.xlu0 %3462, %v231
      %v3464 = vpop.permute.xlu0 %3463
      %3465 = vset.pattern.permute.xlu0 7
      %3466 = vperm.xlu0 %3465, %v232
      %v3467 = vpop.permute.xlu0 %3466
      %3468 = vset.pattern.permute.xlu0 7
      %3469 = vperm.xlu0 %3468, %v233
      %v3470 = vpop.permute.xlu0 %3469
      %3471 = vset.pattern.permute.xlu0 7
      %3472 = vperm.xlu0 %3471, %v234
      %v3473 = vpop.permute.xlu0 %3472
      %3474 = vset.pattern.permute.xlu0 7
      %3475 = vperm.xlu0 %3474, %v235
      %v3476 = vpop.permute.xlu0 %3475
      %3477 = vset.pattern.permute.xlu0 7
      %3478 = vperm.xlu0 %3477, %v236
      %v3479 = vpop.permute.xlu0 %3478
      %3480 = vset.pattern.permute.xlu0 7
      %3481 = vperm.xlu0 %3480, %v237
      %v3482 = vpop.permute.xlu0 %3481
      %3483 = vset.pattern.permute.xlu0 7
      %3484 = vperm.xlu0 %3483, %v238
      %v3485 = vpop.permute.xlu0 %3484
      %3486 = vset.pattern.permute.xlu0 7
      %3487 = vperm.xlu0 %3486, %v239
      %v3488 = vpop.permute.xlu0 %3487
      %3489 = vset.pattern.permute.xlu0 7
      %3490 = vperm.xlu0 %3489, %v240
      %v3491 = vpop.permute.xlu0 %3490
      %3492 = vset.pattern.permute.xlu0 7
      %3493 = vperm.xlu0 %3492, %v241
      %v3494 = vpop.permute.xlu0 %3493
      %3495 = vset.pattern.permute.xlu0 7
      %3496 = vperm.xlu0 %3495, %v242
      %v3497 = vpop.permute.xlu0 %3496
      %3498 = vset.pattern.permute.xlu0 7
      %3499 = vperm.xlu0 %3498, %v243
      %v3500 = vpop.permute.xlu0 %3499
      %3501 = vset.pattern.permute.xlu0 7
      %3502 = vperm.xlu0 %3501, %v244
      %v3503 = vpop.permute.xlu0 %3502
      %3504 = vset.pattern.permute.xlu0 7
      %3505 = vperm.xlu0 %3504, %v245
      %v3506 = vpop.permute.xlu0 %3505
      %3507 = vset.pattern.permute.xlu0 7
      %3508 = vperm.xlu0 %3507, %v246
      %v3509 = vpop.permute.xlu0 %3508
      %3510 = vset.pattern.permute.xlu0 7
      %3511 = vperm.xlu0 %3510, %v247
      %v3512 = vpop.permute.xlu0 %3511
      %3513 = vset.pattern.permute.xlu0 7
      %3514 = vperm.xlu0 %3513, %v248
      %v3515 = vpop.permute.xlu0 %3514
      %3516 = vset.pattern.permute.xlu0 7
      %3517 = vperm.xlu0 %3516, %v249
      %v3518 = vpop.permute.xlu0 %3517
      %3519 = vset.pattern.permute.xlu0 7
      %3520 = vperm.xlu0 %3519, %v250
      %v3521 = vpop.permute.xlu0 %3520
      %3522 = vset.pattern.permute.xlu0 7
      %3523 = vperm.xlu0 %3522, %v251
      %v3524 = vpop.permute.xlu0 %3523
      %3525 = vset.pattern.permute.xlu0 7
      %3526 = vperm.xlu0 %3525, %v252
      %v3527 = vpop.permute.xlu0 %3526
      %3528 = vset.pattern.permute.xlu0 7
      %3529 = vperm.xlu0 %3528, %v253
      %v3530 = vpop.permute.xlu0 %3529
      %3531 = vset.pattern.permute.xlu0 7
      %3532 = vperm.xlu0 %3531, %v254
      %v3533 = vpop.permute.xlu0 %3532
      %3534 = vset.pattern.permute.xlu0 7
      %3535 = vperm.xlu0 %3534, %v255
      %v3536 = vpop.permute.xlu0 %3535
      %3537 = vset.pattern.permute.xlu0 7
      %3538 = vperm.xlu0 %3537, %v256
      %v3539 = vpop.permute.xlu0 %3538
      %3540 = vset.pattern.permute.xlu0 7
      %3541 = vperm.xlu0 %3540, %v257
      %v3542 = vpop.permute.xlu0 %3541
      %3543 = vset.pattern.permute.xlu0 7
      %3544 = vperm.xlu0 %3543, %v258
      %v3545 = vpop.permute.xlu0 %3544
      %3546 = vset.pattern.permute.xlu0 7
      %3547 = vperm.xlu0 %3546, %v259
      %v3548 = vpop.permute.xlu0 %3547
      %vm3549 = vcmp.eq.s32.totalorder %v261, %v3455
      %vm3550 = vcmp.eq.s32.totalorder %v261, %v3458
      %vm3551 = vcmp.eq.s32.totalorder %v261, %v3461
      %vm3552 = vcmp.eq.s32.totalorder %v261, %v3464
      %vm3553 = vcmp.eq.s32.totalorder %v261, %v3467
      %vm3554 = vcmp.eq.s32.totalorder %v261, %v3470
      %vm3555 = vcmp.eq.s32.totalorder %v261, %v3473
      %vm3556 = vcmp.eq.s32.totalorder %v261, %v3476
      %vm3557 = vcmp.eq.s32.totalorder %v261, %v3479
      %vm3558 = vcmp.eq.s32.totalorder %v261, %v3482
      %vm3559 = vcmp.eq.s32.totalorder %v261, %v3485
      %vm3560 = vcmp.eq.s32.totalorder %v261, %v3488
      %vm3561 = vcmp.eq.s32.totalorder %v261, %v3491
      %vm3562 = vcmp.eq.s32.totalorder %v261, %v3494
      %vm3563 = vcmp.eq.s32.totalorder %v261, %v3497
      %vm3564 = vcmp.eq.s32.totalorder %v261, %v3500
      %vm3565 = vcmp.eq.s32.totalorder %v261, %v3503
      %vm3566 = vcmp.eq.s32.totalorder %v261, %v3506
      %vm3567 = vcmp.eq.s32.totalorder %v261, %v3509
      %vm3568 = vcmp.eq.s32.totalorder %v261, %v3512
      %vm3569 = vcmp.eq.s32.totalorder %v261, %v3515
      %vm3570 = vcmp.eq.s32.totalorder %v261, %v3518
      %vm3571 = vcmp.eq.s32.totalorder %v261, %v3521
      %vm3572 = vcmp.eq.s32.totalorder %v261, %v3524
      %vm3573 = vcmp.eq.s32.totalorder %v261, %v3527
      %vm3574 = vcmp.eq.s32.totalorder %v261, %v3530
      %vm3575 = vcmp.eq.s32.totalorder %v261, %v3533
      %vm3576 = vcmp.eq.s32.totalorder %v261, %v3536
      %vm3577 = vcmp.eq.s32.totalorder %v261, %v3539
      %vm3578 = vcmp.eq.s32.totalorder %v261, %v3542
      %vm3579 = vcmp.eq.s32.totalorder %v261, %v3545
      %vm3580 = vcmp.eq.s32.totalorder %v261, %v3548
      %v3581 = vsel %vm3549, 1, 0
      %v3582 = vsel %vm3550, 1, 0
      %v3583 = vsel %vm3551, 1, 0
      %v3584 = vsel %vm3552, 1, 0
      %v3585 = vsel %vm3553, 1, 0
      %v3586 = vsel %vm3554, 1, 0
      %v3587 = vsel %vm3555, 1, 0
      %v3588 = vsel %vm3556, 1, 0
      %v3589 = vsel %vm3557, 1, 0
      %v3590 = vsel %vm3558, 1, 0
      %v3591 = vsel %vm3559, 1, 0
      %v3592 = vsel %vm3560, 1, 0
      %v3593 = vsel %vm3561, 1, 0
      %v3594 = vsel %vm3562, 1, 0
      %v3595 = vsel %vm3563, 1, 0
      %v3596 = vsel %vm3564, 1, 0
      %v3597 = vsel %vm3565, 1, 0
      %v3598 = vsel %vm3566, 1, 0
      %v3599 = vsel %vm3567, 1, 0
      %v3600 = vsel %vm3568, 1, 0
      %v3601 = vsel %vm3569, 1, 0
      %v3602 = vsel %vm3570, 1, 0
      %v3603 = vsel %vm3571, 1, 0
      %v3604 = vsel %vm3572, 1, 0
      %v3605 = vsel %vm3573, 1, 0
      %v3606 = vsel %vm3574, 1, 0
      %v3607 = vsel %vm3575, 1, 0
      %v3608 = vsel %vm3576, 1, 0
      %v3609 = vsel %vm3577, 1, 0
      %v3610 = vsel %vm3578, 1, 0
      %v3611 = vsel %vm3579, 1, 0
      %v3612 = vsel %vm3580, 1, 0
      %v3613 = vcvt.s32.f32 %v3581
      %v3614 = vcvt.s32.f32 %v3582
      %v3615 = vcvt.s32.f32 %v3583
      %v3616 = vcvt.s32.f32 %v3584
      %v3617 = vcvt.s32.f32 %v3585
      %v3618 = vcvt.s32.f32 %v3586
      %v3619 = vcvt.s32.f32 %v3587
      %v3620 = vcvt.s32.f32 %v3588
      %v3621 = vcvt.s32.f32 %v3589
      %v3622 = vcvt.s32.f32 %v3590
      %v3623 = vcvt.s32.f32 %v3591
      %v3624 = vcvt.s32.f32 %v3592
      %v3625 = vcvt.s32.f32 %v3593
      %v3626 = vcvt.s32.f32 %v3594
      %v3627 = vcvt.s32.f32 %v3595
      %v3628 = vcvt.s32.f32 %v3596
      %v3629 = vcvt.s32.f32 %v3597
      %v3630 = vcvt.s32.f32 %v3598
      %v3631 = vcvt.s32.f32 %v3599
      %v3632 = vcvt.s32.f32 %v3600
      %v3633 = vcvt.s32.f32 %v3601
      %v3634 = vcvt.s32.f32 %v3602
      %v3635 = vcvt.s32.f32 %v3603
      %v3636 = vcvt.s32.f32 %v3604
      %v3637 = vcvt.s32.f32 %v3605
      %v3638 = vcvt.s32.f32 %v3606
      %v3639 = vcvt.s32.f32 %v3607
      %v3640 = vcvt.s32.f32 %v3608
      %v3641 = vcvt.s32.f32 %v3609
      %v3642 = vcvt.s32.f32 %v3610
      %v3643 = vcvt.s32.f32 %v3611
      %v3644 = vcvt.s32.f32 %v3612
      %v3645 = vld [vmem:[%s1 + $0x380] sm:$0xff]
      %v3646 = vld [vmem:[%s1 + $0x388] sm:$0xff]
      %v3647 = vld [vmem:[%s1 + $0x390] sm:$0xff]
      %v3648 = vld [vmem:[%s1 + $0x398] sm:$0xff]
      %v3649 = vld [vmem:[%s1 + $0x3a0] sm:$0xff]
      %v3650 = vld [vmem:[%s1 + $0x3a8] sm:$0xff]
      %v3651 = vld [vmem:[%s1 + $0x3b0] sm:$0xff]
      %v3652 = vld [vmem:[%s1 + $0x3b8] sm:$0xff]
      %v3653 = vld [vmem:[%s1 + $0x3c0] sm:$0xff]
      %v3654 = vld [vmem:[%s1 + $0x3c8] sm:$0xff]
      %v3655 = vld [vmem:[%s1 + $0x3d0] sm:$0xff]
      %v3656 = vld [vmem:[%s1 + $0x3d8] sm:$0xff]
      %v3657 = vld [vmem:[%s1 + $0x3e0] sm:$0xff]
      %v3658 = vld [vmem:[%s1 + $0x3e8] sm:$0xff]
      %v3659 = vld [vmem:[%s1 + $0x3f0] sm:$0xff]
      %v3660 = vld [vmem:[%s1 + $0x3f8] sm:$0xff]
      %3661 = vmatprep.subr.mxu0 0.0
      %3662 = vmatpush1.msra.mxu0 %v3645
      %3663 = vmatprep.subr.mxu0 0.0
      %3664 = vmatpush1.msra.mxu0 %v3646
      %3665 = vmatprep.subr.mxu0 0.0
      %3666 = vmatpush1.msra.mxu0 %v3647
      %3667 = vmatprep.subr.mxu0 0.0
      %3668 = vmatpush1.msra.mxu0 %v3648
      %3669 = vmatprep.subr.mxu0 0.0
      %3670 = vmatpush1.msra.mxu0 %v3649
      %3671 = vmatprep.subr.mxu0 0.0
      %3672 = vmatpush1.msra.mxu0 %v3650
      %3673 = vmatprep.subr.mxu0 0.0
      %3674 = vmatpush1.msra.mxu0 %v3651
      %3675 = vmatprep.subr.mxu0 0.0
      %3676 = vmatpush1.msra.mxu0 %v3652
      %3677 = vmatprep.subr.mxu0 0.0
      %3678 = vmatpush1.msra.mxu0 %v3653
      %3679 = vmatprep.subr.mxu0 0.0
      %3680 = vmatpush1.msra.mxu0 %v3654
      %3681 = vmatprep.subr.mxu0 0.0
      %3682 = vmatpush1.msra.mxu0 %v3655
      %3683 = vmatprep.subr.mxu0 0.0
      %3684 = vmatpush1.msra.mxu0 %v3656
      %3685 = vmatprep.subr.mxu0 0.0
      %3686 = vmatpush1.msra.mxu0 %v3657
      %3687 = vmatprep.subr.mxu0 0.0
      %3688 = vmatpush1.msra.mxu0 %v3658
      %3689 = vmatprep.subr.mxu0 0.0
      %3690 = vmatpush1.msra.mxu0 %v3659
      %3691 = vmatprep.subr.mxu0 0.0
      %3692 = vmatpush1.msra.mxu0 %v3660
      %3693 = vmatprep.subr.mxu0 0.0
      %3694 = vmatpush1.msra.mxu0 0.0
      %3695 = vmatprep.subr.mxu0 0.0
      %3696 = vmatpush1.msra.mxu0 0.0
      %3697 = vmatprep.subr.mxu0 0.0
      %3698 = vmatpush1.msra.mxu0 0.0
      %3699 = vmatprep.subr.mxu0 0.0
      %3700 = vmatpush1.msra.mxu0 0.0
      %3701 = vmatprep.subr.mxu0 0.0
      %3702 = vmatpush1.msra.mxu0 0.0
      %3703 = vmatprep.subr.mxu0 0.0
      %3704 = vmatpush1.msra.mxu0 0.0
      %3705 = vmatprep.subr.mxu0 0.0
      %3706 = vmatpush1.msra.mxu0 0.0
      %3707 = vmatprep.subr.mxu0 0.0
      %3708 = vmatpush1.msra.mxu0 0.0
      %3709 = vmatprep.subr.mxu0 0.0
      %3710 = vmatpush1.msra.mxu0 0.0
      %3711 = vmatprep.subr.mxu0 0.0
      %3712 = vmatpush1.msra.mxu0 0.0
      %3713 = vmatprep.subr.mxu0 0.0
      %3714 = vmatpush1.msra.mxu0 0.0
      %3715 = vmatprep.subr.mxu0 0.0
      %3716 = vmatpush1.msra.mxu0 0.0
      %3717 = vmatprep.subr.mxu0 0.0
      %3718 = vmatpush1.msra.mxu0 0.0
      %3719 = vmatprep.subr.mxu0 0.0
      %3720 = vmatpush1.msra.mxu0 0.0
      %3721 = vmatprep.subr.mxu0 0.0
      %3722 = vmatpush1.msra.mxu0 0.0
      %3723 = vmatprep.subr.mxu0 0.0
      %3724 = vmatpush1.msra.mxu0 0.0
      %3725 = vmatprep.mubr.f32.mxu0 0.0
      %3726 = vmatmul.mubr.f32.gmra.mrb[0].mxu0 %v3613
      %v3727 = vpop.f32.mrb[0].mxu0
      %v3728 = vadd.f32 0.0, %v3727
      %v3729 = vpop.f32.mrb[0].mxu0
      %3730 = vmatprep.mubr.f32.mxu0 0.0
      %3731 = vmatmul.mubr.f32.gmra.mrb[0].mxu0 %v3614
      %v3732 = vpop.f32.mrb[0].mxu0
      %v3733 = vadd.f32 0.0, %v3732
      %v3734 = vpop.f32.mrb[0].mxu0
      %3735 = vmatprep.mubr.f32.mxu0 0.0
      %3736 = vmatmul.mubr.f32.gmra.mrb[0].mxu0 %v3615
      %v3737 = vpop.f32.mrb[0].mxu0
      %v3738 = vadd.f32 0.0, %v3737
      %v3739 = vpop.f32.mrb[0].mxu0
      %3740 = vmatprep.mubr.f32.mxu0 0.0
      %3741 = vmatmul.mubr.f32.gmra.mrb[0].mxu0 %v3616
      %v3742 = vpop.f32.mrb[0].mxu0
      %v3743 = vadd.f32 0.0, %v3742
      %v3744 = vpop.f32.mrb[0].mxu0
      %3745 = vmatprep.mubr.f32.mxu0 0.0
      %3746 = vmatmul.mubr.f32.gmra.mrb[0].mxu0 %v3617
      %v3747 = vpop.f32.mrb[0].mxu0
      %v3748 = vadd.f32 0.0, %v3747
      %v3749 = vpop.f32.mrb[0].mxu0
      %3750 = vmatprep.mubr.f32.mxu0 0.0
      %3751 = vmatmul.mubr.f32.gmra.mrb[0].mxu0 %v3618
      %v3752 = vpop.f32.mrb[0].mxu0
      %v3753 = vadd.f32 0.0, %v3752
      %v3754 = vpop.f32.mrb[0].mxu0
      %3755 = vmatprep.mubr.f32.mxu0 0.0
      %3756 = vmatmul.mubr.f32.gmra.mrb[0].mxu0 %v3619
      %v3757 = vpop.f32.mrb[0].mxu0
      %v3758 = vadd.f32 0.0, %v3757
      %v3759 = vpop.f32.mrb[0].mxu0
      %3760 = vmatprep.mubr.f32.mxu0 0.0
      %3761 = vmatmul.mubr.f32.gmra.mrb[0].mxu0 %v3620
      %v3762 = vpop.f32.mrb[0].mxu0
      %v3763 = vadd.f32 0.0, %v3762
      %v3764 = vpop.f32.mrb[0].mxu0
      %3765 = vmatprep.mubr.f32.mxu0 0.0
      %3766 = vmatmul.mubr.f32.gmra.mrb[0].mxu0 %v3621
      %v3767 = vpop.f32.mrb[0].mxu0
      %v3768 = vadd.f32 0.0, %v3767
      %v3769 = vpop.f32.mrb[0].mxu0
      %3770 = vmatprep.mubr.f32.mxu0 0.0
      %3771 = vmatmul.mubr.f32.gmra.mrb[0].mxu0 %v3622
      %v3772 = vpop.f32.mrb[0].mxu0
      %v3773 = vadd.f32 0.0, %v3772
      %v3774 = vpop.f32.mrb[0].mxu0
      %3775 = vmatprep.mubr.f32.mxu0 0.0
      %3776 = vmatmul.mubr.f32.gmra.mrb[0].mxu0 %v3623
      %v3777 = vpop.f32.mrb[0].mxu0
      %v3778 = vadd.f32 0.0, %v3777
      %v3779 = vpop.f32.mrb[0].mxu0
      %3780 = vmatprep.mubr.f32.mxu0 0.0
      %3781 = vmatmul.mubr.f32.gmra.mrb[0].mxu0 %v3624
      %v3782 = vpop.f32.mrb[0].mxu0
      %v3783 = vadd.f32 0.0, %v3782
      %v3784 = vpop.f32.mrb[0].mxu0
      %3785 = vmatprep.mubr.f32.mxu0 0.0
      %3786 = vmatmul.mubr.f32.gmra.mrb[0].mxu0 %v3625
      %v3787 = vpop.f32.mrb[0].mxu0
      %v3788 = vadd.f32 0.0, %v3787
      %v3789 = vpop.f32.mrb[0].mxu0
      %3790 = vmatprep.mubr.f32.mxu0 0.0
      %3791 = vmatmul.mubr.f32.gmra.mrb[0].mxu0 %v3626
      %v3792 = vpop.f32.mrb[0].mxu0
      %v3793 = vadd.f32 0.0, %v3792
      %v3794 = vpop.f32.mrb[0].mxu0
      %3795 = vmatprep.mubr.f32.mxu0 0.0
      %3796 = vmatmul.mubr.f32.gmra.mrb[0].mxu0 %v3627
      %v3797 = vpop.f32.mrb[0].mxu0
      %v3798 = vadd.f32 0.0, %v3797
      %v3799 = vpop.f32.mrb[0].mxu0
      %3800 = vmatprep.mubr.f32.mxu0 0.0
      %3801 = vmatmul.mubr.f32.gmra.mrb[0].mxu0 %v3628
      %v3802 = vpop.f32.mrb[0].mxu0
      %v3803 = vadd.f32 0.0, %v3802
      %v3804 = vpop.f32.mrb[0].mxu0
      %3805 = vmatprep.mubr.f32.mxu0 0.0
      %3806 = vmatmul.mubr.f32.gmra.mrb[0].mxu0 %v3629
      %v3807 = vpop.f32.mrb[0].mxu0
      %v3808 = vadd.f32 0.0, %v3807
      %v3809 = vpop.f32.mrb[0].mxu0
      %3810 = vmatprep.mubr.f32.mxu0 0.0
      %3811 = vmatmul.mubr.f32.gmra.mrb[0].mxu0 %v3630
      %v3812 = vpop.f32.mrb[0].mxu0
      %v3813 = vadd.f32 0.0, %v3812
      %v3814 = vpop.f32.mrb[0].mxu0
      %3815 = vmatprep.mubr.f32.mxu0 0.0
      %3816 = vmatmul.mubr.f32.gmra.mrb[0].mxu0 %v3631
      %v3817 = vpop.f32.mrb[0].mxu0
      %v3818 = vadd.f32 0.0, %v3817
      %v3819 = vpop.f32.mrb[0].mxu0
      %3820 = vmatprep.mubr.f32.mxu0 0.0
      %3821 = vmatmul.mubr.f32.gmra.mrb[0].mxu0 %v3632
      %v3822 = vpop.f32.mrb[0].mxu0
      %v3823 = vadd.f32 0.0, %v3822
      %v3824 = vpop.f32.mrb[0].mxu0
      %3825 = vmatprep.mubr.f32.mxu0 0.0
      %3826 = vmatmul.mubr.f32.gmra.mrb[0].mxu0 %v3633
      %v3827 = vpop.f32.mrb[0].mxu0
      %v3828 = vadd.f32 0.0, %v3827
      %v3829 = vpop.f32.mrb[0].mxu0
      %3830 = vmatprep.mubr.f32.mxu0 0.0
      %3831 = vmatmul.mubr.f32.gmra.mrb[0].mxu0 %v3634
      %v3832 = vpop.f32.mrb[0].mxu0
      %v3833 = vadd.f32 0.0, %v3832
      %v3834 = vpop.f32.mrb[0].mxu0
      %3835 = vmatprep.mubr.f32.mxu0 0.0
      %3836 = vmatmul.mubr.f32.gmra.mrb[0].mxu0 %v3635
      %v3837 = vpop.f32.mrb[0].mxu0
      %v3838 = vadd.f32 0.0, %v3837
      %v3839 = vpop.f32.mrb[0].mxu0
      %3840 = vmatprep.mubr.f32.mxu0 0.0
      %3841 = vmatmul.mubr.f32.gmra.mrb[0].mxu0 %v3636
      %v3842 = vpop.f32.mrb[0].mxu0
      %v3843 = vadd.f32 0.0, %v3842
      %v3844 = vpop.f32.mrb[0].mxu0
      %3845 = vmatprep.mubr.f32.mxu0 0.0
      %3846 = vmatmul.mubr.f32.gmra.mrb[0].mxu0 %v3637
      %v3847 = vpop.f32.mrb[0].mxu0
      %v3848 = vadd.f32 0.0, %v3847
      %v3849 = vpop.f32.mrb[0].mxu0
      %3850 = vmatprep.mubr.f32.mxu0 0.0
      %3851 = vmatmul.mubr.f32.gmra.mrb[0].mxu0 %v3638
      %v3852 = vpop.f32.mrb[0].mxu0
      %v3853 = vadd.f32 0.0, %v3852
      %v3854 = vpop.f32.mrb[0].mxu0
      %3855 = vmatprep.mubr.f32.mxu0 0.0
      %3856 = vmatmul.mubr.f32.gmra.mrb[0].mxu0 %v3639
      %v3857 = vpop.f32.mrb[0].mxu0
      %v3858 = vadd.f32 0.0, %v3857
      %v3859 = vpop.f32.mrb[0].mxu0
      %3860 = vmatprep.mubr.f32.mxu0 0.0
      %3861 = vmatmul.mubr.f32.gmra.mrb[0].mxu0 %v3640
      %v3862 = vpop.f32.mrb[0].mxu0
      %v3863 = vadd.f32 0.0, %v3862
      %v3864 = vpop.f32.mrb[0].mxu0
      %3865 = vmatprep.mubr.f32.mxu0 0.0
      %3866 = vmatmul.mubr.f32.gmra.mrb[0].mxu0 %v3641
      %v3867 = vpop.f32.mrb[0].mxu0
      %v3868 = vadd.f32 0.0, %v3867
      %v3869 = vpop.f32.mrb[0].mxu0
      %3870 = vmatprep.mubr.f32.mxu0 0.0
      %3871 = vmatmul.mubr.f32.gmra.mrb[0].mxu0 %v3642
      %v3872 = vpop.f32.mrb[0].mxu0
      %v3873 = vadd.f32 0.0, %v3872
      %v3874 = vpop.f32.mrb[0].mxu0
      %3875 = vmatprep.mubr.f32.mxu0 0.0
      %3876 = vmatmul.mubr.f32.gmra.mrb[0].mxu0 %v3643
      %v3877 = vpop.f32.mrb[0].mxu0
      %v3878 = vadd.f32 0.0, %v3877
      %v3879 = vpop.f32.mrb[0].mxu0
      %3880 = vmatprep.mubr.f32.mxu0 0.0
      %3881 = vmatmul.mubr.f32.gmra.mrb[0].mxu0 %v3644
      %v3882 = vpop.f32.mrb[0].mxu0
      %v3883 = vadd.f32 0.0, %v3882
      %v3884 = vpop.f32.mrb[0].mxu0
      %3885 = vdwg.mxu0
      %v3886 = vadd.f32 %v3421, %v3728
      %v3887 = vadd.f32 %v3422, %v3733
      %v3888 = vadd.f32 %v3423, %v3738
      %v3889 = vadd.f32 %v3424, %v3743
      %v3890 = vadd.f32 %v3425, %v3748
      %v3891 = vadd.f32 %v3426, %v3753
      %v3892 = vadd.f32 %v3427, %v3758
      %v3893 = vadd.f32 %v3428, %v3763
      %v3894 = vadd.f32 %v3429, %v3768
      %v3895 = vadd.f32 %v3430, %v3773
      %v3896 = vadd.f32 %v3431, %v3778
      %v3897 = vadd.f32 %v3432, %v3783
      %v3898 = vadd.f32 %v3433, %v3788
      %v3899 = vadd.f32 %v3434, %v3793
      %v3900 = vadd.f32 %v3435, %v3798
      %v3901 = vadd.f32 %v3436, %v3803
      %v3902 = vadd.f32 %v3437, %v3808
      %v3903 = vadd.f32 %v3438, %v3813
      %v3904 = vadd.f32 %v3439, %v3818
      %v3905 = vadd.f32 %v3440, %v3823
      %v3906 = vadd.f32 %v3441, %v3828
      %v3907 = vadd.f32 %v3442, %v3833
      %v3908 = vadd.f32 %v3443, %v3838
      %v3909 = vadd.f32 %v3444, %v3843
      %v3910 = vadd.f32 %v3445, %v3848
      %v3911 = vadd.f32 %v3446, %v3853
      %v3912 = vadd.f32 %v3447, %v3858
      %v3913 = vadd.f32 %v3448, %v3863
      %v3914 = vadd.f32 %v3449, %v3868
      %v3915 = vadd.f32 %v3450, %v3873
      %v3916 = vadd.f32 %v3451, %v3878
      %v3917 = vadd.f32 %v3452, %v3883
      %3918 = vset.pattern.permute.xlu0 8
      %3919 = vperm.xlu0 %3918, %v228
      %v3920 = vpop.permute.xlu0 %3919
      %3921 = vset.pattern.permute.xlu0 8
      %3922 = vperm.xlu0 %3921, %v229
      %v3923 = vpop.permute.xlu0 %3922
      %3924 = vset.pattern.permute.xlu0 8
      %3925 = vperm.xlu0 %3924, %v230
      %v3926 = vpop.permute.xlu0 %3925
      %3927 = vset.pattern.permute.xlu0 8
      %3928 = vperm.xlu0 %3927, %v231
      %v3929 = vpop.permute.xlu0 %3928
      %3930 = vset.pattern.permute.xlu0 8
      %3931 = vperm.xlu0 %3930, %v232
      %v3932 = vpop.permute.xlu0 %3931
      %3933 = vset.pattern.permute.xlu0 8
      %3934 = vperm.xlu0 %3933, %v233
      %v3935 = vpop.permute.xlu0 %3934
      %3936 = vset.pattern.permute.xlu0 8
      %3937 = vperm.xlu0 %3936, %v234
      %v3938 = vpop.permute.xlu0 %3937
      %3939 = vset.pattern.permute.xlu0 8
      %3940 = vperm.xlu0 %3939, %v235
      %v3941 = vpop.permute.xlu0 %3940
      %3942 = vset.pattern.permute.xlu0 8
      %3943 = vperm.xlu0 %3942, %v236
      %v3944 = vpop.permute.xlu0 %3943
      %3945 = vset.pattern.permute.xlu0 8
      %3946 = vperm.xlu0 %3945, %v237
      %v3947 = vpop.permute.xlu0 %3946
      %3948 = vset.pattern.permute.xlu0 8
      %3949 = vperm.xlu0 %3948, %v238
      %v3950 = vpop.permute.xlu0 %3949
      %3951 = vset.pattern.permute.xlu0 8
      %3952 = vperm.xlu0 %3951, %v239
      %v3953 = vpop.permute.xlu0 %3952
      %3954 = vset.pattern.permute.xlu0 8
      %3955 = vperm.xlu0 %3954, %v240
      %v3956 = vpop.permute.xlu0 %3955
      %3957 = vset.pattern.permute.xlu0 8
      %3958 = vperm.xlu0 %3957, %v241
      %v3959 = vpop.permute.xlu0 %3958
      %3960 = vset.pattern.permute.xlu0 8
      %3961 = vperm.xlu0 %3960, %v242
      %v3962 = vpop.permute.xlu0 %3961
      %3963 = vset.pattern.permute.xlu0 8
      %3964 = vperm.xlu0 %3963, %v243
      %v3965 = vpop.permute.xlu0 %3964
      %3966 = vset.pattern.permute.xlu0 8
      %3967 = vperm.xlu0 %3966, %v244
      %v3968 = vpop.permute.xlu0 %3967
      %3969 = vset.pattern.permute.xlu0 8
      %3970 = vperm.xlu0 %3969, %v245
      %v3971 = vpop.permute.xlu0 %3970
      %3972 = vset.pattern.permute.xlu0 8
      %3973 = vperm.xlu0 %3972, %v246
      %v3974 = vpop.permute.xlu0 %3973
      %3975 = vset.pattern.permute.xlu0 8
      %3976 = vperm.xlu0 %3975, %v247
      %v3977 = vpop.permute.xlu0 %3976
      %3978 = vset.pattern.permute.xlu0 8
      %3979 = vperm.xlu0 %3978, %v248
      %v3980 = vpop.permute.xlu0 %3979
      %3981 = vset.pattern.permute.xlu0 8
      %3982 = vperm.xlu0 %3981, %v249
      %v3983 = vpop.permute.xlu0 %3982
      %3984 = vset.pattern.permute.xlu0 8
      %3985 = vperm.xlu0 %3984, %v250
      %v3986 = vpop.permute.xlu0 %3985
      %3987 = vset.pattern.permute.xlu0 8
      %3988 = vperm.xlu0 %3987, %v251
      %v3989 = vpop.permute.xlu0 %3988
      %3990 = vset.pattern.permute.xlu0 8
      %3991 = vperm.xlu0 %3990, %v252
      %v3992 = vpop.permute.xlu0 %3991
      %3993 = vset.pattern.permute.xlu0 8
      %3994 = vperm.xlu0 %3993, %v253
      %v3995 = vpop.permute.xlu0 %3994
      %3996 = vset.pattern.permute.xlu0 8
      %3997 = vperm.xlu0 %3996, %v254
      %v3998 = vpop.permute.xlu0 %3997
      %3999 = vset.pattern.permute.xlu0 8
      %4000 = vperm.xlu0 %3999, %v255
      %v4001 = vpop.permute.xlu0 %4000
      %4002 = vset.pattern.permute.xlu0 8
      %4003 = vperm.xlu0 %4002, %v256
      %v4004 = vpop.permute.xlu0 %4003
      %4005 = vset.pattern.permute.xlu0 8
      %4006 = vperm.xlu0 %4005, %v257
      %v4007 = vpop.permute.xlu0 %4006
      %4008 = vset.pattern.permute.xlu0 8
      %4009 = vperm.xlu0 %4008, %v258
      %v4010 = vpop.permute.xlu0 %4009
      %4011 = vset.pattern.permute.xlu0 8
      %4012 = vperm.xlu0 %4011, %v259
      %v4013 = vpop.permute.xlu0 %4012
      %vm4014 = vcmp.eq.s32.totalorder %v261, %v3920
      %vm4015 = vcmp.eq.s32.totalorder %v261, %v3923
      %vm4016 = vcmp.eq.s32.totalorder %v261, %v3926
      %vm4017 = vcmp.eq.s32.totalorder %v261, %v3929
      %vm4018 = vcmp.eq.s32.totalorder %v261, %v3932
      %vm4019 = vcmp.eq.s32.totalorder %v261, %v3935
      %vm4020 = vcmp.eq.s32.totalorder %v261, %v3938
      %vm4021 = vcmp.eq.s32.totalorder %v261, %v3941
      %vm4022 = vcmp.eq.s32.totalorder %v261, %v3944
      %vm4023 = vcmp.eq.s32.totalorder %v261, %v3947
      %vm4024 = vcmp.eq.s32.totalorder %v261, %v3950
      %vm4025 = vcmp.eq.s32.totalorder %v261, %v3953
      %vm4026 = vcmp.eq.s32.totalorder %v261, %v3956
      %vm4027 = vcmp.eq.s32.totalorder %v261, %v3959
      %vm4028 = vcmp.eq.s32.totalorder %v261, %v3962
      %vm4029 = vcmp.eq.s32.totalorder %v261, %v3965
      %vm4030 = vcmp.eq.s32.totalorder %v261, %v3968
      %vm4031 = vcmp.eq.s32.totalorder %v261, %v3971
      %vm4032 = vcmp.eq.s32.totalorder %v261, %v3974
      %vm4033 = vcmp.eq.s32.totalorder %v261, %v3977
      %vm4034 = vcmp.eq.s32.totalorder %v261, %v3980
      %vm4035 = vcmp.eq.s32.totalorder %v261, %v3983
      %vm4036 = vcmp.eq.s32.totalorder %v261, %v3986
      %vm4037 = vcmp.eq.s32.totalorder %v261, %v3989
      %vm4038 = vcmp.eq.s32.totalorder %v261, %v3992
      %vm4039 = vcmp.eq.s32.totalorder %v261, %v3995
      %vm4040 = vcmp.eq.s32.totalorder %v261, %v3998
      %vm4041 = vcmp.eq.s32.totalorder %v261, %v4001
      %vm4042 = vcmp.eq.s32.totalorder %v261, %v4004
      %vm4043 = vcmp.eq.s32.totalorder %v261, %v4007
      %vm4044 = vcmp.eq.s32.totalorder %v261, %v4010
      %vm4045 = vcmp.eq.s32.totalorder %v261, %v4013
      %v4046 = vsel %vm4014, 1, 0
      %v4047 = vsel %vm4015, 1, 0
      %v4048 = vsel %vm4016, 1, 0
      %v4049 = vsel %vm4017, 1, 0
      %v4050 = vsel %vm4018, 1, 0
      %v4051 = vsel %vm4019, 1, 0
      %v4052 = vsel %vm4020, 1, 0
      %v4053 = vsel %vm4021, 1, 0
      %v4054 = vsel %vm4022, 1, 0
      %v4055 = vsel %vm4023, 1, 0
      %v4056 = vsel %vm4024, 1, 0
      %v4057 = vsel %vm4025, 1, 0
      %v4058 = vsel %vm4026, 1, 0
      %v4059 = vsel %vm4027, 1, 0
      %v4060 = vsel %vm4028, 1, 0
      %v4061 = vsel %vm4029, 1, 0
      %v4062 = vsel %vm4030, 1, 0
      %v4063 = vsel %vm4031, 1, 0
      %v4064 = vsel %vm4032, 1, 0
      %v4065 = vsel %vm4033, 1, 0
      %v4066 = vsel %vm4034, 1, 0
      %v4067 = vsel %vm4035, 1, 0
      %v4068 = vsel %vm4036, 1, 0
      %v4069 = vsel %vm4037, 1, 0
      %v4070 = vsel %vm4038, 1, 0
      %v4071 = vsel %vm4039, 1, 0
      %v4072 = vsel %vm4040, 1, 0
      %v4073 = vsel %vm4041, 1, 0
      %v4074 = vsel %vm4042, 1, 0
      %v4075 = vsel %vm4043, 1, 0
      %v4076 = vsel %vm4044, 1, 0
      %v4077 = vsel %vm4045, 1, 0
      %v4078 = vcvt.s32.f32 %v4046
      %v4079 = vcvt.s32.f32 %v4047
      %v4080 = vcvt.s32.f32 %v4048
      %v4081 = vcvt.s32.f32 %v4049
      %v4082 = vcvt.s32.f32 %v4050
      %v4083 = vcvt.s32.f32 %v4051
      %v4084 = vcvt.s32.f32 %v4052
      %v4085 = vcvt.s32.f32 %v4053
      %v4086 = vcvt.s32.f32 %v4054
      %v4087 = vcvt.s32.f32 %v4055
      %v4088 = vcvt.s32.f32 %v4056
      %v4089 = vcvt.s32.f32 %v4057
      %v4090 = vcvt.s32.f32 %v4058
      %v4091 = vcvt.s32.f32 %v4059
      %v4092 = vcvt.s32.f32 %v4060
      %v4093 = vcvt.s32.f32 %v4061
      %v4094 = vcvt.s32.f32 %v4062
      %v4095 = vcvt.s32.f32 %v4063
      %v4096 = vcvt.s32.f32 %v4064
      %v4097 = vcvt.s32.f32 %v4065
      %v4098 = vcvt.s32.f32 %v4066
      %v4099 = vcvt.s32.f32 %v4067
      %v4100 = vcvt.s32.f32 %v4068
      %v4101 = vcvt.s32.f32 %v4069
      %v4102 = vcvt.s32.f32 %v4070
      %v4103 = vcvt.s32.f32 %v4071
      %v4104 = vcvt.s32.f32 %v4072
      %v4105 = vcvt.s32.f32 %v4073
      %v4106 = vcvt.s32.f32 %v4074
      %v4107 = vcvt.s32.f32 %v4075
      %v4108 = vcvt.s32.f32 %v4076
      %v4109 = vcvt.s32.f32 %v4077
      %v4110 = vld [vmem:[%s1 + $0x400] sm:$0xff]
      %v4111 = vld [vmem:[%s1 + $0x408] sm:$0xff]
      %v4112 = vld [vmem:[%s1 + $0x410] sm:$0xff]
      %v4113 = vld [vmem:[%s1 + $0x418] sm:$0xff]
      %v4114 = vld [vmem:[%s1 + $0x420] sm:$0xff]
      %v4115 = vld [vmem:[%s1 + $0x428] sm:$0xff]
      %v4116 = vld [vmem:[%s1 + $0x430] sm:$0xff]
      %v4117 = vld [vmem:[%s1 + $0x438] sm:$0xff]
      %v4118 = vld [vmem:[%s1 + $0x440] sm:$0xff]
      %v4119 = vld [vmem:[%s1 + $0x448] sm:$0xff]
      %v4120 = vld [vmem:[%s1 + $0x450] sm:$0xff]
      %v4121 = vld [vmem:[%s1 + $0x458] sm:$0xff]
      %v4122 = vld [vmem:[%s1 + $0x460] sm:$0xff]
      %v4123 = vld [vmem:[%s1 + $0x468] sm:$0xff]
      %v4124 = vld [vmem:[%s1 + $0x470] sm:$0xff]
      %v4125 = vld [vmem:[%s1 + $0x478] sm:$0xff]
      %4126 = vmatprep.subr.mxu0 0.0
      %4127 = vmatpush1.msra.mxu0 %v4110
      %4128 = vmatprep.subr.mxu0 0.0
      %4129 = vmatpush1.msra.mxu0 %v4111
      %4130 = vmatprep.subr.mxu0 0.0
      %4131 = vmatpush1.msra.mxu0 %v4112
      %4132 = vmatprep.subr.mxu0 0.0
      %4133 = vmatpush1.msra.mxu0 %v4113
      %4134 = vmatprep.subr.mxu0 0.0
      %4135 = vmatpush1.msra.mxu0 %v4114
      %4136 = vmatprep.subr.mxu0 0.0
      %4137 = vmatpush1.msra.mxu0 %v4115
      %4138 = vmatprep.subr.mxu0 0.0
      %4139 = vmatpush1.msra.mxu0 %v4116
      %4140 = vmatprep.subr.mxu0 0.0
      %4141 = vmatpush1.msra.mxu0 %v4117
      %4142 = vmatprep.subr.mxu0 0.0
      %4143 = vmatpush1.msra.mxu0 %v4118
      %4144 = vmatprep.subr.mxu0 0.0
      %4145 = vmatpush1.msra.mxu0 %v4119
      %4146 = vmatprep.subr.mxu0 0.0
      %4147 = vmatpush1.msra.mxu0 %v4120
      %4148 = vmatprep.subr.mxu0 0.0
      %4149 = vmatpush1.msra.mxu0 %v4121
      %4150 = vmatprep.subr.mxu0 0.0
      %4151 = vmatpush1.msra.mxu0 %v4122
      %4152 = vmatprep.subr.mxu0 0.0
      %4153 = vmatpush1.msra.mxu0 %v4123
      %4154 = vmatprep.subr.mxu0 0.0
      %4155 = vmatpush1.msra.mxu0 %v4124
      %4156 = vmatprep.subr.mxu0 0.0
      %4157 = vmatpush1.msra.mxu0 %v4125
      %4158 = vmatprep.subr.mxu0 0.0
      %4159 = vmatpush1.msra.mxu0 0.0
      %4160 = vmatprep.subr.mxu0 0.0
      %4161 = vmatpush1.msra.mxu0 0.0
      %4162 = vmatprep.subr.mxu0 0.0
      %4163 = vmatpush1.msra.mxu0 0.0
      %4164 = vmatprep.subr.mxu0 0.0
      %4165 = vmatpush1.msra.mxu0 0.0
      %4166 = vmatprep.subr.mxu0 0.0
      %4167 = vmatpush1.msra.mxu0 0.0
      %4168 = vmatprep.subr.mxu0 0.0
      %4169 = vmatpush1.msra.mxu0 0.0
      %4170 = vmatprep.subr.mxu0 0.0
      %4171 = vmatpush1.msra.mxu0 0.0
      %4172 = vmatprep.subr.mxu0 0.0
      %4173 = vmatpush1.msra.mxu0 0.0
      %4174 = vmatprep.subr.mxu0 0.0
      %4175 = vmatpush1.msra.mxu0 0.0
      %4176 = vmatprep.subr.mxu0 0.0
      %4177 = vmatpush1.msra.mxu0 0.0
      %4178 = vmatprep.subr.mxu0 0.0
      %4179 = vmatpush1.msra.mxu0 0.0
      %4180 = vmatprep.subr.mxu0 0.0
      %4181 = vmatpush1.msra.mxu0 0.0
      %4182 = vmatprep.subr.mxu0 0.0
      %4183 = vmatpush1.msra.mxu0 0.0
      %4184 = vmatprep.subr.mxu0 0.0
      %4185 = vmatpush1.msra.mxu0 0.0
      %4186 = vmatprep.subr.mxu0 0.0
      %4187 = vmatpush1.msra.mxu0 0.0
      %4188 = vmatprep.subr.mxu0 0.0
      %4189 = vmatpush1.msra.mxu0 0.0
      %4190 = vmatprep.mubr.f32.mxu0 0.0
      %4191 = vmatmul.mubr.f32.gmra.mrb[0].mxu0 %v4078
      %v4192 = vpop.f32.mrb[0].mxu0
      %v4193 = vadd.f32 0.0, %v4192
      %v4194 = vpop.f32.mrb[0].mxu0
      %4195 = vmatprep.mubr.f32.mxu0 0.0
      %4196 = vmatmul.mubr.f32.gmra.mrb[0].mxu0 %v4079
      %v4197 = vpop.f32.mrb[0].mxu0
      %v4198 = vadd.f32 0.0, %v4197
      %v4199 = vpop.f32.mrb[0].mxu0
      %4200 = vmatprep.mubr.f32.mxu0 0.0
      %4201 = vmatmul.mubr.f32.gmra.mrb[0].mxu0 %v4080
      %v4202 = vpop.f32.mrb[0].mxu0
      %v4203 = vadd.f32 0.0, %v4202
      %v4204 = vpop.f32.mrb[0].mxu0
      %4205 = vmatprep.mubr.f32.mxu0 0.0
      %4206 = vmatmul.mubr.f32.gmra.mrb[0].mxu0 %v4081
      %v4207 = vpop.f32.mrb[0].mxu0
      %v4208 = vadd.f32 0.0, %v4207
      %v4209 = vpop.f32.mrb[0].mxu0
      %4210 = vmatprep.mubr.f32.mxu0 0.0
      %4211 = vmatmul.mubr.f32.gmra.mrb[0].mxu0 %v4082
      %v4212 = vpop.f32.mrb[0].mxu0
      %v4213 = vadd.f32 0.0, %v4212
      %v4214 = vpop.f32.mrb[0].mxu0
      %4215 = vmatprep.mubr.f32.mxu0 0.0
      %4216 = vmatmul.mubr.f32.gmra.mrb[0].mxu0 %v4083
      %v4217 = vpop.f32.mrb[0].mxu0
      %v4218 = vadd.f32 0.0, %v4217
      %v4219 = vpop.f32.mrb[0].mxu0
      %4220 = vmatprep.mubr.f32.mxu0 0.0
      %4221 = vmatmul.mubr.f32.gmra.mrb[0].mxu0 %v4084
      %v4222 = vpop.f32.mrb[0].mxu0
      %v4223 = vadd.f32 0.0, %v4222
      %v4224 = vpop.f32.mrb[0].mxu0
      %4225 = vmatprep.mubr.f32.mxu0 0.0
      %4226 = vmatmul.mubr.f32.gmra.mrb[0].mxu0 %v4085
      %v4227 = vpop.f32.mrb[0].mxu0
      %v4228 = vadd.f32 0.0, %v4227
      %v4229 = vpop.f32.mrb[0].mxu0
      %4230 = vmatprep.mubr.f32.mxu0 0.0
      %4231 = vmatmul.mubr.f32.gmra.mrb[0].mxu0 %v4086
      %v4232 = vpop.f32.mrb[0].mxu0
      %v4233 = vadd.f32 0.0, %v4232
      %v4234 = vpop.f32.mrb[0].mxu0
      %4235 = vmatprep.mubr.f32.mxu0 0.0
      %4236 = vmatmul.mubr.f32.gmra.mrb[0].mxu0 %v4087
      %v4237 = vpop.f32.mrb[0].mxu0
      %v4238 = vadd.f32 0.0, %v4237
      %v4239 = vpop.f32.mrb[0].mxu0
      %4240 = vmatprep.mubr.f32.mxu0 0.0
      %4241 = vmatmul.mubr.f32.gmra.mrb[0].mxu0 %v4088
      %v4242 = vpop.f32.mrb[0].mxu0
      %v4243 = vadd.f32 0.0, %v4242
      %v4244 = vpop.f32.mrb[0].mxu0
      %4245 = vmatprep.mubr.f32.mxu0 0.0
      %4246 = vmatmul.mubr.f32.gmra.mrb[0].mxu0 %v4089
      %v4247 = vpop.f32.mrb[0].mxu0
      %v4248 = vadd.f32 0.0, %v4247
      %v4249 = vpop.f32.mrb[0].mxu0
      %4250 = vmatprep.mubr.f32.mxu0 0.0
      %4251 = vmatmul.mubr.f32.gmra.mrb[0].mxu0 %v4090
      %v4252 = vpop.f32.mrb[0].mxu0
      %v4253 = vadd.f32 0.0, %v4252
      %v4254 = vpop.f32.mrb[0].mxu0
      %4255 = vmatprep.mubr.f32.mxu0 0.0
      %4256 = vmatmul.mubr.f32.gmra.mrb[0].mxu0 %v4091
      %v4257 = vpop.f32.mrb[0].mxu0
      %v4258 = vadd.f32 0.0, %v4257
      %v4259 = vpop.f32.mrb[0].mxu0
      %4260 = vmatprep.mubr.f32.mxu0 0.0
      %4261 = vmatmul.mubr.f32.gmra.mrb[0].mxu0 %v4092
      %v4262 = vpop.f32.mrb[0].mxu0
      %v4263 = vadd.f32 0.0, %v4262
      %v4264 = vpop.f32.mrb[0].mxu0
      %4265 = vmatprep.mubr.f32.mxu0 0.0
      %4266 = vmatmul.mubr.f32.gmra.mrb[0].mxu0 %v4093
      %v4267 = vpop.f32.mrb[0].mxu0
      %v4268 = vadd.f32 0.0, %v4267
      %v4269 = vpop.f32.mrb[0].mxu0
      %4270 = vmatprep.mubr.f32.mxu0 0.0
      %4271 = vmatmul.mubr.f32.gmra.mrb[0].mxu0 %v4094
      %v4272 = vpop.f32.mrb[0].mxu0
      %v4273 = vadd.f32 0.0, %v4272
      %v4274 = vpop.f32.mrb[0].mxu0
      %4275 = vmatprep.mubr.f32.mxu0 0.0
      %4276 = vmatmul.mubr.f32.gmra.mrb[0].mxu0 %v4095
      %v4277 = vpop.f32.mrb[0].mxu0
      %v4278 = vadd.f32 0.0, %v4277
      %v4279 = vpop.f32.mrb[0].mxu0
      %4280 = vmatprep.mubr.f32.mxu0 0.0
      %4281 = vmatmul.mubr.f32.gmra.mrb[0].mxu0 %v4096
      %v4282 = vpop.f32.mrb[0].mxu0
      %v4283 = vadd.f32 0.0, %v4282
      %v4284 = vpop.f32.mrb[0].mxu0
      %4285 = vmatprep.mubr.f32.mxu0 0.0
      %4286 = vmatmul.mubr.f32.gmra.mrb[0].mxu0 %v4097
      %v4287 = vpop.f32.mrb[0].mxu0
      %v4288 = vadd.f32 0.0, %v4287
      %v4289 = vpop.f32.mrb[0].mxu0
      %4290 = vmatprep.mubr.f32.mxu0 0.0
      %4291 = vmatmul.mubr.f32.gmra.mrb[0].mxu0 %v4098
      %v4292 = vpop.f32.mrb[0].mxu0
      %v4293 = vadd.f32 0.0, %v4292
      %v4294 = vpop.f32.mrb[0].mxu0
      %4295 = vmatprep.mubr.f32.mxu0 0.0
      %4296 = vmatmul.mubr.f32.gmra.mrb[0].mxu0 %v4099
      %v4297 = vpop.f32.mrb[0].mxu0
      %v4298 = vadd.f32 0.0, %v4297
      %v4299 = vpop.f32.mrb[0].mxu0
      %4300 = vmatprep.mubr.f32.mxu0 0.0
      %4301 = vmatmul.mubr.f32.gmra.mrb[0].mxu0 %v4100
      %v4302 = vpop.f32.mrb[0].mxu0
      %v4303 = vadd.f32 0.0, %v4302
      %v4304 = vpop.f32.mrb[0].mxu0
      %4305 = vmatprep.mubr.f32.mxu0 0.0
      %4306 = vmatmul.mubr.f32.gmra.mrb[0].mxu0 %v4101
      %v4307 = vpop.f32.mrb[0].mxu0
      %v4308 = vadd.f32 0.0, %v4307
      %v4309 = vpop.f32.mrb[0].mxu0
      %4310 = vmatprep.mubr.f32.mxu0 0.0
      %4311 = vmatmul.mubr.f32.gmra.mrb[0].mxu0 %v4102
      %v4312 = vpop.f32.mrb[0].mxu0
      %v4313 = vadd.f32 0.0, %v4312
      %v4314 = vpop.f32.mrb[0].mxu0
      %4315 = vmatprep.mubr.f32.mxu0 0.0
      %4316 = vmatmul.mubr.f32.gmra.mrb[0].mxu0 %v4103
      %v4317 = vpop.f32.mrb[0].mxu0
      %v4318 = vadd.f32 0.0, %v4317
      %v4319 = vpop.f32.mrb[0].mxu0
      %4320 = vmatprep.mubr.f32.mxu0 0.0
      %4321 = vmatmul.mubr.f32.gmra.mrb[0].mxu0 %v4104
      %v4322 = vpop.f32.mrb[0].mxu0
      %v4323 = vadd.f32 0.0, %v4322
      %v4324 = vpop.f32.mrb[0].mxu0
      %4325 = vmatprep.mubr.f32.mxu0 0.0
      %4326 = vmatmul.mubr.f32.gmra.mrb[0].mxu0 %v4105
      %v4327 = vpop.f32.mrb[0].mxu0
      %v4328 = vadd.f32 0.0, %v4327
      %v4329 = vpop.f32.mrb[0].mxu0
      %4330 = vmatprep.mubr.f32.mxu0 0.0
      %4331 = vmatmul.mubr.f32.gmra.mrb[0].mxu0 %v4106
      %v4332 = vpop.f32.mrb[0].mxu0
      %v4333 = vadd.f32 0.0, %v4332
      %v4334 = vpop.f32.mrb[0].mxu0
      %4335 = vmatprep.mubr.f32.mxu0 0.0
      %4336 = vmatmul.mubr.f32.gmra.mrb[0].mxu0 %v4107
      %v4337 = vpop.f32.mrb[0].mxu0
      %v4338 = vadd.f32 0.0, %v4337
      %v4339 = vpop.f32.mrb[0].mxu0
      %4340 = vmatprep.mubr.f32.mxu0 0.0
      %4341 = vmatmul.mubr.f32.gmra.mrb[0].mxu0 %v4108
      %v4342 = vpop.f32.mrb[0].mxu0
      %v4343 = vadd.f32 0.0, %v4342
      %v4344 = vpop.f32.mrb[0].mxu0
      %4345 = vmatprep.mubr.f32.mxu0 0.0
      %4346 = vmatmul.mubr.f32.gmra.mrb[0].mxu0 %v4109
      %v4347 = vpop.f32.mrb[0].mxu0
      %v4348 = vadd.f32 0.0, %v4347
      %v4349 = vpop.f32.mrb[0].mxu0
      %4350 = vdwg.mxu0
      %v4351 = vadd.f32 %v3886, %v4193
      %v4352 = vadd.f32 %v3887, %v4198
      %v4353 = vadd.f32 %v3888, %v4203
      %v4354 = vadd.f32 %v3889, %v4208
      %v4355 = vadd.f32 %v3890, %v4213
      %v4356 = vadd.f32 %v3891, %v4218
      %v4357 = vadd.f32 %v3892, %v4223
      %v4358 = vadd.f32 %v3893, %v4228
      %v4359 = vadd.f32 %v3894, %v4233
      %v4360 = vadd.f32 %v3895, %v4238
      %v4361 = vadd.f32 %v3896, %v4243
      %v4362 = vadd.f32 %v3897, %v4248
      %v4363 = vadd.f32 %v3898, %v4253
      %v4364 = vadd.f32 %v3899, %v4258
      %v4365 = vadd.f32 %v3900, %v4263
      %v4366 = vadd.f32 %v3901, %v4268
      %v4367 = vadd.f32 %v3902, %v4273
      %v4368 = vadd.f32 %v3903, %v4278
      %v4369 = vadd.f32 %v3904, %v4283
      %v4370 = vadd.f32 %v3905, %v4288
      %v4371 = vadd.f32 %v3906, %v4293
      %v4372 = vadd.f32 %v3907, %v4298
      %v4373 = vadd.f32 %v3908, %v4303
      %v4374 = vadd.f32 %v3909, %v4308
      %v4375 = vadd.f32 %v3910, %v4313
      %v4376 = vadd.f32 %v3911, %v4318
      %v4377 = vadd.f32 %v3912, %v4323
      %v4378 = vadd.f32 %v3913, %v4328
      %v4379 = vadd.f32 %v3914, %v4333
      %v4380 = vadd.f32 %v3915, %v4338
      %v4381 = vadd.f32 %v3916, %v4343
      %v4382 = vadd.f32 %v3917, %v4348
      %4383 = vset.pattern.permute.xlu0 9
      %4384 = vperm.xlu0 %4383, %v228
      %v4385 = vpop.permute.xlu0 %4384
      %4386 = vset.pattern.permute.xlu0 9
      %4387 = vperm.xlu0 %4386, %v229
      %v4388 = vpop.permute.xlu0 %4387
      %4389 = vset.pattern.permute.xlu0 9
      %4390 = vperm.xlu0 %4389, %v230
      %v4391 = vpop.permute.xlu0 %4390
      %4392 = vset.pattern.permute.xlu0 9
      %4393 = vperm.xlu0 %4392, %v231
      %v4394 = vpop.permute.xlu0 %4393
      %4395 = vset.pattern.permute.xlu0 9
      %4396 = vperm.xlu0 %4395, %v232
      %v4397 = vpop.permute.xlu0 %4396
      %4398 = vset.pattern.permute.xlu0 9
      %4399 = vperm.xlu0 %4398, %v233
      %v4400 = vpop.permute.xlu0 %4399
      %4401 = vset.pattern.permute.xlu0 9
      %4402 = vperm.xlu0 %4401, %v234
      %v4403 = vpop.permute.xlu0 %4402
      %4404 = vset.pattern.permute.xlu0 9
      %4405 = vperm.xlu0 %4404, %v235
      %v4406 = vpop.permute.xlu0 %4405
      %4407 = vset.pattern.permute.xlu0 9
      %4408 = vperm.xlu0 %4407, %v236
      %v4409 = vpop.permute.xlu0 %4408
      %4410 = vset.pattern.permute.xlu0 9
      %4411 = vperm.xlu0 %4410, %v237
      %v4412 = vpop.permute.xlu0 %4411
      %4413 = vset.pattern.permute.xlu0 9
      %4414 = vperm.xlu0 %4413, %v238
      %v4415 = vpop.permute.xlu0 %4414
      %4416 = vset.pattern.permute.xlu0 9
      %4417 = vperm.xlu0 %4416, %v239
      %v4418 = vpop.permute.xlu0 %4417
      %4419 = vset.pattern.permute.xlu0 9
      %4420 = vperm.xlu0 %4419, %v240
      %v4421 = vpop.permute.xlu0 %4420
      %4422 = vset.pattern.permute.xlu0 9
      %4423 = vperm.xlu0 %4422, %v241
      %v4424 = vpop.permute.xlu0 %4423
      %4425 = vset.pattern.permute.xlu0 9
      %4426 = vperm.xlu0 %4425, %v242
      %v4427 = vpop.permute.xlu0 %4426
      %4428 = vset.pattern.permute.xlu0 9
      %4429 = vperm.xlu0 %4428, %v243
      %v4430 = vpop.permute.xlu0 %4429
      %4431 = vset.pattern.permute.xlu0 9
      %4432 = vperm.xlu0 %4431, %v244
      %v4433 = vpop.permute.xlu0 %4432
      %4434 = vset.pattern.permute.xlu0 9
      %4435 = vperm.xlu0 %4434, %v245
      %v4436 = vpop.permute.xlu0 %4435
      %4437 = vset.pattern.permute.xlu0 9
      %4438 = vperm.xlu0 %4437, %v246
      %v4439 = vpop.permute.xlu0 %4438
      %4440 = vset.pattern.permute.xlu0 9
      %4441 = vperm.xlu0 %4440, %v247
      %v4442 = vpop.permute.xlu0 %4441
      %4443 = vset.pattern.permute.xlu0 9
      %4444 = vperm.xlu0 %4443, %v248
      %v4445 = vpop.permute.xlu0 %4444
      %4446 = vset.pattern.permute.xlu0 9
      %4447 = vperm.xlu0 %4446, %v249
      %v4448 = vpop.permute.xlu0 %4447
      %4449 = vset.pattern.permute.xlu0 9
      %4450 = vperm.xlu0 %4449, %v250
      %v4451 = vpop.permute.xlu0 %4450
      %4452 = vset.pattern.permute.xlu0 9
      %4453 = vperm.xlu0 %4452, %v251
      %v4454 = vpop.permute.xlu0 %4453
      %4455 = vset.pattern.permute.xlu0 9
      %4456 = vperm.xlu0 %4455, %v252
      %v4457 = vpop.permute.xlu0 %4456
      %4458 = vset.pattern.permute.xlu0 9
      %4459 = vperm.xlu0 %4458, %v253
      %v4460 = vpop.permute.xlu0 %4459
      %4461 = vset.pattern.permute.xlu0 9
      %4462 = vperm.xlu0 %4461, %v254
      %v4463 = vpop.permute.xlu0 %4462
      %4464 = vset.pattern.permute.xlu0 9
      %4465 = vperm.xlu0 %4464, %v255
      %v4466 = vpop.permute.xlu0 %4465
      %4467 = vset.pattern.permute.xlu0 9
      %4468 = vperm.xlu0 %4467, %v256
      %v4469 = vpop.permute.xlu0 %4468
      %4470 = vset.pattern.permute.xlu0 9
      %4471 = vperm.xlu0 %4470, %v257
      %v4472 = vpop.permute.xlu0 %4471
      %4473 = vset.pattern.permute.xlu0 9
      %4474 = vperm.xlu0 %4473, %v258
      %v4475 = vpop.permute.xlu0 %4474
      %4476 = vset.pattern.permute.xlu0 9
      %4477 = vperm.xlu0 %4476, %v259
      %v4478 = vpop.permute.xlu0 %4477
      %vm4479 = vcmp.eq.s32.totalorder %v261, %v4385
      %vm4480 = vcmp.eq.s32.totalorder %v261, %v4388
      %vm4481 = vcmp.eq.s32.totalorder %v261, %v4391
      %vm4482 = vcmp.eq.s32.totalorder %v261, %v4394
      %vm4483 = vcmp.eq.s32.totalorder %v261, %v4397
      %vm4484 = vcmp.eq.s32.totalorder %v261, %v4400
      %vm4485 = vcmp.eq.s32.totalorder %v261, %v4403
      %vm4486 = vcmp.eq.s32.totalorder %v261, %v4406
      %vm4487 = vcmp.eq.s32.totalorder %v261, %v4409
      %vm4488 = vcmp.eq.s32.totalorder %v261, %v4412
      %vm4489 = vcmp.eq.s32.totalorder %v261, %v4415
      %vm4490 = vcmp.eq.s32.totalorder %v261, %v4418
      %vm4491 = vcmp.eq.s32.totalorder %v261, %v4421
      %vm4492 = vcmp.eq.s32.totalorder %v261, %v4424
      %vm4493 = vcmp.eq.s32.totalorder %v261, %v4427
      %vm4494 = vcmp.eq.s32.totalorder %v261, %v4430
      %vm4495 = vcmp.eq.s32.totalorder %v261, %v4433
      %vm4496 = vcmp.eq.s32.totalorder %v261, %v4436
      %vm4497 = vcmp.eq.s32.totalorder %v261, %v4439
      %vm4498 = vcmp.eq.s32.totalorder %v261, %v4442
      %vm4499 = vcmp.eq.s32.totalorder %v261, %v4445
      %vm4500 = vcmp.eq.s32.totalorder %v261, %v4448
      %vm4501 = vcmp.eq.s32.totalorder %v261, %v4451
      %vm4502 = vcmp.eq.s32.totalorder %v261, %v4454
      %vm4503 = vcmp.eq.s32.totalorder %v261, %v4457
      %vm4504 = vcmp.eq.s32.totalorder %v261, %v4460
      %vm4505 = vcmp.eq.s32.totalorder %v261, %v4463
      %vm4506 = vcmp.eq.s32.totalorder %v261, %v4466
      %vm4507 = vcmp.eq.s32.totalorder %v261, %v4469
      %vm4508 = vcmp.eq.s32.totalorder %v261, %v4472
      %vm4509 = vcmp.eq.s32.totalorder %v261, %v4475
      %vm4510 = vcmp.eq.s32.totalorder %v261, %v4478
      %v4511 = vsel %vm4479, 1, 0
      %v4512 = vsel %vm4480, 1, 0
      %v4513 = vsel %vm4481, 1, 0
      %v4514 = vsel %vm4482, 1, 0
      %v4515 = vsel %vm4483, 1, 0
      %v4516 = vsel %vm4484, 1, 0
      %v4517 = vsel %vm4485, 1, 0
      %v4518 = vsel %vm4486, 1, 0
      %v4519 = vsel %vm4487, 1, 0
      %v4520 = vsel %vm4488, 1, 0
      %v4521 = vsel %vm4489, 1, 0
      %v4522 = vsel %vm4490, 1, 0
      %v4523 = vsel %vm4491, 1, 0
      %v4524 = vsel %vm4492, 1, 0
      %v4525 = vsel %vm4493, 1, 0
      %v4526 = vsel %vm4494, 1, 0
      %v4527 = vsel %vm4495, 1, 0
      %v4528 = vsel %vm4496, 1, 0
      %v4529 = vsel %vm4497, 1, 0
      %v4530 = vsel %vm4498, 1, 0
      %v4531 = vsel %vm4499, 1, 0
      %v4532 = vsel %vm4500, 1, 0
      %v4533 = vsel %vm4501, 1, 0
      %v4534 = vsel %vm4502, 1, 0
      %v4535 = vsel %vm4503, 1, 0
      %v4536 = vsel %vm4504, 1, 0
      %v4537 = vsel %vm4505, 1, 0
      %v4538 = vsel %vm4506, 1, 0
      %v4539 = vsel %vm4507, 1, 0
      %v4540 = vsel %vm4508, 1, 0
      %v4541 = vsel %vm4509, 1, 0
      %v4542 = vsel %vm4510, 1, 0
      %v4543 = vcvt.s32.f32 %v4511
      %v4544 = vcvt.s32.f32 %v4512
      %v4545 = vcvt.s32.f32 %v4513
      %v4546 = vcvt.s32.f32 %v4514
      %v4547 = vcvt.s32.f32 %v4515
      %v4548 = vcvt.s32.f32 %v4516
      %v4549 = vcvt.s32.f32 %v4517
      %v4550 = vcvt.s32.f32 %v4518
      %v4551 = vcvt.s32.f32 %v4519
      %v4552 = vcvt.s32.f32 %v4520
      %v4553 = vcvt.s32.f32 %v4521
      %v4554 = vcvt.s32.f32 %v4522
      %v4555 = vcvt.s32.f32 %v4523
      %v4556 = vcvt.s32.f32 %v4524
      %v4557 = vcvt.s32.f32 %v4525
      %v4558 = vcvt.s32.f32 %v4526
      %v4559 = vcvt.s32.f32 %v4527
      %v4560 = vcvt.s32.f32 %v4528
      %v4561 = vcvt.s32.f32 %v4529
      %v4562 = vcvt.s32.f32 %v4530
      %v4563 = vcvt.s32.f32 %v4531
      %v4564 = vcvt.s32.f32 %v4532
      %v4565 = vcvt.s32.f32 %v4533
      %v4566 = vcvt.s32.f32 %v4534
      %v4567 = vcvt.s32.f32 %v4535
      %v4568 = vcvt.s32.f32 %v4536
      %v4569 = vcvt.s32.f32 %v4537
      %v4570 = vcvt.s32.f32 %v4538
      %v4571 = vcvt.s32.f32 %v4539
      %v4572 = vcvt.s32.f32 %v4540
      %v4573 = vcvt.s32.f32 %v4541
      %v4574 = vcvt.s32.f32 %v4542
      %v4575 = vld [vmem:[%s1 + $0x480] sm:$0xff]
      %v4576 = vld [vmem:[%s1 + $0x488] sm:$0xff]
      %v4577 = vld [vmem:[%s1 + $0x490] sm:$0xff]
      %v4578 = vld [vmem:[%s1 + $0x498] sm:$0xff]
      %v4579 = vld [vmem:[%s1 + $0x4a0] sm:$0xff]
      %v4580 = vld [vmem:[%s1 + $0x4a8] sm:$0xff]
      %v4581 = vld [vmem:[%s1 + $0x4b0] sm:$0xff]
      %v4582 = vld [vmem:[%s1 + $0x4b8] sm:$0xff]
      %v4583 = vld [vmem:[%s1 + $0x4c0] sm:$0xff]
      %v4584 = vld [vmem:[%s1 + $0x4c8] sm:$0xff]
      %v4585 = vld [vmem:[%s1 + $0x4d0] sm:$0xff]
      %v4586 = vld [vmem:[%s1 + $0x4d8] sm:$0xff]
      %v4587 = vld [vmem:[%s1 + $0x4e0] sm:$0xff]
      %v4588 = vld [vmem:[%s1 + $0x4e8] sm:$0xff]
      %v4589 = vld [vmem:[%s1 + $0x4f0] sm:$0xff]
      %v4590 = vld [vmem:[%s1 + $0x4f8] sm:$0xff]
      %4591 = vmatprep.subr.mxu0 0.0
      %4592 = vmatpush1.msra.mxu0 %v4575
      %4593 = vmatprep.subr.mxu0 0.0
      %4594 = vmatpush1.msra.mxu0 %v4576
      %4595 = vmatprep.subr.mxu0 0.0
      %4596 = vmatpush1.msra.mxu0 %v4577
      %4597 = vmatprep.subr.mxu0 0.0
      %4598 = vmatpush1.msra.mxu0 %v4578
      %4599 = vmatprep.subr.mxu0 0.0
      %4600 = vmatpush1.msra.mxu0 %v4579
      %4601 = vmatprep.subr.mxu0 0.0
      %4602 = vmatpush1.msra.mxu0 %v4580
      %4603 = vmatprep.subr.mxu0 0.0
      %4604 = vmatpush1.msra.mxu0 %v4581
      %4605 = vmatprep.subr.mxu0 0.0
      %4606 = vmatpush1.msra.mxu0 %v4582
      %4607 = vmatprep.subr.mxu0 0.0
      %4608 = vmatpush1.msra.mxu0 %v4583
      %4609 = vmatprep.subr.mxu0 0.0
      %4610 = vmatpush1.msra.mxu0 %v4584
      %4611 = vmatprep.subr.mxu0 0.0
      %4612 = vmatpush1.msra.mxu0 %v4585
      %4613 = vmatprep.subr.mxu0 0.0
      %4614 = vmatpush1.msra.mxu0 %v4586
      %4615 = vmatprep.subr.mxu0 0.0
      %4616 = vmatpush1.msra.mxu0 %v4587
      %4617 = vmatprep.subr.mxu0 0.0
      %4618 = vmatpush1.msra.mxu0 %v4588
      %4619 = vmatprep.subr.mxu0 0.0
      %4620 = vmatpush1.msra.mxu0 %v4589
      %4621 = vmatprep.subr.mxu0 0.0
      %4622 = vmatpush1.msra.mxu0 %v4590
      %4623 = vmatprep.subr.mxu0 0.0
      %4624 = vmatpush1.msra.mxu0 0.0
      %4625 = vmatprep.subr.mxu0 0.0
      %4626 = vmatpush1.msra.mxu0 0.0
      %4627 = vmatprep.subr.mxu0 0.0
      %4628 = vmatpush1.msra.mxu0 0.0
      %4629 = vmatprep.subr.mxu0 0.0
      %4630 = vmatpush1.msra.mxu0 0.0
      %4631 = vmatprep.subr.mxu0 0.0
      %4632 = vmatpush1.msra.mxu0 0.0
      %4633 = vmatprep.subr.mxu0 0.0
      %4634 = vmatpush1.msra.mxu0 0.0
      %4635 = vmatprep.subr.mxu0 0.0
      %4636 = vmatpush1.msra.mxu0 0.0
      %4637 = vmatprep.subr.mxu0 0.0
      %4638 = vmatpush1.msra.mxu0 0.0
      %4639 = vmatprep.subr.mxu0 0.0
      %4640 = vmatpush1.msra.mxu0 0.0
      %4641 = vmatprep.subr.mxu0 0.0
      %4642 = vmatpush1.msra.mxu0 0.0
      %4643 = vmatprep.subr.mxu0 0.0
      %4644 = vmatpush1.msra.mxu0 0.0
      %4645 = vmatprep.subr.mxu0 0.0
      %4646 = vmatpush1.msra.mxu0 0.0
      %4647 = vmatprep.subr.mxu0 0.0
      %4648 = vmatpush1.msra.mxu0 0.0
      %4649 = vmatprep.subr.mxu0 0.0
      %4650 = vmatpush1.msra.mxu0 0.0
      %4651 = vmatprep.subr.mxu0 0.0
      %4652 = vmatpush1.msra.mxu0 0.0
      %4653 = vmatprep.subr.mxu0 0.0
      %4654 = vmatpush1.msra.mxu0 0.0
      %4655 = vmatprep.mubr.f32.mxu0 0.0
      %4656 = vmatmul.mubr.f32.gmra.mrb[0].mxu0 %v4543
      %v4657 = vpop.f32.mrb[0].mxu0
      %v4658 = vadd.f32 0.0, %v4657
      %v4659 = vpop.f32.mrb[0].mxu0
      %4660 = vmatprep.mubr.f32.mxu0 0.0
      %4661 = vmatmul.mubr.f32.gmra.mrb[0].mxu0 %v4544
      %v4662 = vpop.f32.mrb[0].mxu0
      %v4663 = vadd.f32 0.0, %v4662
      %v4664 = vpop.f32.mrb[0].mxu0
      %4665 = vmatprep.mubr.f32.mxu0 0.0
      %4666 = vmatmul.mubr.f32.gmra.mrb[0].mxu0 %v4545
      %v4667 = vpop.f32.mrb[0].mxu0
      %v4668 = vadd.f32 0.0, %v4667
      %v4669 = vpop.f32.mrb[0].mxu0
      %4670 = vmatprep.mubr.f32.mxu0 0.0
      %4671 = vmatmul.mubr.f32.gmra.mrb[0].mxu0 %v4546
      %v4672 = vpop.f32.mrb[0].mxu0
      %v4673 = vadd.f32 0.0, %v4672
      %v4674 = vpop.f32.mrb[0].mxu0
      %4675 = vmatprep.mubr.f32.mxu0 0.0
      %4676 = vmatmul.mubr.f32.gmra.mrb[0].mxu0 %v4547
      %v4677 = vpop.f32.mrb[0].mxu0
      %v4678 = vadd.f32 0.0, %v4677
      %v4679 = vpop.f32.mrb[0].mxu0
      %4680 = vmatprep.mubr.f32.mxu0 0.0
      %4681 = vmatmul.mubr.f32.gmra.mrb[0].mxu0 %v4548
      %v4682 = vpop.f32.mrb[0].mxu0
      %v4683 = vadd.f32 0.0, %v4682
      %v4684 = vpop.f32.mrb[0].mxu0
      %4685 = vmatprep.mubr.f32.mxu0 0.0
      %4686 = vmatmul.mubr.f32.gmra.mrb[0].mxu0 %v4549
      %v4687 = vpop.f32.mrb[0].mxu0
      %v4688 = vadd.f32 0.0, %v4687
      %v4689 = vpop.f32.mrb[0].mxu0
      %4690 = vmatprep.mubr.f32.mxu0 0.0
      %4691 = vmatmul.mubr.f32.gmra.mrb[0].mxu0 %v4550
      %v4692 = vpop.f32.mrb[0].mxu0
      %v4693 = vadd.f32 0.0, %v4692
      %v4694 = vpop.f32.mrb[0].mxu0
      %4695 = vmatprep.mubr.f32.mxu0 0.0
      %4696 = vmatmul.mubr.f32.gmra.mrb[0].mxu0 %v4551
      %v4697 = vpop.f32.mrb[0].mxu0
      %v4698 = vadd.f32 0.0, %v4697
      %v4699 = vpop.f32.mrb[0].mxu0
      %4700 = vmatprep.mubr.f32.mxu0 0.0
      %4701 = vmatmul.mubr.f32.gmra.mrb[0].mxu0 %v4552
      %v4702 = vpop.f32.mrb[0].mxu0
      %v4703 = vadd.f32 0.0, %v4702
      %v4704 = vpop.f32.mrb[0].mxu0
      %4705 = vmatprep.mubr.f32.mxu0 0.0
      %4706 = vmatmul.mubr.f32.gmra.mrb[0].mxu0 %v4553
      %v4707 = vpop.f32.mrb[0].mxu0
      %v4708 = vadd.f32 0.0, %v4707
      %v4709 = vpop.f32.mrb[0].mxu0
      %4710 = vmatprep.mubr.f32.mxu0 0.0
      %4711 = vmatmul.mubr.f32.gmra.mrb[0].mxu0 %v4554
      %v4712 = vpop.f32.mrb[0].mxu0
      %v4713 = vadd.f32 0.0, %v4712
      %v4714 = vpop.f32.mrb[0].mxu0
      %4715 = vmatprep.mubr.f32.mxu0 0.0
      %4716 = vmatmul.mubr.f32.gmra.mrb[0].mxu0 %v4555
      %v4717 = vpop.f32.mrb[0].mxu0
      %v4718 = vadd.f32 0.0, %v4717
      %v4719 = vpop.f32.mrb[0].mxu0
      %4720 = vmatprep.mubr.f32.mxu0 0.0
      %4721 = vmatmul.mubr.f32.gmra.mrb[0].mxu0 %v4556
      %v4722 = vpop.f32.mrb[0].mxu0
      %v4723 = vadd.f32 0.0, %v4722
      %v4724 = vpop.f32.mrb[0].mxu0
      %4725 = vmatprep.mubr.f32.mxu0 0.0
      %4726 = vmatmul.mubr.f32.gmra.mrb[0].mxu0 %v4557
      %v4727 = vpop.f32.mrb[0].mxu0
      %v4728 = vadd.f32 0.0, %v4727
      %v4729 = vpop.f32.mrb[0].mxu0
      %4730 = vmatprep.mubr.f32.mxu0 0.0
      %4731 = vmatmul.mubr.f32.gmra.mrb[0].mxu0 %v4558
      %v4732 = vpop.f32.mrb[0].mxu0
      %v4733 = vadd.f32 0.0, %v4732
      %v4734 = vpop.f32.mrb[0].mxu0
      %4735 = vmatprep.mubr.f32.mxu0 0.0
      %4736 = vmatmul.mubr.f32.gmra.mrb[0].mxu0 %v4559
      %v4737 = vpop.f32.mrb[0].mxu0
      %v4738 = vadd.f32 0.0, %v4737
      %v4739 = vpop.f32.mrb[0].mxu0
      %4740 = vmatprep.mubr.f32.mxu0 0.0
      %4741 = vmatmul.mubr.f32.gmra.mrb[0].mxu0 %v4560
      %v4742 = vpop.f32.mrb[0].mxu0
      %v4743 = vadd.f32 0.0, %v4742
      %v4744 = vpop.f32.mrb[0].mxu0
      %4745 = vmatprep.mubr.f32.mxu0 0.0
      %4746 = vmatmul.mubr.f32.gmra.mrb[0].mxu0 %v4561
      %v4747 = vpop.f32.mrb[0].mxu0
      %v4748 = vadd.f32 0.0, %v4747
      %v4749 = vpop.f32.mrb[0].mxu0
      %4750 = vmatprep.mubr.f32.mxu0 0.0
      %4751 = vmatmul.mubr.f32.gmra.mrb[0].mxu0 %v4562
      %v4752 = vpop.f32.mrb[0].mxu0
      %v4753 = vadd.f32 0.0, %v4752
      %v4754 = vpop.f32.mrb[0].mxu0
      %4755 = vmatprep.mubr.f32.mxu0 0.0
      %4756 = vmatmul.mubr.f32.gmra.mrb[0].mxu0 %v4563
      %v4757 = vpop.f32.mrb[0].mxu0
      %v4758 = vadd.f32 0.0, %v4757
      %v4759 = vpop.f32.mrb[0].mxu0
      %4760 = vmatprep.mubr.f32.mxu0 0.0
      %4761 = vmatmul.mubr.f32.gmra.mrb[0].mxu0 %v4564
      %v4762 = vpop.f32.mrb[0].mxu0
      %v4763 = vadd.f32 0.0, %v4762
      %v4764 = vpop.f32.mrb[0].mxu0
      %4765 = vmatprep.mubr.f32.mxu0 0.0
      %4766 = vmatmul.mubr.f32.gmra.mrb[0].mxu0 %v4565
      %v4767 = vpop.f32.mrb[0].mxu0
      %v4768 = vadd.f32 0.0, %v4767
      %v4769 = vpop.f32.mrb[0].mxu0
      %4770 = vmatprep.mubr.f32.mxu0 0.0
      %4771 = vmatmul.mubr.f32.gmra.mrb[0].mxu0 %v4566
      %v4772 = vpop.f32.mrb[0].mxu0
      %v4773 = vadd.f32 0.0, %v4772
      %v4774 = vpop.f32.mrb[0].mxu0
      %4775 = vmatprep.mubr.f32.mxu0 0.0
      %4776 = vmatmul.mubr.f32.gmra.mrb[0].mxu0 %v4567
      %v4777 = vpop.f32.mrb[0].mxu0
      %v4778 = vadd.f32 0.0, %v4777
      %v4779 = vpop.f32.mrb[0].mxu0
      %4780 = vmatprep.mubr.f32.mxu0 0.0
      %4781 = vmatmul.mubr.f32.gmra.mrb[0].mxu0 %v4568
      %v4782 = vpop.f32.mrb[0].mxu0
      %v4783 = vadd.f32 0.0, %v4782
      %v4784 = vpop.f32.mrb[0].mxu0
      %4785 = vmatprep.mubr.f32.mxu0 0.0
      %4786 = vmatmul.mubr.f32.gmra.mrb[0].mxu0 %v4569
      %v4787 = vpop.f32.mrb[0].mxu0
      %v4788 = vadd.f32 0.0, %v4787
      %v4789 = vpop.f32.mrb[0].mxu0
      %4790 = vmatprep.mubr.f32.mxu0 0.0
      %4791 = vmatmul.mubr.f32.gmra.mrb[0].mxu0 %v4570
      %v4792 = vpop.f32.mrb[0].mxu0
      %v4793 = vadd.f32 0.0, %v4792
      %v4794 = vpop.f32.mrb[0].mxu0
      %4795 = vmatprep.mubr.f32.mxu0 0.0
      %4796 = vmatmul.mubr.f32.gmra.mrb[0].mxu0 %v4571
      %v4797 = vpop.f32.mrb[0].mxu0
      %v4798 = vadd.f32 0.0, %v4797
      %v4799 = vpop.f32.mrb[0].mxu0
      %4800 = vmatprep.mubr.f32.mxu0 0.0
      %4801 = vmatmul.mubr.f32.gmra.mrb[0].mxu0 %v4572
      %v4802 = vpop.f32.mrb[0].mxu0
      %v4803 = vadd.f32 0.0, %v4802
      %v4804 = vpop.f32.mrb[0].mxu0
      %4805 = vmatprep.mubr.f32.mxu0 0.0
      %4806 = vmatmul.mubr.f32.gmra.mrb[0].mxu0 %v4573
      %v4807 = vpop.f32.mrb[0].mxu0
      %v4808 = vadd.f32 0.0, %v4807
      %v4809 = vpop.f32.mrb[0].mxu0
      %4810 = vmatprep.mubr.f32.mxu0 0.0
      %4811 = vmatmul.mubr.f32.gmra.mrb[0].mxu0 %v4574
      %v4812 = vpop.f32.mrb[0].mxu0
      %v4813 = vadd.f32 0.0, %v4812
      %v4814 = vpop.f32.mrb[0].mxu0
      %4815 = vdwg.mxu0
      %v4816 = vadd.f32 %v4351, %v4658
      %v4817 = vadd.f32 %v4352, %v4663
      %v4818 = vadd.f32 %v4353, %v4668
      %v4819 = vadd.f32 %v4354, %v4673
      %v4820 = vadd.f32 %v4355, %v4678
      %v4821 = vadd.f32 %v4356, %v4683
      %v4822 = vadd.f32 %v4357, %v4688
      %v4823 = vadd.f32 %v4358, %v4693
      %v4824 = vadd.f32 %v4359, %v4698
      %v4825 = vadd.f32 %v4360, %v4703
      %v4826 = vadd.f32 %v4361, %v4708
      %v4827 = vadd.f32 %v4362, %v4713
      %v4828 = vadd.f32 %v4363, %v4718
      %v4829 = vadd.f32 %v4364, %v4723
      %v4830 = vadd.f32 %v4365, %v4728
      %v4831 = vadd.f32 %v4366, %v4733
      %v4832 = vadd.f32 %v4367, %v4738
      %v4833 = vadd.f32 %v4368, %v4743
      %v4834 = vadd.f32 %v4369, %v4748
      %v4835 = vadd.f32 %v4370, %v4753
      %v4836 = vadd.f32 %v4371, %v4758
      %v4837 = vadd.f32 %v4372, %v4763
      %v4838 = vadd.f32 %v4373, %v4768
      %v4839 = vadd.f32 %v4374, %v4773
      %v4840 = vadd.f32 %v4375, %v4778
      %v4841 = vadd.f32 %v4376, %v4783
      %v4842 = vadd.f32 %v4377, %v4788
      %v4843 = vadd.f32 %v4378, %v4793
      %v4844 = vadd.f32 %v4379, %v4798
      %v4845 = vadd.f32 %v4380, %v4803
      %v4846 = vadd.f32 %v4381, %v4808
      %v4847 = vadd.f32 %v4382, %v4813
      %4848 = vset.pattern.permute.xlu0 10
      %4849 = vperm.xlu0 %4848, %v228
      %v4850 = vpop.permute.xlu0 %4849
      %4851 = vset.pattern.permute.xlu0 10
      %4852 = vperm.xlu0 %4851, %v229
      %v4853 = vpop.permute.xlu0 %4852
      %4854 = vset.pattern.permute.xlu0 10
      %4855 = vperm.xlu0 %4854, %v230
      %v4856 = vpop.permute.xlu0 %4855
      %4857 = vset.pattern.permute.xlu0 10
      %4858 = vperm.xlu0 %4857, %v231
      %v4859 = vpop.permute.xlu0 %4858
      %4860 = vset.pattern.permute.xlu0 10
      %4861 = vperm.xlu0 %4860, %v232
      %v4862 = vpop.permute.xlu0 %4861
      %4863 = vset.pattern.permute.xlu0 10
      %4864 = vperm.xlu0 %4863, %v233
      %v4865 = vpop.permute.xlu0 %4864
      %4866 = vset.pattern.permute.xlu0 10
      %4867 = vperm.xlu0 %4866, %v234
      %v4868 = vpop.permute.xlu0 %4867
      %4869 = vset.pattern.permute.xlu0 10
      %4870 = vperm.xlu0 %4869, %v235
      %v4871 = vpop.permute.xlu0 %4870
      %4872 = vset.pattern.permute.xlu0 10
      %4873 = vperm.xlu0 %4872, %v236
      %v4874 = vpop.permute.xlu0 %4873
      %4875 = vset.pattern.permute.xlu0 10
      %4876 = vperm.xlu0 %4875, %v237
      %v4877 = vpop.permute.xlu0 %4876
      %4878 = vset.pattern.permute.xlu0 10
      %4879 = vperm.xlu0 %4878, %v238
      %v4880 = vpop.permute.xlu0 %4879
      %4881 = vset.pattern.permute.xlu0 10
      %4882 = vperm.xlu0 %4881, %v239
      %v4883 = vpop.permute.xlu0 %4882
      %4884 = vset.pattern.permute.xlu0 10
      %4885 = vperm.xlu0 %4884, %v240
      %v4886 = vpop.permute.xlu0 %4885
      %4887 = vset.pattern.permute.xlu0 10
      %4888 = vperm.xlu0 %4887, %v241
      %v4889 = vpop.permute.xlu0 %4888
      %4890 = vset.pattern.permute.xlu0 10
      %4891 = vperm.xlu0 %4890, %v242
      %v4892 = vpop.permute.xlu0 %4891
      %4893 = vset.pattern.permute.xlu0 10
      %4894 = vperm.xlu0 %4893, %v243
      %v4895 = vpop.permute.xlu0 %4894
      %4896 = vset.pattern.permute.xlu0 10
      %4897 = vperm.xlu0 %4896, %v244
      %v4898 = vpop.permute.xlu0 %4897
      %4899 = vset.pattern.permute.xlu0 10
      %4900 = vperm.xlu0 %4899, %v245
      %v4901 = vpop.permute.xlu0 %4900
      %4902 = vset.pattern.permute.xlu0 10
      %4903 = vperm.xlu0 %4902, %v246
      %v4904 = vpop.permute.xlu0 %4903
      %4905 = vset.pattern.permute.xlu0 10
      %4906 = vperm.xlu0 %4905, %v247
      %v4907 = vpop.permute.xlu0 %4906
      %4908 = vset.pattern.permute.xlu0 10
      %4909 = vperm.xlu0 %4908, %v248
      %v4910 = vpop.permute.xlu0 %4909
      %4911 = vset.pattern.permute.xlu0 10
      %4912 = vperm.xlu0 %4911, %v249
      %v4913 = vpop.permute.xlu0 %4912
      %4914 = vset.pattern.permute.xlu0 10
      %4915 = vperm.xlu0 %4914, %v250
      %v4916 = vpop.permute.xlu0 %4915
      %4917 = vset.pattern.permute.xlu0 10
      %4918 = vperm.xlu0 %4917, %v251
      %v4919 = vpop.permute.xlu0 %4918
      %4920 = vset.pattern.permute.xlu0 10
      %4921 = vperm.xlu0 %4920, %v252
      %v4922 = vpop.permute.xlu0 %4921
      %4923 = vset.pattern.permute.xlu0 10
      %4924 = vperm.xlu0 %4923, %v253
      %v4925 = vpop.permute.xlu0 %4924
      %4926 = vset.pattern.permute.xlu0 10
      %4927 = vperm.xlu0 %4926, %v254
      %v4928 = vpop.permute.xlu0 %4927
      %4929 = vset.pattern.permute.xlu0 10
      %4930 = vperm.xlu0 %4929, %v255
      %v4931 = vpop.permute.xlu0 %4930
      %4932 = vset.pattern.permute.xlu0 10
      %4933 = vperm.xlu0 %4932, %v256
      %v4934 = vpop.permute.xlu0 %4933
      %4935 = vset.pattern.permute.xlu0 10
      %4936 = vperm.xlu0 %4935, %v257
      %v4937 = vpop.permute.xlu0 %4936
      %4938 = vset.pattern.permute.xlu0 10
      %4939 = vperm.xlu0 %4938, %v258
      %v4940 = vpop.permute.xlu0 %4939
      %4941 = vset.pattern.permute.xlu0 10
      %4942 = vperm.xlu0 %4941, %v259
      %v4943 = vpop.permute.xlu0 %4942
      %vm4944 = vcmp.eq.s32.totalorder %v261, %v4850
      %vm4945 = vcmp.eq.s32.totalorder %v261, %v4853
      %vm4946 = vcmp.eq.s32.totalorder %v261, %v4856
      %vm4947 = vcmp.eq.s32.totalorder %v261, %v4859
      %vm4948 = vcmp.eq.s32.totalorder %v261, %v4862
      %vm4949 = vcmp.eq.s32.totalorder %v261, %v4865
      %vm4950 = vcmp.eq.s32.totalorder %v261, %v4868
      %vm4951 = vcmp.eq.s32.totalorder %v261, %v4871
      %vm4952 = vcmp.eq.s32.totalorder %v261, %v4874
      %vm4953 = vcmp.eq.s32.totalorder %v261, %v4877
      %vm4954 = vcmp.eq.s32.totalorder %v261, %v4880
      %vm4955 = vcmp.eq.s32.totalorder %v261, %v4883
      %vm4956 = vcmp.eq.s32.totalorder %v261, %v4886
      %vm4957 = vcmp.eq.s32.totalorder %v261, %v4889
      %vm4958 = vcmp.eq.s32.totalorder %v261, %v4892
      %vm4959 = vcmp.eq.s32.totalorder %v261, %v4895
      %vm4960 = vcmp.eq.s32.totalorder %v261, %v4898
      %vm4961 = vcmp.eq.s32.totalorder %v261, %v4901
      %vm4962 = vcmp.eq.s32.totalorder %v261, %v4904
      %vm4963 = vcmp.eq.s32.totalorder %v261, %v4907
      %vm4964 = vcmp.eq.s32.totalorder %v261, %v4910
      %vm4965 = vcmp.eq.s32.totalorder %v261, %v4913
      %vm4966 = vcmp.eq.s32.totalorder %v261, %v4916
      %vm4967 = vcmp.eq.s32.totalorder %v261, %v4919
      %vm4968 = vcmp.eq.s32.totalorder %v261, %v4922
      %vm4969 = vcmp.eq.s32.totalorder %v261, %v4925
      %vm4970 = vcmp.eq.s32.totalorder %v261, %v4928
      %vm4971 = vcmp.eq.s32.totalorder %v261, %v4931
      %vm4972 = vcmp.eq.s32.totalorder %v261, %v4934
      %vm4973 = vcmp.eq.s32.totalorder %v261, %v4937
      %vm4974 = vcmp.eq.s32.totalorder %v261, %v4940
      %vm4975 = vcmp.eq.s32.totalorder %v261, %v4943
      %v4976 = vsel %vm4944, 1, 0
      %v4977 = vsel %vm4945, 1, 0
      %v4978 = vsel %vm4946, 1, 0
      %v4979 = vsel %vm4947, 1, 0
      %v4980 = vsel %vm4948, 1, 0
      %v4981 = vsel %vm4949, 1, 0
      %v4982 = vsel %vm4950, 1, 0
      %v4983 = vsel %vm4951, 1, 0
      %v4984 = vsel %vm4952, 1, 0
      %v4985 = vsel %vm4953, 1, 0
      %v4986 = vsel %vm4954, 1, 0
      %v4987 = vsel %vm4955, 1, 0
      %v4988 = vsel %vm4956, 1, 0
      %v4989 = vsel %vm4957, 1, 0
      %v4990 = vsel %vm4958, 1, 0
      %v4991 = vsel %vm4959, 1, 0
      %v4992 = vsel %vm4960, 1, 0
      %v4993 = vsel %vm4961, 1, 0
      %v4994 = vsel %vm4962, 1, 0
      %v4995 = vsel %vm4963, 1, 0
      %v4996 = vsel %vm4964, 1, 0
      %v4997 = vsel %vm4965, 1, 0
      %v4998 = vsel %vm4966, 1, 0
      %v4999 = vsel %vm4967, 1, 0
      %v5000 = vsel %vm4968, 1, 0
      %v5001 = vsel %vm4969, 1, 0
      %v5002 = vsel %vm4970, 1, 0
      %v5003 = vsel %vm4971, 1, 0
      %v5004 = vsel %vm4972, 1, 0
      %v5005 = vsel %vm4973, 1, 0
      %v5006 = vsel %vm4974, 1, 0
      %v5007 = vsel %vm4975, 1, 0
      %v5008 = vcvt.s32.f32 %v4976
      %v5009 = vcvt.s32.f32 %v4977
      %v5010 = vcvt.s32.f32 %v4978
      %v5011 = vcvt.s32.f32 %v4979
      %v5012 = vcvt.s32.f32 %v4980
      %v5013 = vcvt.s32.f32 %v4981
      %v5014 = vcvt.s32.f32 %v4982
      %v5015 = vcvt.s32.f32 %v4983
      %v5016 = vcvt.s32.f32 %v4984
      %v5017 = vcvt.s32.f32 %v4985
      %v5018 = vcvt.s32.f32 %v4986
      %v5019 = vcvt.s32.f32 %v4987
      %v5020 = vcvt.s32.f32 %v4988
      %v5021 = vcvt.s32.f32 %v4989
      %v5022 = vcvt.s32.f32 %v4990
      %v5023 = vcvt.s32.f32 %v4991
      %v5024 = vcvt.s32.f32 %v4992
      %v5025 = vcvt.s32.f32 %v4993
      %v5026 = vcvt.s32.f32 %v4994
      %v5027 = vcvt.s32.f32 %v4995
      %v5028 = vcvt.s32.f32 %v4996
      %v5029 = vcvt.s32.f32 %v4997
      %v5030 = vcvt.s32.f32 %v4998
      %v5031 = vcvt.s32.f32 %v4999
      %v5032 = vcvt.s32.f32 %v5000
      %v5033 = vcvt.s32.f32 %v5001
      %v5034 = vcvt.s32.f32 %v5002
      %v5035 = vcvt.s32.f32 %v5003
      %v5036 = vcvt.s32.f32 %v5004
      %v5037 = vcvt.s32.f32 %v5005
      %v5038 = vcvt.s32.f32 %v5006
      %v5039 = vcvt.s32.f32 %v5007
      %v5040 = vld [vmem:[%s1 + $0x500] sm:$0xff]
      %v5041 = vld [vmem:[%s1 + $0x508] sm:$0xff]
      %v5042 = vld [vmem:[%s1 + $0x510] sm:$0xff]
      %v5043 = vld [vmem:[%s1 + $0x518] sm:$0xff]
      %v5044 = vld [vmem:[%s1 + $0x520] sm:$0xff]
      %v5045 = vld [vmem:[%s1 + $0x528] sm:$0xff]
      %v5046 = vld [vmem:[%s1 + $0x530] sm:$0xff]
      %v5047 = vld [vmem:[%s1 + $0x538] sm:$0xff]
      %v5048 = vld [vmem:[%s1 + $0x540] sm:$0xff]
      %v5049 = vld [vmem:[%s1 + $0x548] sm:$0xff]
      %v5050 = vld [vmem:[%s1 + $0x550] sm:$0xff]
      %v5051 = vld [vmem:[%s1 + $0x558] sm:$0xff]
      %v5052 = vld [vmem:[%s1 + $0x560] sm:$0xff]
      %v5053 = vld [vmem:[%s1 + $0x568] sm:$0xff]
      %v5054 = vld [vmem:[%s1 + $0x570] sm:$0xff]
      %v5055 = vld [vmem:[%s1 + $0x578] sm:$0xff]
      %5056 = vmatprep.subr.mxu0 0.0
      %5057 = vmatpush1.msra.mxu0 %v5040
      %5058 = vmatprep.subr.mxu0 0.0
      %5059 = vmatpush1.msra.mxu0 %v5041
      %5060 = vmatprep.subr.mxu0 0.0
      %5061 = vmatpush1.msra.mxu0 %v5042
      %5062 = vmatprep.subr.mxu0 0.0
      %5063 = vmatpush1.msra.mxu0 %v5043
      %5064 = vmatprep.subr.mxu0 0.0
      %5065 = vmatpush1.msra.mxu0 %v5044
      %5066 = vmatprep.subr.mxu0 0.0
      %5067 = vmatpush1.msra.mxu0 %v5045
      %5068 = vmatprep.subr.mxu0 0.0
      %5069 = vmatpush1.msra.mxu0 %v5046
      %5070 = vmatprep.subr.mxu0 0.0
      %5071 = vmatpush1.msra.mxu0 %v5047
      %5072 = vmatprep.subr.mxu0 0.0
      %5073 = vmatpush1.msra.mxu0 %v5048
      %5074 = vmatprep.subr.mxu0 0.0
      %5075 = vmatpush1.msra.mxu0 %v5049
      %5076 = vmatprep.subr.mxu0 0.0
      %5077 = vmatpush1.msra.mxu0 %v5050
      %5078 = vmatprep.subr.mxu0 0.0
      %5079 = vmatpush1.msra.mxu0 %v5051
      %5080 = vmatprep.subr.mxu0 0.0
      %5081 = vmatpush1.msra.mxu0 %v5052
      %5082 = vmatprep.subr.mxu0 0.0
      %5083 = vmatpush1.msra.mxu0 %v5053
      %5084 = vmatprep.subr.mxu0 0.0
      %5085 = vmatpush1.msra.mxu0 %v5054
      %5086 = vmatprep.subr.mxu0 0.0
      %5087 = vmatpush1.msra.mxu0 %v5055
      %5088 = vmatprep.subr.mxu0 0.0
      %5089 = vmatpush1.msra.mxu0 0.0
      %5090 = vmatprep.subr.mxu0 0.0
      %5091 = vmatpush1.msra.mxu0 0.0
      %5092 = vmatprep.subr.mxu0 0.0
      %5093 = vmatpush1.msra.mxu0 0.0
      %5094 = vmatprep.subr.mxu0 0.0
      %5095 = vmatpush1.msra.mxu0 0.0
      %5096 = vmatprep.subr.mxu0 0.0
      %5097 = vmatpush1.msra.mxu0 0.0
      %5098 = vmatprep.subr.mxu0 0.0
      %5099 = vmatpush1.msra.mxu0 0.0
      %5100 = vmatprep.subr.mxu0 0.0
      %5101 = vmatpush1.msra.mxu0 0.0
      %5102 = vmatprep.subr.mxu0 0.0
      %5103 = vmatpush1.msra.mxu0 0.0
      %5104 = vmatprep.subr.mxu0 0.0
      %5105 = vmatpush1.msra.mxu0 0.0
      %5106 = vmatprep.subr.mxu0 0.0
      %5107 = vmatpush1.msra.mxu0 0.0
      %5108 = vmatprep.subr.mxu0 0.0
      %5109 = vmatpush1.msra.mxu0 0.0
      %5110 = vmatprep.subr.mxu0 0.0
      %5111 = vmatpush1.msra.mxu0 0.0
      %5112 = vmatprep.subr.mxu0 0.0
      %5113 = vmatpush1.msra.mxu0 0.0
      %5114 = vmatprep.subr.mxu0 0.0
      %5115 = vmatpush1.msra.mxu0 0.0
      %5116 = vmatprep.subr.mxu0 0.0
      %5117 = vmatpush1.msra.mxu0 0.0
      %5118 = vmatprep.subr.mxu0 0.0
      %5119 = vmatpush1.msra.mxu0 0.0
      %5120 = vmatprep.mubr.f32.mxu0 0.0
      %5121 = vmatmul.mubr.f32.gmra.mrb[0].mxu0 %v5008
      %v5122 = vpop.f32.mrb[0].mxu0
      %v5123 = vadd.f32 0.0, %v5122
      %v5124 = vpop.f32.mrb[0].mxu0
      %5125 = vmatprep.mubr.f32.mxu0 0.0
      %5126 = vmatmul.mubr.f32.gmra.mrb[0].mxu0 %v5009
      %v5127 = vpop.f32.mrb[0].mxu0
      %v5128 = vadd.f32 0.0, %v5127
      %v5129 = vpop.f32.mrb[0].mxu0
      %5130 = vmatprep.mubr.f32.mxu0 0.0
      %5131 = vmatmul.mubr.f32.gmra.mrb[0].mxu0 %v5010
      %v5132 = vpop.f32.mrb[0].mxu0
      %v5133 = vadd.f32 0.0, %v5132
      %v5134 = vpop.f32.mrb[0].mxu0
      %5135 = vmatprep.mubr.f32.mxu0 0.0
      %5136 = vmatmul.mubr.f32.gmra.mrb[0].mxu0 %v5011
      %v5137 = vpop.f32.mrb[0].mxu0
      %v5138 = vadd.f32 0.0, %v5137
      %v5139 = vpop.f32.mrb[0].mxu0
      %5140 = vmatprep.mubr.f32.mxu0 0.0
      %5141 = vmatmul.mubr.f32.gmra.mrb[0].mxu0 %v5012
      %v5142 = vpop.f32.mrb[0].mxu0
      %v5143 = vadd.f32 0.0, %v5142
      %v5144 = vpop.f32.mrb[0].mxu0
      %5145 = vmatprep.mubr.f32.mxu0 0.0
      %5146 = vmatmul.mubr.f32.gmra.mrb[0].mxu0 %v5013
      %v5147 = vpop.f32.mrb[0].mxu0
      %v5148 = vadd.f32 0.0, %v5147
      %v5149 = vpop.f32.mrb[0].mxu0
      %5150 = vmatprep.mubr.f32.mxu0 0.0
      %5151 = vmatmul.mubr.f32.gmra.mrb[0].mxu0 %v5014
      %v5152 = vpop.f32.mrb[0].mxu0
      %v5153 = vadd.f32 0.0, %v5152
      %v5154 = vpop.f32.mrb[0].mxu0
      %5155 = vmatprep.mubr.f32.mxu0 0.0
      %5156 = vmatmul.mubr.f32.gmra.mrb[0].mxu0 %v5015
      %v5157 = vpop.f32.mrb[0].mxu0
      %v5158 = vadd.f32 0.0, %v5157
      %v5159 = vpop.f32.mrb[0].mxu0
      %5160 = vmatprep.mubr.f32.mxu0 0.0
      %5161 = vmatmul.mubr.f32.gmra.mrb[0].mxu0 %v5016
      %v5162 = vpop.f32.mrb[0].mxu0
      %v5163 = vadd.f32 0.0, %v5162
      %v5164 = vpop.f32.mrb[0].mxu0
      %5165 = vmatprep.mubr.f32.mxu0 0.0
      %5166 = vmatmul.mubr.f32.gmra.mrb[0].mxu0 %v5017
      %v5167 = vpop.f32.mrb[0].mxu0
      %v5168 = vadd.f32 0.0, %v5167
      %v5169 = vpop.f32.mrb[0].mxu0
      %5170 = vmatprep.mubr.f32.mxu0 0.0
      %5171 = vmatmul.mubr.f32.gmra.mrb[0].mxu0 %v5018
      %v5172 = vpop.f32.mrb[0].mxu0
      %v5173 = vadd.f32 0.0, %v5172
      %v5174 = vpop.f32.mrb[0].mxu0
      %5175 = vmatprep.mubr.f32.mxu0 0.0
      %5176 = vmatmul.mubr.f32.gmra.mrb[0].mxu0 %v5019
      %v5177 = vpop.f32.mrb[0].mxu0
      %v5178 = vadd.f32 0.0, %v5177
      %v5179 = vpop.f32.mrb[0].mxu0
      %5180 = vmatprep.mubr.f32.mxu0 0.0
      %5181 = vmatmul.mubr.f32.gmra.mrb[0].mxu0 %v5020
      %v5182 = vpop.f32.mrb[0].mxu0
      %v5183 = vadd.f32 0.0, %v5182
      %v5184 = vpop.f32.mrb[0].mxu0
      %5185 = vmatprep.mubr.f32.mxu0 0.0
      %5186 = vmatmul.mubr.f32.gmra.mrb[0].mxu0 %v5021
      %v5187 = vpop.f32.mrb[0].mxu0
      %v5188 = vadd.f32 0.0, %v5187
      %v5189 = vpop.f32.mrb[0].mxu0
      %5190 = vmatprep.mubr.f32.mxu0 0.0
      %5191 = vmatmul.mubr.f32.gmra.mrb[0].mxu0 %v5022
      %v5192 = vpop.f32.mrb[0].mxu0
      %v5193 = vadd.f32 0.0, %v5192
      %v5194 = vpop.f32.mrb[0].mxu0
      %5195 = vmatprep.mubr.f32.mxu0 0.0
      %5196 = vmatmul.mubr.f32.gmra.mrb[0].mxu0 %v5023
      %v5197 = vpop.f32.mrb[0].mxu0
      %v5198 = vadd.f32 0.0, %v5197
      %v5199 = vpop.f32.mrb[0].mxu0
      %5200 = vmatprep.mubr.f32.mxu0 0.0
      %5201 = vmatmul.mubr.f32.gmra.mrb[0].mxu0 %v5024
      %v5202 = vpop.f32.mrb[0].mxu0
      %v5203 = vadd.f32 0.0, %v5202
      %v5204 = vpop.f32.mrb[0].mxu0
      %5205 = vmatprep.mubr.f32.mxu0 0.0
      %5206 = vmatmul.mubr.f32.gmra.mrb[0].mxu0 %v5025
      %v5207 = vpop.f32.mrb[0].mxu0
      %v5208 = vadd.f32 0.0, %v5207
      %v5209 = vpop.f32.mrb[0].mxu0
      %5210 = vmatprep.mubr.f32.mxu0 0.0
      %5211 = vmatmul.mubr.f32.gmra.mrb[0].mxu0 %v5026
      %v5212 = vpop.f32.mrb[0].mxu0
      %v5213 = vadd.f32 0.0, %v5212
      %v5214 = vpop.f32.mrb[0].mxu0
      %5215 = vmatprep.mubr.f32.mxu0 0.0
      %5216 = vmatmul.mubr.f32.gmra.mrb[0].mxu0 %v5027
      %v5217 = vpop.f32.mrb[0].mxu0
      %v5218 = vadd.f32 0.0, %v5217
      %v5219 = vpop.f32.mrb[0].mxu0
      %5220 = vmatprep.mubr.f32.mxu0 0.0
      %5221 = vmatmul.mubr.f32.gmra.mrb[0].mxu0 %v5028
      %v5222 = vpop.f32.mrb[0].mxu0
      %v5223 = vadd.f32 0.0, %v5222
      %v5224 = vpop.f32.mrb[0].mxu0
      %5225 = vmatprep.mubr.f32.mxu0 0.0
      %5226 = vmatmul.mubr.f32.gmra.mrb[0].mxu0 %v5029
      %v5227 = vpop.f32.mrb[0].mxu0
      %v5228 = vadd.f32 0.0, %v5227
      %v5229 = vpop.f32.mrb[0].mxu0
      %5230 = vmatprep.mubr.f32.mxu0 0.0
      %5231 = vmatmul.mubr.f32.gmra.mrb[0].mxu0 %v5030
      %v5232 = vpop.f32.mrb[0].mxu0
      %v5233 = vadd.f32 0.0, %v5232
      %v5234 = vpop.f32.mrb[0].mxu0
      %5235 = vmatprep.mubr.f32.mxu0 0.0
      %5236 = vmatmul.mubr.f32.gmra.mrb[0].mxu0 %v5031
      %v5237 = vpop.f32.mrb[0].mxu0
      %v5238 = vadd.f32 0.0, %v5237
      %v5239 = vpop.f32.mrb[0].mxu0
      %5240 = vmatprep.mubr.f32.mxu0 0.0
      %5241 = vmatmul.mubr.f32.gmra.mrb[0].mxu0 %v5032
      %v5242 = vpop.f32.mrb[0].mxu0
      %v5243 = vadd.f32 0.0, %v5242
      %v5244 = vpop.f32.mrb[0].mxu0
      %5245 = vmatprep.mubr.f32.mxu0 0.0
      %5246 = vmatmul.mubr.f32.gmra.mrb[0].mxu0 %v5033
      %v5247 = vpop.f32.mrb[0].mxu0
      %v5248 = vadd.f32 0.0, %v5247
      %v5249 = vpop.f32.mrb[0].mxu0
      %5250 = vmatprep.mubr.f32.mxu0 0.0
      %5251 = vmatmul.mubr.f32.gmra.mrb[0].mxu0 %v5034
      %v5252 = vpop.f32.mrb[0].mxu0
      %v5253 = vadd.f32 0.0, %v5252
      %v5254 = vpop.f32.mrb[0].mxu0
      %5255 = vmatprep.mubr.f32.mxu0 0.0
      %5256 = vmatmul.mubr.f32.gmra.mrb[0].mxu0 %v5035
      %v5257 = vpop.f32.mrb[0].mxu0
      %v5258 = vadd.f32 0.0, %v5257
      %v5259 = vpop.f32.mrb[0].mxu0
      %5260 = vmatprep.mubr.f32.mxu0 0.0
      %5261 = vmatmul.mubr.f32.gmra.mrb[0].mxu0 %v5036
      %v5262 = vpop.f32.mrb[0].mxu0
      %v5263 = vadd.f32 0.0, %v5262
      %v5264 = vpop.f32.mrb[0].mxu0
      %5265 = vmatprep.mubr.f32.mxu0 0.0
      %5266 = vmatmul.mubr.f32.gmra.mrb[0].mxu0 %v5037
      %v5267 = vpop.f32.mrb[0].mxu0
      %v5268 = vadd.f32 0.0, %v5267
      %v5269 = vpop.f32.mrb[0].mxu0
      %5270 = vmatprep.mubr.f32.mxu0 0.0
      %5271 = vmatmul.mubr.f32.gmra.mrb[0].mxu0 %v5038
      %v5272 = vpop.f32.mrb[0].mxu0
      %v5273 = vadd.f32 0.0, %v5272
      %v5274 = vpop.f32.mrb[0].mxu0
      %5275 = vmatprep.mubr.f32.mxu0 0.0
      %5276 = vmatmul.mubr.f32.gmra.mrb[0].mxu0 %v5039
      %v5277 = vpop.f32.mrb[0].mxu0
      %v5278 = vadd.f32 0.0, %v5277
      %v5279 = vpop.f32.mrb[0].mxu0
      %5280 = vdwg.mxu0
      %v5281 = vadd.f32 %v4816, %v5123
      %v5282 = vadd.f32 %v4817, %v5128
      %v5283 = vadd.f32 %v4818, %v5133
      %v5284 = vadd.f32 %v4819, %v5138
      %v5285 = vadd.f32 %v4820, %v5143
      %v5286 = vadd.f32 %v4821, %v5148
      %v5287 = vadd.f32 %v4822, %v5153
      %v5288 = vadd.f32 %v4823, %v5158
      %v5289 = vadd.f32 %v4824, %v5163
      %v5290 = vadd.f32 %v4825, %v5168
      %v5291 = vadd.f32 %v4826, %v5173
      %v5292 = vadd.f32 %v4827, %v5178
      %v5293 = vadd.f32 %v4828, %v5183
      %v5294 = vadd.f32 %v4829, %v5188
      %v5295 = vadd.f32 %v4830, %v5193
      %v5296 = vadd.f32 %v4831, %v5198
      %v5297 = vadd.f32 %v4832, %v5203
      %v5298 = vadd.f32 %v4833, %v5208
      %v5299 = vadd.f32 %v4834, %v5213
      %v5300 = vadd.f32 %v4835, %v5218
      %v5301 = vadd.f32 %v4836, %v5223
      %v5302 = vadd.f32 %v4837, %v5228
      %v5303 = vadd.f32 %v4838, %v5233
      %v5304 = vadd.f32 %v4839, %v5238
      %v5305 = vadd.f32 %v4840, %v5243
      %v5306 = vadd.f32 %v4841, %v5248
      %v5307 = vadd.f32 %v4842, %v5253
      %v5308 = vadd.f32 %v4843, %v5258
      %v5309 = vadd.f32 %v4844, %v5263
      %v5310 = vadd.f32 %v4845, %v5268
      %v5311 = vadd.f32 %v4846, %v5273
      %v5312 = vadd.f32 %v4847, %v5278
      %5313 = vset.pattern.permute.xlu0 11
      %5314 = vperm.xlu0 %5313, %v228
      %v5315 = vpop.permute.xlu0 %5314
      %5316 = vset.pattern.permute.xlu0 11
      %5317 = vperm.xlu0 %5316, %v229
      %v5318 = vpop.permute.xlu0 %5317
      %5319 = vset.pattern.permute.xlu0 11
      %5320 = vperm.xlu0 %5319, %v230
      %v5321 = vpop.permute.xlu0 %5320
      %5322 = vset.pattern.permute.xlu0 11
      %5323 = vperm.xlu0 %5322, %v231
      %v5324 = vpop.permute.xlu0 %5323
      %5325 = vset.pattern.permute.xlu0 11
      %5326 = vperm.xlu0 %5325, %v232
      %v5327 = vpop.permute.xlu0 %5326
      %5328 = vset.pattern.permute.xlu0 11
      %5329 = vperm.xlu0 %5328, %v233
      %v5330 = vpop.permute.xlu0 %5329
      %5331 = vset.pattern.permute.xlu0 11
      %5332 = vperm.xlu0 %5331, %v234
      %v5333 = vpop.permute.xlu0 %5332
      %5334 = vset.pattern.permute.xlu0 11
      %5335 = vperm.xlu0 %5334, %v235
      %v5336 = vpop.permute.xlu0 %5335
      %5337 = vset.pattern.permute.xlu0 11
      %5338 = vperm.xlu0 %5337, %v236
      %v5339 = vpop.permute.xlu0 %5338
      %5340 = vset.pattern.permute.xlu0 11
      %5341 = vperm.xlu0 %5340, %v237
      %v5342 = vpop.permute.xlu0 %5341
      %5343 = vset.pattern.permute.xlu0 11
      %5344 = vperm.xlu0 %5343, %v238
      %v5345 = vpop.permute.xlu0 %5344
      %5346 = vset.pattern.permute.xlu0 11
      %5347 = vperm.xlu0 %5346, %v239
      %v5348 = vpop.permute.xlu0 %5347
      %5349 = vset.pattern.permute.xlu0 11
      %5350 = vperm.xlu0 %5349, %v240
      %v5351 = vpop.permute.xlu0 %5350
      %5352 = vset.pattern.permute.xlu0 11
      %5353 = vperm.xlu0 %5352, %v241
      %v5354 = vpop.permute.xlu0 %5353
      %5355 = vset.pattern.permute.xlu0 11
      %5356 = vperm.xlu0 %5355, %v242
      %v5357 = vpop.permute.xlu0 %5356
      %5358 = vset.pattern.permute.xlu0 11
      %5359 = vperm.xlu0 %5358, %v243
      %v5360 = vpop.permute.xlu0 %5359
      %5361 = vset.pattern.permute.xlu0 11
      %5362 = vperm.xlu0 %5361, %v244
      %v5363 = vpop.permute.xlu0 %5362
      %5364 = vset.pattern.permute.xlu0 11
      %5365 = vperm.xlu0 %5364, %v245
      %v5366 = vpop.permute.xlu0 %5365
      %5367 = vset.pattern.permute.xlu0 11
      %5368 = vperm.xlu0 %5367, %v246
      %v5369 = vpop.permute.xlu0 %5368
      %5370 = vset.pattern.permute.xlu0 11
      %5371 = vperm.xlu0 %5370, %v247
      %v5372 = vpop.permute.xlu0 %5371
      %5373 = vset.pattern.permute.xlu0 11
      %5374 = vperm.xlu0 %5373, %v248
      %v5375 = vpop.permute.xlu0 %5374
      %5376 = vset.pattern.permute.xlu0 11
      %5377 = vperm.xlu0 %5376, %v249
      %v5378 = vpop.permute.xlu0 %5377
      %5379 = vset.pattern.permute.xlu0 11
      %5380 = vperm.xlu0 %5379, %v250
      %v5381 = vpop.permute.xlu0 %5380
      %5382 = vset.pattern.permute.xlu0 11
      %5383 = vperm.xlu0 %5382, %v251
      %v5384 = vpop.permute.xlu0 %5383
      %5385 = vset.pattern.permute.xlu0 11
      %5386 = vperm.xlu0 %5385, %v252
      %v5387 = vpop.permute.xlu0 %5386
      %5388 = vset.pattern.permute.xlu0 11
      %5389 = vperm.xlu0 %5388, %v253
      %v5390 = vpop.permute.xlu0 %5389
      %5391 = vset.pattern.permute.xlu0 11
      %5392 = vperm.xlu0 %5391, %v254
      %v5393 = vpop.permute.xlu0 %5392
      %5394 = vset.pattern.permute.xlu0 11
      %5395 = vperm.xlu0 %5394, %v255
      %v5396 = vpop.permute.xlu0 %5395
      %5397 = vset.pattern.permute.xlu0 11
      %5398 = vperm.xlu0 %5397, %v256
      %v5399 = vpop.permute.xlu0 %5398
      %5400 = vset.pattern.permute.xlu0 11
      %5401 = vperm.xlu0 %5400, %v257
      %v5402 = vpop.permute.xlu0 %5401
      %5403 = vset.pattern.permute.xlu0 11
      %5404 = vperm.xlu0 %5403, %v258
      %v5405 = vpop.permute.xlu0 %5404
      %5406 = vset.pattern.permute.xlu0 11
      %5407 = vperm.xlu0 %5406, %v259
      %v5408 = vpop.permute.xlu0 %5407
      %vm5409 = vcmp.eq.s32.totalorder %v261, %v5315
      %vm5410 = vcmp.eq.s32.totalorder %v261, %v5318
      %vm5411 = vcmp.eq.s32.totalorder %v261, %v5321
      %vm5412 = vcmp.eq.s32.totalorder %v261, %v5324
      %vm5413 = vcmp.eq.s32.totalorder %v261, %v5327
      %vm5414 = vcmp.eq.s32.totalorder %v261, %v5330
      %vm5415 = vcmp.eq.s32.totalorder %v261, %v5333
      %vm5416 = vcmp.eq.s32.totalorder %v261, %v5336
      %vm5417 = vcmp.eq.s32.totalorder %v261, %v5339
      %vm5418 = vcmp.eq.s32.totalorder %v261, %v5342
      %vm5419 = vcmp.eq.s32.totalorder %v261, %v5345
      %vm5420 = vcmp.eq.s32.totalorder %v261, %v5348
      %vm5421 = vcmp.eq.s32.totalorder %v261, %v5351
      %vm5422 = vcmp.eq.s32.totalorder %v261, %v5354
      %vm5423 = vcmp.eq.s32.totalorder %v261, %v5357
      %vm5424 = vcmp.eq.s32.totalorder %v261, %v5360
      %vm5425 = vcmp.eq.s32.totalorder %v261, %v5363
      %vm5426 = vcmp.eq.s32.totalorder %v261, %v5366
      %vm5427 = vcmp.eq.s32.totalorder %v261, %v5369
      %vm5428 = vcmp.eq.s32.totalorder %v261, %v5372
      %vm5429 = vcmp.eq.s32.totalorder %v261, %v5375
      %vm5430 = vcmp.eq.s32.totalorder %v261, %v5378
      %vm5431 = vcmp.eq.s32.totalorder %v261, %v5381
      %vm5432 = vcmp.eq.s32.totalorder %v261, %v5384
      %vm5433 = vcmp.eq.s32.totalorder %v261, %v5387
      %vm5434 = vcmp.eq.s32.totalorder %v261, %v5390
      %vm5435 = vcmp.eq.s32.totalorder %v261, %v5393
      %vm5436 = vcmp.eq.s32.totalorder %v261, %v5396
      %vm5437 = vcmp.eq.s32.totalorder %v261, %v5399
      %vm5438 = vcmp.eq.s32.totalorder %v261, %v5402
      %vm5439 = vcmp.eq.s32.totalorder %v261, %v5405
      %vm5440 = vcmp.eq.s32.totalorder %v261, %v5408
      %v5441 = vsel %vm5409, 1, 0
      %v5442 = vsel %vm5410, 1, 0
      %v5443 = vsel %vm5411, 1, 0
      %v5444 = vsel %vm5412, 1, 0
      %v5445 = vsel %vm5413, 1, 0
      %v5446 = vsel %vm5414, 1, 0
      %v5447 = vsel %vm5415, 1, 0
      %v5448 = vsel %vm5416, 1, 0
      %v5449 = vsel %vm5417, 1, 0
      %v5450 = vsel %vm5418, 1, 0
      %v5451 = vsel %vm5419, 1, 0
      %v5452 = vsel %vm5420, 1, 0
      %v5453 = vsel %vm5421, 1, 0
      %v5454 = vsel %vm5422, 1, 0
      %v5455 = vsel %vm5423, 1, 0
      %v5456 = vsel %vm5424, 1, 0
      %v5457 = vsel %vm5425, 1, 0
      %v5458 = vsel %vm5426, 1, 0
      %v5459 = vsel %vm5427, 1, 0
      %v5460 = vsel %vm5428, 1, 0
      %v5461 = vsel %vm5429, 1, 0
      %v5462 = vsel %vm5430, 1, 0
      %v5463 = vsel %vm5431, 1, 0
      %v5464 = vsel %vm5432, 1, 0
      %v5465 = vsel %vm5433, 1, 0
      %v5466 = vsel %vm5434, 1, 0
      %v5467 = vsel %vm5435, 1, 0
      %v5468 = vsel %vm5436, 1, 0
      %v5469 = vsel %vm5437, 1, 0
      %v5470 = vsel %vm5438, 1, 0
      %v5471 = vsel %vm5439, 1, 0
      %v5472 = vsel %vm5440, 1, 0
      %v5473 = vcvt.s32.f32 %v5441
      %v5474 = vcvt.s32.f32 %v5442
      %v5475 = vcvt.s32.f32 %v5443
      %v5476 = vcvt.s32.f32 %v5444
      %v5477 = vcvt.s32.f32 %v5445
      %v5478 = vcvt.s32.f32 %v5446
      %v5479 = vcvt.s32.f32 %v5447
      %v5480 = vcvt.s32.f32 %v5448
      %v5481 = vcvt.s32.f32 %v5449
      %v5482 = vcvt.s32.f32 %v5450
      %v5483 = vcvt.s32.f32 %v5451
      %v5484 = vcvt.s32.f32 %v5452
      %v5485 = vcvt.s32.f32 %v5453
      %v5486 = vcvt.s32.f32 %v5454
      %v5487 = vcvt.s32.f32 %v5455
      %v5488 = vcvt.s32.f32 %v5456
      %v5489 = vcvt.s32.f32 %v5457
      %v5490 = vcvt.s32.f32 %v5458
      %v5491 = vcvt.s32.f32 %v5459
      %v5492 = vcvt.s32.f32 %v5460
      %v5493 = vcvt.s32.f32 %v5461
      %v5494 = vcvt.s32.f32 %v5462
      %v5495 = vcvt.s32.f32 %v5463
      %v5496 = vcvt.s32.f32 %v5464
      %v5497 = vcvt.s32.f32 %v5465
      %v5498 = vcvt.s32.f32 %v5466
      %v5499 = vcvt.s32.f32 %v5467
      %v5500 = vcvt.s32.f32 %v5468
      %v5501 = vcvt.s32.f32 %v5469
      %v5502 = vcvt.s32.f32 %v5470
      %v5503 = vcvt.s32.f32 %v5471
      %v5504 = vcvt.s32.f32 %v5472
      %v5505 = vld [vmem:[%s1 + $0x580] sm:$0xff]
      %v5506 = vld [vmem:[%s1 + $0x588] sm:$0xff]
      %v5507 = vld [vmem:[%s1 + $0x590] sm:$0xff]
      %v5508 = vld [vmem:[%s1 + $0x598] sm:$0xff]
      %v5509 = vld [vmem:[%s1 + $0x5a0] sm:$0xff]
      %v5510 = vld [vmem:[%s1 + $0x5a8] sm:$0xff]
      %v5511 = vld [vmem:[%s1 + $0x5b0] sm:$0xff]
      %v5512 = vld [vmem:[%s1 + $0x5b8] sm:$0xff]
      %v5513 = vld [vmem:[%s1 + $0x5c0] sm:$0xff]
      %v5514 = vld [vmem:[%s1 + $0x5c8] sm:$0xff]
      %v5515 = vld [vmem:[%s1 + $0x5d0] sm:$0xff]
      %v5516 = vld [vmem:[%s1 + $0x5d8] sm:$0xff]
      %v5517 = vld [vmem:[%s1 + $0x5e0] sm:$0xff]
      %v5518 = vld [vmem:[%s1 + $0x5e8] sm:$0xff]
      %v5519 = vld [vmem:[%s1 + $0x5f0] sm:$0xff]
      %v5520 = vld [vmem:[%s1 + $0x5f8] sm:$0xff]
      %5521 = vmatprep.subr.mxu0 0.0
      %5522 = vmatpush1.msra.mxu0 %v5505
      %5523 = vmatprep.subr.mxu0 0.0
      %5524 = vmatpush1.msra.mxu0 %v5506
      %5525 = vmatprep.subr.mxu0 0.0
      %5526 = vmatpush1.msra.mxu0 %v5507
      %5527 = vmatprep.subr.mxu0 0.0
      %5528 = vmatpush1.msra.mxu0 %v5508
      %5529 = vmatprep.subr.mxu0 0.0
      %5530 = vmatpush1.msra.mxu0 %v5509
      %5531 = vmatprep.subr.mxu0 0.0
      %5532 = vmatpush1.msra.mxu0 %v5510
      %5533 = vmatprep.subr.mxu0 0.0
      %5534 = vmatpush1.msra.mxu0 %v5511
      %5535 = vmatprep.subr.mxu0 0.0
      %5536 = vmatpush1.msra.mxu0 %v5512
      %5537 = vmatprep.subr.mxu0 0.0
      %5538 = vmatpush1.msra.mxu0 %v5513
      %5539 = vmatprep.subr.mxu0 0.0
      %5540 = vmatpush1.msra.mxu0 %v5514
      %5541 = vmatprep.subr.mxu0 0.0
      %5542 = vmatpush1.msra.mxu0 %v5515
      %5543 = vmatprep.subr.mxu0 0.0
      %5544 = vmatpush1.msra.mxu0 %v5516
      %5545 = vmatprep.subr.mxu0 0.0
      %5546 = vmatpush1.msra.mxu0 %v5517
      %5547 = vmatprep.subr.mxu0 0.0
      %5548 = vmatpush1.msra.mxu0 %v5518
      %5549 = vmatprep.subr.mxu0 0.0
      %5550 = vmatpush1.msra.mxu0 %v5519
      %5551 = vmatprep.subr.mxu0 0.0
      %5552 = vmatpush1.msra.mxu0 %v5520
      %5553 = vmatprep.subr.mxu0 0.0
      %5554 = vmatpush1.msra.mxu0 0.0
      %5555 = vmatprep.subr.mxu0 0.0
      %5556 = vmatpush1.msra.mxu0 0.0
      %5557 = vmatprep.subr.mxu0 0.0
      %5558 = vmatpush1.msra.mxu0 0.0
      %5559 = vmatprep.subr.mxu0 0.0
      %5560 = vmatpush1.msra.mxu0 0.0
      %5561 = vmatprep.subr.mxu0 0.0
      %5562 = vmatpush1.msra.mxu0 0.0
      %5563 = vmatprep.subr.mxu0 0.0
      %5564 = vmatpush1.msra.mxu0 0.0
      %5565 = vmatprep.subr.mxu0 0.0
      %5566 = vmatpush1.msra.mxu0 0.0
      %5567 = vmatprep.subr.mxu0 0.0
      %5568 = vmatpush1.msra.mxu0 0.0
      %5569 = vmatprep.subr.mxu0 0.0
      %5570 = vmatpush1.msra.mxu0 0.0
      %5571 = vmatprep.subr.mxu0 0.0
      %5572 = vmatpush1.msra.mxu0 0.0
      %5573 = vmatprep.subr.mxu0 0.0
      %5574 = vmatpush1.msra.mxu0 0.0
      %5575 = vmatprep.subr.mxu0 0.0
      %5576 = vmatpush1.msra.mxu0 0.0
      %5577 = vmatprep.subr.mxu0 0.0
      %5578 = vmatpush1.msra.mxu0 0.0
      %5579 = vmatprep.subr.mxu0 0.0
      %5580 = vmatpush1.msra.mxu0 0.0
      %5581 = vmatprep.subr.mxu0 0.0
      %5582 = vmatpush1.msra.mxu0 0.0
      %5583 = vmatprep.subr.mxu0 0.0
      %5584 = vmatpush1.msra.mxu0 0.0
      %5585 = vmatprep.mubr.f32.mxu0 0.0
      %5586 = vmatmul.mubr.f32.gmra.mrb[0].mxu0 %v5473
      %v5587 = vpop.f32.mrb[0].mxu0
      %v5588 = vadd.f32 0.0, %v5587
      %v5589 = vpop.f32.mrb[0].mxu0
      %5590 = vmatprep.mubr.f32.mxu0 0.0
      %5591 = vmatmul.mubr.f32.gmra.mrb[0].mxu0 %v5474
      %v5592 = vpop.f32.mrb[0].mxu0
      %v5593 = vadd.f32 0.0, %v5592
      %v5594 = vpop.f32.mrb[0].mxu0
      %5595 = vmatprep.mubr.f32.mxu0 0.0
      %5596 = vmatmul.mubr.f32.gmra.mrb[0].mxu0 %v5475
      %v5597 = vpop.f32.mrb[0].mxu0
      %v5598 = vadd.f32 0.0, %v5597
      %v5599 = vpop.f32.mrb[0].mxu0
      %5600 = vmatprep.mubr.f32.mxu0 0.0
      %5601 = vmatmul.mubr.f32.gmra.mrb[0].mxu0 %v5476
      %v5602 = vpop.f32.mrb[0].mxu0
      %v5603 = vadd.f32 0.0, %v5602
      %v5604 = vpop.f32.mrb[0].mxu0
      %5605 = vmatprep.mubr.f32.mxu0 0.0
      %5606 = vmatmul.mubr.f32.gmra.mrb[0].mxu0 %v5477
      %v5607 = vpop.f32.mrb[0].mxu0
      %v5608 = vadd.f32 0.0, %v5607
      %v5609 = vpop.f32.mrb[0].mxu0
      %5610 = vmatprep.mubr.f32.mxu0 0.0
      %5611 = vmatmul.mubr.f32.gmra.mrb[0].mxu0 %v5478
      %v5612 = vpop.f32.mrb[0].mxu0
      %v5613 = vadd.f32 0.0, %v5612
      %v5614 = vpop.f32.mrb[0].mxu0
      %5615 = vmatprep.mubr.f32.mxu0 0.0
      %5616 = vmatmul.mubr.f32.gmra.mrb[0].mxu0 %v5479
      %v5617 = vpop.f32.mrb[0].mxu0
      %v5618 = vadd.f32 0.0, %v5617
      %v5619 = vpop.f32.mrb[0].mxu0
      %5620 = vmatprep.mubr.f32.mxu0 0.0
      %5621 = vmatmul.mubr.f32.gmra.mrb[0].mxu0 %v5480
      %v5622 = vpop.f32.mrb[0].mxu0
      %v5623 = vadd.f32 0.0, %v5622
      %v5624 = vpop.f32.mrb[0].mxu0
      %5625 = vmatprep.mubr.f32.mxu0 0.0
      %5626 = vmatmul.mubr.f32.gmra.mrb[0].mxu0 %v5481
      %v5627 = vpop.f32.mrb[0].mxu0
      %v5628 = vadd.f32 0.0, %v5627
      %v5629 = vpop.f32.mrb[0].mxu0
      %5630 = vmatprep.mubr.f32.mxu0 0.0
      %5631 = vmatmul.mubr.f32.gmra.mrb[0].mxu0 %v5482
      %v5632 = vpop.f32.mrb[0].mxu0
      %v5633 = vadd.f32 0.0, %v5632
      %v5634 = vpop.f32.mrb[0].mxu0
      %5635 = vmatprep.mubr.f32.mxu0 0.0
      %5636 = vmatmul.mubr.f32.gmra.mrb[0].mxu0 %v5483
      %v5637 = vpop.f32.mrb[0].mxu0
      %v5638 = vadd.f32 0.0, %v5637
      %v5639 = vpop.f32.mrb[0].mxu0
      %5640 = vmatprep.mubr.f32.mxu0 0.0
      %5641 = vmatmul.mubr.f32.gmra.mrb[0].mxu0 %v5484
      %v5642 = vpop.f32.mrb[0].mxu0
      %v5643 = vadd.f32 0.0, %v5642
      %v5644 = vpop.f32.mrb[0].mxu0
      %5645 = vmatprep.mubr.f32.mxu0 0.0
      %5646 = vmatmul.mubr.f32.gmra.mrb[0].mxu0 %v5485
      %v5647 = vpop.f32.mrb[0].mxu0
      %v5648 = vadd.f32 0.0, %v5647
      %v5649 = vpop.f32.mrb[0].mxu0
      %5650 = vmatprep.mubr.f32.mxu0 0.0
      %5651 = vmatmul.mubr.f32.gmra.mrb[0].mxu0 %v5486
      %v5652 = vpop.f32.mrb[0].mxu0
      %v5653 = vadd.f32 0.0, %v5652
      %v5654 = vpop.f32.mrb[0].mxu0
      %5655 = vmatprep.mubr.f32.mxu0 0.0
      %5656 = vmatmul.mubr.f32.gmra.mrb[0].mxu0 %v5487
      %v5657 = vpop.f32.mrb[0].mxu0
      %v5658 = vadd.f32 0.0, %v5657
      %v5659 = vpop.f32.mrb[0].mxu0
      %5660 = vmatprep.mubr.f32.mxu0 0.0
      %5661 = vmatmul.mubr.f32.gmra.mrb[0].mxu0 %v5488
      %v5662 = vpop.f32.mrb[0].mxu0
      %v5663 = vadd.f32 0.0, %v5662
      %v5664 = vpop.f32.mrb[0].mxu0
      %5665 = vmatprep.mubr.f32.mxu0 0.0
      %5666 = vmatmul.mubr.f32.gmra.mrb[0].mxu0 %v5489
      %v5667 = vpop.f32.mrb[0].mxu0
      %v5668 = vadd.f32 0.0, %v5667
      %v5669 = vpop.f32.mrb[0].mxu0
      %5670 = vmatprep.mubr.f32.mxu0 0.0
      %5671 = vmatmul.mubr.f32.gmra.mrb[0].mxu0 %v5490
      %v5672 = vpop.f32.mrb[0].mxu0
      %v5673 = vadd.f32 0.0, %v5672
      %v5674 = vpop.f32.mrb[0].mxu0
      %5675 = vmatprep.mubr.f32.mxu0 0.0
      %5676 = vmatmul.mubr.f32.gmra.mrb[0].mxu0 %v5491
      %v5677 = vpop.f32.mrb[0].mxu0
      %v5678 = vadd.f32 0.0, %v5677
      %v5679 = vpop.f32.mrb[0].mxu0
      %5680 = vmatprep.mubr.f32.mxu0 0.0
      %5681 = vmatmul.mubr.f32.gmra.mrb[0].mxu0 %v5492
      %v5682 = vpop.f32.mrb[0].mxu0
      %v5683 = vadd.f32 0.0, %v5682
      %v5684 = vpop.f32.mrb[0].mxu0
      %5685 = vmatprep.mubr.f32.mxu0 0.0
      %5686 = vmatmul.mubr.f32.gmra.mrb[0].mxu0 %v5493
      %v5687 = vpop.f32.mrb[0].mxu0
      %v5688 = vadd.f32 0.0, %v5687
      %v5689 = vpop.f32.mrb[0].mxu0
      %5690 = vmatprep.mubr.f32.mxu0 0.0
      %5691 = vmatmul.mubr.f32.gmra.mrb[0].mxu0 %v5494
      %v5692 = vpop.f32.mrb[0].mxu0
      %v5693 = vadd.f32 0.0, %v5692
      %v5694 = vpop.f32.mrb[0].mxu0
      %5695 = vmatprep.mubr.f32.mxu0 0.0
      %5696 = vmatmul.mubr.f32.gmra.mrb[0].mxu0 %v5495
      %v5697 = vpop.f32.mrb[0].mxu0
      %v5698 = vadd.f32 0.0, %v5697
      %v5699 = vpop.f32.mrb[0].mxu0
      %5700 = vmatprep.mubr.f32.mxu0 0.0
      %5701 = vmatmul.mubr.f32.gmra.mrb[0].mxu0 %v5496
      %v5702 = vpop.f32.mrb[0].mxu0
      %v5703 = vadd.f32 0.0, %v5702
      %v5704 = vpop.f32.mrb[0].mxu0
      %5705 = vmatprep.mubr.f32.mxu0 0.0
      %5706 = vmatmul.mubr.f32.gmra.mrb[0].mxu0 %v5497
      %v5707 = vpop.f32.mrb[0].mxu0
      %v5708 = vadd.f32 0.0, %v5707
      %v5709 = vpop.f32.mrb[0].mxu0
      %5710 = vmatprep.mubr.f32.mxu0 0.0
      %5711 = vmatmul.mubr.f32.gmra.mrb[0].mxu0 %v5498
      %v5712 = vpop.f32.mrb[0].mxu0
      %v5713 = vadd.f32 0.0, %v5712
      %v5714 = vpop.f32.mrb[0].mxu0
      %5715 = vmatprep.mubr.f32.mxu0 0.0
      %5716 = vmatmul.mubr.f32.gmra.mrb[0].mxu0 %v5499
      %v5717 = vpop.f32.mrb[0].mxu0
      %v5718 = vadd.f32 0.0, %v5717
      %v5719 = vpop.f32.mrb[0].mxu0
      %5720 = vmatprep.mubr.f32.mxu0 0.0
      %5721 = vmatmul.mubr.f32.gmra.mrb[0].mxu0 %v5500
      %v5722 = vpop.f32.mrb[0].mxu0
      %v5723 = vadd.f32 0.0, %v5722
      %v5724 = vpop.f32.mrb[0].mxu0
      %5725 = vmatprep.mubr.f32.mxu0 0.0
      %5726 = vmatmul.mubr.f32.gmra.mrb[0].mxu0 %v5501
      %v5727 = vpop.f32.mrb[0].mxu0
      %v5728 = vadd.f32 0.0, %v5727
      %v5729 = vpop.f32.mrb[0].mxu0
      %5730 = vmatprep.mubr.f32.mxu0 0.0
      %5731 = vmatmul.mubr.f32.gmra.mrb[0].mxu0 %v5502
      %v5732 = vpop.f32.mrb[0].mxu0
      %v5733 = vadd.f32 0.0, %v5732
      %v5734 = vpop.f32.mrb[0].mxu0
      %5735 = vmatprep.mubr.f32.mxu0 0.0
      %5736 = vmatmul.mubr.f32.gmra.mrb[0].mxu0 %v5503
      %v5737 = vpop.f32.mrb[0].mxu0
      %v5738 = vadd.f32 0.0, %v5737
      %v5739 = vpop.f32.mrb[0].mxu0
      %5740 = vmatprep.mubr.f32.mxu0 0.0
      %5741 = vmatmul.mubr.f32.gmra.mrb[0].mxu0 %v5504
      %v5742 = vpop.f32.mrb[0].mxu0
      %v5743 = vadd.f32 0.0, %v5742
      %v5744 = vpop.f32.mrb[0].mxu0
      %5745 = vdwg.mxu0
      %v5746 = vadd.f32 %v5281, %v5588
      %v5747 = vadd.f32 %v5282, %v5593
      %v5748 = vadd.f32 %v5283, %v5598
      %v5749 = vadd.f32 %v5284, %v5603
      %v5750 = vadd.f32 %v5285, %v5608
      %v5751 = vadd.f32 %v5286, %v5613
      %v5752 = vadd.f32 %v5287, %v5618
      %v5753 = vadd.f32 %v5288, %v5623
      %v5754 = vadd.f32 %v5289, %v5628
      %v5755 = vadd.f32 %v5290, %v5633
      %v5756 = vadd.f32 %v5291, %v5638
      %v5757 = vadd.f32 %v5292, %v5643
      %v5758 = vadd.f32 %v5293, %v5648
      %v5759 = vadd.f32 %v5294, %v5653
      %v5760 = vadd.f32 %v5295, %v5658
      %v5761 = vadd.f32 %v5296, %v5663
      %v5762 = vadd.f32 %v5297, %v5668
      %v5763 = vadd.f32 %v5298, %v5673
      %v5764 = vadd.f32 %v5299, %v5678
      %v5765 = vadd.f32 %v5300, %v5683
      %v5766 = vadd.f32 %v5301, %v5688
      %v5767 = vadd.f32 %v5302, %v5693
      %v5768 = vadd.f32 %v5303, %v5698
      %v5769 = vadd.f32 %v5304, %v5703
      %v5770 = vadd.f32 %v5305, %v5708
      %v5771 = vadd.f32 %v5306, %v5713
      %v5772 = vadd.f32 %v5307, %v5718
      %v5773 = vadd.f32 %v5308, %v5723
      %v5774 = vadd.f32 %v5309, %v5728
      %v5775 = vadd.f32 %v5310, %v5733
      %v5776 = vadd.f32 %v5311, %v5738
      %v5777 = vadd.f32 %v5312, %v5743
      %5778 = vset.pattern.permute.xlu0 12
      %5779 = vperm.xlu0 %5778, %v228
      %v5780 = vpop.permute.xlu0 %5779
      %5781 = vset.pattern.permute.xlu0 12
      %5782 = vperm.xlu0 %5781, %v229
      %v5783 = vpop.permute.xlu0 %5782
      %5784 = vset.pattern.permute.xlu0 12
      %5785 = vperm.xlu0 %5784, %v230
      %v5786 = vpop.permute.xlu0 %5785
      %5787 = vset.pattern.permute.xlu0 12
      %5788 = vperm.xlu0 %5787, %v231
      %v5789 = vpop.permute.xlu0 %5788
      %5790 = vset.pattern.permute.xlu0 12
      %5791 = vperm.xlu0 %5790, %v232
      %v5792 = vpop.permute.xlu0 %5791
      %5793 = vset.pattern.permute.xlu0 12
      %5794 = vperm.xlu0 %5793, %v233
      %v5795 = vpop.permute.xlu0 %5794
      %5796 = vset.pattern.permute.xlu0 12
      %5797 = vperm.xlu0 %5796, %v234
      %v5798 = vpop.permute.xlu0 %5797
      %5799 = vset.pattern.permute.xlu0 12
      %5800 = vperm.xlu0 %5799, %v235
      %v5801 = vpop.permute.xlu0 %5800
      %5802 = vset.pattern.permute.xlu0 12
      %5803 = vperm.xlu0 %5802, %v236
      %v5804 = vpop.permute.xlu0 %5803
      %5805 = vset.pattern.permute.xlu0 12
      %5806 = vperm.xlu0 %5805, %v237
      %v5807 = vpop.permute.xlu0 %5806
      %5808 = vset.pattern.permute.xlu0 12
      %5809 = vperm.xlu0 %5808, %v238
      %v5810 = vpop.permute.xlu0 %5809
      %5811 = vset.pattern.permute.xlu0 12
      %5812 = vperm.xlu0 %5811, %v239
      %v5813 = vpop.permute.xlu0 %5812
      %5814 = vset.pattern.permute.xlu0 12
      %5815 = vperm.xlu0 %5814, %v240
      %v5816 = vpop.permute.xlu0 %5815
      %5817 = vset.pattern.permute.xlu0 12
      %5818 = vperm.xlu0 %5817, %v241
      %v5819 = vpop.permute.xlu0 %5818
      %5820 = vset.pattern.permute.xlu0 12
      %5821 = vperm.xlu0 %5820, %v242
      %v5822 = vpop.permute.xlu0 %5821
      %5823 = vset.pattern.permute.xlu0 12
      %5824 = vperm.xlu0 %5823, %v243
      %v5825 = vpop.permute.xlu0 %5824
      %5826 = vset.pattern.permute.xlu0 12
      %5827 = vperm.xlu0 %5826, %v244
      %v5828 = vpop.permute.xlu0 %5827
      %5829 = vset.pattern.permute.xlu0 12
      %5830 = vperm.xlu0 %5829, %v245
      %v5831 = vpop.permute.xlu0 %5830
      %5832 = vset.pattern.permute.xlu0 12
      %5833 = vperm.xlu0 %5832, %v246
      %v5834 = vpop.permute.xlu0 %5833
      %5835 = vset.pattern.permute.xlu0 12
      %5836 = vperm.xlu0 %5835, %v247
      %v5837 = vpop.permute.xlu0 %5836
      %5838 = vset.pattern.permute.xlu0 12
      %5839 = vperm.xlu0 %5838, %v248
      %v5840 = vpop.permute.xlu0 %5839
      %5841 = vset.pattern.permute.xlu0 12
      %5842 = vperm.xlu0 %5841, %v249
      %v5843 = vpop.permute.xlu0 %5842
      %5844 = vset.pattern.permute.xlu0 12
      %5845 = vperm.xlu0 %5844, %v250
      %v5846 = vpop.permute.xlu0 %5845
      %5847 = vset.pattern.permute.xlu0 12
      %5848 = vperm.xlu0 %5847, %v251
      %v5849 = vpop.permute.xlu0 %5848
      %5850 = vset.pattern.permute.xlu0 12
      %5851 = vperm.xlu0 %5850, %v252
      %v5852 = vpop.permute.xlu0 %5851
      %5853 = vset.pattern.permute.xlu0 12
      %5854 = vperm.xlu0 %5853, %v253
      %v5855 = vpop.permute.xlu0 %5854
      %5856 = vset.pattern.permute.xlu0 12
      %5857 = vperm.xlu0 %5856, %v254
      %v5858 = vpop.permute.xlu0 %5857
      %5859 = vset.pattern.permute.xlu0 12
      %5860 = vperm.xlu0 %5859, %v255
      %v5861 = vpop.permute.xlu0 %5860
      %5862 = vset.pattern.permute.xlu0 12
      %5863 = vperm.xlu0 %5862, %v256
      %v5864 = vpop.permute.xlu0 %5863
      %5865 = vset.pattern.permute.xlu0 12
      %5866 = vperm.xlu0 %5865, %v257
      %v5867 = vpop.permute.xlu0 %5866
      %5868 = vset.pattern.permute.xlu0 12
      %5869 = vperm.xlu0 %5868, %v258
      %v5870 = vpop.permute.xlu0 %5869
      %5871 = vset.pattern.permute.xlu0 12
      %5872 = vperm.xlu0 %5871, %v259
      %v5873 = vpop.permute.xlu0 %5872
      %vm5874 = vcmp.eq.s32.totalorder %v261, %v5780
      %vm5875 = vcmp.eq.s32.totalorder %v261, %v5783
      %vm5876 = vcmp.eq.s32.totalorder %v261, %v5786
      %vm5877 = vcmp.eq.s32.totalorder %v261, %v5789
      %vm5878 = vcmp.eq.s32.totalorder %v261, %v5792
      %vm5879 = vcmp.eq.s32.totalorder %v261, %v5795
      %vm5880 = vcmp.eq.s32.totalorder %v261, %v5798
      %vm5881 = vcmp.eq.s32.totalorder %v261, %v5801
      %vm5882 = vcmp.eq.s32.totalorder %v261, %v5804
      %vm5883 = vcmp.eq.s32.totalorder %v261, %v5807
      %vm5884 = vcmp.eq.s32.totalorder %v261, %v5810
      %vm5885 = vcmp.eq.s32.totalorder %v261, %v5813
      %vm5886 = vcmp.eq.s32.totalorder %v261, %v5816
      %vm5887 = vcmp.eq.s32.totalorder %v261, %v5819
      %vm5888 = vcmp.eq.s32.totalorder %v261, %v5822
      %vm5889 = vcmp.eq.s32.totalorder %v261, %v5825
      %vm5890 = vcmp.eq.s32.totalorder %v261, %v5828
      %vm5891 = vcmp.eq.s32.totalorder %v261, %v5831
      %vm5892 = vcmp.eq.s32.totalorder %v261, %v5834
      %vm5893 = vcmp.eq.s32.totalorder %v261, %v5837
      %vm5894 = vcmp.eq.s32.totalorder %v261, %v5840
      %vm5895 = vcmp.eq.s32.totalorder %v261, %v5843
      %vm5896 = vcmp.eq.s32.totalorder %v261, %v5846
      %vm5897 = vcmp.eq.s32.totalorder %v261, %v5849
      %vm5898 = vcmp.eq.s32.totalorder %v261, %v5852
      %vm5899 = vcmp.eq.s32.totalorder %v261, %v5855
      %vm5900 = vcmp.eq.s32.totalorder %v261, %v5858
      %vm5901 = vcmp.eq.s32.totalorder %v261, %v5861
      %vm5902 = vcmp.eq.s32.totalorder %v261, %v5864
      %vm5903 = vcmp.eq.s32.totalorder %v261, %v5867
      %vm5904 = vcmp.eq.s32.totalorder %v261, %v5870
      %vm5905 = vcmp.eq.s32.totalorder %v261, %v5873
      %v5906 = vsel %vm5874, 1, 0
      %v5907 = vsel %vm5875, 1, 0
      %v5908 = vsel %vm5876, 1, 0
      %v5909 = vsel %vm5877, 1, 0
      %v5910 = vsel %vm5878, 1, 0
      %v5911 = vsel %vm5879, 1, 0
      %v5912 = vsel %vm5880, 1, 0
      %v5913 = vsel %vm5881, 1, 0
      %v5914 = vsel %vm5882, 1, 0
      %v5915 = vsel %vm5883, 1, 0
      %v5916 = vsel %vm5884, 1, 0
      %v5917 = vsel %vm5885, 1, 0
      %v5918 = vsel %vm5886, 1, 0
      %v5919 = vsel %vm5887, 1, 0
      %v5920 = vsel %vm5888, 1, 0
      %v5921 = vsel %vm5889, 1, 0
      %v5922 = vsel %vm5890, 1, 0
      %v5923 = vsel %vm5891, 1, 0
      %v5924 = vsel %vm5892, 1, 0
      %v5925 = vsel %vm5893, 1, 0
      %v5926 = vsel %vm5894, 1, 0
      %v5927 = vsel %vm5895, 1, 0
      %v5928 = vsel %vm5896, 1, 0
      %v5929 = vsel %vm5897, 1, 0
      %v5930 = vsel %vm5898, 1, 0
      %v5931 = vsel %vm5899, 1, 0
      %v5932 = vsel %vm5900, 1, 0
      %v5933 = vsel %vm5901, 1, 0
      %v5934 = vsel %vm5902, 1, 0
      %v5935 = vsel %vm5903, 1, 0
      %v5936 = vsel %vm5904, 1, 0
      %v5937 = vsel %vm5905, 1, 0
      %v5938 = vcvt.s32.f32 %v5906
      %v5939 = vcvt.s32.f32 %v5907
      %v5940 = vcvt.s32.f32 %v5908
      %v5941 = vcvt.s32.f32 %v5909
      %v5942 = vcvt.s32.f32 %v5910
      %v5943 = vcvt.s32.f32 %v5911
      %v5944 = vcvt.s32.f32 %v5912
      %v5945 = vcvt.s32.f32 %v5913
      %v5946 = vcvt.s32.f32 %v5914
      %v5947 = vcvt.s32.f32 %v5915
      %v5948 = vcvt.s32.f32 %v5916
      %v5949 = vcvt.s32.f32 %v5917
      %v5950 = vcvt.s32.f32 %v5918
      %v5951 = vcvt.s32.f32 %v5919
      %v5952 = vcvt.s32.f32 %v5920
      %v5953 = vcvt.s32.f32 %v5921
      %v5954 = vcvt.s32.f32 %v5922
      %v5955 = vcvt.s32.f32 %v5923
      %v5956 = vcvt.s32.f32 %v5924
      %v5957 = vcvt.s32.f32 %v5925
      %v5958 = vcvt.s32.f32 %v5926
      %v5959 = vcvt.s32.f32 %v5927
      %v5960 = vcvt.s32.f32 %v5928
      %v5961 = vcvt.s32.f32 %v5929
      %v5962 = vcvt.s32.f32 %v5930
      %v5963 = vcvt.s32.f32 %v5931
      %v5964 = vcvt.s32.f32 %v5932
      %v5965 = vcvt.s32.f32 %v5933
      %v5966 = vcvt.s32.f32 %v5934
      %v5967 = vcvt.s32.f32 %v5935
      %v5968 = vcvt.s32.f32 %v5936
      %v5969 = vcvt.s32.f32 %v5937
      %v5970 = vld [vmem:[%s1 + $0x600] sm:$0xff]
      %v5971 = vld [vmem:[%s1 + $0x608] sm:$0xff]
      %v5972 = vld [vmem:[%s1 + $0x610] sm:$0xff]
      %v5973 = vld [vmem:[%s1 + $0x618] sm:$0xff]
      %v5974 = vld [vmem:[%s1 + $0x620] sm:$0xff]
      %v5975 = vld [vmem:[%s1 + $0x628] sm:$0xff]
      %v5976 = vld [vmem:[%s1 + $0x630] sm:$0xff]
      %v5977 = vld [vmem:[%s1 + $0x638] sm:$0xff]
      %v5978 = vld [vmem:[%s1 + $0x640] sm:$0xff]
      %v5979 = vld [vmem:[%s1 + $0x648] sm:$0xff]
      %v5980 = vld [vmem:[%s1 + $0x650] sm:$0xff]
      %v5981 = vld [vmem:[%s1 + $0x658] sm:$0xff]
      %v5982 = vld [vmem:[%s1 + $0x660] sm:$0xff]
      %v5983 = vld [vmem:[%s1 + $0x668] sm:$0xff]
      %v5984 = vld [vmem:[%s1 + $0x670] sm:$0xff]
      %v5985 = vld [vmem:[%s1 + $0x678] sm:$0xff]
      %5986 = vmatprep.subr.mxu0 0.0
      %5987 = vmatpush1.msra.mxu0 %v5970
      %5988 = vmatprep.subr.mxu0 0.0
      %5989 = vmatpush1.msra.mxu0 %v5971
      %5990 = vmatprep.subr.mxu0 0.0
      %5991 = vmatpush1.msra.mxu0 %v5972
      %5992 = vmatprep.subr.mxu0 0.0
      %5993 = vmatpush1.msra.mxu0 %v5973
      %5994 = vmatprep.subr.mxu0 0.0
      %5995 = vmatpush1.msra.mxu0 %v5974
      %5996 = vmatprep.subr.mxu0 0.0
      %5997 = vmatpush1.msra.mxu0 %v5975
      %5998 = vmatprep.subr.mxu0 0.0
      %5999 = vmatpush1.msra.mxu0 %v5976
      %6000 = vmatprep.subr.mxu0 0.0
      %6001 = vmatpush1.msra.mxu0 %v5977
      %6002 = vmatprep.subr.mxu0 0.0
      %6003 = vmatpush1.msra.mxu0 %v5978
      %6004 = vmatprep.subr.mxu0 0.0
      %6005 = vmatpush1.msra.mxu0 %v5979
      %6006 = vmatprep.subr.mxu0 0.0
      %6007 = vmatpush1.msra.mxu0 %v5980
      %6008 = vmatprep.subr.mxu0 0.0
      %6009 = vmatpush1.msra.mxu0 %v5981
      %6010 = vmatprep.subr.mxu0 0.0
      %6011 = vmatpush1.msra.mxu0 %v5982
      %6012 = vmatprep.subr.mxu0 0.0
      %6013 = vmatpush1.msra.mxu0 %v5983
      %6014 = vmatprep.subr.mxu0 0.0
      %6015 = vmatpush1.msra.mxu0 %v5984
      %6016 = vmatprep.subr.mxu0 0.0
      %6017 = vmatpush1.msra.mxu0 %v5985
      %6018 = vmatprep.subr.mxu0 0.0
      %6019 = vmatpush1.msra.mxu0 0.0
      %6020 = vmatprep.subr.mxu0 0.0
      %6021 = vmatpush1.msra.mxu0 0.0
      %6022 = vmatprep.subr.mxu0 0.0
      %6023 = vmatpush1.msra.mxu0 0.0
      %6024 = vmatprep.subr.mxu0 0.0
      %6025 = vmatpush1.msra.mxu0 0.0
      %6026 = vmatprep.subr.mxu0 0.0
      %6027 = vmatpush1.msra.mxu0 0.0
      %6028 = vmatprep.subr.mxu0 0.0
      %6029 = vmatpush1.msra.mxu0 0.0
      %6030 = vmatprep.subr.mxu0 0.0
      %6031 = vmatpush1.msra.mxu0 0.0
      %6032 = vmatprep.subr.mxu0 0.0
      %6033 = vmatpush1.msra.mxu0 0.0
      %6034 = vmatprep.subr.mxu0 0.0
      %6035 = vmatpush1.msra.mxu0 0.0
      %6036 = vmatprep.subr.mxu0 0.0
      %6037 = vmatpush1.msra.mxu0 0.0
      %6038 = vmatprep.subr.mxu0 0.0
      %6039 = vmatpush1.msra.mxu0 0.0
      %6040 = vmatprep.subr.mxu0 0.0
      %6041 = vmatpush1.msra.mxu0 0.0
      %6042 = vmatprep.subr.mxu0 0.0
      %6043 = vmatpush1.msra.mxu0 0.0
      %6044 = vmatprep.subr.mxu0 0.0
      %6045 = vmatpush1.msra.mxu0 0.0
      %6046 = vmatprep.subr.mxu0 0.0
      %6047 = vmatpush1.msra.mxu0 0.0
      %6048 = vmatprep.subr.mxu0 0.0
      %6049 = vmatpush1.msra.mxu0 0.0
      %6050 = vmatprep.mubr.f32.mxu0 0.0
      %6051 = vmatmul.mubr.f32.gmra.mrb[0].mxu0 %v5938
      %v6052 = vpop.f32.mrb[0].mxu0
      %v6053 = vadd.f32 0.0, %v6052
      %v6054 = vpop.f32.mrb[0].mxu0
      %6055 = vmatprep.mubr.f32.mxu0 0.0
      %6056 = vmatmul.mubr.f32.gmra.mrb[0].mxu0 %v5939
      %v6057 = vpop.f32.mrb[0].mxu0
      %v6058 = vadd.f32 0.0, %v6057
      %v6059 = vpop.f32.mrb[0].mxu0
      %6060 = vmatprep.mubr.f32.mxu0 0.0
      %6061 = vmatmul.mubr.f32.gmra.mrb[0].mxu0 %v5940
      %v6062 = vpop.f32.mrb[0].mxu0
      %v6063 = vadd.f32 0.0, %v6062
      %v6064 = vpop.f32.mrb[0].mxu0
      %6065 = vmatprep.mubr.f32.mxu0 0.0
      %6066 = vmatmul.mubr.f32.gmra.mrb[0].mxu0 %v5941
      %v6067 = vpop.f32.mrb[0].mxu0
      %v6068 = vadd.f32 0.0, %v6067
      %v6069 = vpop.f32.mrb[0].mxu0
      %6070 = vmatprep.mubr.f32.mxu0 0.0
      %6071 = vmatmul.mubr.f32.gmra.mrb[0].mxu0 %v5942
      %v6072 = vpop.f32.mrb[0].mxu0
      %v6073 = vadd.f32 0.0, %v6072
      %v6074 = vpop.f32.mrb[0].mxu0
      %6075 = vmatprep.mubr.f32.mxu0 0.0
      %6076 = vmatmul.mubr.f32.gmra.mrb[0].mxu0 %v5943
      %v6077 = vpop.f32.mrb[0].mxu0
      %v6078 = vadd.f32 0.0, %v6077
      %v6079 = vpop.f32.mrb[0].mxu0
      %6080 = vmatprep.mubr.f32.mxu0 0.0
      %6081 = vmatmul.mubr.f32.gmra.mrb[0].mxu0 %v5944
      %v6082 = vpop.f32.mrb[0].mxu0
      %v6083 = vadd.f32 0.0, %v6082
      %v6084 = vpop.f32.mrb[0].mxu0
      %6085 = vmatprep.mubr.f32.mxu0 0.0
      %6086 = vmatmul.mubr.f32.gmra.mrb[0].mxu0 %v5945
      %v6087 = vpop.f32.mrb[0].mxu0
      %v6088 = vadd.f32 0.0, %v6087
      %v6089 = vpop.f32.mrb[0].mxu0
      %6090 = vmatprep.mubr.f32.mxu0 0.0
      %6091 = vmatmul.mubr.f32.gmra.mrb[0].mxu0 %v5946
      %v6092 = vpop.f32.mrb[0].mxu0
      %v6093 = vadd.f32 0.0, %v6092
      %v6094 = vpop.f32.mrb[0].mxu0
      %6095 = vmatprep.mubr.f32.mxu0 0.0
      %6096 = vmatmul.mubr.f32.gmra.mrb[0].mxu0 %v5947
      %v6097 = vpop.f32.mrb[0].mxu0
      %v6098 = vadd.f32 0.0, %v6097
      %v6099 = vpop.f32.mrb[0].mxu0
      %6100 = vmatprep.mubr.f32.mxu0 0.0
      %6101 = vmatmul.mubr.f32.gmra.mrb[0].mxu0 %v5948
      %v6102 = vpop.f32.mrb[0].mxu0
      %v6103 = vadd.f32 0.0, %v6102
      %v6104 = vpop.f32.mrb[0].mxu0
      %6105 = vmatprep.mubr.f32.mxu0 0.0
      %6106 = vmatmul.mubr.f32.gmra.mrb[0].mxu0 %v5949
      %v6107 = vpop.f32.mrb[0].mxu0
      %v6108 = vadd.f32 0.0, %v6107
      %v6109 = vpop.f32.mrb[0].mxu0
      %6110 = vmatprep.mubr.f32.mxu0 0.0
      %6111 = vmatmul.mubr.f32.gmra.mrb[0].mxu0 %v5950
      %v6112 = vpop.f32.mrb[0].mxu0
      %v6113 = vadd.f32 0.0, %v6112
      %v6114 = vpop.f32.mrb[0].mxu0
      %6115 = vmatprep.mubr.f32.mxu0 0.0
      %6116 = vmatmul.mubr.f32.gmra.mrb[0].mxu0 %v5951
      %v6117 = vpop.f32.mrb[0].mxu0
      %v6118 = vadd.f32 0.0, %v6117
      %v6119 = vpop.f32.mrb[0].mxu0
      %6120 = vmatprep.mubr.f32.mxu0 0.0
      %6121 = vmatmul.mubr.f32.gmra.mrb[0].mxu0 %v5952
      %v6122 = vpop.f32.mrb[0].mxu0
      %v6123 = vadd.f32 0.0, %v6122
      %v6124 = vpop.f32.mrb[0].mxu0
      %6125 = vmatprep.mubr.f32.mxu0 0.0
      %6126 = vmatmul.mubr.f32.gmra.mrb[0].mxu0 %v5953
      %v6127 = vpop.f32.mrb[0].mxu0
      %v6128 = vadd.f32 0.0, %v6127
      %v6129 = vpop.f32.mrb[0].mxu0
      %6130 = vmatprep.mubr.f32.mxu0 0.0
      %6131 = vmatmul.mubr.f32.gmra.mrb[0].mxu0 %v5954
      %v6132 = vpop.f32.mrb[0].mxu0
      %v6133 = vadd.f32 0.0, %v6132
      %v6134 = vpop.f32.mrb[0].mxu0
      %6135 = vmatprep.mubr.f32.mxu0 0.0
      %6136 = vmatmul.mubr.f32.gmra.mrb[0].mxu0 %v5955
      %v6137 = vpop.f32.mrb[0].mxu0
      %v6138 = vadd.f32 0.0, %v6137
      %v6139 = vpop.f32.mrb[0].mxu0
      %6140 = vmatprep.mubr.f32.mxu0 0.0
      %6141 = vmatmul.mubr.f32.gmra.mrb[0].mxu0 %v5956
      %v6142 = vpop.f32.mrb[0].mxu0
      %v6143 = vadd.f32 0.0, %v6142
      %v6144 = vpop.f32.mrb[0].mxu0
      %6145 = vmatprep.mubr.f32.mxu0 0.0
      %6146 = vmatmul.mubr.f32.gmra.mrb[0].mxu0 %v5957
      %v6147 = vpop.f32.mrb[0].mxu0
      %v6148 = vadd.f32 0.0, %v6147
      %v6149 = vpop.f32.mrb[0].mxu0
      %6150 = vmatprep.mubr.f32.mxu0 0.0
      %6151 = vmatmul.mubr.f32.gmra.mrb[0].mxu0 %v5958
      %v6152 = vpop.f32.mrb[0].mxu0
      %v6153 = vadd.f32 0.0, %v6152
      %v6154 = vpop.f32.mrb[0].mxu0
      %6155 = vmatprep.mubr.f32.mxu0 0.0
      %6156 = vmatmul.mubr.f32.gmra.mrb[0].mxu0 %v5959
      %v6157 = vpop.f32.mrb[0].mxu0
      %v6158 = vadd.f32 0.0, %v6157
      %v6159 = vpop.f32.mrb[0].mxu0
      %6160 = vmatprep.mubr.f32.mxu0 0.0
      %6161 = vmatmul.mubr.f32.gmra.mrb[0].mxu0 %v5960
      %v6162 = vpop.f32.mrb[0].mxu0
      %v6163 = vadd.f32 0.0, %v6162
      %v6164 = vpop.f32.mrb[0].mxu0
      %6165 = vmatprep.mubr.f32.mxu0 0.0
      %6166 = vmatmul.mubr.f32.gmra.mrb[0].mxu0 %v5961
      %v6167 = vpop.f32.mrb[0].mxu0
      %v6168 = vadd.f32 0.0, %v6167
      %v6169 = vpop.f32.mrb[0].mxu0
      %6170 = vmatprep.mubr.f32.mxu0 0.0
      %6171 = vmatmul.mubr.f32.gmra.mrb[0].mxu0 %v5962
      %v6172 = vpop.f32.mrb[0].mxu0
      %v6173 = vadd.f32 0.0, %v6172
      %v6174 = vpop.f32.mrb[0].mxu0
      %6175 = vmatprep.mubr.f32.mxu0 0.0
      %6176 = vmatmul.mubr.f32.gmra.mrb[0].mxu0 %v5963
      %v6177 = vpop.f32.mrb[0].mxu0
      %v6178 = vadd.f32 0.0, %v6177
      %v6179 = vpop.f32.mrb[0].mxu0
      %6180 = vmatprep.mubr.f32.mxu0 0.0
      %6181 = vmatmul.mubr.f32.gmra.mrb[0].mxu0 %v5964
      %v6182 = vpop.f32.mrb[0].mxu0
      %v6183 = vadd.f32 0.0, %v6182
      %v6184 = vpop.f32.mrb[0].mxu0
      %6185 = vmatprep.mubr.f32.mxu0 0.0
      %6186 = vmatmul.mubr.f32.gmra.mrb[0].mxu0 %v5965
      %v6187 = vpop.f32.mrb[0].mxu0
      %v6188 = vadd.f32 0.0, %v6187
      %v6189 = vpop.f32.mrb[0].mxu0
      %6190 = vmatprep.mubr.f32.mxu0 0.0
      %6191 = vmatmul.mubr.f32.gmra.mrb[0].mxu0 %v5966
      %v6192 = vpop.f32.mrb[0].mxu0
      %v6193 = vadd.f32 0.0, %v6192
      %v6194 = vpop.f32.mrb[0].mxu0
      %6195 = vmatprep.mubr.f32.mxu0 0.0
      %6196 = vmatmul.mubr.f32.gmra.mrb[0].mxu0 %v5967
      %v6197 = vpop.f32.mrb[0].mxu0
      %v6198 = vadd.f32 0.0, %v6197
      %v6199 = vpop.f32.mrb[0].mxu0
      %6200 = vmatprep.mubr.f32.mxu0 0.0
      %6201 = vmatmul.mubr.f32.gmra.mrb[0].mxu0 %v5968
      %v6202 = vpop.f32.mrb[0].mxu0
      %v6203 = vadd.f32 0.0, %v6202
      %v6204 = vpop.f32.mrb[0].mxu0
      %6205 = vmatprep.mubr.f32.mxu0 0.0
      %6206 = vmatmul.mubr.f32.gmra.mrb[0].mxu0 %v5969
      %v6207 = vpop.f32.mrb[0].mxu0
      %v6208 = vadd.f32 0.0, %v6207
      %v6209 = vpop.f32.mrb[0].mxu0
      %6210 = vdwg.mxu0
      %v6211 = vadd.f32 %v5746, %v6053
      %v6212 = vadd.f32 %v5747, %v6058
      %v6213 = vadd.f32 %v5748, %v6063
      %v6214 = vadd.f32 %v5749, %v6068
      %v6215 = vadd.f32 %v5750, %v6073
      %v6216 = vadd.f32 %v5751, %v6078
      %v6217 = vadd.f32 %v5752, %v6083
      %v6218 = vadd.f32 %v5753, %v6088
      %v6219 = vadd.f32 %v5754, %v6093
      %v6220 = vadd.f32 %v5755, %v6098
      %v6221 = vadd.f32 %v5756, %v6103
      %v6222 = vadd.f32 %v5757, %v6108
      %v6223 = vadd.f32 %v5758, %v6113
      %v6224 = vadd.f32 %v5759, %v6118
      %v6225 = vadd.f32 %v5760, %v6123
      %v6226 = vadd.f32 %v5761, %v6128
      %v6227 = vadd.f32 %v5762, %v6133
      %v6228 = vadd.f32 %v5763, %v6138
      %v6229 = vadd.f32 %v5764, %v6143
      %v6230 = vadd.f32 %v5765, %v6148
      %v6231 = vadd.f32 %v5766, %v6153
      %v6232 = vadd.f32 %v5767, %v6158
      %v6233 = vadd.f32 %v5768, %v6163
      %v6234 = vadd.f32 %v5769, %v6168
      %v6235 = vadd.f32 %v5770, %v6173
      %v6236 = vadd.f32 %v5771, %v6178
      %v6237 = vadd.f32 %v5772, %v6183
      %v6238 = vadd.f32 %v5773, %v6188
      %v6239 = vadd.f32 %v5774, %v6193
      %v6240 = vadd.f32 %v5775, %v6198
      %v6241 = vadd.f32 %v5776, %v6203
      %v6242 = vadd.f32 %v5777, %v6208
      %6243 = vset.pattern.permute.xlu0 13
      %6244 = vperm.xlu0 %6243, %v228
      %v6245 = vpop.permute.xlu0 %6244
      %6246 = vset.pattern.permute.xlu0 13
      %6247 = vperm.xlu0 %6246, %v229
      %v6248 = vpop.permute.xlu0 %6247
      %6249 = vset.pattern.permute.xlu0 13
      %6250 = vperm.xlu0 %6249, %v230
      %v6251 = vpop.permute.xlu0 %6250
      %6252 = vset.pattern.permute.xlu0 13
      %6253 = vperm.xlu0 %6252, %v231
      %v6254 = vpop.permute.xlu0 %6253
      %6255 = vset.pattern.permute.xlu0 13
      %6256 = vperm.xlu0 %6255, %v232
      %v6257 = vpop.permute.xlu0 %6256
      %6258 = vset.pattern.permute.xlu0 13
      %6259 = vperm.xlu0 %6258, %v233
      %v6260 = vpop.permute.xlu0 %6259
      %6261 = vset.pattern.permute.xlu0 13
      %6262 = vperm.xlu0 %6261, %v234
      %v6263 = vpop.permute.xlu0 %6262
      %6264 = vset.pattern.permute.xlu0 13
      %6265 = vperm.xlu0 %6264, %v235
      %v6266 = vpop.permute.xlu0 %6265
      %6267 = vset.pattern.permute.xlu0 13
      %6268 = vperm.xlu0 %6267, %v236
      %v6269 = vpop.permute.xlu0 %6268
      %6270 = vset.pattern.permute.xlu0 13
      %6271 = vperm.xlu0 %6270, %v237
      %v6272 = vpop.permute.xlu0 %6271
      %6273 = vset.pattern.permute.xlu0 13
      %6274 = vperm.xlu0 %6273, %v238
      %v6275 = vpop.permute.xlu0 %6274
      %6276 = vset.pattern.permute.xlu0 13
      %6277 = vperm.xlu0 %6276, %v239
      %v6278 = vpop.permute.xlu0 %6277
      %6279 = vset.pattern.permute.xlu0 13
      %6280 = vperm.xlu0 %6279, %v240
      %v6281 = vpop.permute.xlu0 %6280
      %6282 = vset.pattern.permute.xlu0 13
      %6283 = vperm.xlu0 %6282, %v241
      %v6284 = vpop.permute.xlu0 %6283
      %6285 = vset.pattern.permute.xlu0 13
      %6286 = vperm.xlu0 %6285, %v242
      %v6287 = vpop.permute.xlu0 %6286
      %6288 = vset.pattern.permute.xlu0 13
      %6289 = vperm.xlu0 %6288, %v243
      %v6290 = vpop.permute.xlu0 %6289
      %6291 = vset.pattern.permute.xlu0 13
      %6292 = vperm.xlu0 %6291, %v244
      %v6293 = vpop.permute.xlu0 %6292
      %6294 = vset.pattern.permute.xlu0 13
      %6295 = vperm.xlu0 %6294, %v245
      %v6296 = vpop.permute.xlu0 %6295
      %6297 = vset.pattern.permute.xlu0 13
      %6298 = vperm.xlu0 %6297, %v246
      %v6299 = vpop.permute.xlu0 %6298
      %6300 = vset.pattern.permute.xlu0 13
      %6301 = vperm.xlu0 %6300, %v247
      %v6302 = vpop.permute.xlu0 %6301
      %6303 = vset.pattern.permute.xlu0 13
      %6304 = vperm.xlu0 %6303, %v248
      %v6305 = vpop.permute.xlu0 %6304
      %6306 = vset.pattern.permute.xlu0 13
      %6307 = vperm.xlu0 %6306, %v249
      %v6308 = vpop.permute.xlu0 %6307
      %6309 = vset.pattern.permute.xlu0 13
      %6310 = vperm.xlu0 %6309, %v250
      %v6311 = vpop.permute.xlu0 %6310
      %6312 = vset.pattern.permute.xlu0 13
      %6313 = vperm.xlu0 %6312, %v251
      %v6314 = vpop.permute.xlu0 %6313
      %6315 = vset.pattern.permute.xlu0 13
      %6316 = vperm.xlu0 %6315, %v252
      %v6317 = vpop.permute.xlu0 %6316
      %6318 = vset.pattern.permute.xlu0 13
      %6319 = vperm.xlu0 %6318, %v253
      %v6320 = vpop.permute.xlu0 %6319
      %6321 = vset.pattern.permute.xlu0 13
      %6322 = vperm.xlu0 %6321, %v254
      %v6323 = vpop.permute.xlu0 %6322
      %6324 = vset.pattern.permute.xlu0 13
      %6325 = vperm.xlu0 %6324, %v255
      %v6326 = vpop.permute.xlu0 %6325
      %6327 = vset.pattern.permute.xlu0 13
      %6328 = vperm.xlu0 %6327, %v256
      %v6329 = vpop.permute.xlu0 %6328
      %6330 = vset.pattern.permute.xlu0 13
      %6331 = vperm.xlu0 %6330, %v257
      %v6332 = vpop.permute.xlu0 %6331
      %6333 = vset.pattern.permute.xlu0 13
      %6334 = vperm.xlu0 %6333, %v258
      %v6335 = vpop.permute.xlu0 %6334
      %6336 = vset.pattern.permute.xlu0 13
      %6337 = vperm.xlu0 %6336, %v259
      %v6338 = vpop.permute.xlu0 %6337
      %vm6339 = vcmp.eq.s32.totalorder %v261, %v6245
      %vm6340 = vcmp.eq.s32.totalorder %v261, %v6248
      %vm6341 = vcmp.eq.s32.totalorder %v261, %v6251
      %vm6342 = vcmp.eq.s32.totalorder %v261, %v6254
      %vm6343 = vcmp.eq.s32.totalorder %v261, %v6257
      %vm6344 = vcmp.eq.s32.totalorder %v261, %v6260
      %vm6345 = vcmp.eq.s32.totalorder %v261, %v6263
      %vm6346 = vcmp.eq.s32.totalorder %v261, %v6266
      %vm6347 = vcmp.eq.s32.totalorder %v261, %v6269
      %vm6348 = vcmp.eq.s32.totalorder %v261, %v6272
      %vm6349 = vcmp.eq.s32.totalorder %v261, %v6275
      %vm6350 = vcmp.eq.s32.totalorder %v261, %v6278
      %vm6351 = vcmp.eq.s32.totalorder %v261, %v6281
      %vm6352 = vcmp.eq.s32.totalorder %v261, %v6284
      %vm6353 = vcmp.eq.s32.totalorder %v261, %v6287
      %vm6354 = vcmp.eq.s32.totalorder %v261, %v6290
      %vm6355 = vcmp.eq.s32.totalorder %v261, %v6293
      %vm6356 = vcmp.eq.s32.totalorder %v261, %v6296
      %vm6357 = vcmp.eq.s32.totalorder %v261, %v6299
      %vm6358 = vcmp.eq.s32.totalorder %v261, %v6302
      %vm6359 = vcmp.eq.s32.totalorder %v261, %v6305
      %vm6360 = vcmp.eq.s32.totalorder %v261, %v6308
      %vm6361 = vcmp.eq.s32.totalorder %v261, %v6311
      %vm6362 = vcmp.eq.s32.totalorder %v261, %v6314
      %vm6363 = vcmp.eq.s32.totalorder %v261, %v6317
      %vm6364 = vcmp.eq.s32.totalorder %v261, %v6320
      %vm6365 = vcmp.eq.s32.totalorder %v261, %v6323
      %vm6366 = vcmp.eq.s32.totalorder %v261, %v6326
      %vm6367 = vcmp.eq.s32.totalorder %v261, %v6329
      %vm6368 = vcmp.eq.s32.totalorder %v261, %v6332
      %vm6369 = vcmp.eq.s32.totalorder %v261, %v6335
      %vm6370 = vcmp.eq.s32.totalorder %v261, %v6338
      %v6371 = vsel %vm6339, 1, 0
      %v6372 = vsel %vm6340, 1, 0
      %v6373 = vsel %vm6341, 1, 0
      %v6374 = vsel %vm6342, 1, 0
      %v6375 = vsel %vm6343, 1, 0
      %v6376 = vsel %vm6344, 1, 0
      %v6377 = vsel %vm6345, 1, 0
      %v6378 = vsel %vm6346, 1, 0
      %v6379 = vsel %vm6347, 1, 0
      %v6380 = vsel %vm6348, 1, 0
      %v6381 = vsel %vm6349, 1, 0
      %v6382 = vsel %vm6350, 1, 0
      %v6383 = vsel %vm6351, 1, 0
      %v6384 = vsel %vm6352, 1, 0
      %v6385 = vsel %vm6353, 1, 0
      %v6386 = vsel %vm6354, 1, 0
      %v6387 = vsel %vm6355, 1, 0
      %v6388 = vsel %vm6356, 1, 0
      %v6389 = vsel %vm6357, 1, 0
      %v6390 = vsel %vm6358, 1, 0
      %v6391 = vsel %vm6359, 1, 0
      %v6392 = vsel %vm6360, 1, 0
      %v6393 = vsel %vm6361, 1, 0
      %v6394 = vsel %vm6362, 1, 0
      %v6395 = vsel %vm6363, 1, 0
      %v6396 = vsel %vm6364, 1, 0
      %v6397 = vsel %vm6365, 1, 0
      %v6398 = vsel %vm6366, 1, 0
      %v6399 = vsel %vm6367, 1, 0
      %v6400 = vsel %vm6368, 1, 0
      %v6401 = vsel %vm6369, 1, 0
      %v6402 = vsel %vm6370, 1, 0
      %v6403 = vcvt.s32.f32 %v6371
      %v6404 = vcvt.s32.f32 %v6372
      %v6405 = vcvt.s32.f32 %v6373
      %v6406 = vcvt.s32.f32 %v6374
      %v6407 = vcvt.s32.f32 %v6375
      %v6408 = vcvt.s32.f32 %v6376
      %v6409 = vcvt.s32.f32 %v6377
      %v6410 = vcvt.s32.f32 %v6378
      %v6411 = vcvt.s32.f32 %v6379
      %v6412 = vcvt.s32.f32 %v6380
      %v6413 = vcvt.s32.f32 %v6381
      %v6414 = vcvt.s32.f32 %v6382
      %v6415 = vcvt.s32.f32 %v6383
      %v6416 = vcvt.s32.f32 %v6384
      %v6417 = vcvt.s32.f32 %v6385
      %v6418 = vcvt.s32.f32 %v6386
      %v6419 = vcvt.s32.f32 %v6387
      %v6420 = vcvt.s32.f32 %v6388
      %v6421 = vcvt.s32.f32 %v6389
      %v6422 = vcvt.s32.f32 %v6390
      %v6423 = vcvt.s32.f32 %v6391
      %v6424 = vcvt.s32.f32 %v6392
      %v6425 = vcvt.s32.f32 %v6393
      %v6426 = vcvt.s32.f32 %v6394
      %v6427 = vcvt.s32.f32 %v6395
      %v6428 = vcvt.s32.f32 %v6396
      %v6429 = vcvt.s32.f32 %v6397
      %v6430 = vcvt.s32.f32 %v6398
      %v6431 = vcvt.s32.f32 %v6399
      %v6432 = vcvt.s32.f32 %v6400
      %v6433 = vcvt.s32.f32 %v6401
      %v6434 = vcvt.s32.f32 %v6402
      %v6435 = vld [vmem:[%s1 + $0x680] sm:$0xff]
      %v6436 = vld [vmem:[%s1 + $0x688] sm:$0xff]
      %v6437 = vld [vmem:[%s1 + $0x690] sm:$0xff]
      %v6438 = vld [vmem:[%s1 + $0x698] sm:$0xff]
      %v6439 = vld [vmem:[%s1 + $0x6a0] sm:$0xff]
      %v6440 = vld [vmem:[%s1 + $0x6a8] sm:$0xff]
      %v6441 = vld [vmem:[%s1 + $0x6b0] sm:$0xff]
      %v6442 = vld [vmem:[%s1 + $0x6b8] sm:$0xff]
      %v6443 = vld [vmem:[%s1 + $0x6c0] sm:$0xff]
      %v6444 = vld [vmem:[%s1 + $0x6c8] sm:$0xff]
      %v6445 = vld [vmem:[%s1 + $0x6d0] sm:$0xff]
      %v6446 = vld [vmem:[%s1 + $0x6d8] sm:$0xff]
      %v6447 = vld [vmem:[%s1 + $0x6e0] sm:$0xff]
      %v6448 = vld [vmem:[%s1 + $0x6e8] sm:$0xff]
      %v6449 = vld [vmem:[%s1 + $0x6f0] sm:$0xff]
      %v6450 = vld [vmem:[%s1 + $0x6f8] sm:$0xff]
      %6451 = vmatprep.subr.mxu0 0.0
      %6452 = vmatpush1.msra.mxu0 %v6435
      %6453 = vmatprep.subr.mxu0 0.0
      %6454 = vmatpush1.msra.mxu0 %v6436
      %6455 = vmatprep.subr.mxu0 0.0
      %6456 = vmatpush1.msra.mxu0 %v6437
      %6457 = vmatprep.subr.mxu0 0.0
      %6458 = vmatpush1.msra.mxu0 %v6438
      %6459 = vmatprep.subr.mxu0 0.0
      %6460 = vmatpush1.msra.mxu0 %v6439
      %6461 = vmatprep.subr.mxu0 0.0
      %6462 = vmatpush1.msra.mxu0 %v6440
      %6463 = vmatprep.subr.mxu0 0.0
      %6464 = vmatpush1.msra.mxu0 %v6441
      %6465 = vmatprep.subr.mxu0 0.0
      %6466 = vmatpush1.msra.mxu0 %v6442
      %6467 = vmatprep.subr.mxu0 0.0
      %6468 = vmatpush1.msra.mxu0 %v6443
      %6469 = vmatprep.subr.mxu0 0.0
      %6470 = vmatpush1.msra.mxu0 %v6444
      %6471 = vmatprep.subr.mxu0 0.0
      %6472 = vmatpush1.msra.mxu0 %v6445
      %6473 = vmatprep.subr.mxu0 0.0
      %6474 = vmatpush1.msra.mxu0 %v6446
      %6475 = vmatprep.subr.mxu0 0.0
      %6476 = vmatpush1.msra.mxu0 %v6447
      %6477 = vmatprep.subr.mxu0 0.0
      %6478 = vmatpush1.msra.mxu0 %v6448
      %6479 = vmatprep.subr.mxu0 0.0
      %6480 = vmatpush1.msra.mxu0 %v6449
      %6481 = vmatprep.subr.mxu0 0.0
      %6482 = vmatpush1.msra.mxu0 %v6450
      %6483 = vmatprep.subr.mxu0 0.0
      %6484 = vmatpush1.msra.mxu0 0.0
      %6485 = vmatprep.subr.mxu0 0.0
      %6486 = vmatpush1.msra.mxu0 0.0
      %6487 = vmatprep.subr.mxu0 0.0
      %6488 = vmatpush1.msra.mxu0 0.0
      %6489 = vmatprep.subr.mxu0 0.0
      %6490 = vmatpush1.msra.mxu0 0.0
      %6491 = vmatprep.subr.mxu0 0.0
      %6492 = vmatpush1.msra.mxu0 0.0
      %6493 = vmatprep.subr.mxu0 0.0
      %6494 = vmatpush1.msra.mxu0 0.0
      %6495 = vmatprep.subr.mxu0 0.0
      %6496 = vmatpush1.msra.mxu0 0.0
      %6497 = vmatprep.subr.mxu0 0.0
      %6498 = vmatpush1.msra.mxu0 0.0
      %6499 = vmatprep.subr.mxu0 0.0
      %6500 = vmatpush1.msra.mxu0 0.0
      %6501 = vmatprep.subr.mxu0 0.0
      %6502 = vmatpush1.msra.mxu0 0.0
      %6503 = vmatprep.subr.mxu0 0.0
      %6504 = vmatpush1.msra.mxu0 0.0
      %6505 = vmatprep.subr.mxu0 0.0
      %6506 = vmatpush1.msra.mxu0 0.0
      %6507 = vmatprep.subr.mxu0 0.0
      %6508 = vmatpush1.msra.mxu0 0.0
      %6509 = vmatprep.subr.mxu0 0.0
      %6510 = vmatpush1.msra.mxu0 0.0
      %6511 = vmatprep.subr.mxu0 0.0
      %6512 = vmatpush1.msra.mxu0 0.0
      %6513 = vmatprep.subr.mxu0 0.0
      %6514 = vmatpush1.msra.mxu0 0.0
      %6515 = vmatprep.mubr.f32.mxu0 0.0
      %6516 = vmatmul.mubr.f32.gmra.mrb[0].mxu0 %v6403
      %v6517 = vpop.f32.mrb[0].mxu0
      %v6518 = vadd.f32 0.0, %v6517
      %v6519 = vpop.f32.mrb[0].mxu0
      %6520 = vmatprep.mubr.f32.mxu0 0.0
      %6521 = vmatmul.mubr.f32.gmra.mrb[0].mxu0 %v6404
      %v6522 = vpop.f32.mrb[0].mxu0
      %v6523 = vadd.f32 0.0, %v6522
      %v6524 = vpop.f32.mrb[0].mxu0
      %6525 = vmatprep.mubr.f32.mxu0 0.0
      %6526 = vmatmul.mubr.f32.gmra.mrb[0].mxu0 %v6405
      %v6527 = vpop.f32.mrb[0].mxu0
      %v6528 = vadd.f32 0.0, %v6527
      %v6529 = vpop.f32.mrb[0].mxu0
      %6530 = vmatprep.mubr.f32.mxu0 0.0
      %6531 = vmatmul.mubr.f32.gmra.mrb[0].mxu0 %v6406
      %v6532 = vpop.f32.mrb[0].mxu0
      %v6533 = vadd.f32 0.0, %v6532
      %v6534 = vpop.f32.mrb[0].mxu0
      %6535 = vmatprep.mubr.f32.mxu0 0.0
      %6536 = vmatmul.mubr.f32.gmra.mrb[0].mxu0 %v6407
      %v6537 = vpop.f32.mrb[0].mxu0
      %v6538 = vadd.f32 0.0, %v6537
      %v6539 = vpop.f32.mrb[0].mxu0
      %6540 = vmatprep.mubr.f32.mxu0 0.0
      %6541 = vmatmul.mubr.f32.gmra.mrb[0].mxu0 %v6408
      %v6542 = vpop.f32.mrb[0].mxu0
      %v6543 = vadd.f32 0.0, %v6542
      %v6544 = vpop.f32.mrb[0].mxu0
      %6545 = vmatprep.mubr.f32.mxu0 0.0
      %6546 = vmatmul.mubr.f32.gmra.mrb[0].mxu0 %v6409
      %v6547 = vpop.f32.mrb[0].mxu0
      %v6548 = vadd.f32 0.0, %v6547
      %v6549 = vpop.f32.mrb[0].mxu0
      %6550 = vmatprep.mubr.f32.mxu0 0.0
      %6551 = vmatmul.mubr.f32.gmra.mrb[0].mxu0 %v6410
      %v6552 = vpop.f32.mrb[0].mxu0
      %v6553 = vadd.f32 0.0, %v6552
      %v6554 = vpop.f32.mrb[0].mxu0
      %6555 = vmatprep.mubr.f32.mxu0 0.0
      %6556 = vmatmul.mubr.f32.gmra.mrb[0].mxu0 %v6411
      %v6557 = vpop.f32.mrb[0].mxu0
      %v6558 = vadd.f32 0.0, %v6557
      %v6559 = vpop.f32.mrb[0].mxu0
      %6560 = vmatprep.mubr.f32.mxu0 0.0
      %6561 = vmatmul.mubr.f32.gmra.mrb[0].mxu0 %v6412
      %v6562 = vpop.f32.mrb[0].mxu0
      %v6563 = vadd.f32 0.0, %v6562
      %v6564 = vpop.f32.mrb[0].mxu0
      %6565 = vmatprep.mubr.f32.mxu0 0.0
      %6566 = vmatmul.mubr.f32.gmra.mrb[0].mxu0 %v6413
      %v6567 = vpop.f32.mrb[0].mxu0
      %v6568 = vadd.f32 0.0, %v6567
      %v6569 = vpop.f32.mrb[0].mxu0
      %6570 = vmatprep.mubr.f32.mxu0 0.0
      %6571 = vmatmul.mubr.f32.gmra.mrb[0].mxu0 %v6414
      %v6572 = vpop.f32.mrb[0].mxu0
      %v6573 = vadd.f32 0.0, %v6572
      %v6574 = vpop.f32.mrb[0].mxu0
      %6575 = vmatprep.mubr.f32.mxu0 0.0
      %6576 = vmatmul.mubr.f32.gmra.mrb[0].mxu0 %v6415
      %v6577 = vpop.f32.mrb[0].mxu0
      %v6578 = vadd.f32 0.0, %v6577
      %v6579 = vpop.f32.mrb[0].mxu0
      %6580 = vmatprep.mubr.f32.mxu0 0.0
      %6581 = vmatmul.mubr.f32.gmra.mrb[0].mxu0 %v6416
      %v6582 = vpop.f32.mrb[0].mxu0
      %v6583 = vadd.f32 0.0, %v6582
      %v6584 = vpop.f32.mrb[0].mxu0
      %6585 = vmatprep.mubr.f32.mxu0 0.0
      %6586 = vmatmul.mubr.f32.gmra.mrb[0].mxu0 %v6417
      %v6587 = vpop.f32.mrb[0].mxu0
      %v6588 = vadd.f32 0.0, %v6587
      %v6589 = vpop.f32.mrb[0].mxu0
      %6590 = vmatprep.mubr.f32.mxu0 0.0
      %6591 = vmatmul.mubr.f32.gmra.mrb[0].mxu0 %v6418
      %v6592 = vpop.f32.mrb[0].mxu0
      %v6593 = vadd.f32 0.0, %v6592
      %v6594 = vpop.f32.mrb[0].mxu0
      %6595 = vmatprep.mubr.f32.mxu0 0.0
      %6596 = vmatmul.mubr.f32.gmra.mrb[0].mxu0 %v6419
      %v6597 = vpop.f32.mrb[0].mxu0
      %v6598 = vadd.f32 0.0, %v6597
      %v6599 = vpop.f32.mrb[0].mxu0
      %6600 = vmatprep.mubr.f32.mxu0 0.0
      %6601 = vmatmul.mubr.f32.gmra.mrb[0].mxu0 %v6420
      %v6602 = vpop.f32.mrb[0].mxu0
      %v6603 = vadd.f32 0.0, %v6602
      %v6604 = vpop.f32.mrb[0].mxu0
      %6605 = vmatprep.mubr.f32.mxu0 0.0
      %6606 = vmatmul.mubr.f32.gmra.mrb[0].mxu0 %v6421
      %v6607 = vpop.f32.mrb[0].mxu0
      %v6608 = vadd.f32 0.0, %v6607
      %v6609 = vpop.f32.mrb[0].mxu0
      %6610 = vmatprep.mubr.f32.mxu0 0.0
      %6611 = vmatmul.mubr.f32.gmra.mrb[0].mxu0 %v6422
      %v6612 = vpop.f32.mrb[0].mxu0
      %v6613 = vadd.f32 0.0, %v6612
      %v6614 = vpop.f32.mrb[0].mxu0
      %6615 = vmatprep.mubr.f32.mxu0 0.0
      %6616 = vmatmul.mubr.f32.gmra.mrb[0].mxu0 %v6423
      %v6617 = vpop.f32.mrb[0].mxu0
      %v6618 = vadd.f32 0.0, %v6617
      %v6619 = vpop.f32.mrb[0].mxu0
      %6620 = vmatprep.mubr.f32.mxu0 0.0
      %6621 = vmatmul.mubr.f32.gmra.mrb[0].mxu0 %v6424
      %v6622 = vpop.f32.mrb[0].mxu0
      %v6623 = vadd.f32 0.0, %v6622
      %v6624 = vpop.f32.mrb[0].mxu0
      %6625 = vmatprep.mubr.f32.mxu0 0.0
      %6626 = vmatmul.mubr.f32.gmra.mrb[0].mxu0 %v6425
      %v6627 = vpop.f32.mrb[0].mxu0
      %v6628 = vadd.f32 0.0, %v6627
      %v6629 = vpop.f32.mrb[0].mxu0
      %6630 = vmatprep.mubr.f32.mxu0 0.0
      %6631 = vmatmul.mubr.f32.gmra.mrb[0].mxu0 %v6426
      %v6632 = vpop.f32.mrb[0].mxu0
      %v6633 = vadd.f32 0.0, %v6632
      %v6634 = vpop.f32.mrb[0].mxu0
      %6635 = vmatprep.mubr.f32.mxu0 0.0
      %6636 = vmatmul.mubr.f32.gmra.mrb[0].mxu0 %v6427
      %v6637 = vpop.f32.mrb[0].mxu0
      %v6638 = vadd.f32 0.0, %v6637
      %v6639 = vpop.f32.mrb[0].mxu0
      %6640 = vmatprep.mubr.f32.mxu0 0.0
      %6641 = vmatmul.mubr.f32.gmra.mrb[0].mxu0 %v6428
      %v6642 = vpop.f32.mrb[0].mxu0
      %v6643 = vadd.f32 0.0, %v6642
      %v6644 = vpop.f32.mrb[0].mxu0
      %6645 = vmatprep.mubr.f32.mxu0 0.0
      %6646 = vmatmul.mubr.f32.gmra.mrb[0].mxu0 %v6429
      %v6647 = vpop.f32.mrb[0].mxu0
      %v6648 = vadd.f32 0.0, %v6647
      %v6649 = vpop.f32.mrb[0].mxu0
      %6650 = vmatprep.mubr.f32.mxu0 0.0
      %6651 = vmatmul.mubr.f32.gmra.mrb[0].mxu0 %v6430
      %v6652 = vpop.f32.mrb[0].mxu0
      %v6653 = vadd.f32 0.0, %v6652
      %v6654 = vpop.f32.mrb[0].mxu0
      %6655 = vmatprep.mubr.f32.mxu0 0.0
      %6656 = vmatmul.mubr.f32.gmra.mrb[0].mxu0 %v6431
      %v6657 = vpop.f32.mrb[0].mxu0
      %v6658 = vadd.f32 0.0, %v6657
      %v6659 = vpop.f32.mrb[0].mxu0
      %6660 = vmatprep.mubr.f32.mxu0 0.0
      %6661 = vmatmul.mubr.f32.gmra.mrb[0].mxu0 %v6432
      %v6662 = vpop.f32.mrb[0].mxu0
      %v6663 = vadd.f32 0.0, %v6662
      %v6664 = vpop.f32.mrb[0].mxu0
      %6665 = vmatprep.mubr.f32.mxu0 0.0
      %6666 = vmatmul.mubr.f32.gmra.mrb[0].mxu0 %v6433
      %v6667 = vpop.f32.mrb[0].mxu0
      %v6668 = vadd.f32 0.0, %v6667
      %v6669 = vpop.f32.mrb[0].mxu0
      %6670 = vmatprep.mubr.f32.mxu0 0.0
      %6671 = vmatmul.mubr.f32.gmra.mrb[0].mxu0 %v6434
      %v6672 = vpop.f32.mrb[0].mxu0
      %v6673 = vadd.f32 0.0, %v6672
      %v6674 = vpop.f32.mrb[0].mxu0
      %6675 = vdwg.mxu0
      %v6676 = vadd.f32 %v6211, %v6518
      %v6677 = vadd.f32 %v6212, %v6523
      %v6678 = vadd.f32 %v6213, %v6528
      %v6679 = vadd.f32 %v6214, %v6533
      %v6680 = vadd.f32 %v6215, %v6538
      %v6681 = vadd.f32 %v6216, %v6543
      %v6682 = vadd.f32 %v6217, %v6548
      %v6683 = vadd.f32 %v6218, %v6553
      %v6684 = vadd.f32 %v6219, %v6558
      %v6685 = vadd.f32 %v6220, %v6563
      %v6686 = vadd.f32 %v6221, %v6568
      %v6687 = vadd.f32 %v6222, %v6573
      %v6688 = vadd.f32 %v6223, %v6578
      %v6689 = vadd.f32 %v6224, %v6583
      %v6690 = vadd.f32 %v6225, %v6588
      %v6691 = vadd.f32 %v6226, %v6593
      %v6692 = vadd.f32 %v6227, %v6598
      %v6693 = vadd.f32 %v6228, %v6603
      %v6694 = vadd.f32 %v6229, %v6608
      %v6695 = vadd.f32 %v6230, %v6613
      %v6696 = vadd.f32 %v6231, %v6618
      %v6697 = vadd.f32 %v6232, %v6623
      %v6698 = vadd.f32 %v6233, %v6628
      %v6699 = vadd.f32 %v6234, %v6633
      %v6700 = vadd.f32 %v6235, %v6638
      %v6701 = vadd.f32 %v6236, %v6643
      %v6702 = vadd.f32 %v6237, %v6648
      %v6703 = vadd.f32 %v6238, %v6653
      %v6704 = vadd.f32 %v6239, %v6658
      %v6705 = vadd.f32 %v6240, %v6663
      %v6706 = vadd.f32 %v6241, %v6668
      %v6707 = vadd.f32 %v6242, %v6673
      %6708 = vset.pattern.permute.xlu0 14
      %6709 = vperm.xlu0 %6708, %v228
      %v6710 = vpop.permute.xlu0 %6709
      %6711 = vset.pattern.permute.xlu0 14
      %6712 = vperm.xlu0 %6711, %v229
      %v6713 = vpop.permute.xlu0 %6712
      %6714 = vset.pattern.permute.xlu0 14
      %6715 = vperm.xlu0 %6714, %v230
      %v6716 = vpop.permute.xlu0 %6715
      %6717 = vset.pattern.permute.xlu0 14
      %6718 = vperm.xlu0 %6717, %v231
      %v6719 = vpop.permute.xlu0 %6718
      %6720 = vset.pattern.permute.xlu0 14
      %6721 = vperm.xlu0 %6720, %v232
      %v6722 = vpop.permute.xlu0 %6721
      %6723 = vset.pattern.permute.xlu0 14
      %6724 = vperm.xlu0 %6723, %v233
      %v6725 = vpop.permute.xlu0 %6724
      %6726 = vset.pattern.permute.xlu0 14
      %6727 = vperm.xlu0 %6726, %v234
      %v6728 = vpop.permute.xlu0 %6727
      %6729 = vset.pattern.permute.xlu0 14
      %6730 = vperm.xlu0 %6729, %v235
      %v6731 = vpop.permute.xlu0 %6730
      %6732 = vset.pattern.permute.xlu0 14
      %6733 = vperm.xlu0 %6732, %v236
      %v6734 = vpop.permute.xlu0 %6733
      %6735 = vset.pattern.permute.xlu0 14
      %6736 = vperm.xlu0 %6735, %v237
      %v6737 = vpop.permute.xlu0 %6736
      %6738 = vset.pattern.permute.xlu0 14
      %6739 = vperm.xlu0 %6738, %v238
      %v6740 = vpop.permute.xlu0 %6739
      %6741 = vset.pattern.permute.xlu0 14
      %6742 = vperm.xlu0 %6741, %v239
      %v6743 = vpop.permute.xlu0 %6742
      %6744 = vset.pattern.permute.xlu0 14
      %6745 = vperm.xlu0 %6744, %v240
      %v6746 = vpop.permute.xlu0 %6745
      %6747 = vset.pattern.permute.xlu0 14
      %6748 = vperm.xlu0 %6747, %v241
      %v6749 = vpop.permute.xlu0 %6748
      %6750 = vset.pattern.permute.xlu0 14
      %6751 = vperm.xlu0 %6750, %v242
      %v6752 = vpop.permute.xlu0 %6751
      %6753 = vset.pattern.permute.xlu0 14
      %6754 = vperm.xlu0 %6753, %v243
      %v6755 = vpop.permute.xlu0 %6754
      %6756 = vset.pattern.permute.xlu0 14
      %6757 = vperm.xlu0 %6756, %v244
      %v6758 = vpop.permute.xlu0 %6757
      %6759 = vset.pattern.permute.xlu0 14
      %6760 = vperm.xlu0 %6759, %v245
      %v6761 = vpop.permute.xlu0 %6760
      %6762 = vset.pattern.permute.xlu0 14
      %6763 = vperm.xlu0 %6762, %v246
      %v6764 = vpop.permute.xlu0 %6763
      %6765 = vset.pattern.permute.xlu0 14
      %6766 = vperm.xlu0 %6765, %v247
      %v6767 = vpop.permute.xlu0 %6766
      %6768 = vset.pattern.permute.xlu0 14
      %6769 = vperm.xlu0 %6768, %v248
      %v6770 = vpop.permute.xlu0 %6769
      %6771 = vset.pattern.permute.xlu0 14
      %6772 = vperm.xlu0 %6771, %v249
      %v6773 = vpop.permute.xlu0 %6772
      %6774 = vset.pattern.permute.xlu0 14
      %6775 = vperm.xlu0 %6774, %v250
      %v6776 = vpop.permute.xlu0 %6775
      %6777 = vset.pattern.permute.xlu0 14
      %6778 = vperm.xlu0 %6777, %v251
      %v6779 = vpop.permute.xlu0 %6778
      %6780 = vset.pattern.permute.xlu0 14
      %6781 = vperm.xlu0 %6780, %v252
      %v6782 = vpop.permute.xlu0 %6781
      %6783 = vset.pattern.permute.xlu0 14
      %6784 = vperm.xlu0 %6783, %v253
      %v6785 = vpop.permute.xlu0 %6784
      %6786 = vset.pattern.permute.xlu0 14
      %6787 = vperm.xlu0 %6786, %v254
      %v6788 = vpop.permute.xlu0 %6787
      %6789 = vset.pattern.permute.xlu0 14
      %6790 = vperm.xlu0 %6789, %v255
      %v6791 = vpop.permute.xlu0 %6790
      %6792 = vset.pattern.permute.xlu0 14
      %6793 = vperm.xlu0 %6792, %v256
      %v6794 = vpop.permute.xlu0 %6793
      %6795 = vset.pattern.permute.xlu0 14
      %6796 = vperm.xlu0 %6795, %v257
      %v6797 = vpop.permute.xlu0 %6796
      %6798 = vset.pattern.permute.xlu0 14
      %6799 = vperm.xlu0 %6798, %v258
      %v6800 = vpop.permute.xlu0 %6799
      %6801 = vset.pattern.permute.xlu0 14
      %6802 = vperm.xlu0 %6801, %v259
      %v6803 = vpop.permute.xlu0 %6802
      %vm6804 = vcmp.eq.s32.totalorder %v261, %v6710
      %vm6805 = vcmp.eq.s32.totalorder %v261, %v6713
      %vm6806 = vcmp.eq.s32.totalorder %v261, %v6716
      %vm6807 = vcmp.eq.s32.totalorder %v261, %v6719
      %vm6808 = vcmp.eq.s32.totalorder %v261, %v6722
      %vm6809 = vcmp.eq.s32.totalorder %v261, %v6725
      %vm6810 = vcmp.eq.s32.totalorder %v261, %v6728
      %vm6811 = vcmp.eq.s32.totalorder %v261, %v6731
      %vm6812 = vcmp.eq.s32.totalorder %v261, %v6734
      %vm6813 = vcmp.eq.s32.totalorder %v261, %v6737
      %vm6814 = vcmp.eq.s32.totalorder %v261, %v6740
      %vm6815 = vcmp.eq.s32.totalorder %v261, %v6743
      %vm6816 = vcmp.eq.s32.totalorder %v261, %v6746
      %vm6817 = vcmp.eq.s32.totalorder %v261, %v6749
      %vm6818 = vcmp.eq.s32.totalorder %v261, %v6752
      %vm6819 = vcmp.eq.s32.totalorder %v261, %v6755
      %vm6820 = vcmp.eq.s32.totalorder %v261, %v6758
      %vm6821 = vcmp.eq.s32.totalorder %v261, %v6761
      %vm6822 = vcmp.eq.s32.totalorder %v261, %v6764
      %vm6823 = vcmp.eq.s32.totalorder %v261, %v6767
      %vm6824 = vcmp.eq.s32.totalorder %v261, %v6770
      %vm6825 = vcmp.eq.s32.totalorder %v261, %v6773
      %vm6826 = vcmp.eq.s32.totalorder %v261, %v6776
      %vm6827 = vcmp.eq.s32.totalorder %v261, %v6779
      %vm6828 = vcmp.eq.s32.totalorder %v261, %v6782
      %vm6829 = vcmp.eq.s32.totalorder %v261, %v6785
      %vm6830 = vcmp.eq.s32.totalorder %v261, %v6788
      %vm6831 = vcmp.eq.s32.totalorder %v261, %v6791
      %vm6832 = vcmp.eq.s32.totalorder %v261, %v6794
      %vm6833 = vcmp.eq.s32.totalorder %v261, %v6797
      %vm6834 = vcmp.eq.s32.totalorder %v261, %v6800
      %vm6835 = vcmp.eq.s32.totalorder %v261, %v6803
      %v6836 = vsel %vm6804, 1, 0
      %v6837 = vsel %vm6805, 1, 0
      %v6838 = vsel %vm6806, 1, 0
      %v6839 = vsel %vm6807, 1, 0
      %v6840 = vsel %vm6808, 1, 0
      %v6841 = vsel %vm6809, 1, 0
      %v6842 = vsel %vm6810, 1, 0
      %v6843 = vsel %vm6811, 1, 0
      %v6844 = vsel %vm6812, 1, 0
      %v6845 = vsel %vm6813, 1, 0
      %v6846 = vsel %vm6814, 1, 0
      %v6847 = vsel %vm6815, 1, 0
      %v6848 = vsel %vm6816, 1, 0
      %v6849 = vsel %vm6817, 1, 0
      %v6850 = vsel %vm6818, 1, 0
      %v6851 = vsel %vm6819, 1, 0
      %v6852 = vsel %vm6820, 1, 0
      %v6853 = vsel %vm6821, 1, 0
      %v6854 = vsel %vm6822, 1, 0
      %v6855 = vsel %vm6823, 1, 0
      %v6856 = vsel %vm6824, 1, 0
      %v6857 = vsel %vm6825, 1, 0
      %v6858 = vsel %vm6826, 1, 0
      %v6859 = vsel %vm6827, 1, 0
      %v6860 = vsel %vm6828, 1, 0
      %v6861 = vsel %vm6829, 1, 0
      %v6862 = vsel %vm6830, 1, 0
      %v6863 = vsel %vm6831, 1, 0
      %v6864 = vsel %vm6832, 1, 0
      %v6865 = vsel %vm6833, 1, 0
      %v6866 = vsel %vm6834, 1, 0
      %v6867 = vsel %vm6835, 1, 0
      %v6868 = vcvt.s32.f32 %v6836
      %v6869 = vcvt.s32.f32 %v6837
      %v6870 = vcvt.s32.f32 %v6838
      %v6871 = vcvt.s32.f32 %v6839
      %v6872 = vcvt.s32.f32 %v6840
      %v6873 = vcvt.s32.f32 %v6841
      %v6874 = vcvt.s32.f32 %v6842
      %v6875 = vcvt.s32.f32 %v6843
      %v6876 = vcvt.s32.f32 %v6844
      %v6877 = vcvt.s32.f32 %v6845
      %v6878 = vcvt.s32.f32 %v6846
      %v6879 = vcvt.s32.f32 %v6847
      %v6880 = vcvt.s32.f32 %v6848
      %v6881 = vcvt.s32.f32 %v6849
      %v6882 = vcvt.s32.f32 %v6850
      %v6883 = vcvt.s32.f32 %v6851
      %v6884 = vcvt.s32.f32 %v6852
      %v6885 = vcvt.s32.f32 %v6853
      %v6886 = vcvt.s32.f32 %v6854
      %v6887 = vcvt.s32.f32 %v6855
      %v6888 = vcvt.s32.f32 %v6856
      %v6889 = vcvt.s32.f32 %v6857
      %v6890 = vcvt.s32.f32 %v6858
      %v6891 = vcvt.s32.f32 %v6859
      %v6892 = vcvt.s32.f32 %v6860
      %v6893 = vcvt.s32.f32 %v6861
      %v6894 = vcvt.s32.f32 %v6862
      %v6895 = vcvt.s32.f32 %v6863
      %v6896 = vcvt.s32.f32 %v6864
      %v6897 = vcvt.s32.f32 %v6865
      %v6898 = vcvt.s32.f32 %v6866
      %v6899 = vcvt.s32.f32 %v6867
      %v6900 = vld [vmem:[%s1 + $0x700] sm:$0xff]
      %v6901 = vld [vmem:[%s1 + $0x708] sm:$0xff]
      %v6902 = vld [vmem:[%s1 + $0x710] sm:$0xff]
      %v6903 = vld [vmem:[%s1 + $0x718] sm:$0xff]
      %v6904 = vld [vmem:[%s1 + $0x720] sm:$0xff]
      %v6905 = vld [vmem:[%s1 + $0x728] sm:$0xff]
      %v6906 = vld [vmem:[%s1 + $0x730] sm:$0xff]
      %v6907 = vld [vmem:[%s1 + $0x738] sm:$0xff]
      %v6908 = vld [vmem:[%s1 + $0x740] sm:$0xff]
      %v6909 = vld [vmem:[%s1 + $0x748] sm:$0xff]
      %v6910 = vld [vmem:[%s1 + $0x750] sm:$0xff]
      %v6911 = vld [vmem:[%s1 + $0x758] sm:$0xff]
      %v6912 = vld [vmem:[%s1 + $0x760] sm:$0xff]
      %v6913 = vld [vmem:[%s1 + $0x768] sm:$0xff]
      %v6914 = vld [vmem:[%s1 + $0x770] sm:$0xff]
      %v6915 = vld [vmem:[%s1 + $0x778] sm:$0xff]
      %6916 = vmatprep.subr.mxu0 0.0
      %6917 = vmatpush1.msra.mxu0 %v6900
      %6918 = vmatprep.subr.mxu0 0.0
      %6919 = vmatpush1.msra.mxu0 %v6901
      %6920 = vmatprep.subr.mxu0 0.0
      %6921 = vmatpush1.msra.mxu0 %v6902
      %6922 = vmatprep.subr.mxu0 0.0
      %6923 = vmatpush1.msra.mxu0 %v6903
      %6924 = vmatprep.subr.mxu0 0.0
      %6925 = vmatpush1.msra.mxu0 %v6904
      %6926 = vmatprep.subr.mxu0 0.0
      %6927 = vmatpush1.msra.mxu0 %v6905
      %6928 = vmatprep.subr.mxu0 0.0
      %6929 = vmatpush1.msra.mxu0 %v6906
      %6930 = vmatprep.subr.mxu0 0.0
      %6931 = vmatpush1.msra.mxu0 %v6907
      %6932 = vmatprep.subr.mxu0 0.0
      %6933 = vmatpush1.msra.mxu0 %v6908
      %6934 = vmatprep.subr.mxu0 0.0
      %6935 = vmatpush1.msra.mxu0 %v6909
      %6936 = vmatprep.subr.mxu0 0.0
      %6937 = vmatpush1.msra.mxu0 %v6910
      %6938 = vmatprep.subr.mxu0 0.0
      %6939 = vmatpush1.msra.mxu0 %v6911
      %6940 = vmatprep.subr.mxu0 0.0
      %6941 = vmatpush1.msra.mxu0 %v6912
      %6942 = vmatprep.subr.mxu0 0.0
      %6943 = vmatpush1.msra.mxu0 %v6913
      %6944 = vmatprep.subr.mxu0 0.0
      %6945 = vmatpush1.msra.mxu0 %v6914
      %6946 = vmatprep.subr.mxu0 0.0
      %6947 = vmatpush1.msra.mxu0 %v6915
      %6948 = vmatprep.subr.mxu0 0.0
      %6949 = vmatpush1.msra.mxu0 0.0
      %6950 = vmatprep.subr.mxu0 0.0
      %6951 = vmatpush1.msra.mxu0 0.0
      %6952 = vmatprep.subr.mxu0 0.0
      %6953 = vmatpush1.msra.mxu0 0.0
      %6954 = vmatprep.subr.mxu0 0.0
      %6955 = vmatpush1.msra.mxu0 0.0
      %6956 = vmatprep.subr.mxu0 0.0
      %6957 = vmatpush1.msra.mxu0 0.0
      %6958 = vmatprep.subr.mxu0 0.0
      %6959 = vmatpush1.msra.mxu0 0.0
      %6960 = vmatprep.subr.mxu0 0.0
      %6961 = vmatpush1.msra.mxu0 0.0
      %6962 = vmatprep.subr.mxu0 0.0
      %6963 = vmatpush1.msra.mxu0 0.0
      %6964 = vmatprep.subr.mxu0 0.0
      %6965 = vmatpush1.msra.mxu0 0.0
      %6966 = vmatprep.subr.mxu0 0.0
      %6967 = vmatpush1.msra.mxu0 0.0
      %6968 = vmatprep.subr.mxu0 0.0
      %6969 = vmatpush1.msra.mxu0 0.0
      %6970 = vmatprep.subr.mxu0 0.0
      %6971 = vmatpush1.msra.mxu0 0.0
      %6972 = vmatprep.subr.mxu0 0.0
      %6973 = vmatpush1.msra.mxu0 0.0
      %6974 = vmatprep.subr.mxu0 0.0
      %6975 = vmatpush1.msra.mxu0 0.0
      %6976 = vmatprep.subr.mxu0 0.0
      %6977 = vmatpush1.msra.mxu0 0.0
      %6978 = vmatprep.subr.mxu0 0.0
      %6979 = vmatpush1.msra.mxu0 0.0
      %6980 = vmatprep.mubr.f32.mxu0 0.0
      %6981 = vmatmul.mubr.f32.gmra.mrb[0].mxu0 %v6868
      %v6982 = vpop.f32.mrb[0].mxu0
      %v6983 = vadd.f32 0.0, %v6982
      %v6984 = vpop.f32.mrb[0].mxu0
      %6985 = vmatprep.mubr.f32.mxu0 0.0
      %6986 = vmatmul.mubr.f32.gmra.mrb[0].mxu0 %v6869
      %v6987 = vpop.f32.mrb[0].mxu0
      %v6988 = vadd.f32 0.0, %v6987
      %v6989 = vpop.f32.mrb[0].mxu0
      %6990 = vmatprep.mubr.f32.mxu0 0.0
      %6991 = vmatmul.mubr.f32.gmra.mrb[0].mxu0 %v6870
      %v6992 = vpop.f32.mrb[0].mxu0
      %v6993 = vadd.f32 0.0, %v6992
      %v6994 = vpop.f32.mrb[0].mxu0
      %6995 = vmatprep.mubr.f32.mxu0 0.0
      %6996 = vmatmul.mubr.f32.gmra.mrb[0].mxu0 %v6871
      %v6997 = vpop.f32.mrb[0].mxu0
      %v6998 = vadd.f32 0.0, %v6997
      %v6999 = vpop.f32.mrb[0].mxu0
      %7000 = vmatprep.mubr.f32.mxu0 0.0
      %7001 = vmatmul.mubr.f32.gmra.mrb[0].mxu0 %v6872
      %v7002 = vpop.f32.mrb[0].mxu0
      %v7003 = vadd.f32 0.0, %v7002
      %v7004 = vpop.f32.mrb[0].mxu0
      %7005 = vmatprep.mubr.f32.mxu0 0.0
      %7006 = vmatmul.mubr.f32.gmra.mrb[0].mxu0 %v6873
      %v7007 = vpop.f32.mrb[0].mxu0
      %v7008 = vadd.f32 0.0, %v7007
      %v7009 = vpop.f32.mrb[0].mxu0
      %7010 = vmatprep.mubr.f32.mxu0 0.0
      %7011 = vmatmul.mubr.f32.gmra.mrb[0].mxu0 %v6874
      %v7012 = vpop.f32.mrb[0].mxu0
      %v7013 = vadd.f32 0.0, %v7012
      %v7014 = vpop.f32.mrb[0].mxu0
      %7015 = vmatprep.mubr.f32.mxu0 0.0
      %7016 = vmatmul.mubr.f32.gmra.mrb[0].mxu0 %v6875
      %v7017 = vpop.f32.mrb[0].mxu0
      %v7018 = vadd.f32 0.0, %v7017
      %v7019 = vpop.f32.mrb[0].mxu0
      %7020 = vmatprep.mubr.f32.mxu0 0.0
      %7021 = vmatmul.mubr.f32.gmra.mrb[0].mxu0 %v6876
      %v7022 = vpop.f32.mrb[0].mxu0
      %v7023 = vadd.f32 0.0, %v7022
      %v7024 = vpop.f32.mrb[0].mxu0
      %7025 = vmatprep.mubr.f32.mxu0 0.0
      %7026 = vmatmul.mubr.f32.gmra.mrb[0].mxu0 %v6877
      %v7027 = vpop.f32.mrb[0].mxu0
      %v7028 = vadd.f32 0.0, %v7027
      %v7029 = vpop.f32.mrb[0].mxu0
      %7030 = vmatprep.mubr.f32.mxu0 0.0
      %7031 = vmatmul.mubr.f32.gmra.mrb[0].mxu0 %v6878
      %v7032 = vpop.f32.mrb[0].mxu0
      %v7033 = vadd.f32 0.0, %v7032
      %v7034 = vpop.f32.mrb[0].mxu0
      %7035 = vmatprep.mubr.f32.mxu0 0.0
      %7036 = vmatmul.mubr.f32.gmra.mrb[0].mxu0 %v6879
      %v7037 = vpop.f32.mrb[0].mxu0
      %v7038 = vadd.f32 0.0, %v7037
      %v7039 = vpop.f32.mrb[0].mxu0
      %7040 = vmatprep.mubr.f32.mxu0 0.0
      %7041 = vmatmul.mubr.f32.gmra.mrb[0].mxu0 %v6880
      %v7042 = vpop.f32.mrb[0].mxu0
      %v7043 = vadd.f32 0.0, %v7042
      %v7044 = vpop.f32.mrb[0].mxu0
      %7045 = vmatprep.mubr.f32.mxu0 0.0
      %7046 = vmatmul.mubr.f32.gmra.mrb[0].mxu0 %v6881
      %v7047 = vpop.f32.mrb[0].mxu0
      %v7048 = vadd.f32 0.0, %v7047
      %v7049 = vpop.f32.mrb[0].mxu0
      %7050 = vmatprep.mubr.f32.mxu0 0.0
      %7051 = vmatmul.mubr.f32.gmra.mrb[0].mxu0 %v6882
      %v7052 = vpop.f32.mrb[0].mxu0
      %v7053 = vadd.f32 0.0, %v7052
      %v7054 = vpop.f32.mrb[0].mxu0
      %7055 = vmatprep.mubr.f32.mxu0 0.0
      %7056 = vmatmul.mubr.f32.gmra.mrb[0].mxu0 %v6883
      %v7057 = vpop.f32.mrb[0].mxu0
      %v7058 = vadd.f32 0.0, %v7057
      %v7059 = vpop.f32.mrb[0].mxu0
      %7060 = vmatprep.mubr.f32.mxu0 0.0
      %7061 = vmatmul.mubr.f32.gmra.mrb[0].mxu0 %v6884
      %v7062 = vpop.f32.mrb[0].mxu0
      %v7063 = vadd.f32 0.0, %v7062
      %v7064 = vpop.f32.mrb[0].mxu0
      %7065 = vmatprep.mubr.f32.mxu0 0.0
      %7066 = vmatmul.mubr.f32.gmra.mrb[0].mxu0 %v6885
      %v7067 = vpop.f32.mrb[0].mxu0
      %v7068 = vadd.f32 0.0, %v7067
      %v7069 = vpop.f32.mrb[0].mxu0
      %7070 = vmatprep.mubr.f32.mxu0 0.0
      %7071 = vmatmul.mubr.f32.gmra.mrb[0].mxu0 %v6886
      %v7072 = vpop.f32.mrb[0].mxu0
      %v7073 = vadd.f32 0.0, %v7072
      %v7074 = vpop.f32.mrb[0].mxu0
      %7075 = vmatprep.mubr.f32.mxu0 0.0
      %7076 = vmatmul.mubr.f32.gmra.mrb[0].mxu0 %v6887
      %v7077 = vpop.f32.mrb[0].mxu0
      %v7078 = vadd.f32 0.0, %v7077
      %v7079 = vpop.f32.mrb[0].mxu0
      %7080 = vmatprep.mubr.f32.mxu0 0.0
      %7081 = vmatmul.mubr.f32.gmra.mrb[0].mxu0 %v6888
      %v7082 = vpop.f32.mrb[0].mxu0
      %v7083 = vadd.f32 0.0, %v7082
      %v7084 = vpop.f32.mrb[0].mxu0
      %7085 = vmatprep.mubr.f32.mxu0 0.0
      %7086 = vmatmul.mubr.f32.gmra.mrb[0].mxu0 %v6889
      %v7087 = vpop.f32.mrb[0].mxu0
      %v7088 = vadd.f32 0.0, %v7087
      %v7089 = vpop.f32.mrb[0].mxu0
      %7090 = vmatprep.mubr.f32.mxu0 0.0
      %7091 = vmatmul.mubr.f32.gmra.mrb[0].mxu0 %v6890
      %v7092 = vpop.f32.mrb[0].mxu0
      %v7093 = vadd.f32 0.0, %v7092
      %v7094 = vpop.f32.mrb[0].mxu0
      %7095 = vmatprep.mubr.f32.mxu0 0.0
      %7096 = vmatmul.mubr.f32.gmra.mrb[0].mxu0 %v6891
      %v7097 = vpop.f32.mrb[0].mxu0
      %v7098 = vadd.f32 0.0, %v7097
      %v7099 = vpop.f32.mrb[0].mxu0
      %7100 = vmatprep.mubr.f32.mxu0 0.0
      %7101 = vmatmul.mubr.f32.gmra.mrb[0].mxu0 %v6892
      %v7102 = vpop.f32.mrb[0].mxu0
      %v7103 = vadd.f32 0.0, %v7102
      %v7104 = vpop.f32.mrb[0].mxu0
      %7105 = vmatprep.mubr.f32.mxu0 0.0
      %7106 = vmatmul.mubr.f32.gmra.mrb[0].mxu0 %v6893
      %v7107 = vpop.f32.mrb[0].mxu0
      %v7108 = vadd.f32 0.0, %v7107
      %v7109 = vpop.f32.mrb[0].mxu0
      %7110 = vmatprep.mubr.f32.mxu0 0.0
      %7111 = vmatmul.mubr.f32.gmra.mrb[0].mxu0 %v6894
      %v7112 = vpop.f32.mrb[0].mxu0
      %v7113 = vadd.f32 0.0, %v7112
      %v7114 = vpop.f32.mrb[0].mxu0
      %7115 = vmatprep.mubr.f32.mxu0 0.0
      %7116 = vmatmul.mubr.f32.gmra.mrb[0].mxu0 %v6895
      %v7117 = vpop.f32.mrb[0].mxu0
      %v7118 = vadd.f32 0.0, %v7117
      %v7119 = vpop.f32.mrb[0].mxu0
      %7120 = vmatprep.mubr.f32.mxu0 0.0
      %7121 = vmatmul.mubr.f32.gmra.mrb[0].mxu0 %v6896
      %v7122 = vpop.f32.mrb[0].mxu0
      %v7123 = vadd.f32 0.0, %v7122
      %v7124 = vpop.f32.mrb[0].mxu0
      %7125 = vmatprep.mubr.f32.mxu0 0.0
      %7126 = vmatmul.mubr.f32.gmra.mrb[0].mxu0 %v6897
      %v7127 = vpop.f32.mrb[0].mxu0
      %v7128 = vadd.f32 0.0, %v7127
      %v7129 = vpop.f32.mrb[0].mxu0
      %7130 = vmatprep.mubr.f32.mxu0 0.0
      %7131 = vmatmul.mubr.f32.gmra.mrb[0].mxu0 %v6898
      %v7132 = vpop.f32.mrb[0].mxu0
      %v7133 = vadd.f32 0.0, %v7132
      %v7134 = vpop.f32.mrb[0].mxu0
      %7135 = vmatprep.mubr.f32.mxu0 0.0
      %7136 = vmatmul.mubr.f32.gmra.mrb[0].mxu0 %v6899
      %v7137 = vpop.f32.mrb[0].mxu0
      %v7138 = vadd.f32 0.0, %v7137
      %v7139 = vpop.f32.mrb[0].mxu0
      %7140 = vdwg.mxu0
      %v7141 = vadd.f32 %v6676, %v6983
      %v7142 = vadd.f32 %v6677, %v6988
      %v7143 = vadd.f32 %v6678, %v6993
      %v7144 = vadd.f32 %v6679, %v6998
      %v7145 = vadd.f32 %v6680, %v7003
      %v7146 = vadd.f32 %v6681, %v7008
      %v7147 = vadd.f32 %v6682, %v7013
      %v7148 = vadd.f32 %v6683, %v7018
      %v7149 = vadd.f32 %v6684, %v7023
      %v7150 = vadd.f32 %v6685, %v7028
      %v7151 = vadd.f32 %v6686, %v7033
      %v7152 = vadd.f32 %v6687, %v7038
      %v7153 = vadd.f32 %v6688, %v7043
      %v7154 = vadd.f32 %v6689, %v7048
      %v7155 = vadd.f32 %v6690, %v7053
      %v7156 = vadd.f32 %v6691, %v7058
      %v7157 = vadd.f32 %v6692, %v7063
      %v7158 = vadd.f32 %v6693, %v7068
      %v7159 = vadd.f32 %v6694, %v7073
      %v7160 = vadd.f32 %v6695, %v7078
      %v7161 = vadd.f32 %v6696, %v7083
      %v7162 = vadd.f32 %v6697, %v7088
      %v7163 = vadd.f32 %v6698, %v7093
      %v7164 = vadd.f32 %v6699, %v7098
      %v7165 = vadd.f32 %v6700, %v7103
      %v7166 = vadd.f32 %v6701, %v7108
      %v7167 = vadd.f32 %v6702, %v7113
      %v7168 = vadd.f32 %v6703, %v7118
      %v7169 = vadd.f32 %v6704, %v7123
      %v7170 = vadd.f32 %v6705, %v7128
      %v7171 = vadd.f32 %v6706, %v7133
      %v7172 = vadd.f32 %v6707, %v7138
      %v7173 = vld [vmem:[%s2] sm:$0x1]
      %v7175 = vlaneseq
      %v7176 = vshrl.u32 %v7175, 7
      %v7177 = vsub.s32 0, %v7176
      %v7178 = vrot.slane %v7173, %v7177
      %v7180 = vadd.f32 %v7141, %v7178
      %v7181 = vadd.f32 %v7142, %v7178
      %v7182 = vadd.f32 %v7143, %v7178
      %v7183 = vadd.f32 %v7144, %v7178
      %v7184 = vadd.f32 %v7145, %v7178
      %v7185 = vadd.f32 %v7146, %v7178
      %v7186 = vadd.f32 %v7147, %v7178
      %v7187 = vadd.f32 %v7148, %v7178
      %v7188 = vadd.f32 %v7149, %v7178
      %v7189 = vadd.f32 %v7150, %v7178
      %v7190 = vadd.f32 %v7151, %v7178
      %v7191 = vadd.f32 %v7152, %v7178
      %v7192 = vadd.f32 %v7153, %v7178
      %v7193 = vadd.f32 %v7154, %v7178
      %v7194 = vadd.f32 %v7155, %v7178
      %v7195 = vadd.f32 %v7156, %v7178
      %v7196 = vadd.f32 %v7157, %v7178
      %v7197 = vadd.f32 %v7158, %v7178
      %v7198 = vadd.f32 %v7159, %v7178
      %v7199 = vadd.f32 %v7160, %v7178
      %v7200 = vadd.f32 %v7161, %v7178
      %v7201 = vadd.f32 %v7162, %v7178
      %v7202 = vadd.f32 %v7163, %v7178
      %v7203 = vadd.f32 %v7164, %v7178
      %v7204 = vadd.f32 %v7165, %v7178
      %v7205 = vadd.f32 %v7166, %v7178
      %v7206 = vadd.f32 %v7167, %v7178
      %v7207 = vadd.f32 %v7168, %v7178
      %v7208 = vadd.f32 %v7169, %v7178
      %v7209 = vadd.f32 %v7170, %v7178
      %v7210 = vadd.f32 %v7171, %v7178
      %v7211 = vadd.f32 %v7172, %v7178
      %v7212 = vtanh.pop %v7180
      %v7213 = vtanh.pop %v7181
      %v7214 = vtanh.pop %v7182
      %v7215 = vtanh.pop %v7183
      %v7216 = vtanh.pop %v7184
      %v7217 = vtanh.pop %v7185
      %v7218 = vtanh.pop %v7186
      %v7219 = vtanh.pop %v7187
      %v7220 = vtanh.pop %v7188
      %v7221 = vtanh.pop %v7189
      %v7222 = vtanh.pop %v7190
      %v7223 = vtanh.pop %v7191
      %v7224 = vtanh.pop %v7192
      %v7225 = vtanh.pop %v7193
      %v7226 = vtanh.pop %v7194
      %v7227 = vtanh.pop %v7195
      %v7228 = vtanh.pop %v7196
      %v7229 = vtanh.pop %v7197
      %v7230 = vtanh.pop %v7198
      %v7231 = vtanh.pop %v7199
      %v7232 = vtanh.pop %v7200
      %v7233 = vtanh.pop %v7201
      %v7234 = vtanh.pop %v7202
      %v7235 = vtanh.pop %v7203
      %v7236 = vtanh.pop %v7204
      %v7237 = vtanh.pop %v7205
      %v7238 = vtanh.pop %v7206
      %v7239 = vtanh.pop %v7207
      %v7240 = vtanh.pop %v7208
      %v7241 = vtanh.pop %v7209
      %v7242 = vtanh.pop %v7210
      %v7243 = vtanh.pop %v7211
      %v7244 = vld [vmem:[%s3] sm:$0xff]
      %v7245 = vld [vmem:[%s3 + $0x8] sm:$0xff]
      %v7246 = vld [vmem:[%s3 + $0x10] sm:$0xff]
      %v7247 = vld [vmem:[%s3 + $0x18] sm:$0xff]
      %v7248 = vld [vmem:[%s3 + $0x20] sm:$0xff]
      %v7249 = vld [vmem:[%s3 + $0x28] sm:$0xff]
      %v7250 = vld [vmem:[%s3 + $0x30] sm:$0xff]
      %v7251 = vld [vmem:[%s3 + $0x38] sm:$0xff]
      %v7252 = vld [vmem:[%s3 + $0x40] sm:$0xff]
      %v7253 = vld [vmem:[%s3 + $0x48] sm:$0xff]
      %v7254 = vld [vmem:[%s3 + $0x50] sm:$0xff]
      %v7255 = vld [vmem:[%s3 + $0x58] sm:$0xff]
      %v7256 = vld [vmem:[%s3 + $0x60] sm:$0xff]
      %v7257 = vld [vmem:[%s3 + $0x68] sm:$0xff]
      %v7258 = vld [vmem:[%s3 + $0x70] sm:$0xff]
      %v7259 = vld [vmem:[%s3 + $0x78] sm:$0xff]
      %v7260 = vld [vmem:[%s4] sm:$0x1]
      %v7262 = vlaneseq
      %v7263 = vshrl.u32 %v7262, 7
      %v7264 = vsub.s32 0, %v7263
      %v7265 = vrot.slane %v7260, %v7264
      %7267 = vmatprep.subr.mxu0 0.0
      %7268 = vmatpush1.msra.mxu0 %v7244
      %7269 = vmatprep.subr.mxu0 0.0
      %7270 = vmatpush1.msra.mxu0 %v7245
      %7271 = vmatprep.subr.mxu0 0.0
      %7272 = vmatpush1.msra.mxu0 %v7246
      %7273 = vmatprep.subr.mxu0 0.0
      %7274 = vmatpush1.msra.mxu0 %v7247
      %7275 = vmatprep.subr.mxu0 0.0
      %7276 = vmatpush1.msra.mxu0 %v7248
      %7277 = vmatprep.subr.mxu0 0.0
      %7278 = vmatpush1.msra.mxu0 %v7249
      %7279 = vmatprep.subr.mxu0 0.0
      %7280 = vmatpush1.msra.mxu0 %v7250
      %7281 = vmatprep.subr.mxu0 0.0
      %7282 = vmatpush1.msra.mxu0 %v7251
      %7283 = vmatprep.subr.mxu0 0.0
      %7284 = vmatpush1.msra.mxu0 %v7252
      %7285 = vmatprep.subr.mxu0 0.0
      %7286 = vmatpush1.msra.mxu0 %v7253
      %7287 = vmatprep.subr.mxu0 0.0
      %7288 = vmatpush1.msra.mxu0 %v7254
      %7289 = vmatprep.subr.mxu0 0.0
      %7290 = vmatpush1.msra.mxu0 %v7255
      %7291 = vmatprep.subr.mxu0 0.0
      %7292 = vmatpush1.msra.mxu0 %v7256
      %7293 = vmatprep.subr.mxu0 0.0
      %7294 = vmatpush1.msra.mxu0 %v7257
      %7295 = vmatprep.subr.mxu0 0.0
      %7296 = vmatpush1.msra.mxu0 %v7258
      %7297 = vmatprep.subr.mxu0 0.0
      %7298 = vmatpush1.msra.mxu0 %v7259
      %7299 = vmatprep.subr.mxu0 0.0
      %7300 = vmatpush1.msra.mxu0 0.0
      %7301 = vmatprep.subr.mxu0 0.0
      %7302 = vmatpush1.msra.mxu0 0.0
      %7303 = vmatprep.subr.mxu0 0.0
      %7304 = vmatpush1.msra.mxu0 0.0
      %7305 = vmatprep.subr.mxu0 0.0
      %7306 = vmatpush1.msra.mxu0 0.0
      %7307 = vmatprep.subr.mxu0 0.0
      %7308 = vmatpush1.msra.mxu0 0.0
      %7309 = vmatprep.subr.mxu0 0.0
      %7310 = vmatpush1.msra.mxu0 0.0
      %7311 = vmatprep.subr.mxu0 0.0
      %7312 = vmatpush1.msra.mxu0 0.0
      %7313 = vmatprep.subr.mxu0 0.0
      %7314 = vmatpush1.msra.mxu0 0.0
      %7315 = vmatprep.subr.mxu0 0.0
      %7316 = vmatpush1.msra.mxu0 0.0
      %7317 = vmatprep.subr.mxu0 0.0
      %7318 = vmatpush1.msra.mxu0 0.0
      %7319 = vmatprep.subr.mxu0 0.0
      %7320 = vmatpush1.msra.mxu0 0.0
      %7321 = vmatprep.subr.mxu0 0.0
      %7322 = vmatpush1.msra.mxu0 0.0
      %7323 = vmatprep.subr.mxu0 0.0
      %7324 = vmatpush1.msra.mxu0 0.0
      %7325 = vmatprep.subr.mxu0 0.0
      %7326 = vmatpush1.msra.mxu0 0.0
      %7327 = vmatprep.subr.mxu0 0.0
      %7328 = vmatpush1.msra.mxu0 0.0
      %7329 = vmatprep.subr.mxu0 0.0
      %7330 = vmatpush1.msra.mxu0 0.0
      %7331 = vmatprep.mubr.f32.mxu0 0.0
      %7332 = vmatmul.mubr.f32.gmra.mrb[0].mxu0 %v7212
      %v7333 = vpop.f32.mrb[0].mxu0
      %v7334 = vadd.f32 %v7265, %v7333
      %v7335 = vpop.f32.mrb[0].mxu0
      %7336 = vmatprep.mubr.f32.mxu0 0.0
      %7337 = vmatmul.mubr.f32.gmra.mrb[0].mxu0 %v7213
      %v7338 = vpop.f32.mrb[0].mxu0
      %v7339 = vadd.f32 %v7265, %v7338
      %v7340 = vpop.f32.mrb[0].mxu0
      %7341 = vmatprep.mubr.f32.mxu0 0.0
      %7342 = vmatmul.mubr.f32.gmra.mrb[0].mxu0 %v7214
      %v7343 = vpop.f32.mrb[0].mxu0
      %v7344 = vadd.f32 %v7265, %v7343
      %v7345 = vpop.f32.mrb[0].mxu0
      %7346 = vmatprep.mubr.f32.mxu0 0.0
      %7347 = vmatmul.mubr.f32.gmra.mrb[0].mxu0 %v7215
      %v7348 = vpop.f32.mrb[0].mxu0
      %v7349 = vadd.f32 %v7265, %v7348
      %v7350 = vpop.f32.mrb[0].mxu0
      %7351 = vmatprep.mubr.f32.mxu0 0.0
      %7352 = vmatmul.mubr.f32.gmra.mrb[0].mxu0 %v7216
      %v7353 = vpop.f32.mrb[0].mxu0
      %v7354 = vadd.f32 %v7265, %v7353
      %v7355 = vpop.f32.mrb[0].mxu0
      %7356 = vmatprep.mubr.f32.mxu0 0.0
      %7357 = vmatmul.mubr.f32.gmra.mrb[0].mxu0 %v7217
      %v7358 = vpop.f32.mrb[0].mxu0
      %v7359 = vadd.f32 %v7265, %v7358
      %v7360 = vpop.f32.mrb[0].mxu0
      %7361 = vmatprep.mubr.f32.mxu0 0.0
      %7362 = vmatmul.mubr.f32.gmra.mrb[0].mxu0 %v7218
      %v7363 = vpop.f32.mrb[0].mxu0
      %v7364 = vadd.f32 %v7265, %v7363
      %v7365 = vpop.f32.mrb[0].mxu0
      %7366 = vmatprep.mubr.f32.mxu0 0.0
      %7367 = vmatmul.mubr.f32.gmra.mrb[0].mxu0 %v7219
      %v7368 = vpop.f32.mrb[0].mxu0
      %v7369 = vadd.f32 %v7265, %v7368
      %v7370 = vpop.f32.mrb[0].mxu0
      %7371 = vmatprep.mubr.f32.mxu0 0.0
      %7372 = vmatmul.mubr.f32.gmra.mrb[0].mxu0 %v7220
      %v7373 = vpop.f32.mrb[0].mxu0
      %v7374 = vadd.f32 %v7265, %v7373
      %v7375 = vpop.f32.mrb[0].mxu0
      %7376 = vmatprep.mubr.f32.mxu0 0.0
      %7377 = vmatmul.mubr.f32.gmra.mrb[0].mxu0 %v7221
      %v7378 = vpop.f32.mrb[0].mxu0
      %v7379 = vadd.f32 %v7265, %v7378
      %v7380 = vpop.f32.mrb[0].mxu0
      %7381 = vmatprep.mubr.f32.mxu0 0.0
      %7382 = vmatmul.mubr.f32.gmra.mrb[0].mxu0 %v7222
      %v7383 = vpop.f32.mrb[0].mxu0
      %v7384 = vadd.f32 %v7265, %v7383
      %v7385 = vpop.f32.mrb[0].mxu0
      %7386 = vmatprep.mubr.f32.mxu0 0.0
      %7387 = vmatmul.mubr.f32.gmra.mrb[0].mxu0 %v7223
      %v7388 = vpop.f32.mrb[0].mxu0
      %v7389 = vadd.f32 %v7265, %v7388
      %v7390 = vpop.f32.mrb[0].mxu0
      %7391 = vmatprep.mubr.f32.mxu0 0.0
      %7392 = vmatmul.mubr.f32.gmra.mrb[0].mxu0 %v7224
      %v7393 = vpop.f32.mrb[0].mxu0
      %v7394 = vadd.f32 %v7265, %v7393
      %v7395 = vpop.f32.mrb[0].mxu0
      %7396 = vmatprep.mubr.f32.mxu0 0.0
      %7397 = vmatmul.mubr.f32.gmra.mrb[0].mxu0 %v7225
      %v7398 = vpop.f32.mrb[0].mxu0
      %v7399 = vadd.f32 %v7265, %v7398
      %v7400 = vpop.f32.mrb[0].mxu0
      %7401 = vmatprep.mubr.f32.mxu0 0.0
      %7402 = vmatmul.mubr.f32.gmra.mrb[0].mxu0 %v7226
      %v7403 = vpop.f32.mrb[0].mxu0
      %v7404 = vadd.f32 %v7265, %v7403
      %v7405 = vpop.f32.mrb[0].mxu0
      %7406 = vmatprep.mubr.f32.mxu0 0.0
      %7407 = vmatmul.mubr.f32.gmra.mrb[0].mxu0 %v7227
      %v7408 = vpop.f32.mrb[0].mxu0
      %v7409 = vadd.f32 %v7265, %v7408
      %v7410 = vpop.f32.mrb[0].mxu0
      %7411 = vmatprep.mubr.f32.mxu0 0.0
      %7412 = vmatmul.mubr.f32.gmra.mrb[0].mxu0 %v7228
      %v7413 = vpop.f32.mrb[0].mxu0
      %v7414 = vadd.f32 %v7265, %v7413
      %v7415 = vpop.f32.mrb[0].mxu0
      %7416 = vmatprep.mubr.f32.mxu0 0.0
      %7417 = vmatmul.mubr.f32.gmra.mrb[0].mxu0 %v7229
      %v7418 = vpop.f32.mrb[0].mxu0
      %v7419 = vadd.f32 %v7265, %v7418
      %v7420 = vpop.f32.mrb[0].mxu0
      %7421 = vmatprep.mubr.f32.mxu0 0.0
      %7422 = vmatmul.mubr.f32.gmra.mrb[0].mxu0 %v7230
      %v7423 = vpop.f32.mrb[0].mxu0
      %v7424 = vadd.f32 %v7265, %v7423
      %v7425 = vpop.f32.mrb[0].mxu0
      %7426 = vmatprep.mubr.f32.mxu0 0.0
      %7427 = vmatmul.mubr.f32.gmra.mrb[0].mxu0 %v7231
      %v7428 = vpop.f32.mrb[0].mxu0
      %v7429 = vadd.f32 %v7265, %v7428
      %v7430 = vpop.f32.mrb[0].mxu0
      %7431 = vmatprep.mubr.f32.mxu0 0.0
      %7432 = vmatmul.mubr.f32.gmra.mrb[0].mxu0 %v7232
      %v7433 = vpop.f32.mrb[0].mxu0
      %v7434 = vadd.f32 %v7265, %v7433
      %v7435 = vpop.f32.mrb[0].mxu0
      %7436 = vmatprep.mubr.f32.mxu0 0.0
      %7437 = vmatmul.mubr.f32.gmra.mrb[0].mxu0 %v7233
      %v7438 = vpop.f32.mrb[0].mxu0
      %v7439 = vadd.f32 %v7265, %v7438
      %v7440 = vpop.f32.mrb[0].mxu0
      %7441 = vmatprep.mubr.f32.mxu0 0.0
      %7442 = vmatmul.mubr.f32.gmra.mrb[0].mxu0 %v7234
      %v7443 = vpop.f32.mrb[0].mxu0
      %v7444 = vadd.f32 %v7265, %v7443
      %v7445 = vpop.f32.mrb[0].mxu0
      %7446 = vmatprep.mubr.f32.mxu0 0.0
      %7447 = vmatmul.mubr.f32.gmra.mrb[0].mxu0 %v7235
      %v7448 = vpop.f32.mrb[0].mxu0
      %v7449 = vadd.f32 %v7265, %v7448
      %v7450 = vpop.f32.mrb[0].mxu0
      %7451 = vmatprep.mubr.f32.mxu0 0.0
      %7452 = vmatmul.mubr.f32.gmra.mrb[0].mxu0 %v7236
      %v7453 = vpop.f32.mrb[0].mxu0
      %v7454 = vadd.f32 %v7265, %v7453
      %v7455 = vpop.f32.mrb[0].mxu0
      %7456 = vmatprep.mubr.f32.mxu0 0.0
      %7457 = vmatmul.mubr.f32.gmra.mrb[0].mxu0 %v7237
      %v7458 = vpop.f32.mrb[0].mxu0
      %v7459 = vadd.f32 %v7265, %v7458
      %v7460 = vpop.f32.mrb[0].mxu0
      %7461 = vmatprep.mubr.f32.mxu0 0.0
      %7462 = vmatmul.mubr.f32.gmra.mrb[0].mxu0 %v7238
      %v7463 = vpop.f32.mrb[0].mxu0
      %v7464 = vadd.f32 %v7265, %v7463
      %v7465 = vpop.f32.mrb[0].mxu0
      %7466 = vmatprep.mubr.f32.mxu0 0.0
      %7467 = vmatmul.mubr.f32.gmra.mrb[0].mxu0 %v7239
      %v7468 = vpop.f32.mrb[0].mxu0
      %v7469 = vadd.f32 %v7265, %v7468
      %v7470 = vpop.f32.mrb[0].mxu0
      %7471 = vmatprep.mubr.f32.mxu0 0.0
      %7472 = vmatmul.mubr.f32.gmra.mrb[0].mxu0 %v7240
      %v7473 = vpop.f32.mrb[0].mxu0
      %v7474 = vadd.f32 %v7265, %v7473
      %v7475 = vpop.f32.mrb[0].mxu0
      %7476 = vmatprep.mubr.f32.mxu0 0.0
      %7477 = vmatmul.mubr.f32.gmra.mrb[0].mxu0 %v7241
      %v7478 = vpop.f32.mrb[0].mxu0
      %v7479 = vadd.f32 %v7265, %v7478
      %v7480 = vpop.f32.mrb[0].mxu0
      %7481 = vmatprep.mubr.f32.mxu0 0.0
      %7482 = vmatmul.mubr.f32.gmra.mrb[0].mxu0 %v7242
      %v7483 = vpop.f32.mrb[0].mxu0
      %v7484 = vadd.f32 %v7265, %v7483
      %v7485 = vpop.f32.mrb[0].mxu0
      %7486 = vmatprep.mubr.f32.mxu0 0.0
      %7487 = vmatmul.mubr.f32.gmra.mrb[0].mxu0 %v7243
      %v7488 = vpop.f32.mrb[0].mxu0
      %v7489 = vadd.f32 %v7265, %v7488
      %v7490 = vpop.f32.mrb[0].mxu0
      %7491 = vdwg.mxu0
      %vm7492 = vcmask 64512
      %7493 = vst.msk [vmem:[%s226] sm:$0xff] %vm7492, %v7334
      %7494 = vst.msk [vmem:[%s226 + $0x8] sm:$0xff] %vm7492, %v7339
      %7495 = vst.msk [vmem:[%s226 + $0x10] sm:$0xff] %vm7492, %v7344
      %7496 = vst.msk [vmem:[%s226 + $0x18] sm:$0xff] %vm7492, %v7349
      %7497 = vst.msk [vmem:[%s226 + $0x20] sm:$0xff] %vm7492, %v7354
      %7498 = vst.msk [vmem:[%s226 + $0x28] sm:$0xff] %vm7492, %v7359
      %7499 = vst.msk [vmem:[%s226 + $0x30] sm:$0xff] %vm7492, %v7364
      %7500 = vst.msk [vmem:[%s226 + $0x38] sm:$0xff] %vm7492, %v7369
      %7501 = vst.msk [vmem:[%s226 + $0x40] sm:$0xff] %vm7492, %v7374
      %7502 = vst.msk [vmem:[%s226 + $0x48] sm:$0xff] %vm7492, %v7379
      %7503 = vst.msk [vmem:[%s226 + $0x50] sm:$0xff] %vm7492, %v7384
      %7504 = vst.msk [vmem:[%s226 + $0x58] sm:$0xff] %vm7492, %v7389
      %7505 = vst.msk [vmem:[%s226 + $0x60] sm:$0xff] %vm7492, %v7394
      %7506 = vst.msk [vmem:[%s226 + $0x68] sm:$0xff] %vm7492, %v7399
      %7507 = vst.msk [vmem:[%s226 + $0x70] sm:$0xff] %vm7492, %v7404
      %7508 = vst.msk [vmem:[%s226 + $0x78] sm:$0xff] %vm7492, %v7409
      %7509 = vst.msk [vmem:[%s226 + $0x80] sm:$0xff] %vm7492, %v7414
      %7510 = vst.msk [vmem:[%s226 + $0x88] sm:$0xff] %vm7492, %v7419
      %7511 = vst.msk [vmem:[%s226 + $0x90] sm:$0xff] %vm7492, %v7424
      %7512 = vst.msk [vmem:[%s226 + $0x98] sm:$0xff] %vm7492, %v7429
      %7513 = vst.msk [vmem:[%s226 + $0xa0] sm:$0xff] %vm7492, %v7434
      %7514 = vst.msk [vmem:[%s226 + $0xa8] sm:$0xff] %vm7492, %v7439
      %7515 = vst.msk [vmem:[%s226 + $0xb0] sm:$0xff] %vm7492, %v7444
      %7516 = vst.msk [vmem:[%s226 + $0xb8] sm:$0xff] %vm7492, %v7449
      %7517 = vst.msk [vmem:[%s226 + $0xc0] sm:$0xff] %vm7492, %v7454
      %7518 = vst.msk [vmem:[%s226 + $0xc8] sm:$0xff] %vm7492, %v7459
      %7519 = vst.msk [vmem:[%s226 + $0xd0] sm:$0xff] %vm7492, %v7464
      %7520 = vst.msk [vmem:[%s226 + $0xd8] sm:$0xff] %vm7492, %v7469
      %7521 = vst.msk [vmem:[%s226 + $0xe0] sm:$0xff] %vm7492, %v7474
      %7522 = vst.msk [vmem:[%s226 + $0xe8] sm:$0xff] %vm7492, %v7479
      %7523 = vst.msk [vmem:[%s226 + $0xf0] sm:$0xff] %vm7492, %v7484
      %7524 = vst.msk [vmem:[%s226 + $0xf8] sm:$0xff] %vm7492, %v7489
      %s7525 = smul.u32 32, %s16
      %p7526 = scmp.lt.s32.totalorder %s7525, 63
      %s7527 = scalar_select %p7526, %s7525, 63
      %s7528 = smul.addr %s7527, 8
      %s7529 = scalar_lea.vmem %s5, %s7528
      // Predicated region
      $region41: #{window_model_with_subwords_forward.1} parent=39 // pred_check
        %p7530 = pneg %p144
      $region42: #{window_model_with_subwords_forward.1} parent=39 // pred_check_branch
        %7532 = sbr.rel (%p7530) target = $region44
      $region43: #{window_model_with_subwords_forward.1} parent=39 // pred_region
        %s7533 = smul.u32 32, %s16
      $region44: #{window_model_with_subwords_forward.1} parent=39 // pred_fallthru
        _
    $region40: #{window_model_with_subwords_forward.1} parent=5 // pred_fallthru
      _
    %p7534 = scmp.le.s32.totalorder 2, %s11
    // Predicated region
    $region45: #{window_model_with_subwords_forward.1} parent=5 // pred_check
      %p7535 = pneg %p7534
    $region46: #{window_model_with_subwords_forward.1} parent=5 // pred_check_branch
      %7537 = sbr.rel (%p7535) target = $region48
    $region47: #{window_model_with_subwords_forward.1} parent=5 // pred_region
      %s7538 = ssub.s32 %s11, 2
      // Predicated region
      $region49: #{window_model_with_subwords_forward.1} parent=47 // pred_check
        %p7539 = pneg %p150
      $region50: #{window_model_with_subwords_forward.1} parent=47 // pred_check_branch
        %7541 = sbr.rel (%p7539) target = $region52
      $region51: #{window_model_with_subwords_forward.1} parent=47 // pred_region
        %s7542 = smul.u32 32, %s17
        %p7543 = scmp.lt.s32.totalorder %s7542, 63
        %s7544 = scalar_select %p7543, %s7542, 63
        %s7545 = smul.addr %s7544, 8
        %s7546 = scalar_lea.vmem %s5, %s7545
      $region52: #{window_model_with_subwords_forward.1} parent=47 // pred_fallthru
        _
    $region48: #{window_model_with_subwords_forward.1} parent=5 // pred_fallthru
      _
  $region6: #{window_model_with_subwords_forward.1} parent=0 // loop_footer
    %s15 = sadd.s32 1, %s11
  $region7: #{window_model_with_subwords_forward.1} parent=0 // loop_footer_branch
    %10 = sbr.rel target = $region3
  $region8: #{window_model_with_subwords_forward.1} parent=0 // loop_exit
    _

</llo_original>
